<compile_context>
chip_gen: v5e
topology: v5e:2x2
jax: 0.10.0
libtpu: 0.0.40
codegen_flags: <defaults>
</compile_context>

<pallas_src>
import jax
import jax.numpy as jnp
from jax.experimental import pallas as pl
from jax.experimental.pallas import tpu as pltpu

CIN = 3       # src channels (RGB)
CHID = 32     # hidden / recurrent channels per ConvGRU
NREC = 4      # number of recurrent states
COUT = 4      # project_mat output channels: fgr(3) + pha(1)
TM = 2048     # steady-state row tile (sweep 1024-4096; ~2.2 MB dbl-buffered)


def matting_kernel(src_ref, rec_ref,
                   w_enc_ref, b_enc_ref, w_aspp_ref, b_aspp_ref,
                   w_rz_ref, b_rz_ref, w_c_ref, b_c_ref,
                   w_mat_ref, b_mat_ref,
                   out_ref, rec_out_ref):
    C = CHID
    f32 = jnp.float32
    bf16 = jnp.bfloat16

    src = src_ref[...]                                    # (TM, 3) f32

    # encoder: (TM,3)@(3,C) done on the VPU as 3 broadcast-FMAs (K=3 would
    # waste a full MXU push), + relu.
    w_enc = w_enc_ref[...]                                # (3, C) f32
    x = (src[:, 0:1] * w_enc[0:1, :]
         + src[:, 1:2] * w_enc[1:2, :]
         + src[:, 2:3] * w_enc[2:3, :]
         + b_enc_ref[...])
    x = jax.nn.relu(x)                                    # (TM, C) f32

    # aspp: 1x1 conv + relu (bf16 MXU inputs, f32 accumulation)
    x = jnp.dot(x.astype(bf16), w_aspp_ref[...], preferred_element_type=f32)
    x = jax.nn.relu(x + b_aspp_ref[...])

    # decoder: 4 ConvGRU cells on the packed recurrent slab (TM, 4C) bf16.
    # Per cell: 2 fused matmuls ([x|h]@W_rz -> [gr|gz], [x|r*h]@W_c -> gc).
    rec = rec_ref[...]
    for i in range(NREC):
        h_bf = rec[:, i * C:(i + 1) * C]                  # (TM, C) bf16
        h = h_bf.astype(f32)
        x_bf = x.astype(bf16)

        g_rz = (jnp.dot(jnp.concatenate([x_bf, h_bf], axis=-1),
                        w_rz_ref[i], preferred_element_type=f32)
                + b_rz_ref[i])                            # (TM, 2C) f32
        # sigmoid(g) == 0.5*(1 + tanh(g/2)): one EUP op per gate (v5e EUP).
        r = 0.5 * (jnp.tanh(0.5 * g_rz[:, 0:C]) + 1.0)
        z = 0.5 * (jnp.tanh(0.5 * g_rz[:, C:2 * C]) + 1.0)

        g_c = (jnp.dot(jnp.concatenate([x_bf, (r * h).astype(bf16)], axis=-1),
                       w_c_ref[i], preferred_element_type=f32)
               + b_c_ref[i])                              # (TM, C) f32
        c = jnp.tanh(g_c)

        h_new = (1.0 - z) * h + z * c
        # stream straight into the lane-dense packed output slab
        rec_out_ref[:, i * C:(i + 1) * C] = h_new.astype(rec_out_ref.dtype)
        x = h_new

    # project_mat: 1x1 conv -> fgr residual (3) + pha (1), clipped to [0, 1]
    out = jnp.dot(x.astype(bf16), w_mat_ref[...], preferred_element_type=f32)
    out = out + b_mat_ref[...]                            # (TM, 4)
    fgr = jnp.clip(src + out[:, 0:3], 0.0, 1.0)
    pha = jnp.clip(out[:, 3:4], 0.0, 1.0)
    out_ref[...] = jnp.concatenate([fgr, pha], axis=-1).astype(out_ref.dtype)


def init_params(key, cin=CIN, chid=CHID, cout=COUT):
    ks = jax.random.split(key, 8)
    s = 0.1
    wdt = jnp.bfloat16   # MXU weight storage dtype (bf16-native on all gens)
    C = chid

    # Raw per-gate ConvGRU weights: (cell, gate [r,z,c], C, C).
    wx = s * jax.random.normal(ks[2], (NREC, 3, C, C))
    wh = s * jax.random.normal(ks[3], (NREC, 3, C, C))
    # Fused packing: W_rz (2C, 2C) acts on [x|h] -> [gr|gz];
    #                W_c  (2C, C)  acts on [x|r*h] -> gc.
    w_rz = jnp.concatenate(
        [jnp.concatenate([wx[:, 0], wx[:, 1]], axis=-1),   # x rows
         jnp.concatenate([wh[:, 0], wh[:, 1]], axis=-1)],  # h rows
        axis=-2)                                           # (NREC, 2C, 2C)
    w_c = jnp.concatenate([wx[:, 2], wh[:, 2]], axis=-2)   # (NREC, 2C, C)

    return {
        "C": C,
        "w_enc": (s * jax.random.normal(ks[0], (cin, C))).astype(jnp.float32),
        "b_enc": jnp.zeros((1, C), jnp.float32),
        "w_aspp": (s * jax.random.normal(ks[1], (C, C))).astype(wdt),
        "b_aspp": jnp.zeros((1, C), jnp.float32),
        "w_rz": w_rz.astype(wdt),
        "b_rz": jnp.zeros((NREC, 1, 2 * C), jnp.float32),
        "w_c": w_c.astype(wdt),
        "b_c": jnp.zeros((NREC, 1, C), jnp.float32),
        "w_mat": (s * jax.random.normal(ks[4], (C, cout))).astype(wdt),
        "b_mat": jnp.zeros((1, cout), jnp.float32),
    }


def _pick_grid(P):
    """Row tile + grid length.

    TM for large inputs; for small inputs pick a >=2-step grid.  The number of
    grid steps is forced even so the ('parallel',) axis shards cleanly across
    the two TensorCores of a v7x chip."""
    if P >= 2 * TM:
        tm = TM
    else:
        tm = max(256, -(-((P + 1) // 2) // 256) * 256)    # ceil(P/2) -> mult of 256
        tm = min(tm, TM)
    steps = max(2, pl.cdiv(P, tm))
    if steps % 2:
        steps += 1
    return tm, steps


def _cost_estimate(P_pad, C):
    two_c = 2 * C
    mm_flops_row = (NREC * (2 * two_c * two_c + 2 * two_c * C)   # fused GRU gates
                    + 2 * C * C                                   # aspp
                    + 2 * C * COUT                                # project_mat
                    + 2 * CIN * C)                                # encoder FMAs
    bytes_row = CIN * 4 + 2 * (NREC * C * 2) + COUT * 4           # src + rec io + out
    return pl.CostEstimate(
        flops=int(P_pad * mm_flops_row),
        transcendentals=int(P_pad * NREC * 3 * C),                # tanh per gate
        bytes_accessed=int(P_pad * bytes_row))


def _backbone_pallas(params, src_f, rec_packed):
    """src_f: (P, 3) f32; rec_packed: (P, 4*C) bf16.

    Returns (out4 (P, 4) f32, new packed rec (P, 4*C) bf16)."""
    P = src_f.shape[0]
    C = params["C"]
    tm, steps = _pick_grid(P)
    P_pad = tm * steps
    if P_pad != P:
        src_f = jnp.pad(src_f, ((0, P_pad - P), (0, 0)))
        rec_packed = jnp.pad(rec_packed, ((0, P_pad - P), (0, 0)))
    grid = (steps,)

    row = lambda i: (i, 0)
    full2 = lambda i: (0, 0)
    full3 = lambda i: (0, 0, 0)

    in_specs = [
        pl.BlockSpec((tm, CIN), row),                   # src
        pl.BlockSpec((tm, NREC * C), row),              # packed rec (lane-dense)
        pl.BlockSpec((CIN, C), full2),                  # w_enc
        pl.BlockSpec((1, C), full2),                    # b_enc
        pl.BlockSpec((C, C), full2),                    # w_aspp
        pl.BlockSpec((1, C), full2),                    # b_aspp
        pl.BlockSpec((NREC, 2 * C, 2 * C), full3),      # w_rz (fused r|z gates)
        pl.BlockSpec((NREC, 1, 2 * C), full3),          # b_rz
        pl.BlockSpec((NREC, 2 * C, C), full3),          # w_c (candidate gate)
        pl.BlockSpec((NREC, 1, C), full3),              # b_c
        pl.BlockSpec((C, COUT), full2),                 # w_mat
        pl.BlockSpec((1, COUT), full2),                 # b_mat
    ]
    out_specs = [
        pl.BlockSpec((tm, COUT), row),                  # fgr|pha fused (P, 4)
        pl.BlockSpec((tm, NREC * C), row),              # packed new rec
    ]
    out_shape = [
        jax.ShapeDtypeStruct((P_pad, COUT), jnp.float32),
        jax.ShapeDtypeStruct((P_pad, NREC * C), jnp.bfloat16),
    ]

    out4, rec_out = pl.pallas_call(
        matting_kernel,
        out_shape=out_shape,
        grid_spec=pltpu.PrefetchScalarGridSpec(
            num_scalar_prefetch=0,
            grid=grid,
            in_specs=in_specs,
            out_specs=out_specs,
        ),
        compiler_params=pltpu.CompilerParams(
            dimension_semantics=("parallel",),
            # explicit scoped-VMEM budget; footprint is ~3 MB at TM=2048 so
            # this is safe on v5e/v6e (128 MiB) and v7x (64 MiB) alike.
            vmem_limit_bytes=32 * 1024 * 1024),
        cost_estimate=_cost_estimate(P_pad, C),
    )(src_f, rec_packed,
      params["w_enc"], params["b_enc"], params["w_aspp"], params["b_aspp"],
      params["w_rz"], params["b_rz"], params["w_c"], params["b_c"],
      params["w_mat"], params["b_mat"])

    if P_pad != P:
        out4 = out4[:P]
        rec_out = rec_out[:P]
    return out4, rec_out


def matting_forward(params, src, r1=None, r2=None, r3=None, r4=None,
                    return_rvm_rec=False, packed_rec=False):
    """Mirrors MattingNetwork.forward. src is NCHW (N, 3, H, W).

    Recurrent state:
      * Fast path (packed_rec=True, recommended for video): rec stays in the
        kernel's packed channels-last (P, 4*C) bf16 layout between frames
        (no NCHW<->NHWC transposes on the dominant recurrent bytes); a packed
        rec array is also accepted directly as r1.
      * PyTorch-compatible path (compat only): r1 is a 4-tuple of NCHW arrays
        (or r1..r4 given individually); returned rec (if return_rvm_rec) is a
        4-tuple of NCHW f32 arrays.
    """
    C = params["C"]
    N, cin, H, W = src.shape
    assert cin == CIN
    P = N * H * W

    # resolve recurrent-state inputs
    if isinstance(r1, tuple) and len(r1) == 4:
        rec_in = r1
    elif r1 is not None and r2 is None and getattr(r1, "ndim", 0) == 2:
        rec_in = r1                                      # already packed (P, 4C)
    elif r1 is not None:
        rec_in = (r1, r2, r3, r4)
    else:
        rec_in = None

    src_f = jnp.transpose(src, (0, 2, 3, 1)).reshape(P, CIN).astype(jnp.float32)

    if rec_in is None:
        rec_packed = jnp.zeros((P, NREC * C), jnp.bfloat16)
    elif isinstance(rec_in, tuple):
        rec_packed = jnp.concatenate(
            [jnp.transpose(r, (0, 2, 3, 1)).reshape(P, C) for r in rec_in],
            axis=-1).astype(jnp.bfloat16)
    else:
        rec_packed = rec_in.astype(jnp.bfloat16)

    out4, rec_out = _backbone_pallas(params, src_f, rec_packed)

    fgr = jnp.transpose(out4[:, 0:3].reshape(N, H, W, 3), (0, 3, 1, 2))
    pha = jnp.transpose(out4[:, 3:4].reshape(N, H, W, 1), (0, 3, 1, 2))

    if not return_rvm_rec:
        return fgr, pha
    if packed_rec:
        return fgr, pha, rec_out
    new_rec = tuple(
        jnp.transpose(
            rec_out[:, i * C:(i + 1) * C].astype(jnp.float32).reshape(N, H, W, C),
            (0, 3, 1, 2))
        for i in range(NREC))
    return fgr, pha, new_rec


if __name__ == "__main__":
    key = jax.random.PRNGKey(0)
    k_param, k_src = jax.random.split(key)

    params = init_params(k_param)

    N, H, W = 2, 16, 16
    src = jax.random.uniform(k_src, (N, CIN, H, W), jnp.float32)

    # Frame 1: no recurrent state; get the NCHW rec tuple back (PyTorch path).
    fgr, pha, rec = matting_forward(params, src, return_rvm_rec=True)
    # Frame 2: feed the recurrence back as a 4-tuple (same as the PyTorch call).
    fgr2, pha2 = matting_forward(params, src, r1=rec)

    # Fast path: packed recurrent state stays in kernel layout between frames.
    fgr3, pha3, rec_p = matting_forward(params, src, return_rvm_rec=True,
                                        packed_rec=True)
    fgr4, pha4, rec_p2 = matting_forward(params, src, r1=rec_p,
                                         return_rvm_rec=True, packed_rec=True)

    jax.block_until_ready((fgr, pha, rec, fgr2, pha2,
                           fgr3, pha3, rec_p, fgr4, pha4, rec_p2))

    assert fgr.shape == (N, 3, H, W) and pha.shape == (N, 1, H, W)
    assert fgr2.shape == (N, 3, H, W) and pha2.shape == (N, 1, H, W)
    assert len(rec) == 4 and all(r.shape == (N, CHID, H, W) for r in rec)
    assert rec_p.shape == (N * H * W, NREC * CHID)
    assert rec_p2.shape == (N * H * W, NREC * CHID)
    assert bool(jnp.all(jnp.isfinite(fgr4))) and bool(jnp.all(jnp.isfinite(pha4)))
    print("KERNEL_OK")
</pallas_src>

<mosaic_0001>
module attributes {stable_mosaic.version = 11 : i64} {
  func.func @matting_kernel(%arg0: i32, %arg1: memref<256x3xf32, #tpu.memory_space<vmem>>, %arg2: memref<256x128xbf16, #tpu.memory_space<vmem>>, %arg3: memref<3x32xf32, #tpu.memory_space<vmem>>, %arg4: memref<1x32xf32, #tpu.memory_space<vmem>>, %arg5: memref<32x32xbf16, #tpu.memory_space<vmem>>, %arg6: memref<1x32xf32, #tpu.memory_space<vmem>>, %arg7: memref<4x64x64xbf16, #tpu.memory_space<vmem>>, %arg8: memref<4x1x64xf32, #tpu.memory_space<vmem>>, %arg9: memref<4x64x32xbf16, #tpu.memory_space<vmem>>, %arg10: memref<4x1x32xf32, #tpu.memory_space<vmem>>, %arg11: memref<32x4xbf16, #tpu.memory_space<vmem>>, %arg12: memref<1x4xf32, #tpu.memory_space<vmem>>, %arg13: memref<256x4xf32, #tpu.memory_space<vmem>>, %arg14: memref<256x128xbf16, #tpu.memory_space<vmem>>) attributes {dimension_semantics = [#tpu.dimension_semantics<parallel>], iteration_bounds = array<i64: 2>, scalar_prefetch = 0 : i64, scratch_operands = 0 : i64, tpu.core_type = #tpu.core_type<tc>, window_params = [{transform_indices = @transform_0, window_bounds = array<i64: 256, 3>}, {transform_indices = @transform_1, window_bounds = array<i64: 256, 128>}, {pipeline_mode = #tpu.pipeline_mode<synchronous>, transform_indices = @transform_2, window_bounds = array<i64: 3, 32>}, {pipeline_mode = #tpu.pipeline_mode<synchronous>, transform_indices = @transform_3, window_bounds = array<i64: 1, 32>}, {pipeline_mode = #tpu.pipeline_mode<synchronous>, transform_indices = @transform_4, window_bounds = array<i64: 32, 32>}, {pipeline_mode = #tpu.pipeline_mode<synchronous>, transform_indices = @transform_5, window_bounds = array<i64: 1, 32>}, {pipeline_mode = #tpu.pipeline_mode<synchronous>, transform_indices = @transform_6, window_bounds = array<i64: 4, 64, 64>}, {pipeline_mode = #tpu.pipeline_mode<synchronous>, transform_indices = @transform_7, window_bounds = array<i64: 4, 1, 64>}, {pipeline_mode = #tpu.pipeline_mode<synchronous>, transform_indices = @transform_8, window_bounds = array<i64: 4, 64, 32>}, {pipeline_mode = #tpu.pipeline_mode<synchronous>, transform_indices = @transform_9, window_bounds = array<i64: 4, 1, 32>}, {pipeline_mode = #tpu.pipeline_mode<synchronous>, transform_indices = @transform_10, window_bounds = array<i64: 32, 4>}, {pipeline_mode = #tpu.pipeline_mode<synchronous>, transform_indices = @transform_11, window_bounds = array<i64: 1, 4>}, {transform_indices = @transform_12, window_bounds = array<i64: 256, 4>}, {transform_indices = @transform_13, window_bounds = array<i64: 256, 128>}]} {
    %c0 = arith.constant 0 : index
    %c0_0 = arith.constant 0 : index
    %0 = vector.load %arg1[%c0, %c0_0] : memref<256x3xf32, #tpu.memory_space<vmem>>, vector<256x3xf32>
    %c0_1 = arith.constant 0 : index
    %c0_2 = arith.constant 0 : index
    %1 = vector.load %arg3[%c0_1, %c0_2] : memref<3x32xf32, #tpu.memory_space<vmem>>, vector<3x32xf32>
    %2 = vector.extract_strided_slice %0 {offsets = [0, 0], sizes = [256, 1], strides = [1, 1]} : vector<256x3xf32> to vector<256x1xf32>
    %3 = vector.extract_strided_slice %1 {offsets = [0, 0], sizes = [1, 32], strides = [1, 1]} : vector<3x32xf32> to vector<1x32xf32>
    %4 = vector.broadcast %2 : vector<256x1xf32> to vector<256x32xf32>
    %5 = vector.broadcast %3 : vector<1x32xf32> to vector<256x32xf32>
    %6 = arith.mulf %4, %5 : vector<256x32xf32>
    %7 = vector.extract_strided_slice %0 {offsets = [0, 1], sizes = [256, 1], strides = [1, 1]} : vector<256x3xf32> to vector<256x1xf32>
    %8 = vector.extract_strided_slice %1 {offsets = [1, 0], sizes = [1, 32], strides = [1, 1]} : vector<3x32xf32> to vector<1x32xf32>
    %9 = vector.broadcast %7 : vector<256x1xf32> to vector<256x32xf32>
    %10 = vector.broadcast %8 : vector<1x32xf32> to vector<256x32xf32>
    %11 = arith.mulf %9, %10 : vector<256x32xf32>
    %12 = arith.addf %6, %11 : vector<256x32xf32>
    %13 = vector.extract_strided_slice %0 {offsets = [0, 2], sizes = [256, 1], strides = [1, 1]} : vector<256x3xf32> to vector<256x1xf32>
    %14 = vector.extract_strided_slice %1 {offsets = [2, 0], sizes = [1, 32], strides = [1, 1]} : vector<3x32xf32> to vector<1x32xf32>
    %15 = vector.broadcast %13 : vector<256x1xf32> to vector<256x32xf32>
    %16 = vector.broadcast %14 : vector<1x32xf32> to vector<256x32xf32>
    %17 = arith.mulf %15, %16 : vector<256x32xf32>
    %18 = arith.addf %12, %17 : vector<256x32xf32>
    %c0_3 = arith.constant 0 : index
    %c0_4 = arith.constant 0 : index
    %19 = vector.load %arg4[%c0_3, %c0_4] : memref<1x32xf32, #tpu.memory_space<vmem>>, vector<1x32xf32>
    %20 = vector.broadcast %19 : vector<1x32xf32> to vector<256x32xf32>
    %21 = arith.addf %18, %20 : vector<256x32xf32>
    %cst = arith.constant 0.000000e+00 : f32
    %22 = vector.broadcast %cst : f32 to vector<256x32xf32>
    %23 = arith.maximumf %21, %22 : vector<256x32xf32>
    %24 = arith.truncf %23 : vector<256x32xf32> to vector<256x32xbf16>
    %c0_5 = arith.constant 0 : index
    %c0_6 = arith.constant 0 : index
    %25 = vector.load %arg5[%c0_5, %c0_6] : memref<32x32xbf16, #tpu.memory_space<vmem>>, vector<32x32xbf16>
    %cst_7 = arith.constant dense<0.000000e+00> : vector<256x32xf32>
    %26 = tpu.matmul %24, %25, %cst_7 {dimension_numbers = #tpu.dot_dimension_numbers<[1], [0], [0], [1], [0, 0, 1, 1], [], []>} : vector<256x32xbf16>, vector<32x32xbf16>, vector<256x32xf32> -> vector<256x32xf32>
    %c0_8 = arith.constant 0 : index
    %c0_9 = arith.constant 0 : index
    %27 = vector.load %arg6[%c0_8, %c0_9] : memref<1x32xf32, #tpu.memory_space<vmem>>, vector<1x32xf32>
    %28 = vector.broadcast %27 : vector<1x32xf32> to vector<256x32xf32>
    %29 = arith.addf %26, %28 : vector<256x32xf32>
    %cst_10 = arith.constant 0.000000e+00 : f32
    %30 = vector.broadcast %cst_10 : f32 to vector<256x32xf32>
    %31 = arith.maximumf %29, %30 : vector<256x32xf32>
    %c0_11 = arith.constant 0 : index
    %c0_12 = arith.constant 0 : index
    %32 = vector.load %arg2[%c0_11, %c0_12] : memref<256x128xbf16, #tpu.memory_space<vmem>>, vector<256x128xbf16>
    %33 = vector.extract_strided_slice %32 {offsets = [0, 0], sizes = [256, 32], strides = [1, 1]} : vector<256x128xbf16> to vector<256x32xbf16>
    %34 = arith.extf %33 : vector<256x32xbf16> to vector<256x32xf32>
    %35 = arith.truncf %31 : vector<256x32xf32> to vector<256x32xbf16>
    %36 = tpu.concatenate %35, %33 in 1 : vector<256x32xbf16>, vector<256x32xbf16> -> vector<256x64xbf16>
    %c0_13 = arith.constant 0 : index
    %c0_14 = arith.constant 0 : index
    %c0_15 = arith.constant 0 : index
    %37 = vector.load %arg7[%c0_13, %c0_14, %c0_15] : memref<4x64x64xbf16, #tpu.memory_space<vmem>>, vector<1x64x64xbf16>
    %38 = vector.shape_cast %37 : vector<1x64x64xbf16> to vector<64x64xbf16>
    %cst_16 = arith.constant dense<0.000000e+00> : vector<256x64xf32>
    %39 = tpu.matmul %36, %38, %cst_16 {dimension_numbers = #tpu.dot_dimension_numbers<[1], [0], [0], [1], [0, 0, 1, 1], [], []>} : vector<256x64xbf16>, vector<64x64xbf16>, vector<256x64xf32> -> vector<256x64xf32>
    %c0_17 = arith.constant 0 : index
    %c0_18 = arith.constant 0 : index
    %c0_19 = arith.constant 0 : index
    %40 = vector.load %arg8[%c0_17, %c0_18, %c0_19] : memref<4x1x64xf32, #tpu.memory_space<vmem>>, vector<1x1x64xf32>
    %41 = vector.shape_cast %40 : vector<1x1x64xf32> to vector<1x64xf32>
    %42 = vector.broadcast %41 : vector<1x64xf32> to vector<256x64xf32>
    %43 = arith.addf %39, %42 : vector<256x64xf32>
    %44 = vector.extract_strided_slice %43 {offsets = [0, 0], sizes = [256, 32], strides = [1, 1]} : vector<256x64xf32> to vector<256x32xf32>
    %cst_20 = arith.constant 5.000000e-01 : f32
    %45 = vector.broadcast %cst_20 : f32 to vector<256x32xf32>
    %46 = arith.mulf %45, %44 : vector<256x32xf32>
    %47 = math.tanh %46 : vector<256x32xf32>
    %cst_21 = arith.constant 1.000000e+00 : f32
    %48 = vector.broadcast %cst_21 : f32 to vector<256x32xf32>
    %49 = arith.addf %47, %48 : vector<256x32xf32>
    %cst_22 = arith.constant 5.000000e-01 : f32
    %50 = vector.broadcast %cst_22 : f32 to vector<256x32xf32>
    %51 = arith.mulf %50, %49 : vector<256x32xf32>
    %52 = vector.extract_strided_slice %43 {offsets = [0, 32], sizes = [256, 32], strides = [1, 1]} : vector<256x64xf32> to vector<256x32xf32>
    %cst_23 = arith.constant 5.000000e-01 : f32
    %53 = vector.broadcast %cst_23 : f32 to vector<256x32xf32>
    %54 = arith.mulf %53, %52 : vector<256x32xf32>
    %55 = math.tanh %54 : vector<256x32xf32>
    %cst_24 = arith.constant 1.000000e+00 : f32
    %56 = vector.broadcast %cst_24 : f32 to vector<256x32xf32>
    %57 = arith.addf %55, %56 : vector<256x32xf32>
    %cst_25 = arith.constant 5.000000e-01 : f32
    %58 = vector.broadcast %cst_25 : f32 to vector<256x32xf32>
    %59 = arith.mulf %58, %57 : vector<256x32xf32>
    %60 = arith.mulf %51, %34 : vector<256x32xf32>
    %61 = arith.truncf %60 : vector<256x32xf32> to vector<256x32xbf16>
    %62 = tpu.concatenate %35, %61 in 1 : vector<256x32xbf16>, vector<256x32xbf16> -> vector<256x64xbf16>
    %c0_26 = arith.constant 0 : index
    %c0_27 = arith.constant 0 : index
    %c0_28 = arith.constant 0 : index
    %63 = vector.load %arg9[%c0_26, %c0_27, %c0_28] : memref<4x64x32xbf16, #tpu.memory_space<vmem>>, vector<1x64x32xbf16>
    %64 = vector.shape_cast %63 : vector<1x64x32xbf16> to vector<64x32xbf16>
    %cst_29 = arith.constant dense<0.000000e+00> : vector<256x32xf32>
    %65 = tpu.matmul %62, %64, %cst_29 {dimension_numbers = #tpu.dot_dimension_numbers<[1], [0], [0], [1], [0, 0, 1, 1], [], []>} : vector<256x64xbf16>, vector<64x32xbf16>, vector<256x32xf32> -> vector<256x32xf32>
    %c0_30 = arith.constant 0 : index
    %c0_31 = arith.constant 0 : index
    %c0_32 = arith.constant 0 : index
    %66 = vector.load %arg10[%c0_30, %c0_31, %c0_32] : memref<4x1x32xf32, #tpu.memory_space<vmem>>, vector<1x1x32xf32>
    %67 = vector.shape_cast %66 : vector<1x1x32xf32> to vector<1x32xf32>
    %68 = vector.broadcast %67 : vector<1x32xf32> to vector<256x32xf32>
    %69 = arith.addf %65, %68 : vector<256x32xf32>
    %70 = math.tanh %69 : vector<256x32xf32>
    %cst_33 = arith.constant 1.000000e+00 : f32
    %71 = vector.broadcast %cst_33 : f32 to vector<256x32xf32>
    %72 = arith.subf %71, %59 : vector<256x32xf32>
    %73 = arith.mulf %72, %34 : vector<256x32xf32>
    %74 = arith.mulf %59, %70 : vector<256x32xf32>
    %75 = arith.addf %73, %74 : vector<256x32xf32>
    %76 = arith.truncf %75 : vector<256x32xf32> to vector<256x32xbf16>
    %c0_34 = arith.constant 0 : index
    %c0_35 = arith.constant 0 : index
    %77 = vector.load %arg14[%c0_34, %c0_35] : memref<256x128xbf16, #tpu.memory_space<vmem>>, vector<256x32xbf16>
    tpu.vector_store %arg14[%c0_34, %c0_35], %76 {strides = array<i32>} : memref<256x128xbf16, #tpu.memory_space<vmem>>, vector<256x32xbf16>,
    %78 = vector.extract_strided_slice %32 {offsets = [0, 32], sizes = [256, 32], strides = [1, 1]} : vector<256x128xbf16> to vector<256x32xbf16>
    %79 = arith.extf %78 : vector<256x32xbf16> to vector<256x32xf32>
    %80 = arith.truncf %75 : vector<256x32xf32> to vector<256x32xbf16>
    %81 = tpu.concatenate %80, %78 in 1 : vector<256x32xbf16>, vector<256x32xbf16> -> vector<256x64xbf16>
    %c1 = arith.constant 1 : index
    %c0_36 = arith.constant 0 : index
    %c0_37 = arith.constant 0 : index
    %82 = vector.load %arg7[%c1, %c0_36, %c0_37] : memref<4x64x64xbf16, #tpu.memory_space<vmem>>, vector<1x64x64xbf16>
    %83 = vector.shape_cast %82 : vector<1x64x64xbf16> to vector<64x64xbf16>
    %cst_38 = arith.constant dense<0.000000e+00> : vector<256x64xf32>
    %84 = tpu.matmul %81, %83, %cst_38 {dimension_numbers = #tpu.dot_dimension_numbers<[1], [0], [0], [1], [0, 0, 1, 1], [], []>} : vector<256x64xbf16>, vector<64x64xbf16>, vector<256x64xf32> -> vector<256x64xf32>
    %c1_39 = arith.constant 1 : index
    %c0_40 = arith.constant 0 : index
    %c0_41 = arith.constant 0 : index
    %85 = vector.load %arg8[%c1_39, %c0_40, %c0_41] : memref<4x1x64xf32, #tpu.memory_space<vmem>>, vector<1x1x64xf32>
    %86 = vector.shape_cast %85 : vector<1x1x64xf32> to vector<1x64xf32>
    %87 = vector.broadcast %86 : vector<1x64xf32> to vector<256x64xf32>
    %88 = arith.addf %84, %87 : vector<256x64xf32>
    %89 = vector.extract_strided_slice %88 {offsets = [0, 0], sizes = [256, 32], strides = [1, 1]} : vector<256x64xf32> to vector<256x32xf32>
    %cst_42 = arith.constant 5.000000e-01 : f32
    %90 = vector.broadcast %cst_42 : f32 to vector<256x32xf32>
    %91 = arith.mulf %90, %89 : vector<256x32xf32>
    %92 = math.tanh %91 : vector<256x32xf32>
    %cst_43 = arith.constant 1.000000e+00 : f32
    %93 = vector.broadcast %cst_43 : f32 to vector<256x32xf32>
    %94 = arith.addf %92, %93 : vector<256x32xf32>
    %cst_44 = arith.constant 5.000000e-01 : f32
    %95 = vector.broadcast %cst_44 : f32 to vector<256x32xf32>
    %96 = arith.mulf %95, %94 : vector<256x32xf32>
    %97 = vector.extract_strided_slice %88 {offsets = [0, 32], sizes = [256, 32], strides = [1, 1]} : vector<256x64xf32> to vector<256x32xf32>
    %cst_45 = arith.constant 5.000000e-01 : f32
    %98 = vector.broadcast %cst_45 : f32 to vector<256x32xf32>
    %99 = arith.mulf %98, %97 : vector<256x32xf32>
    %100 = math.tanh %99 : vector<256x32xf32>
    %cst_46 = arith.constant 1.000000e+00 : f32
    %101 = vector.broadcast %cst_46 : f32 to vector<256x32xf32>
    %102 = arith.addf %100, %101 : vector<256x32xf32>
    %cst_47 = arith.constant 5.000000e-01 : f32
    %103 = vector.broadcast %cst_47 : f32 to vector<256x32xf32>
    %104 = arith.mulf %103, %102 : vector<256x32xf32>
    %105 = arith.mulf %96, %79 : vector<256x32xf32>
    %106 = arith.truncf %105 : vector<256x32xf32> to vector<256x32xbf16>
    %107 = tpu.concatenate %80, %106 in 1 : vector<256x32xbf16>, vector<256x32xbf16> -> vector<256x64xbf16>
    %c1_48 = arith.constant 1 : index
    %c0_49 = arith.constant 0 : index
    %c0_50 = arith.constant 0 : index
    %108 = vector.load %arg9[%c1_48, %c0_49, %c0_50] : memref<4x64x32xbf16, #tpu.memory_space<vmem>>, vector<1x64x32xbf16>
    %109 = vector.shape_cast %108 : vector<1x64x32xbf16> to vector<64x32xbf16>
    %cst_51 = arith.constant dense<0.000000e+00> : vector<256x32xf32>
    %110 = tpu.matmul %107, %109, %cst_51 {dimension_numbers = #tpu.dot_dimension_numbers<[1], [0], [0], [1], [0, 0, 1, 1], [], []>} : vector<256x64xbf16>, vector<64x32xbf16>, vector<256x32xf32> -> vector<256x32xf32>
    %c1_52 = arith.constant 1 : index
    %c0_53 = arith.constant 0 : index
    %c0_54 = arith.constant 0 : index
    %111 = vector.load %arg10[%c1_52, %c0_53, %c0_54] : memref<4x1x32xf32, #tpu.memory_space<vmem>>, vector<1x1x32xf32>
    %112 = vector.shape_cast %111 : vector<1x1x32xf32> to vector<1x32xf32>
    %113 = vector.broadcast %112 : vector<1x32xf32> to vector<256x32xf32>
    %114 = arith.addf %110, %113 : vector<256x32xf32>
    %115 = math.tanh %114 : vector<256x32xf32>
    %cst_55 = arith.constant 1.000000e+00 : f32
    %116 = vector.broadcast %cst_55 : f32 to vector<256x32xf32>
    %117 = arith.subf %116, %104 : vector<256x32xf32>
    %118 = arith.mulf %117, %79 : vector<256x32xf32>
    %119 = arith.mulf %104, %115 : vector<256x32xf32>
    %120 = arith.addf %118, %119 : vector<256x32xf32>
    %121 = arith.truncf %120 : vector<256x32xf32> to vector<256x32xbf16>
    %c0_56 = arith.constant 0 : index
    %c32 = arith.constant 32 : index
    %122 = vector.load %arg14[%c0_56, %c32] : memref<256x128xbf16, #tpu.memory_space<vmem>>, vector<256x32xbf16>
    tpu.vector_store %arg14[%c0_56, %c32], %121 {strides = array<i32>} : memref<256x128xbf16, #tpu.memory_space<vmem>>, vector<256x32xbf16>,
    %123 = vector.extract_strided_slice %32 {offsets = [0, 64], sizes = [256, 32], strides = [1, 1]} : vector<256x128xbf16> to vector<256x32xbf16>
    %124 = arith.extf %123 : vector<256x32xbf16> to vector<256x32xf32>
    %125 = arith.truncf %120 : vector<256x32xf32> to vector<256x32xbf16>
    %126 = tpu.concatenate %125, %123 in 1 : vector<256x32xbf16>, vector<256x32xbf16> -> vector<256x64xbf16>
    %c2 = arith.constant 2 : index
    %c0_57 = arith.constant 0 : index
    %c0_58 = arith.constant 0 : index
    %127 = vector.load %arg7[%c2, %c0_57, %c0_58] : memref<4x64x64xbf16, #tpu.memory_space<vmem>>, vector<1x64x64xbf16>
    %128 = vector.shape_cast %127 : vector<1x64x64xbf16> to vector<64x64xbf16>
    %cst_59 = arith.constant dense<0.000000e+00> : vector<256x64xf32>
    %129 = tpu.matmul %126, %128, %cst_59 {dimension_numbers = #tpu.dot_dimension_numbers<[1], [0], [0], [1], [0, 0, 1, 1], [], []>} : vector<256x64xbf16>, vector<64x64xbf16>, vector<256x64xf32> -> vector<256x64xf32>
    %c2_60 = arith.constant 2 : index
    %c0_61 = arith.constant 0 : index
    %c0_62 = arith.constant 0 : index
    %130 = vector.load %arg8[%c2_60, %c0_61, %c0_62] : memref<4x1x64xf32, #tpu.memory_space<vmem>>, vector<1x1x64xf32>
    %131 = vector.shape_cast %130 : vector<1x1x64xf32> to vector<1x64xf32>
    %132 = vector.broadcast %131 : vector<1x64xf32> to vector<256x64xf32>
    %133 = arith.addf %129, %132 : vector<256x64xf32>
    %134 = vector.extract_strided_slice %133 {offsets = [0, 0], sizes = [256, 32], strides = [1, 1]} : vector<256x64xf32> to vector<256x32xf32>
    %cst_63 = arith.constant 5.000000e-01 : f32
    %135 = vector.broadcast %cst_63 : f32 to vector<256x32xf32>
    %136 = arith.mulf %135, %134 : vector<256x32xf32>
    %137 = math.tanh %136 : vector<256x32xf32>
    %cst_64 = arith.constant 1.000000e+00 : f32
    %138 = vector.broadcast %cst_64 : f32 to vector<256x32xf32>
    %139 = arith.addf %137, %138 : vector<256x32xf32>
    %cst_65 = arith.constant 5.000000e-01 : f32
    %140 = vector.broadcast %cst_65 : f32 to vector<256x32xf32>
    %141 = arith.mulf %140, %139 : vector<256x32xf32>
    %142 = vector.extract_strided_slice %133 {offsets = [0, 32], sizes = [256, 32], strides = [1, 1]} : vector<256x64xf32> to vector<256x32xf32>
    %cst_66 = arith.constant 5.000000e-01 : f32
    %143 = vector.broadcast %cst_66 : f32 to vector<256x32xf32>
    %144 = arith.mulf %143, %142 : vector<256x32xf32>
    %145 = math.tanh %144 : vector<256x32xf32>
    %cst_67 = arith.constant 1.000000e+00 : f32
    %146 = vector.broadcast %cst_67 : f32 to vector<256x32xf32>
    %147 = arith.addf %145, %146 : vector<256x32xf32>
    %cst_68 = arith.constant 5.000000e-01 : f32
    %148 = vector.broadcast %cst_68 : f32 to vector<256x32xf32>
    %149 = arith.mulf %148, %147 : vector<256x32xf32>
    %150 = arith.mulf %141, %124 : vector<256x32xf32>
    %151 = arith.truncf %150 : vector<256x32xf32> to vector<256x32xbf16>
    %152 = tpu.concatenate %125, %151 in 1 : vector<256x32xbf16>, vector<256x32xbf16> -> vector<256x64xbf16>
    %c2_69 = arith.constant 2 : index
    %c0_70 = arith.constant 0 : index
    %c0_71 = arith.constant 0 : index
    %153 = vector.load %arg9[%c2_69, %c0_70, %c0_71] : memref<4x64x32xbf16, #tpu.memory_space<vmem>>, vector<1x64x32xbf16>
    %154 = vector.shape_cast %153 : vector<1x64x32xbf16> to vector<64x32xbf16>
    %cst_72 = arith.constant dense<0.000000e+00> : vector<256x32xf32>
    %155 = tpu.matmul %152, %154, %cst_72 {dimension_numbers = #tpu.dot_dimension_numbers<[1], [0], [0], [1], [0, 0, 1, 1], [], []>} : vector<256x64xbf16>, vector<64x32xbf16>, vector<256x32xf32> -> vector<256x32xf32>
    %c2_73 = arith.constant 2 : index
    %c0_74 = arith.constant 0 : index
    %c0_75 = arith.constant 0 : index
    %156 = vector.load %arg10[%c2_73, %c0_74, %c0_75] : memref<4x1x32xf32, #tpu.memory_space<vmem>>, vector<1x1x32xf32>
    %157 = vector.shape_cast %156 : vector<1x1x32xf32> to vector<1x32xf32>
    %158 = vector.broadcast %157 : vector<1x32xf32> to vector<256x32xf32>
    %159 = arith.addf %155, %158 : vector<256x32xf32>
    %160 = math.tanh %159 : vector<256x32xf32>
    %cst_76 = arith.constant 1.000000e+00 : f32
    %161 = vector.broadcast %cst_76 : f32 to vector<256x32xf32>
    %162 = arith.subf %161, %149 : vector<256x32xf32>
    %163 = arith.mulf %162, %124 : vector<256x32xf32>
    %164 = arith.mulf %149, %160 : vector<256x32xf32>
    %165 = arith.addf %163, %164 : vector<256x32xf32>
    %166 = arith.truncf %165 : vector<256x32xf32> to vector<256x32xbf16>
    %c0_77 = arith.constant 0 : index
    %c64 = arith.constant 64 : index
    %167 = vector.load %arg14[%c0_77, %c64] : memref<256x128xbf16, #tpu.memory_space<vmem>>, vector<256x32xbf16>
    tpu.vector_store %arg14[%c0_77, %c64], %166 {strides = array<i32>} : memref<256x128xbf16, #tpu.memory_space<vmem>>, vector<256x32xbf16>,
    %168 = vector.extract_strided_slice %32 {offsets = [0, 96], sizes = [256, 32], strides = [1, 1]} : vector<256x128xbf16> to vector<256x32xbf16>
    %169 = arith.extf %168 : vector<256x32xbf16> to vector<256x32xf32>
    %170 = arith.truncf %165 : vector<256x32xf32> to vector<256x32xbf16>
    %171 = tpu.concatenate %170, %168 in 1 : vector<256x32xbf16>, vector<256x32xbf16> -> vector<256x64xbf16>
    %c3 = arith.constant 3 : index
    %c0_78 = arith.constant 0 : index
    %c0_79 = arith.constant 0 : index
    %172 = vector.load %arg7[%c3, %c0_78, %c0_79] : memref<4x64x64xbf16, #tpu.memory_space<vmem>>, vector<1x64x64xbf16>
    %173 = vector.shape_cast %172 : vector<1x64x64xbf16> to vector<64x64xbf16>
    %cst_80 = arith.constant dense<0.000000e+00> : vector<256x64xf32>
    %174 = tpu.matmul %171, %173, %cst_80 {dimension_numbers = #tpu.dot_dimension_numbers<[1], [0], [0], [1], [0, 0, 1, 1], [], []>} : vector<256x64xbf16>, vector<64x64xbf16>, vector<256x64xf32> -> vector<256x64xf32>
    %c3_81 = arith.constant 3 : index
    %c0_82 = arith.constant 0 : index
    %c0_83 = arith.constant 0 : index
    %175 = vector.load %arg8[%c3_81, %c0_82, %c0_83] : memref<4x1x64xf32, #tpu.memory_space<vmem>>, vector<1x1x64xf32>
    %176 = vector.shape_cast %175 : vector<1x1x64xf32> to vector<1x64xf32>
    %177 = vector.broadcast %176 : vector<1x64xf32> to vector<256x64xf32>
    %178 = arith.addf %174, %177 : vector<256x64xf32>
    %179 = vector.extract_strided_slice %178 {offsets = [0, 0], sizes = [256, 32], strides = [1, 1]} : vector<256x64xf32> to vector<256x32xf32>
    %cst_84 = arith.constant 5.000000e-01 : f32
    %180 = vector.broadcast %cst_84 : f32 to vector<256x32xf32>
    %181 = arith.mulf %180, %179 : vector<256x32xf32>
    %182 = math.tanh %181 : vector<256x32xf32>
    %cst_85 = arith.constant 1.000000e+00 : f32
    %183 = vector.broadcast %cst_85 : f32 to vector<256x32xf32>
    %184 = arith.addf %182, %183 : vector<256x32xf32>
    %cst_86 = arith.constant 5.000000e-01 : f32
    %185 = vector.broadcast %cst_86 : f32 to vector<256x32xf32>
    %186 = arith.mulf %185, %184 : vector<256x32xf32>
    %187 = vector.extract_strided_slice %178 {offsets = [0, 32], sizes = [256, 32], strides = [1, 1]} : vector<256x64xf32> to vector<256x32xf32>
    %cst_87 = arith.constant 5.000000e-01 : f32
    %188 = vector.broadcast %cst_87 : f32 to vector<256x32xf32>
    %189 = arith.mulf %188, %187 : vector<256x32xf32>
    %190 = math.tanh %189 : vector<256x32xf32>
    %cst_88 = arith.constant 1.000000e+00 : f32
    %191 = vector.broadcast %cst_88 : f32 to vector<256x32xf32>
    %192 = arith.addf %190, %191 : vector<256x32xf32>
    %cst_89 = arith.constant 5.000000e-01 : f32
    %193 = vector.broadcast %cst_89 : f32 to vector<256x32xf32>
    %194 = arith.mulf %193, %192 : vector<256x32xf32>
    %195 = arith.mulf %186, %169 : vector<256x32xf32>
    %196 = arith.truncf %195 : vector<256x32xf32> to vector<256x32xbf16>
    %197 = tpu.concatenate %170, %196 in 1 : vector<256x32xbf16>, vector<256x32xbf16> -> vector<256x64xbf16>
    %c3_90 = arith.constant 3 : index
    %c0_91 = arith.constant 0 : index
    %c0_92 = arith.constant 0 : index
    %198 = vector.load %arg9[%c3_90, %c0_91, %c0_92] : memref<4x64x32xbf16, #tpu.memory_space<vmem>>, vector<1x64x32xbf16>
    %199 = vector.shape_cast %198 : vector<1x64x32xbf16> to vector<64x32xbf16>
    %cst_93 = arith.constant dense<0.000000e+00> : vector<256x32xf32>
    %200 = tpu.matmul %197, %199, %cst_93 {dimension_numbers = #tpu.dot_dimension_numbers<[1], [0], [0], [1], [0, 0, 1, 1], [], []>} : vector<256x64xbf16>, vector<64x32xbf16>, vector<256x32xf32> -> vector<256x32xf32>
    %c3_94 = arith.constant 3 : index
    %c0_95 = arith.constant 0 : index
    %c0_96 = arith.constant 0 : index
    %201 = vector.load %arg10[%c3_94, %c0_95, %c0_96] : memref<4x1x32xf32, #tpu.memory_space<vmem>>, vector<1x1x32xf32>
    %202 = vector.shape_cast %201 : vector<1x1x32xf32> to vector<1x32xf32>
    %203 = vector.broadcast %202 : vector<1x32xf32> to vector<256x32xf32>
    %204 = arith.addf %200, %203 : vector<256x32xf32>
    %205 = math.tanh %204 : vector<256x32xf32>
    %cst_97 = arith.constant 1.000000e+00 : f32
    %206 = vector.broadcast %cst_97 : f32 to vector<256x32xf32>
    %207 = arith.subf %206, %194 : vector<256x32xf32>
    %208 = arith.mulf %207, %169 : vector<256x32xf32>
    %209 = arith.mulf %194, %205 : vector<256x32xf32>
    %210 = arith.addf %208, %209 : vector<256x32xf32>
    %211 = arith.truncf %210 : vector<256x32xf32> to vector<256x32xbf16>
    %c0_98 = arith.constant 0 : index
    %c96 = arith.constant 96 : index
    %212 = vector.load %arg14[%c0_98, %c96] : memref<256x128xbf16, #tpu.memory_space<vmem>>, vector<256x32xbf16>
    tpu.vector_store %arg14[%c0_98, %c96], %211 {strides = array<i32>} : memref<256x128xbf16, #tpu.memory_space<vmem>>, vector<256x32xbf16>,
    %213 = arith.truncf %210 : vector<256x32xf32> to vector<256x32xbf16>
    %c0_99 = arith.constant 0 : index
    %c0_100 = arith.constant 0 : index
    %214 = vector.load %arg11[%c0_99, %c0_100] : memref<32x4xbf16, #tpu.memory_space<vmem>>, vector<32x4xbf16>
    %cst_101 = arith.constant dense<0.000000e+00> : vector<256x4xf32>
    %215 = tpu.matmul %213, %214, %cst_101 {dimension_numbers = #tpu.dot_dimension_numbers<[1], [0], [0], [1], [0, 0, 1, 1], [], []>} : vector<256x32xbf16>, vector<32x4xbf16>, vector<256x4xf32> -> vector<256x4xf32>
    %c0_102 = arith.constant 0 : index
    %c0_103 = arith.constant 0 : index
    %216 = vector.load %arg12[%c0_102, %c0_103] : memref<1x4xf32, #tpu.memory_space<vmem>>, vector<1x4xf32>
    %217 = vector.broadcast %216 : vector<1x4xf32> to vector<256x4xf32>
    %218 = arith.addf %215, %217 : vector<256x4xf32>
    %219 = vector.extract_strided_slice %218 {offsets = [0, 0], sizes = [256, 3], strides = [1, 1]} : vector<256x4xf32> to vector<256x3xf32>
    %220 = arith.addf %0, %219 : vector<256x3xf32>
    %cst_104 = arith.constant 0.000000e+00 : f32
    %cst_105 = arith.constant 1.000000e+00 : f32
    %221 = vector.broadcast %cst_104 : f32 to vector<256x3xf32>
    %222 = arith.maximumf %221, %220 : vector<256x3xf32>
    %223 = vector.broadcast %cst_105 : f32 to vector<256x3xf32>
    %224 = arith.minimumf %223, %222 : vector<256x3xf32>
    %225 = vector.extract_strided_slice %218 {offsets = [0, 3], sizes = [256, 1], strides = [1, 1]} : vector<256x4xf32> to vector<256x1xf32>
    %cst_106 = arith.constant 0.000000e+00 : f32
    %cst_107 = arith.constant 1.000000e+00 : f32
    %226 = vector.broadcast %cst_106 : f32 to vector<256x1xf32>
    %227 = arith.maximumf %226, %225 : vector<256x1xf32>
    %228 = vector.broadcast %cst_107 : f32 to vector<256x1xf32>
    %229 = arith.minimumf %228, %227 : vector<256x1xf32>
    %230 = tpu.concatenate %224, %229 in 1 : vector<256x3xf32>, vector<256x1xf32> -> vector<256x4xf32>
    %c0_108 = arith.constant 0 : index
    %c0_109 = arith.constant 0 : index
    %231 = vector.load %arg13[%c0_108, %c0_109] : memref<256x4xf32, #tpu.memory_space<vmem>>, vector<256x4xf32>
    tpu.vector_store %arg13[%c0_108, %c0_109], %230 {strides = array<i32>} : memref<256x4xf32, #tpu.memory_space<vmem>>, vector<256x4xf32>,
    return
  }
  func.func @transform_0(%arg0: i32) -> (i32, i32) {
    %c0_i32 = arith.constant 0 : i32
    %c0_i32_0 = arith.constant 0 : i32
    return %arg0, %c0_i32 : i32, i32
  }
  func.func @transform_1(%arg0: i32) -> (i32, i32) {
    %c0_i32 = arith.constant 0 : i32
    %c0_i32_0 = arith.constant 0 : i32
    return %arg0, %c0_i32 : i32, i32
  }
  func.func @transform_2(%arg0: i32) -> (i32, i32) {
    %c0_i32 = arith.constant 0 : i32
    %c0_i32_0 = arith.constant 0 : i32
    %c0_i32_1 = arith.constant 0 : i32
    return %c0_i32, %c0_i32_0 : i32, i32
  }
  func.func @transform_3(%arg0: i32) -> (i32, i32) {
    %c0_i32 = arith.constant 0 : i32
    %c0_i32_0 = arith.constant 0 : i32
    %c0_i32_1 = arith.constant 0 : i32
    return %c0_i32, %c0_i32_0 : i32, i32
  }
  func.func @transform_4(%arg0: i32) -> (i32, i32) {
    %c0_i32 = arith.constant 0 : i32
    %c0_i32_0 = arith.constant 0 : i32
    %c0_i32_1 = arith.constant 0 : i32
    return %c0_i32, %c0_i32_0 : i32, i32
  }
  func.func @transform_5(%arg0: i32) -> (i32, i32) {
    %c0_i32 = arith.constant 0 : i32
    %c0_i32_0 = arith.constant 0 : i32
    %c0_i32_1 = arith.constant 0 : i32
    return %c0_i32, %c0_i32_0 : i32, i32
  }
  func.func @transform_6(%arg0: i32) -> (i32, i32, i32) {
    %c0_i32 = arith.constant 0 : i32
    %c0_i32_0 = arith.constant 0 : i32
    %c0_i32_1 = arith.constant 0 : i32
    %c0_i32_2 = arith.constant 0 : i32
    return %c0_i32, %c0_i32_0, %c0_i32_1 : i32, i32, i32
  }
  func.func @transform_7(%arg0: i32) -> (i32, i32, i32) {
    %c0_i32 = arith.constant 0 : i32
    %c0_i32_0 = arith.constant 0 : i32
    %c0_i32_1 = arith.constant 0 : i32
    %c0_i32_2 = arith.constant 0 : i32
    return %c0_i32, %c0_i32_0, %c0_i32_1 : i32, i32, i32
  }
  func.func @transform_8(%arg0: i32) -> (i32, i32, i32) {
    %c0_i32 = arith.constant 0 : i32
    %c0_i32_0 = arith.constant 0 : i32
    %c0_i32_1 = arith.constant 0 : i32
    %c0_i32_2 = arith.constant 0 : i32
    return %c0_i32, %c0_i32_0, %c0_i32_1 : i32, i32, i32
  }
  func.func @transform_9(%arg0: i32) -> (i32, i32, i32) {
    %c0_i32 = arith.constant 0 : i32
    %c0_i32_0 = arith.constant 0 : i32
    %c0_i32_1 = arith.constant 0 : i32
    %c0_i32_2 = arith.constant 0 : i32
    return %c0_i32, %c0_i32_0, %c0_i32_1 : i32, i32, i32
  }
  func.func @transform_10(%arg0: i32) -> (i32, i32) {
    %c0_i32 = arith.constant 0 : i32
    %c0_i32_0 = arith.constant 0 : i32
    %c0_i32_1 = arith.constant 0 : i32
    return %c0_i32, %c0_i32_0 : i32, i32
  }
  func.func @transform_11(%arg0: i32) -> (i32, i32) {
    %c0_i32 = arith.constant 0 : i32
    %c0_i32_0 = arith.constant 0 : i32
    %c0_i32_1 = arith.constant 0 : i32
    return %c0_i32, %c0_i32_0 : i32, i32
  }
  func.func @transform_12(%arg0: i32) -> (i32, i32) {
    %c0_i32 = arith.constant 0 : i32
    %c0_i32_0 = arith.constant 0 : i32
    return %arg0, %c0_i32 : i32, i32
  }
  func.func @transform_13(%arg0: i32) -> (i32, i32) {
    %c0_i32 = arith.constant 0 : i32
    %c0_i32_0 = arith.constant 0 : i32
    return %arg0, %c0_i32 : i32, i32
  }
}

</mosaic_0001>

<llo_original>
// kernel: tpu_custom_call.1
$region0: #{tpu_custom_call.1}
  #allocation0 [shape = 'u32[]', space=smem, size = 0x4, offset = 0x4, fixed_abs, tag = 'smem constant byte address 0x4 - core index']
  #allocation1 [shape = 'u32[72,128]{1,0:T(1,128)}', space=vmem, size = 0x9000, scoped, tag = 'internal scratch']
  %s0 = inlined_call_operand.vmem [shape: f32[512,3], index: 0, kind: input, shape index: {}]
  %s1 = inlined_call_operand.vmem [shape: bf16[512,128], index: 1, kind: input, shape index: {}]
  %s2 = inlined_call_operand.vmem [shape: f32[3,32], index: 2, kind: input, shape index: {}]
  %s3 = inlined_call_operand.vmem [shape: f32[1,32], index: 3, kind: input, shape index: {}]
  %s4 = inlined_call_operand.vmem [shape: bf16[32,32], index: 4, kind: input, shape index: {}]
  %s5 = inlined_call_operand.vmem [shape: f32[1,32], index: 5, kind: input, shape index: {}]
  %s6 = inlined_call_operand.vmem [shape: bf16[4,64,64], index: 6, kind: input, shape index: {}]
  %s7 = inlined_call_operand.vmem [shape: f32[4,1,64], index: 7, kind: input, shape index: {}]
  %s8 = inlined_call_operand.vmem [shape: bf16[4,64,32], index: 8, kind: input, shape index: {}]
  %s9 = inlined_call_operand.vmem [shape: f32[4,1,32], index: 9, kind: input, shape index: {}]
  %s10 = inlined_call_operand.vmem [shape: bf16[32,4], index: 10, kind: input, shape index: {}]
  %s11 = inlined_call_operand.vmem [shape: f32[1,4], index: 11, kind: input, shape index: {}]
  %s12 = inlined_call_operand.vmem [shape: f32[512,4], index: 12, kind: output, shape index: {0}]
  %s13 = inlined_call_operand.hbm [shape: bf16[512,128], index: 13, kind: output, shape index: {1}]
  %14 = xla_tuple %s12, %s13
  %s15 = sld [smem:[#allocation0]]
  $region89: #{tpu_custom_call.1} parent=0
    _
  %s17 = ssub.s32 1, %s15
  %s18 = scalar_select 0, %s17, %s15
  $region1: #{tpu_custom_call.1} parent=0
    #allocation2 [shape = 'u8[131072]{0}', space=vmem, size = 0x20000, scoped, tag = 'output window, operand 1']
    #allocation3 [shape = 's32[2]{0}', space=sflag, size = 0x8, scoped, tag = 'scoped memory for tpu_custom_call.1']
    %19 = vsyncpa [#allocation3], 0
    %s20 = scalar_lea.sflag [#allocation3], 1
    %21 = vsyncpa %s20, 0
    loop: start=0, step=1, limit=4
    $region2: #{tpu_custom_call.1} parent=1 // loop_pre_header
      _
    $region3: #{tpu_custom_call.1} parent=1 // loop_header
      %s23 = sphi 0, %s27
      %p24 = scmp.ge.s32.totalorder %s23, 4
      %s33 = sphi 0, %s35
      %s36 = sphi 0, %s33
      %s37 = sphi 0, %s36
      %s53 = sphi 0, %s37
      %s59 = sphi 0, %s61
      %s62 = sphi 0, %s59
      %s63 = sphi 0, %s62
      %s79 = sphi 0, %s63
      %s83 = sphi 0, %s83
      %s85 = sphi 0, %s83
      %s86 = sphi 0, %s85
      %s100 = sphi 0, %s86
      %s104 = sphi 0, %s104
      %s106 = sphi 0, %s104
      %s107 = sphi 0, %s106
      %s121 = sphi 0, %s107
      %s125 = sphi 0, %s125
      %s127 = sphi 0, %s125
      %s128 = sphi 0, %s127
      %s142 = sphi 0, %s128
      %s146 = sphi 0, %s146
      %s148 = sphi 0, %s146
      %s149 = sphi 0, %s148
      %s163 = sphi 0, %s149
      %s167 = sphi 0, %s167
      %s169 = sphi 0, %s167
      %s170 = sphi 0, %s169
      %s184 = sphi 0, %s170
      %s188 = sphi 0, %s188
      %s190 = sphi 0, %s188
      %s191 = sphi 0, %s190
      %s205 = sphi 0, %s191
      %s209 = sphi 0, %s209
      %s211 = sphi 0, %s209
      %s212 = sphi 0, %s211
      %s226 = sphi 0, %s212
      %s230 = sphi 0, %s230
      %s232 = sphi 0, %s230
      %s233 = sphi 0, %s232
      %s247 = sphi 0, %s233
      %s251 = sphi 0, %s251
      %s253 = sphi 0, %s251
      %s254 = sphi 0, %s253
      %s268 = sphi 0, %s254
      %s272 = sphi 0, %s272
      %s274 = sphi 0, %s272
      %s275 = sphi 0, %s274
      %s289 = sphi 0, %s275
      %s295 = sphi 0, %s297
      %s298 = sphi 0, %s295
      %s299 = sphi 0, %s298
      %s315 = sphi 0, %s299
      %s321 = sphi 0, %s323
      %s324 = sphi 0, %s321
      %s325 = sphi 0, %s324
      %s341 = sphi 0, %s325
    $region4: #{tpu_custom_call.1} parent=1 // loop_header_branch
      %26 = sbr.rel (%p24) target = $region8
    $region5: #{tpu_custom_call.1} parent=1 // loop_body
      %s28 = ssub.s32 %s23, 1
      %s29 = ssub.s32 %s23, 2
      %s30 = sadd.s32 %s23, 1
      %s31 = ssub.s32 %s23, %s30
      %p32 = scmp.eq.s32.totalorder %s31, 0
      %s34 = sadd.s32 %s33, 1
      %s35 = scalar_select %p32, %s33, %s34
      %p38 = pneg %p32
      %p39 = scmp.eq.s32.totalorder %s23, 1
      %p40 = por %p38, %p39
      %p41 = scmp.ne.s32.totalorder %s33, %s36
      %p42 = scmp.eq.s32.totalorder %s23, 0
      %p43 = por %p41, %p42
      %p44 = scmp.ne.s32.totalorder %s33, %s36
      %p45 = scmp.eq.s32.totalorder %s28, 1
      %p46 = por %p44, %p45
      %p47 = scmp.ne.s32.totalorder %s36, %s37
      %p48 = scmp.eq.s32.totalorder %s28, 0
      %p49 = por %p47, %p48
      %p50 = scmp.ne.s32.totalorder %s36, %s37
      %p51 = scmp.eq.s32.totalorder %s29, 1
      %p52 = por %p50, %p51
      %p54 = scmp.ne.s32.totalorder %s37, %s53
      %p55 = scmp.eq.s32.totalorder %s29, 0
      %p56 = por %p54, %p55
      %s57 = ssub.s32 %s23, %s30
      %p58 = scmp.eq.s32.totalorder %s57, 0
      %s60 = sadd.s32 %s59, 1
      %s61 = scalar_select %p58, %s59, %s60
      %p64 = pneg %p58
      %p65 = scmp.eq.s32.totalorder %s23, 1
      %p66 = por %p64, %p65
      %p67 = scmp.ne.s32.totalorder %s59, %s62
      %p68 = scmp.eq.s32.totalorder %s23, 0
      %p69 = por %p67, %p68
      %p70 = scmp.ne.s32.totalorder %s59, %s62
      %p71 = scmp.eq.s32.totalorder %s28, 1
      %p72 = por %p70, %p71
      %p73 = scmp.ne.s32.totalorder %s62, %s63
      %p74 = scmp.eq.s32.totalorder %s28, 0
      %p75 = por %p73, %p74
      %p76 = scmp.ne.s32.totalorder %s62, %s63
      %p77 = scmp.eq.s32.totalorder %s29, 1
      %p78 = por %p76, %p77
      %p80 = scmp.ne.s32.totalorder %s63, %s79
      %p81 = scmp.eq.s32.totalorder %s29, 0
      %p82 = por %p80, %p81
      %s84 = sadd.s32 %s83, 1
      %p87 = scmp.eq.s32.totalorder %s23, 1
      %p88 = scmp.ne.s32.totalorder %s83, %s85
      %p89 = scmp.eq.s32.totalorder %s23, 0
      %p90 = por %p88, %p89
      %p91 = scmp.ne.s32.totalorder %s83, %s85
      %p92 = scmp.eq.s32.totalorder %s28, 1
      %p93 = por %p91, %p92
      %p94 = scmp.ne.s32.totalorder %s85, %s86
      %p95 = scmp.eq.s32.totalorder %s28, 0
      %p96 = por %p94, %p95
      %p97 = scmp.ne.s32.totalorder %s85, %s86
      %p98 = scmp.eq.s32.totalorder %s29, 1
      %p99 = por %p97, %p98
      %p101 = scmp.ne.s32.totalorder %s86, %s100
      %p102 = scmp.eq.s32.totalorder %s29, 0
      %p103 = por %p101, %p102
      %s105 = sadd.s32 %s104, 1
      %p108 = scmp.eq.s32.totalorder %s23, 1
      %p109 = scmp.ne.s32.totalorder %s104, %s106
      %p110 = scmp.eq.s32.totalorder %s23, 0
      %p111 = por %p109, %p110
      %p112 = scmp.ne.s32.totalorder %s104, %s106
      %p113 = scmp.eq.s32.totalorder %s28, 1
      %p114 = por %p112, %p113
      %p115 = scmp.ne.s32.totalorder %s106, %s107
      %p116 = scmp.eq.s32.totalorder %s28, 0
      %p117 = por %p115, %p116
      %p118 = scmp.ne.s32.totalorder %s106, %s107
      %p119 = scmp.eq.s32.totalorder %s29, 1
      %p120 = por %p118, %p119
      %p122 = scmp.ne.s32.totalorder %s107, %s121
      %p123 = scmp.eq.s32.totalorder %s29, 0
      %p124 = por %p122, %p123
      %s126 = sadd.s32 %s125, 1
      %p129 = scmp.eq.s32.totalorder %s23, 1
      %p130 = scmp.ne.s32.totalorder %s125, %s127
      %p131 = scmp.eq.s32.totalorder %s23, 0
      %p132 = por %p130, %p131
      %p133 = scmp.ne.s32.totalorder %s125, %s127
      %p134 = scmp.eq.s32.totalorder %s28, 1
      %p135 = por %p133, %p134
      %p136 = scmp.ne.s32.totalorder %s127, %s128
      %p137 = scmp.eq.s32.totalorder %s28, 0
      %p138 = por %p136, %p137
      %p139 = scmp.ne.s32.totalorder %s127, %s128
      %p140 = scmp.eq.s32.totalorder %s29, 1
      %p141 = por %p139, %p140
      %p143 = scmp.ne.s32.totalorder %s128, %s142
      %p144 = scmp.eq.s32.totalorder %s29, 0
      %p145 = por %p143, %p144
      %s147 = sadd.s32 %s146, 1
      %p150 = scmp.eq.s32.totalorder %s23, 1
      %p151 = scmp.ne.s32.totalorder %s146, %s148
      %p152 = scmp.eq.s32.totalorder %s23, 0
      %p153 = por %p151, %p152
      %p154 = scmp.ne.s32.totalorder %s146, %s148
      %p155 = scmp.eq.s32.totalorder %s28, 1
      %p156 = por %p154, %p155
      %p157 = scmp.ne.s32.totalorder %s148, %s149
      %p158 = scmp.eq.s32.totalorder %s28, 0
      %p159 = por %p157, %p158
      %p160 = scmp.ne.s32.totalorder %s148, %s149
      %p161 = scmp.eq.s32.totalorder %s29, 1
      %p162 = por %p160, %p161
      %p164 = scmp.ne.s32.totalorder %s149, %s163
      %p165 = scmp.eq.s32.totalorder %s29, 0
      %p166 = por %p164, %p165
      %s168 = sadd.s32 %s167, 1
      %p171 = scmp.eq.s32.totalorder %s23, 1
      %p172 = scmp.ne.s32.totalorder %s167, %s169
      %p173 = scmp.eq.s32.totalorder %s23, 0
      %p174 = por %p172, %p173
      %p175 = scmp.ne.s32.totalorder %s167, %s169
      %p176 = scmp.eq.s32.totalorder %s28, 1
      %p177 = por %p175, %p176
      %p178 = scmp.ne.s32.totalorder %s169, %s170
      %p179 = scmp.eq.s32.totalorder %s28, 0
      %p180 = por %p178, %p179
      %p181 = scmp.ne.s32.totalorder %s169, %s170
      %p182 = scmp.eq.s32.totalorder %s29, 1
      %p183 = por %p181, %p182
      %p185 = scmp.ne.s32.totalorder %s170, %s184
      %p186 = scmp.eq.s32.totalorder %s29, 0
      %p187 = por %p185, %p186
      %s189 = sadd.s32 %s188, 1
      %p192 = scmp.eq.s32.totalorder %s23, 1
      %p193 = scmp.ne.s32.totalorder %s188, %s190
      %p194 = scmp.eq.s32.totalorder %s23, 0
      %p195 = por %p193, %p194
      %p196 = scmp.ne.s32.totalorder %s188, %s190
      %p197 = scmp.eq.s32.totalorder %s28, 1
      %p198 = por %p196, %p197
      %p199 = scmp.ne.s32.totalorder %s190, %s191
      %p200 = scmp.eq.s32.totalorder %s28, 0
      %p201 = por %p199, %p200
      %p202 = scmp.ne.s32.totalorder %s190, %s191
      %p203 = scmp.eq.s32.totalorder %s29, 1
      %p204 = por %p202, %p203
      %p206 = scmp.ne.s32.totalorder %s191, %s205
      %p207 = scmp.eq.s32.totalorder %s29, 0
      %p208 = por %p206, %p207
      %s210 = sadd.s32 %s209, 1
      %p213 = scmp.eq.s32.totalorder %s23, 1
      %p214 = scmp.ne.s32.totalorder %s209, %s211
      %p215 = scmp.eq.s32.totalorder %s23, 0
      %p216 = por %p214, %p215
      %p217 = scmp.ne.s32.totalorder %s209, %s211
      %p218 = scmp.eq.s32.totalorder %s28, 1
      %p219 = por %p217, %p218
      %p220 = scmp.ne.s32.totalorder %s211, %s212
      %p221 = scmp.eq.s32.totalorder %s28, 0
      %p222 = por %p220, %p221
      %p223 = scmp.ne.s32.totalorder %s211, %s212
      %p224 = scmp.eq.s32.totalorder %s29, 1
      %p225 = por %p223, %p224
      %p227 = scmp.ne.s32.totalorder %s212, %s226
      %p228 = scmp.eq.s32.totalorder %s29, 0
      %p229 = por %p227, %p228
      %s231 = sadd.s32 %s230, 1
      %p234 = scmp.eq.s32.totalorder %s23, 1
      %p235 = scmp.ne.s32.totalorder %s230, %s232
      %p236 = scmp.eq.s32.totalorder %s23, 0
      %p237 = por %p235, %p236
      %p238 = scmp.ne.s32.totalorder %s230, %s232
      %p239 = scmp.eq.s32.totalorder %s28, 1
      %p240 = por %p238, %p239
      %p241 = scmp.ne.s32.totalorder %s232, %s233
      %p242 = scmp.eq.s32.totalorder %s28, 0
      %p243 = por %p241, %p242
      %p244 = scmp.ne.s32.totalorder %s232, %s233
      %p245 = scmp.eq.s32.totalorder %s29, 1
      %p246 = por %p244, %p245
      %p248 = scmp.ne.s32.totalorder %s233, %s247
      %p249 = scmp.eq.s32.totalorder %s29, 0
      %p250 = por %p248, %p249
      %s252 = sadd.s32 %s251, 1
      %p255 = scmp.eq.s32.totalorder %s23, 1
      %p256 = scmp.ne.s32.totalorder %s251, %s253
      %p257 = scmp.eq.s32.totalorder %s23, 0
      %p258 = por %p256, %p257
      %p259 = scmp.ne.s32.totalorder %s251, %s253
      %p260 = scmp.eq.s32.totalorder %s28, 1
      %p261 = por %p259, %p260
      %p262 = scmp.ne.s32.totalorder %s253, %s254
      %p263 = scmp.eq.s32.totalorder %s28, 0
      %p264 = por %p262, %p263
      %p265 = scmp.ne.s32.totalorder %s253, %s254
      %p266 = scmp.eq.s32.totalorder %s29, 1
      %p267 = por %p265, %p266
      %p269 = scmp.ne.s32.totalorder %s254, %s268
      %p270 = scmp.eq.s32.totalorder %s29, 0
      %p271 = por %p269, %p270
      %s273 = sadd.s32 %s272, 1
      %p276 = scmp.eq.s32.totalorder %s23, 1
      %p277 = scmp.ne.s32.totalorder %s272, %s274
      %p278 = scmp.eq.s32.totalorder %s23, 0
      %p279 = por %p277, %p278
      %p280 = scmp.ne.s32.totalorder %s272, %s274
      %p281 = scmp.eq.s32.totalorder %s28, 1
      %p282 = por %p280, %p281
      %p283 = scmp.ne.s32.totalorder %s274, %s275
      %p284 = scmp.eq.s32.totalorder %s28, 0
      %p285 = por %p283, %p284
      %p286 = scmp.ne.s32.totalorder %s274, %s275
      %p287 = scmp.eq.s32.totalorder %s29, 1
      %p288 = por %p286, %p287
      %p290 = scmp.ne.s32.totalorder %s275, %s289
      %p291 = scmp.eq.s32.totalorder %s29, 0
      %p292 = por %p290, %p291
      %s293 = ssub.s32 %s23, %s30
      %p294 = scmp.eq.s32.totalorder %s293, 0
      %s296 = sadd.s32 %s295, 1
      %s297 = scalar_select %p294, %s295, %s296
      %p300 = pneg %p294
      %p301 = scmp.eq.s32.totalorder %s23, 1
      %p302 = por %p300, %p301
      %p303 = scmp.ne.s32.totalorder %s295, %s298
      %p304 = scmp.eq.s32.totalorder %s23, 0
      %p305 = por %p303, %p304
      %p306 = scmp.ne.s32.totalorder %s295, %s298
      %p307 = scmp.eq.s32.totalorder %s28, 1
      %p308 = por %p306, %p307
      %p309 = scmp.ne.s32.totalorder %s298, %s299
      %p310 = scmp.eq.s32.totalorder %s28, 0
      %p311 = por %p309, %p310
      %p312 = scmp.ne.s32.totalorder %s298, %s299
      %p313 = scmp.eq.s32.totalorder %s29, 1
      %p314 = por %p312, %p313
      %p316 = scmp.ne.s32.totalorder %s299, %s315
      %p317 = scmp.eq.s32.totalorder %s29, 0
      %p318 = por %p316, %p317
      %s319 = ssub.s32 %s23, %s30
      %p320 = scmp.eq.s32.totalorder %s319, 0
      %s322 = sadd.s32 %s321, 1
      %s323 = scalar_select %p320, %s321, %s322
      %p326 = pneg %p320
      %p327 = scmp.eq.s32.totalorder %s23, 1
      %p328 = por %p326, %p327
      %p329 = scmp.ne.s32.totalorder %s321, %s324
      %p330 = scmp.eq.s32.totalorder %s23, 0
      %p331 = por %p329, %p330
      %p332 = scmp.ne.s32.totalorder %s321, %s324
      %p333 = scmp.eq.s32.totalorder %s28, 1
      %p334 = por %p332, %p333
      %p335 = scmp.ne.s32.totalorder %s324, %s325
      %p336 = scmp.eq.s32.totalorder %s28, 0
      %p337 = por %p335, %p336
      %p338 = scmp.ne.s32.totalorder %s324, %s325
      %p339 = scmp.eq.s32.totalorder %s29, 1
      %p340 = por %p338, %p339
      %p342 = scmp.ne.s32.totalorder %s325, %s341
      %p343 = scmp.eq.s32.totalorder %s29, 0
      %p344 = por %p342, %p343
      %p345 = scmp.le.s32.totalorder 1, %s23
      %p346 = scmp.lt.s32.totalorder %s23, 3
      %p347 = pnand %p345, %p346
      %p348 = pneg %p347
      // Predicated region
      $region9: #{tpu_custom_call.1} parent=5 // pred_check
        _
      $region10: #{tpu_custom_call.1} parent=5 // pred_check_branch
        %350 = sbr.rel (%p347) target = $region12
      $region11: #{tpu_custom_call.1} parent=5 // pred_region
        %s351 = ssub.s32 %s23, 1
        // Predicated region
        $region13: #{tpu_custom_call.1} parent=11 // pred_check
          %p352 = pneg %p96
        $region14: #{tpu_custom_call.1} parent=11 // pred_check_branch
          %354 = sbr.rel (%p352) target = $region16
        $region15: #{tpu_custom_call.1} parent=11 // pred_region
          _
        $region16: #{tpu_custom_call.1} parent=11 // pred_fallthru
          _
        // Predicated region
        $region17: #{tpu_custom_call.1} parent=11 // pred_check
          %p355 = pneg %p117
        $region18: #{tpu_custom_call.1} parent=11 // pred_check_branch
          %357 = sbr.rel (%p355) target = $region20
        $region19: #{tpu_custom_call.1} parent=11 // pred_region
          _
        $region20: #{tpu_custom_call.1} parent=11 // pred_fallthru
          _
        // Predicated region
        $region21: #{tpu_custom_call.1} parent=11 // pred_check
          %p358 = pneg %p138
        $region22: #{tpu_custom_call.1} parent=11 // pred_check_branch
          %360 = sbr.rel (%p358) target = $region24
        $region23: #{tpu_custom_call.1} parent=11 // pred_region
          _
        $region24: #{tpu_custom_call.1} parent=11 // pred_fallthru
          _
        // Predicated region
        $region25: #{tpu_custom_call.1} parent=11 // pred_check
          %p361 = pneg %p159
        $region26: #{tpu_custom_call.1} parent=11 // pred_check_branch
          %363 = sbr.rel (%p361) target = $region28
        $region27: #{tpu_custom_call.1} parent=11 // pred_region
          _
        $region28: #{tpu_custom_call.1} parent=11 // pred_fallthru
          _
        // Predicated region
        $region29: #{tpu_custom_call.1} parent=11 // pred_check
          %p364 = pneg %p180
        $region30: #{tpu_custom_call.1} parent=11 // pred_check_branch
          %366 = sbr.rel (%p364) target = $region32
        $region31: #{tpu_custom_call.1} parent=11 // pred_region
          _
        $region32: #{tpu_custom_call.1} parent=11 // pred_fallthru
          _
        // Predicated region
        $region33: #{tpu_custom_call.1} parent=11 // pred_check
          %p367 = pneg %p201
        $region34: #{tpu_custom_call.1} parent=11 // pred_check_branch
          %369 = sbr.rel (%p367) target = $region36
        $region35: #{tpu_custom_call.1} parent=11 // pred_region
          _
        $region36: #{tpu_custom_call.1} parent=11 // pred_fallthru
          _
        // Predicated region
        $region37: #{tpu_custom_call.1} parent=11 // pred_check
          %p370 = pneg %p222
        $region38: #{tpu_custom_call.1} parent=11 // pred_check_branch
          %372 = sbr.rel (%p370) target = $region40
        $region39: #{tpu_custom_call.1} parent=11 // pred_region
          _
        $region40: #{tpu_custom_call.1} parent=11 // pred_fallthru
          _
        // Predicated region
        $region41: #{tpu_custom_call.1} parent=11 // pred_check
          %p373 = pneg %p243
        $region42: #{tpu_custom_call.1} parent=11 // pred_check_branch
          %375 = sbr.rel (%p373) target = $region44
        $region43: #{tpu_custom_call.1} parent=11 // pred_region
          _
        $region44: #{tpu_custom_call.1} parent=11 // pred_fallthru
          _
        // Predicated region
        $region45: #{tpu_custom_call.1} parent=11 // pred_check
          %p376 = pneg %p264
        $region46: #{tpu_custom_call.1} parent=11 // pred_check_branch
          %378 = sbr.rel (%p376) target = $region48
        $region47: #{tpu_custom_call.1} parent=11 // pred_region
          _
        $region48: #{tpu_custom_call.1} parent=11 // pred_fallthru
          _
        // Predicated region
        $region49: #{tpu_custom_call.1} parent=11 // pred_check
          %p379 = pneg %p285
        $region50: #{tpu_custom_call.1} parent=11 // pred_check_branch
          %381 = sbr.rel (%p379) target = $region52
        $region51: #{tpu_custom_call.1} parent=11 // pred_region
          _
        $region52: #{tpu_custom_call.1} parent=11 // pred_fallthru
          _
      $region12: #{tpu_custom_call.1} parent=5 // pred_fallthru
        _
      %p382 = scmp.lt.s32.totalorder %s23, 2
      // Predicated region
      $region53: #{tpu_custom_call.1} parent=5 // pred_check
        %p383 = pneg %p382
      $region54: #{tpu_custom_call.1} parent=5 // pred_check_branch
        %385 = sbr.rel (%p383) target = $region56
      $region55: #{tpu_custom_call.1} parent=5 // pred_region
        // Predicated region
        $region57: #{tpu_custom_call.1} parent=55 // pred_check
          %p386 = pneg %p43
        $region58: #{tpu_custom_call.1} parent=55 // pred_check_branch
          %388 = sbr.rel (%p386) target = $region60
        $region59: #{tpu_custom_call.1} parent=55 // pred_region
          %s389 = smul.u32 32, %s23
          %p390 = scmp.lt.s32.totalorder %s389, 63
          %s391 = scalar_select %p390, %s389, 63
          %s392 = smul.addr %s391, 8
          %s393 = scalar_lea.vmem %s0, %s392
          %s394 = smul.u32 32, %s23
        $region60: #{tpu_custom_call.1} parent=55 // pred_fallthru
          _
        // Predicated region
        $region61: #{tpu_custom_call.1} parent=55 // pred_check
          %p395 = pneg %p69
        $region62: #{tpu_custom_call.1} parent=55 // pred_check_branch
          %397 = sbr.rel (%p395) target = $region64
        $region63: #{tpu_custom_call.1} parent=55 // pred_region
          %s398 = smul.u32 32, %s23
          %p399 = scmp.lt.s32.totalorder %s398, 63
          %s400 = scalar_select %p399, %s398, 63
          %s401 = smul.addr %s400, 4
          %s402 = scalar_lea.vmem %s1, %s401
          %s403 = smul.u32 32, %s23
        $region64: #{tpu_custom_call.1} parent=55 // pred_fallthru
          _
      $region56: #{tpu_custom_call.1} parent=5 // pred_fallthru
        _
      %p404 = scmp.le.s32.totalorder 1, %s23
      %p405 = scmp.lt.s32.totalorder %s23, 3
      %p406 = pnand %p404, %p405
      %p407 = pneg %p406
      // Predicated region
      $region65: #{tpu_custom_call.1} parent=5 // pred_check
        _
      $region66: #{tpu_custom_call.1} parent=5 // pred_check_branch
        %409 = sbr.rel (%p406) target = $region68
      $region67: #{tpu_custom_call.1} parent=5 // pred_region
        %s410 = ssub.s32 %s23, 1
        %s411 = smul.u32 32, %s28
        %p412 = scmp.lt.s32.totalorder %s411, 63
        %s413 = scalar_select %p412, %s411, 63
        %s414 = smul.addr %s413, 8
        %s415 = scalar_lea.vmem %s0, %s414
        %p416 = pneg %p49
        %p417 = pneg %p46
        %s418 = smul.u32 32, %s28
        %p419 = scmp.lt.s32.totalorder %s418, 63
        %s420 = scalar_select %p419, %s418, 63
        %s421 = smul.addr %s420, 4
        %s422 = scalar_lea.vmem %s1, %s421
        %p423 = pneg %p75
        %p424 = pneg %p72
        %p425 = pneg %p96
        %p426 = pneg %p93
        %p427 = pneg %p117
        %p428 = pneg %p114
        %p429 = pneg %p138
        %p430 = pneg %p135
        %p431 = pneg %p159
        %p432 = pneg %p156
        %p433 = pneg %p180
        %p434 = pneg %p177
        %p435 = pneg %p201
        %p436 = pneg %p198
        %p437 = pneg %p222
        %p438 = pneg %p219
        %p439 = pneg %p243
        %p440 = pneg %p240
        %p441 = pneg %p264
        %p442 = pneg %p261
        %p443 = pneg %p285
        %p444 = pneg %p282
        %p445 = pneg %p311
        %p446 = pneg %p308
        %s447 = smul.u32 32, %s28
        %p448 = scmp.lt.s32.totalorder %s447, 63
        %s449 = scalar_select %p448, %s447, 63
        %s450 = smul.addr %s449, 8
        %s451 = scalar_lea.vmem %s12, %s450
        %p452 = pneg %p337
        %p453 = pneg %p334
        %s454 = sand.u32 %s324, 1
        %s455 = scalar_lea.sflag [#allocation3], %s454
        %s456 = sand.u32 %s324, 1
        %s457 = smul.addr %s456, 128
        %s458 = scalar_lea.vmem [#allocation2], %s457
        %s459 = smul.u32 32, %s28
        %p460 = scmp.lt.s32.totalorder %s459, 63
        %s461 = scalar_select %p460, %s459, 63
        %s462 = smul.addr %s461, 8
        %s463 = scalar_lea.vmem %s0, %s462
        %s464 = smul.u32 32, %s28
        %s465 = smul.u32 32, %s28
        %p466 = scmp.lt.s32.totalorder %s465, 63
        %s467 = scalar_select %p466, %s465, 63
        %s468 = smul.addr %s467, 4
        %s469 = scalar_lea.vmem %s1, %s468
        %s470 = smul.u32 32, %s28
        %s471 = smul.u32 32, %s28
        %p472 = scmp.lt.s32.totalorder %s471, 63
        %s473 = scalar_select %p472, %s471, 63
        %s474 = smul.addr %s473, 8
        %s475 = scalar_lea.vmem %s12, %s474
        %s476 = smul.u32 32, %s28
        %s477 = smul.u32 32, %s28
        %v479 = vld [vmem:[%s463] sm:$0xff]
        %v480 = vld [vmem:[%s463 + $0x8] sm:$0xff]
        %v481 = vld [vmem:[%s463 + $0x10] sm:$0xff]
        %v482 = vld [vmem:[%s463 + $0x18] sm:$0xff]
        %v483 = vld [vmem:[%s463 + $0x20] sm:$0xff]
        %v484 = vld [vmem:[%s463 + $0x28] sm:$0xff]
        %v485 = vld [vmem:[%s463 + $0x30] sm:$0xff]
        %v486 = vld [vmem:[%s463 + $0x38] sm:$0xff]
        %v487 = vld [vmem:[%s463 + $0x40] sm:$0xff]
        %v488 = vld [vmem:[%s463 + $0x48] sm:$0xff]
        %v489 = vld [vmem:[%s463 + $0x50] sm:$0xff]
        %v490 = vld [vmem:[%s463 + $0x58] sm:$0xff]
        %v491 = vld [vmem:[%s463 + $0x60] sm:$0xff]
        %v492 = vld [vmem:[%s463 + $0x68] sm:$0xff]
        %v493 = vld [vmem:[%s463 + $0x70] sm:$0xff]
        %v494 = vld [vmem:[%s463 + $0x78] sm:$0xff]
        %v495 = vld [vmem:[%s463 + $0x80] sm:$0xff]
        %v496 = vld [vmem:[%s463 + $0x88] sm:$0xff]
        %v497 = vld [vmem:[%s463 + $0x90] sm:$0xff]
        %v498 = vld [vmem:[%s463 + $0x98] sm:$0xff]
        %v499 = vld [vmem:[%s463 + $0xa0] sm:$0xff]
        %v500 = vld [vmem:[%s463 + $0xa8] sm:$0xff]
        %v501 = vld [vmem:[%s463 + $0xb0] sm:$0xff]
        %v502 = vld [vmem:[%s463 + $0xb8] sm:$0xff]
        %v503 = vld [vmem:[%s463 + $0xc0] sm:$0xff]
        %v504 = vld [vmem:[%s463 + $0xc8] sm:$0xff]
        %v505 = vld [vmem:[%s463 + $0xd0] sm:$0xff]
        %v506 = vld [vmem:[%s463 + $0xd8] sm:$0xff]
        %v507 = vld [vmem:[%s463 + $0xe0] sm:$0xff]
        %v508 = vld [vmem:[%s463 + $0xe8] sm:$0xff]
        %v509 = vld [vmem:[%s463 + $0xf0] sm:$0xff]
        %v510 = vld [vmem:[%s463 + $0xf8] sm:$0xff]
        %v511 = vld [vmem:[%s2] sm:$0x7]
        %513 = vset.pattern.permute.xlu0 0
        %514 = vperm.xlu0 %513, %v479
        %v515 = vpop.permute.xlu0 %514
        %518 = vset.pattern.permute.xlu0 0
        %519 = vperm.xlu0 %518, %v480
        %v520 = vpop.permute.xlu0 %519
        %523 = vset.pattern.permute.xlu0 0
        %524 = vperm.xlu0 %523, %v481
        %v525 = vpop.permute.xlu0 %524
        %528 = vset.pattern.permute.xlu0 0
        %529 = vperm.xlu0 %528, %v482
        %v530 = vpop.permute.xlu0 %529
        %533 = vset.pattern.permute.xlu0 0
        %534 = vperm.xlu0 %533, %v483
        %v535 = vpop.permute.xlu0 %534
        %538 = vset.pattern.permute.xlu0 0
        %539 = vperm.xlu0 %538, %v484
        %v540 = vpop.permute.xlu0 %539
        %543 = vset.pattern.permute.xlu0 0
        %544 = vperm.xlu0 %543, %v485
        %v545 = vpop.permute.xlu0 %544
        %548 = vset.pattern.permute.xlu0 0
        %549 = vperm.xlu0 %548, %v486
        %v550 = vpop.permute.xlu0 %549
        %553 = vset.pattern.permute.xlu0 0
        %554 = vperm.xlu0 %553, %v487
        %v555 = vpop.permute.xlu0 %554
        %558 = vset.pattern.permute.xlu0 0
        %559 = vperm.xlu0 %558, %v488
        %v560 = vpop.permute.xlu0 %559
        %563 = vset.pattern.permute.xlu0 0
        %564 = vperm.xlu0 %563, %v489
        %v565 = vpop.permute.xlu0 %564
        %568 = vset.pattern.permute.xlu0 0
        %569 = vperm.xlu0 %568, %v490
        %v570 = vpop.permute.xlu0 %569
        %573 = vset.pattern.permute.xlu0 0
        %574 = vperm.xlu0 %573, %v491
        %v575 = vpop.permute.xlu0 %574
        %578 = vset.pattern.permute.xlu0 0
        %579 = vperm.xlu0 %578, %v492
        %v580 = vpop.permute.xlu0 %579
        %583 = vset.pattern.permute.xlu0 0
        %584 = vperm.xlu0 %583, %v493
        %v585 = vpop.permute.xlu0 %584
        %588 = vset.pattern.permute.xlu0 0
        %589 = vperm.xlu0 %588, %v494
        %v590 = vpop.permute.xlu0 %589
        %593 = vset.pattern.permute.xlu0 0
        %594 = vperm.xlu0 %593, %v495
        %v595 = vpop.permute.xlu0 %594
        %598 = vset.pattern.permute.xlu0 0
        %599 = vperm.xlu0 %598, %v496
        %v600 = vpop.permute.xlu0 %599
        %603 = vset.pattern.permute.xlu0 0
        %604 = vperm.xlu0 %603, %v497
        %v605 = vpop.permute.xlu0 %604
        %608 = vset.pattern.permute.xlu0 0
        %609 = vperm.xlu0 %608, %v498
        %v610 = vpop.permute.xlu0 %609
        %613 = vset.pattern.permute.xlu0 0
        %614 = vperm.xlu0 %613, %v499
        %v615 = vpop.permute.xlu0 %614
        %618 = vset.pattern.permute.xlu0 0
        %619 = vperm.xlu0 %618, %v500
        %v620 = vpop.permute.xlu0 %619
        %623 = vset.pattern.permute.xlu0 0
        %624 = vperm.xlu0 %623, %v501
        %v625 = vpop.permute.xlu0 %624
        %628 = vset.pattern.permute.xlu0 0
        %629 = vperm.xlu0 %628, %v502
        %v630 = vpop.permute.xlu0 %629
        %633 = vset.pattern.permute.xlu0 0
        %634 = vperm.xlu0 %633, %v503
        %v635 = vpop.permute.xlu0 %634
        %638 = vset.pattern.permute.xlu0 0
        %639 = vperm.xlu0 %638, %v504
        %v640 = vpop.permute.xlu0 %639
        %643 = vset.pattern.permute.xlu0 0
        %644 = vperm.xlu0 %643, %v505
        %v645 = vpop.permute.xlu0 %644
        %648 = vset.pattern.permute.xlu0 0
        %649 = vperm.xlu0 %648, %v506
        %v650 = vpop.permute.xlu0 %649
        %653 = vset.pattern.permute.xlu0 0
        %654 = vperm.xlu0 %653, %v507
        %v655 = vpop.permute.xlu0 %654
        %658 = vset.pattern.permute.xlu0 0
        %659 = vperm.xlu0 %658, %v508
        %v660 = vpop.permute.xlu0 %659
        %663 = vset.pattern.permute.xlu0 0
        %664 = vperm.xlu0 %663, %v509
        %v665 = vpop.permute.xlu0 %664
        %668 = vset.pattern.permute.xlu0 0
        %669 = vperm.xlu0 %668, %v510
        %v670 = vpop.permute.xlu0 %669
        %v672 = vperm.slane %v511, 0
        %v673 = vmul.f32 %v515, %v672
        %v674 = vmul.f32 %v520, %v672
        %v675 = vmul.f32 %v525, %v672
        %v676 = vmul.f32 %v530, %v672
        %v677 = vmul.f32 %v535, %v672
        %v678 = vmul.f32 %v540, %v672
        %v679 = vmul.f32 %v545, %v672
        %v680 = vmul.f32 %v550, %v672
        %v681 = vmul.f32 %v555, %v672
        %v682 = vmul.f32 %v560, %v672
        %v683 = vmul.f32 %v565, %v672
        %v684 = vmul.f32 %v570, %v672
        %v685 = vmul.f32 %v575, %v672
        %v686 = vmul.f32 %v580, %v672
        %v687 = vmul.f32 %v585, %v672
        %v688 = vmul.f32 %v590, %v672
        %v689 = vmul.f32 %v595, %v672
        %v690 = vmul.f32 %v600, %v672
        %v691 = vmul.f32 %v605, %v672
        %v692 = vmul.f32 %v610, %v672
        %v693 = vmul.f32 %v615, %v672
        %v694 = vmul.f32 %v620, %v672
        %v695 = vmul.f32 %v625, %v672
        %v696 = vmul.f32 %v630, %v672
        %v697 = vmul.f32 %v635, %v672
        %v698 = vmul.f32 %v640, %v672
        %v699 = vmul.f32 %v645, %v672
        %v700 = vmul.f32 %v650, %v672
        %v701 = vmul.f32 %v655, %v672
        %v702 = vmul.f32 %v660, %v672
        %v703 = vmul.f32 %v665, %v672
        %v704 = vmul.f32 %v670, %v672
        %705 = vset.pattern.permute.xlu0 1
        %706 = vperm.xlu0 %705, %v479
        %v707 = vpop.permute.xlu0 %706
        %709 = vset.pattern.permute.xlu0 1
        %710 = vperm.xlu0 %709, %v480
        %v711 = vpop.permute.xlu0 %710
        %713 = vset.pattern.permute.xlu0 1
        %714 = vperm.xlu0 %713, %v481
        %v715 = vpop.permute.xlu0 %714
        %717 = vset.pattern.permute.xlu0 1
        %718 = vperm.xlu0 %717, %v482
        %v719 = vpop.permute.xlu0 %718
        %721 = vset.pattern.permute.xlu0 1
        %722 = vperm.xlu0 %721, %v483
        %v723 = vpop.permute.xlu0 %722
        %725 = vset.pattern.permute.xlu0 1
        %726 = vperm.xlu0 %725, %v484
        %v727 = vpop.permute.xlu0 %726
        %729 = vset.pattern.permute.xlu0 1
        %730 = vperm.xlu0 %729, %v485
        %v731 = vpop.permute.xlu0 %730
        %733 = vset.pattern.permute.xlu0 1
        %734 = vperm.xlu0 %733, %v486
        %v735 = vpop.permute.xlu0 %734
        %737 = vset.pattern.permute.xlu0 1
        %738 = vperm.xlu0 %737, %v487
        %v739 = vpop.permute.xlu0 %738
        %741 = vset.pattern.permute.xlu0 1
        %742 = vperm.xlu0 %741, %v488
        %v743 = vpop.permute.xlu0 %742
        %745 = vset.pattern.permute.xlu0 1
        %746 = vperm.xlu0 %745, %v489
        %v747 = vpop.permute.xlu0 %746
        %749 = vset.pattern.permute.xlu0 1
        %750 = vperm.xlu0 %749, %v490
        %v751 = vpop.permute.xlu0 %750
        %753 = vset.pattern.permute.xlu0 1
        %754 = vperm.xlu0 %753, %v491
        %v755 = vpop.permute.xlu0 %754
        %757 = vset.pattern.permute.xlu0 1
        %758 = vperm.xlu0 %757, %v492
        %v759 = vpop.permute.xlu0 %758
        %761 = vset.pattern.permute.xlu0 1
        %762 = vperm.xlu0 %761, %v493
        %v763 = vpop.permute.xlu0 %762
        %765 = vset.pattern.permute.xlu0 1
        %766 = vperm.xlu0 %765, %v494
        %v767 = vpop.permute.xlu0 %766
        %769 = vset.pattern.permute.xlu0 1
        %770 = vperm.xlu0 %769, %v495
        %v771 = vpop.permute.xlu0 %770
        %773 = vset.pattern.permute.xlu0 1
        %774 = vperm.xlu0 %773, %v496
        %v775 = vpop.permute.xlu0 %774
        %777 = vset.pattern.permute.xlu0 1
        %778 = vperm.xlu0 %777, %v497
        %v779 = vpop.permute.xlu0 %778
        %781 = vset.pattern.permute.xlu0 1
        %782 = vperm.xlu0 %781, %v498
        %v783 = vpop.permute.xlu0 %782
        %785 = vset.pattern.permute.xlu0 1
        %786 = vperm.xlu0 %785, %v499
        %v787 = vpop.permute.xlu0 %786
        %789 = vset.pattern.permute.xlu0 1
        %790 = vperm.xlu0 %789, %v500
        %v791 = vpop.permute.xlu0 %790
        %793 = vset.pattern.permute.xlu0 1
        %794 = vperm.xlu0 %793, %v501
        %v795 = vpop.permute.xlu0 %794
        %797 = vset.pattern.permute.xlu0 1
        %798 = vperm.xlu0 %797, %v502
        %v799 = vpop.permute.xlu0 %798
        %801 = vset.pattern.permute.xlu0 1
        %802 = vperm.xlu0 %801, %v503
        %v803 = vpop.permute.xlu0 %802
        %805 = vset.pattern.permute.xlu0 1
        %806 = vperm.xlu0 %805, %v504
        %v807 = vpop.permute.xlu0 %806
        %809 = vset.pattern.permute.xlu0 1
        %810 = vperm.xlu0 %809, %v505
        %v811 = vpop.permute.xlu0 %810
        %813 = vset.pattern.permute.xlu0 1
        %814 = vperm.xlu0 %813, %v506
        %v815 = vpop.permute.xlu0 %814
        %817 = vset.pattern.permute.xlu0 1
        %818 = vperm.xlu0 %817, %v507
        %v819 = vpop.permute.xlu0 %818
        %821 = vset.pattern.permute.xlu0 1
        %822 = vperm.xlu0 %821, %v508
        %v823 = vpop.permute.xlu0 %822
        %825 = vset.pattern.permute.xlu0 1
        %826 = vperm.xlu0 %825, %v509
        %v827 = vpop.permute.xlu0 %826
        %829 = vset.pattern.permute.xlu0 1
        %830 = vperm.xlu0 %829, %v510
        %v831 = vpop.permute.xlu0 %830
        %v833 = vperm.slane %v511, 1
        %v834 = vmul.f32 %v707, %v833
        %v835 = vmul.f32 %v711, %v833
        %v836 = vmul.f32 %v715, %v833
        %v837 = vmul.f32 %v719, %v833
        %v838 = vmul.f32 %v723, %v833
        %v839 = vmul.f32 %v727, %v833
        %v840 = vmul.f32 %v731, %v833
        %v841 = vmul.f32 %v735, %v833
        %v842 = vmul.f32 %v739, %v833
        %v843 = vmul.f32 %v743, %v833
        %v844 = vmul.f32 %v747, %v833
        %v845 = vmul.f32 %v751, %v833
        %v846 = vmul.f32 %v755, %v833
        %v847 = vmul.f32 %v759, %v833
        %v848 = vmul.f32 %v763, %v833
        %v849 = vmul.f32 %v767, %v833
        %v850 = vmul.f32 %v771, %v833
        %v851 = vmul.f32 %v775, %v833
        %v852 = vmul.f32 %v779, %v833
        %v853 = vmul.f32 %v783, %v833
        %v854 = vmul.f32 %v787, %v833
        %v855 = vmul.f32 %v791, %v833
        %v856 = vmul.f32 %v795, %v833
        %v857 = vmul.f32 %v799, %v833
        %v858 = vmul.f32 %v803, %v833
        %v859 = vmul.f32 %v807, %v833
        %v860 = vmul.f32 %v811, %v833
        %v861 = vmul.f32 %v815, %v833
        %v862 = vmul.f32 %v819, %v833
        %v863 = vmul.f32 %v823, %v833
        %v864 = vmul.f32 %v827, %v833
        %v865 = vmul.f32 %v831, %v833
        %v866 = vadd.f32 %v673, %v834
        %v867 = vadd.f32 %v674, %v835
        %v868 = vadd.f32 %v675, %v836
        %v869 = vadd.f32 %v676, %v837
        %v870 = vadd.f32 %v677, %v838
        %v871 = vadd.f32 %v678, %v839
        %v872 = vadd.f32 %v679, %v840
        %v873 = vadd.f32 %v680, %v841
        %v874 = vadd.f32 %v681, %v842
        %v875 = vadd.f32 %v682, %v843
        %v876 = vadd.f32 %v683, %v844
        %v877 = vadd.f32 %v684, %v845
        %v878 = vadd.f32 %v685, %v846
        %v879 = vadd.f32 %v686, %v847
        %v880 = vadd.f32 %v687, %v848
        %v881 = vadd.f32 %v688, %v849
        %v882 = vadd.f32 %v689, %v850
        %v883 = vadd.f32 %v690, %v851
        %v884 = vadd.f32 %v691, %v852
        %v885 = vadd.f32 %v692, %v853
        %v886 = vadd.f32 %v693, %v854
        %v887 = vadd.f32 %v694, %v855
        %v888 = vadd.f32 %v695, %v856
        %v889 = vadd.f32 %v696, %v857
        %v890 = vadd.f32 %v697, %v858
        %v891 = vadd.f32 %v698, %v859
        %v892 = vadd.f32 %v699, %v860
        %v893 = vadd.f32 %v700, %v861
        %v894 = vadd.f32 %v701, %v862
        %v895 = vadd.f32 %v702, %v863
        %v896 = vadd.f32 %v703, %v864
        %v897 = vadd.f32 %v704, %v865
        %898 = vset.pattern.permute.xlu0 2
        %899 = vperm.xlu0 %898, %v479
        %v900 = vpop.permute.xlu0 %899
        %902 = vset.pattern.permute.xlu0 2
        %903 = vperm.xlu0 %902, %v480
        %v904 = vpop.permute.xlu0 %903
        %906 = vset.pattern.permute.xlu0 2
        %907 = vperm.xlu0 %906, %v481
        %v908 = vpop.permute.xlu0 %907
        %910 = vset.pattern.permute.xlu0 2
        %911 = vperm.xlu0 %910, %v482
        %v912 = vpop.permute.xlu0 %911
        %914 = vset.pattern.permute.xlu0 2
        %915 = vperm.xlu0 %914, %v483
        %v916 = vpop.permute.xlu0 %915
        %918 = vset.pattern.permute.xlu0 2
        %919 = vperm.xlu0 %918, %v484
        %v920 = vpop.permute.xlu0 %919
        %922 = vset.pattern.permute.xlu0 2
        %923 = vperm.xlu0 %922, %v485
        %v924 = vpop.permute.xlu0 %923
        %926 = vset.pattern.permute.xlu0 2
        %927 = vperm.xlu0 %926, %v486
        %v928 = vpop.permute.xlu0 %927
        %930 = vset.pattern.permute.xlu0 2
        %931 = vperm.xlu0 %930, %v487
        %v932 = vpop.permute.xlu0 %931
        %934 = vset.pattern.permute.xlu0 2
        %935 = vperm.xlu0 %934, %v488
        %v936 = vpop.permute.xlu0 %935
        %938 = vset.pattern.permute.xlu0 2
        %939 = vperm.xlu0 %938, %v489
        %v940 = vpop.permute.xlu0 %939
        %942 = vset.pattern.permute.xlu0 2
        %943 = vperm.xlu0 %942, %v490
        %v944 = vpop.permute.xlu0 %943
        %946 = vset.pattern.permute.xlu0 2
        %947 = vperm.xlu0 %946, %v491
        %v948 = vpop.permute.xlu0 %947
        %950 = vset.pattern.permute.xlu0 2
        %951 = vperm.xlu0 %950, %v492
        %v952 = vpop.permute.xlu0 %951
        %954 = vset.pattern.permute.xlu0 2
        %955 = vperm.xlu0 %954, %v493
        %v956 = vpop.permute.xlu0 %955
        %958 = vset.pattern.permute.xlu0 2
        %959 = vperm.xlu0 %958, %v494
        %v960 = vpop.permute.xlu0 %959
        %962 = vset.pattern.permute.xlu0 2
        %963 = vperm.xlu0 %962, %v495
        %v964 = vpop.permute.xlu0 %963
        %966 = vset.pattern.permute.xlu0 2
        %967 = vperm.xlu0 %966, %v496
        %v968 = vpop.permute.xlu0 %967
        %970 = vset.pattern.permute.xlu0 2
        %971 = vperm.xlu0 %970, %v497
        %v972 = vpop.permute.xlu0 %971
        %974 = vset.pattern.permute.xlu0 2
        %975 = vperm.xlu0 %974, %v498
        %v976 = vpop.permute.xlu0 %975
        %978 = vset.pattern.permute.xlu0 2
        %979 = vperm.xlu0 %978, %v499
        %v980 = vpop.permute.xlu0 %979
        %982 = vset.pattern.permute.xlu0 2
        %983 = vperm.xlu0 %982, %v500
        %v984 = vpop.permute.xlu0 %983
        %986 = vset.pattern.permute.xlu0 2
        %987 = vperm.xlu0 %986, %v501
        %v988 = vpop.permute.xlu0 %987
        %990 = vset.pattern.permute.xlu0 2
        %991 = vperm.xlu0 %990, %v502
        %v992 = vpop.permute.xlu0 %991
        %994 = vset.pattern.permute.xlu0 2
        %995 = vperm.xlu0 %994, %v503
        %v996 = vpop.permute.xlu0 %995
        %998 = vset.pattern.permute.xlu0 2
        %999 = vperm.xlu0 %998, %v504
        %v1000 = vpop.permute.xlu0 %999
        %1002 = vset.pattern.permute.xlu0 2
        %1003 = vperm.xlu0 %1002, %v505
        %v1004 = vpop.permute.xlu0 %1003
        %1006 = vset.pattern.permute.xlu0 2
        %1007 = vperm.xlu0 %1006, %v506
        %v1008 = vpop.permute.xlu0 %1007
        %1010 = vset.pattern.permute.xlu0 2
        %1011 = vperm.xlu0 %1010, %v507
        %v1012 = vpop.permute.xlu0 %1011
        %1014 = vset.pattern.permute.xlu0 2
        %1015 = vperm.xlu0 %1014, %v508
        %v1016 = vpop.permute.xlu0 %1015
        %1018 = vset.pattern.permute.xlu0 2
        %1019 = vperm.xlu0 %1018, %v509
        %v1020 = vpop.permute.xlu0 %1019
        %1022 = vset.pattern.permute.xlu0 2
        %1023 = vperm.xlu0 %1022, %v510
        %v1024 = vpop.permute.xlu0 %1023
        %v1026 = vperm.slane %v511, 2
        %v1027 = vmul.f32 %v900, %v1026
        %v1028 = vmul.f32 %v904, %v1026
        %v1029 = vmul.f32 %v908, %v1026
        %v1030 = vmul.f32 %v912, %v1026
        %v1031 = vmul.f32 %v916, %v1026
        %v1032 = vmul.f32 %v920, %v1026
        %v1033 = vmul.f32 %v924, %v1026
        %v1034 = vmul.f32 %v928, %v1026
        %v1035 = vmul.f32 %v932, %v1026
        %v1036 = vmul.f32 %v936, %v1026
        %v1037 = vmul.f32 %v940, %v1026
        %v1038 = vmul.f32 %v944, %v1026
        %v1039 = vmul.f32 %v948, %v1026
        %v1040 = vmul.f32 %v952, %v1026
        %v1041 = vmul.f32 %v956, %v1026
        %v1042 = vmul.f32 %v960, %v1026
        %v1043 = vmul.f32 %v964, %v1026
        %v1044 = vmul.f32 %v968, %v1026
        %v1045 = vmul.f32 %v972, %v1026
        %v1046 = vmul.f32 %v976, %v1026
        %v1047 = vmul.f32 %v980, %v1026
        %v1048 = vmul.f32 %v984, %v1026
        %v1049 = vmul.f32 %v988, %v1026
        %v1050 = vmul.f32 %v992, %v1026
        %v1051 = vmul.f32 %v996, %v1026
        %v1052 = vmul.f32 %v1000, %v1026
        %v1053 = vmul.f32 %v1004, %v1026
        %v1054 = vmul.f32 %v1008, %v1026
        %v1055 = vmul.f32 %v1012, %v1026
        %v1056 = vmul.f32 %v1016, %v1026
        %v1057 = vmul.f32 %v1020, %v1026
        %v1058 = vmul.f32 %v1024, %v1026
        %v1059 = vadd.f32 %v866, %v1027
        %v1060 = vadd.f32 %v867, %v1028
        %v1061 = vadd.f32 %v868, %v1029
        %v1062 = vadd.f32 %v869, %v1030
        %v1063 = vadd.f32 %v870, %v1031
        %v1064 = vadd.f32 %v871, %v1032
        %v1065 = vadd.f32 %v872, %v1033
        %v1066 = vadd.f32 %v873, %v1034
        %v1067 = vadd.f32 %v874, %v1035
        %v1068 = vadd.f32 %v875, %v1036
        %v1069 = vadd.f32 %v876, %v1037
        %v1070 = vadd.f32 %v877, %v1038
        %v1071 = vadd.f32 %v878, %v1039
        %v1072 = vadd.f32 %v879, %v1040
        %v1073 = vadd.f32 %v880, %v1041
        %v1074 = vadd.f32 %v881, %v1042
        %v1075 = vadd.f32 %v882, %v1043
        %v1076 = vadd.f32 %v883, %v1044
        %v1077 = vadd.f32 %v884, %v1045
        %v1078 = vadd.f32 %v885, %v1046
        %v1079 = vadd.f32 %v886, %v1047
        %v1080 = vadd.f32 %v887, %v1048
        %v1081 = vadd.f32 %v888, %v1049
        %v1082 = vadd.f32 %v889, %v1050
        %v1083 = vadd.f32 %v890, %v1051
        %v1084 = vadd.f32 %v891, %v1052
        %v1085 = vadd.f32 %v892, %v1053
        %v1086 = vadd.f32 %v893, %v1054
        %v1087 = vadd.f32 %v894, %v1055
        %v1088 = vadd.f32 %v895, %v1056
        %v1089 = vadd.f32 %v896, %v1057
        %v1090 = vadd.f32 %v897, %v1058
        %v1091 = vld [vmem:[%s3] sm:$0x1]
        %v1093 = vperm.slane %v1091, 0
        %v1095 = vadd.f32 %v1059, %v1093
        %v1096 = vadd.f32 %v1060, %v1093
        %v1097 = vadd.f32 %v1061, %v1093
        %v1098 = vadd.f32 %v1062, %v1093
        %v1099 = vadd.f32 %v1063, %v1093
        %v1100 = vadd.f32 %v1064, %v1093
        %v1101 = vadd.f32 %v1065, %v1093
        %v1102 = vadd.f32 %v1066, %v1093
        %v1103 = vadd.f32 %v1067, %v1093
        %v1104 = vadd.f32 %v1068, %v1093
        %v1105 = vadd.f32 %v1069, %v1093
        %v1106 = vadd.f32 %v1070, %v1093
        %v1107 = vadd.f32 %v1071, %v1093
        %v1108 = vadd.f32 %v1072, %v1093
        %v1109 = vadd.f32 %v1073, %v1093
        %v1110 = vadd.f32 %v1074, %v1093
        %v1111 = vadd.f32 %v1075, %v1093
        %v1112 = vadd.f32 %v1076, %v1093
        %v1113 = vadd.f32 %v1077, %v1093
        %v1114 = vadd.f32 %v1078, %v1093
        %v1115 = vadd.f32 %v1079, %v1093
        %v1116 = vadd.f32 %v1080, %v1093
        %v1117 = vadd.f32 %v1081, %v1093
        %v1118 = vadd.f32 %v1082, %v1093
        %v1119 = vadd.f32 %v1083, %v1093
        %v1120 = vadd.f32 %v1084, %v1093
        %v1121 = vadd.f32 %v1085, %v1093
        %v1122 = vadd.f32 %v1086, %v1093
        %v1123 = vadd.f32 %v1087, %v1093
        %v1124 = vadd.f32 %v1088, %v1093
        %v1125 = vadd.f32 %v1089, %v1093
        %v1126 = vadd.f32 %v1090, %v1093
        %v1127 = vmax.f32 %v1095, 0.0
        %v1128 = vmax.f32 %v1096, 0.0
        %v1129 = vmax.f32 %v1097, 0.0
        %v1130 = vmax.f32 %v1098, 0.0
        %v1131 = vmax.f32 %v1099, 0.0
        %v1132 = vmax.f32 %v1100, 0.0
        %v1133 = vmax.f32 %v1101, 0.0
        %v1134 = vmax.f32 %v1102, 0.0
        %v1135 = vmax.f32 %v1103, 0.0
        %v1136 = vmax.f32 %v1104, 0.0
        %v1137 = vmax.f32 %v1105, 0.0
        %v1138 = vmax.f32 %v1106, 0.0
        %v1139 = vmax.f32 %v1107, 0.0
        %v1140 = vmax.f32 %v1108, 0.0
        %v1141 = vmax.f32 %v1109, 0.0
        %v1142 = vmax.f32 %v1110, 0.0
        %v1143 = vmax.f32 %v1111, 0.0
        %v1144 = vmax.f32 %v1112, 0.0
        %v1145 = vmax.f32 %v1113, 0.0
        %v1146 = vmax.f32 %v1114, 0.0
        %v1147 = vmax.f32 %v1115, 0.0
        %v1148 = vmax.f32 %v1116, 0.0
        %v1149 = vmax.f32 %v1117, 0.0
        %v1150 = vmax.f32 %v1118, 0.0
        %v1151 = vmax.f32 %v1119, 0.0
        %v1152 = vmax.f32 %v1120, 0.0
        %v1153 = vmax.f32 %v1121, 0.0
        %v1154 = vmax.f32 %v1122, 0.0
        %v1155 = vmax.f32 %v1123, 0.0
        %v1156 = vmax.f32 %v1124, 0.0
        %v1157 = vmax.f32 %v1125, 0.0
        %v1158 = vmax.f32 %v1126, 0.0
        %v1159 = vpack.c.bf16 %v1128, %v1127
        %v1160 = vpack.c.bf16 %v1130, %v1129
        %v1161 = vpack.c.bf16 %v1132, %v1131
        %v1162 = vpack.c.bf16 %v1134, %v1133
        %v1163 = vpack.c.bf16 %v1136, %v1135
        %v1164 = vpack.c.bf16 %v1138, %v1137
        %v1165 = vpack.c.bf16 %v1140, %v1139
        %v1166 = vpack.c.bf16 %v1142, %v1141
        %v1167 = vpack.c.bf16 %v1144, %v1143
        %v1168 = vpack.c.bf16 %v1146, %v1145
        %v1169 = vpack.c.bf16 %v1148, %v1147
        %v1170 = vpack.c.bf16 %v1150, %v1149
        %v1171 = vpack.c.bf16 %v1152, %v1151
        %v1172 = vpack.c.bf16 %v1154, %v1153
        %v1173 = vpack.c.bf16 %v1156, %v1155
        %v1174 = vpack.c.bf16 %v1158, %v1157
        %v1175 = vld [vmem:[%s4] sm:$0xf]
        %v1176 = vld [vmem:[%s4 + $0x4] sm:$0xf]
        %v1177 = vld [vmem:[%s4 + $0x8] sm:$0xf]
        %v1178 = vld [vmem:[%s4 + $0xc] sm:$0xf]
        %v1179 = vld [vmem:[%s5] sm:$0x1]
        %v1181 = vperm.slane %v1179, 0
        %v1187 = vunpack.c.l.b16 %v1175
        %v1188 = vunpack.c.l.b16 %v1176
        %v1189 = vunpack.c.l.b16 %v1177
        %v1190 = vunpack.c.l.b16 %v1178
        %v1191 = vpack.c.b16 %v1188, %v1187
        %v1192 = vpack.c.b16 %v1190, %v1189
        %vm1195 = vcmask 261120
        %v1197 = vsel %vm1195, %v1159, 0
        %v1200 = vsel %vm1195, %v1160, 0
        %v1203 = vsel %vm1195, %v1161, 0
        %v1206 = vsel %vm1195, %v1162, 0
        %v1209 = vsel %vm1195, %v1163, 0
        %v1212 = vsel %vm1195, %v1164, 0
        %v1215 = vsel %vm1195, %v1165, 0
        %v1218 = vsel %vm1195, %v1166, 0
        %v1221 = vsel %vm1195, %v1167, 0
        %v1224 = vsel %vm1195, %v1168, 0
        %v1227 = vsel %vm1195, %v1169, 0
        %v1230 = vsel %vm1195, %v1170, 0
        %v1233 = vsel %vm1195, %v1171, 0
        %v1236 = vsel %vm1195, %v1172, 0
        %v1239 = vsel %vm1195, %v1173, 0
        %v1242 = vsel %vm1195, %v1174, 0
        %1244 = vmatpush.bf16.msra.mxu0 0
        %1245 = vmatpush.bf16.msra.mxu0 0
        %1246 = vmatpush.bf16.msra.mxu0 0
        %1247 = vmatpush.bf16.msra.mxu0 0
        %1248 = vmatpush.bf16.msra.mxu0 0
        %1249 = vmatpush.bf16.msra.mxu0 0
        %1250 = vmatpush.bf16.msra.mxu0 %v1192
        %1251 = vmatpush.bf16.msra.mxu0 %v1191
        %1252 = vmatmul.bf16.gmra.mxu0 %v1197
        %v1253 = vpop.f32.mrf.mxu0
        %v1254 = vadd.f32 %v1181, %v1253
        %v1255 = vpop.f32.mrf.mxu0
        %v1256 = vadd.f32 %v1181, %v1255
        %1257 = vmatmul.bf16.gmra.mxu0 %v1200
        %v1258 = vpop.f32.mrf.mxu0
        %v1259 = vadd.f32 %v1181, %v1258
        %v1260 = vpop.f32.mrf.mxu0
        %v1261 = vadd.f32 %v1181, %v1260
        %1262 = vmatmul.bf16.gmra.mxu0 %v1203
        %v1263 = vpop.f32.mrf.mxu0
        %v1264 = vadd.f32 %v1181, %v1263
        %v1265 = vpop.f32.mrf.mxu0
        %v1266 = vadd.f32 %v1181, %v1265
        %1267 = vmatmul.bf16.gmra.mxu0 %v1206
        %v1268 = vpop.f32.mrf.mxu0
        %v1269 = vadd.f32 %v1181, %v1268
        %v1270 = vpop.f32.mrf.mxu0
        %v1271 = vadd.f32 %v1181, %v1270
        %1272 = vmatmul.bf16.gmra.mxu0 %v1209
        %v1273 = vpop.f32.mrf.mxu0
        %v1274 = vadd.f32 %v1181, %v1273
        %v1275 = vpop.f32.mrf.mxu0
        %v1276 = vadd.f32 %v1181, %v1275
        %1277 = vmatmul.bf16.gmra.mxu0 %v1212
        %v1278 = vpop.f32.mrf.mxu0
        %v1279 = vadd.f32 %v1181, %v1278
        %v1280 = vpop.f32.mrf.mxu0
        %v1281 = vadd.f32 %v1181, %v1280
        %1282 = vmatmul.bf16.gmra.mxu0 %v1215
        %v1283 = vpop.f32.mrf.mxu0
        %v1284 = vadd.f32 %v1181, %v1283
        %v1285 = vpop.f32.mrf.mxu0
        %v1286 = vadd.f32 %v1181, %v1285
        %1287 = vmatmul.bf16.gmra.mxu0 %v1218
        %v1288 = vpop.f32.mrf.mxu0
        %v1289 = vadd.f32 %v1181, %v1288
        %v1290 = vpop.f32.mrf.mxu0
        %v1291 = vadd.f32 %v1181, %v1290
        %1292 = vmatmul.bf16.gmra.mxu0 %v1221
        %v1293 = vpop.f32.mrf.mxu0
        %v1294 = vadd.f32 %v1181, %v1293
        %v1295 = vpop.f32.mrf.mxu0
        %v1296 = vadd.f32 %v1181, %v1295
        %1297 = vmatmul.bf16.gmra.mxu0 %v1224
        %v1298 = vpop.f32.mrf.mxu0
        %v1299 = vadd.f32 %v1181, %v1298
        %v1300 = vpop.f32.mrf.mxu0
        %v1301 = vadd.f32 %v1181, %v1300
        %1302 = vmatmul.bf16.gmra.mxu0 %v1227
        %v1303 = vpop.f32.mrf.mxu0
        %v1304 = vadd.f32 %v1181, %v1303
        %v1305 = vpop.f32.mrf.mxu0
        %v1306 = vadd.f32 %v1181, %v1305
        %1307 = vmatmul.bf16.gmra.mxu0 %v1230
        %v1308 = vpop.f32.mrf.mxu0
        %v1309 = vadd.f32 %v1181, %v1308
        %v1310 = vpop.f32.mrf.mxu0
        %v1311 = vadd.f32 %v1181, %v1310
        %1312 = vmatmul.bf16.gmra.mxu0 %v1233
        %v1313 = vpop.f32.mrf.mxu0
        %v1314 = vadd.f32 %v1181, %v1313
        %v1315 = vpop.f32.mrf.mxu0
        %v1316 = vadd.f32 %v1181, %v1315
        %1317 = vmatmul.bf16.gmra.mxu0 %v1236
        %v1318 = vpop.f32.mrf.mxu0
        %v1319 = vadd.f32 %v1181, %v1318
        %v1320 = vpop.f32.mrf.mxu0
        %v1321 = vadd.f32 %v1181, %v1320
        %1322 = vmatmul.bf16.gmra.mxu0 %v1239
        %v1323 = vpop.f32.mrf.mxu0
        %v1324 = vadd.f32 %v1181, %v1323
        %v1325 = vpop.f32.mrf.mxu0
        %v1326 = vadd.f32 %v1181, %v1325
        %1327 = vmatmul.bf16.gmra.mxu0 %v1242
        %v1328 = vpop.f32.mrf.mxu0
        %v1329 = vadd.f32 %v1181, %v1328
        %v1330 = vpop.f32.mrf.mxu0
        %v1331 = vadd.f32 %v1181, %v1330
        %1332 = vdwg.mxu0
        %v1333 = vmax.f32 %v1254, 0.0
        %v1334 = vmax.f32 %v1256, 0.0
        %v1335 = vmax.f32 %v1259, 0.0
        %v1336 = vmax.f32 %v1261, 0.0
        %v1337 = vmax.f32 %v1264, 0.0
        %v1338 = vmax.f32 %v1266, 0.0
        %v1339 = vmax.f32 %v1269, 0.0
        %v1340 = vmax.f32 %v1271, 0.0
        %v1341 = vmax.f32 %v1274, 0.0
        %v1342 = vmax.f32 %v1276, 0.0
        %v1343 = vmax.f32 %v1279, 0.0
        %v1344 = vmax.f32 %v1281, 0.0
        %v1345 = vmax.f32 %v1284, 0.0
        %v1346 = vmax.f32 %v1286, 0.0
        %v1347 = vmax.f32 %v1289, 0.0
        %v1348 = vmax.f32 %v1291, 0.0
        %v1349 = vmax.f32 %v1294, 0.0
        %v1350 = vmax.f32 %v1296, 0.0
        %v1351 = vmax.f32 %v1299, 0.0
        %v1352 = vmax.f32 %v1301, 0.0
        %v1353 = vmax.f32 %v1304, 0.0
        %v1354 = vmax.f32 %v1306, 0.0
        %v1355 = vmax.f32 %v1309, 0.0
        %v1356 = vmax.f32 %v1311, 0.0
        %v1357 = vmax.f32 %v1314, 0.0
        %v1358 = vmax.f32 %v1316, 0.0
        %v1359 = vmax.f32 %v1319, 0.0
        %v1360 = vmax.f32 %v1321, 0.0
        %v1361 = vmax.f32 %v1324, 0.0
        %v1362 = vmax.f32 %v1326, 0.0
        %v1363 = vmax.f32 %v1329, 0.0
        %v1364 = vmax.f32 %v1331, 0.0
        %v1365 = vld [vmem:[%s469] sm:$0xf]
        %v1366 = vld [vmem:[%s469 + $0x4] sm:$0xf]
        %v1367 = vld [vmem:[%s469 + $0x8] sm:$0xf]
        %v1368 = vld [vmem:[%s469 + $0xc] sm:$0xf]
        %v1369 = vld [vmem:[%s469 + $0x10] sm:$0xf]
        %v1370 = vld [vmem:[%s469 + $0x14] sm:$0xf]
        %v1371 = vld [vmem:[%s469 + $0x18] sm:$0xf]
        %v1372 = vld [vmem:[%s469 + $0x1c] sm:$0xf]
        %v1373 = vld [vmem:[%s469 + $0x20] sm:$0xf]
        %v1374 = vld [vmem:[%s469 + $0x24] sm:$0xf]
        %v1375 = vld [vmem:[%s469 + $0x28] sm:$0xf]
        %v1376 = vld [vmem:[%s469 + $0x2c] sm:$0xf]
        %v1377 = vld [vmem:[%s469 + $0x30] sm:$0xf]
        %v1378 = vld [vmem:[%s469 + $0x34] sm:$0xf]
        %v1379 = vld [vmem:[%s469 + $0x38] sm:$0xf]
        %v1380 = vld [vmem:[%s469 + $0x3c] sm:$0xf]
        %v1381 = vld [vmem:[%s469 + $0x40] sm:$0xf]
        %v1382 = vld [vmem:[%s469 + $0x44] sm:$0xf]
        %v1383 = vld [vmem:[%s469 + $0x48] sm:$0xf]
        %v1384 = vld [vmem:[%s469 + $0x4c] sm:$0xf]
        %v1385 = vld [vmem:[%s469 + $0x50] sm:$0xf]
        %v1386 = vld [vmem:[%s469 + $0x54] sm:$0xf]
        %v1387 = vld [vmem:[%s469 + $0x58] sm:$0xf]
        %v1388 = vld [vmem:[%s469 + $0x5c] sm:$0xf]
        %v1389 = vld [vmem:[%s469 + $0x60] sm:$0xf]
        %v1390 = vld [vmem:[%s469 + $0x64] sm:$0xf]
        %v1391 = vld [vmem:[%s469 + $0x68] sm:$0xf]
        %v1392 = vld [vmem:[%s469 + $0x6c] sm:$0xf]
        %v1393 = vld [vmem:[%s469 + $0x70] sm:$0xf]
        %v1394 = vld [vmem:[%s469 + $0x74] sm:$0xf]
        %v1395 = vld [vmem:[%s469 + $0x78] sm:$0xf]
        %v1396 = vld [vmem:[%s469 + $0x7c] sm:$0xf]
        %v1397 = vunpack.c.l.bf16 %v1365
        %v1398 = vunpack.c.l.bf16 %v1366
        %v1399 = vunpack.c.l.bf16 %v1367
        %v1400 = vunpack.c.l.bf16 %v1368
        %v1401 = vunpack.c.l.bf16 %v1369
        %v1402 = vunpack.c.l.bf16 %v1370
        %v1403 = vunpack.c.l.bf16 %v1371
        %v1404 = vunpack.c.l.bf16 %v1372
        %v1405 = vunpack.c.l.bf16 %v1373
        %v1406 = vunpack.c.l.bf16 %v1374
        %v1407 = vunpack.c.l.bf16 %v1375
        %v1408 = vunpack.c.l.bf16 %v1376
        %v1409 = vunpack.c.l.bf16 %v1377
        %v1410 = vunpack.c.l.bf16 %v1378
        %v1411 = vunpack.c.l.bf16 %v1379
        %v1412 = vunpack.c.l.bf16 %v1380
        %v1413 = vunpack.c.l.bf16 %v1381
        %v1414 = vunpack.c.l.bf16 %v1382
        %v1415 = vunpack.c.l.bf16 %v1383
        %v1416 = vunpack.c.l.bf16 %v1384
        %v1417 = vunpack.c.l.bf16 %v1385
        %v1418 = vunpack.c.l.bf16 %v1386
        %v1419 = vunpack.c.l.bf16 %v1387
        %v1420 = vunpack.c.l.bf16 %v1388
        %v1421 = vunpack.c.l.bf16 %v1389
        %v1422 = vunpack.c.l.bf16 %v1390
        %v1423 = vunpack.c.l.bf16 %v1391
        %v1424 = vunpack.c.l.bf16 %v1392
        %v1425 = vunpack.c.l.bf16 %v1393
        %v1426 = vunpack.c.l.bf16 %v1394
        %v1427 = vunpack.c.l.bf16 %v1395
        %v1428 = vunpack.c.l.bf16 %v1396
        %v1429 = vpack.c.bf16 %v1333, %v1333
        %v1430 = vpack.c.bf16 %v1334, %v1334
        %v1431 = vpack.c.bf16 %v1335, %v1335
        %v1432 = vpack.c.bf16 %v1336, %v1336
        %v1433 = vpack.c.bf16 %v1337, %v1337
        %v1434 = vpack.c.bf16 %v1338, %v1338
        %v1435 = vpack.c.bf16 %v1339, %v1339
        %v1436 = vpack.c.bf16 %v1340, %v1340
        %v1437 = vpack.c.bf16 %v1341, %v1341
        %v1438 = vpack.c.bf16 %v1342, %v1342
        %v1439 = vpack.c.bf16 %v1343, %v1343
        %v1440 = vpack.c.bf16 %v1344, %v1344
        %v1441 = vpack.c.bf16 %v1345, %v1345
        %v1442 = vpack.c.bf16 %v1346, %v1346
        %v1443 = vpack.c.bf16 %v1347, %v1347
        %v1444 = vpack.c.bf16 %v1348, %v1348
        %v1445 = vpack.c.bf16 %v1349, %v1349
        %v1446 = vpack.c.bf16 %v1350, %v1350
        %v1447 = vpack.c.bf16 %v1351, %v1351
        %v1448 = vpack.c.bf16 %v1352, %v1352
        %v1449 = vpack.c.bf16 %v1353, %v1353
        %v1450 = vpack.c.bf16 %v1354, %v1354
        %v1451 = vpack.c.bf16 %v1355, %v1355
        %v1452 = vpack.c.bf16 %v1356, %v1356
        %v1453 = vpack.c.bf16 %v1357, %v1357
        %v1454 = vpack.c.bf16 %v1358, %v1358
        %v1455 = vpack.c.bf16 %v1359, %v1359
        %v1456 = vpack.c.bf16 %v1360, %v1360
        %v1457 = vpack.c.bf16 %v1361, %v1361
        %v1458 = vpack.c.bf16 %v1362, %v1362
        %v1459 = vpack.c.bf16 %v1363, %v1363
        %v1460 = vpack.c.bf16 %v1364, %v1364
        %v1493 = vunpack.c.l.b16 %v1429
        %v1494 = vunpack.c.l.b16 %v1430
        %v1495 = vunpack.c.l.b16 %v1431
        %v1496 = vunpack.c.l.b16 %v1432
        %v1497 = vunpack.c.l.b16 %v1433
        %v1498 = vunpack.c.l.b16 %v1434
        %v1499 = vunpack.c.l.b16 %v1435
        %v1500 = vunpack.c.l.b16 %v1436
        %v1501 = vunpack.c.l.b16 %v1437
        %v1502 = vunpack.c.l.b16 %v1438
        %v1503 = vunpack.c.l.b16 %v1439
        %v1504 = vunpack.c.l.b16 %v1440
        %v1505 = vunpack.c.l.b16 %v1441
        %v1506 = vunpack.c.l.b16 %v1442
        %v1507 = vunpack.c.l.b16 %v1443
        %v1508 = vunpack.c.l.b16 %v1444
        %v1509 = vunpack.c.l.b16 %v1445
        %v1510 = vunpack.c.l.b16 %v1446
        %v1511 = vunpack.c.l.b16 %v1447
        %v1512 = vunpack.c.l.b16 %v1448
        %v1513 = vunpack.c.l.b16 %v1449
        %v1514 = vunpack.c.l.b16 %v1450
        %v1515 = vunpack.c.l.b16 %v1451
        %v1516 = vunpack.c.l.b16 %v1452
        %v1517 = vunpack.c.l.b16 %v1453
        %v1518 = vunpack.c.l.b16 %v1454
        %v1519 = vunpack.c.l.b16 %v1455
        %v1520 = vunpack.c.l.b16 %v1456
        %v1521 = vunpack.c.l.b16 %v1457
        %v1522 = vunpack.c.l.b16 %v1458
        %v1523 = vunpack.c.l.b16 %v1459
        %v1524 = vunpack.c.l.b16 %v1460
        %v1525 = vpack.c.b16 %v1494, %v1493
        %v1526 = vpack.c.b16 %v1496, %v1495
        %v1527 = vpack.c.b16 %v1498, %v1497
        %v1528 = vpack.c.b16 %v1500, %v1499
        %v1529 = vpack.c.b16 %v1502, %v1501
        %v1530 = vpack.c.b16 %v1504, %v1503
        %v1531 = vpack.c.b16 %v1506, %v1505
        %v1532 = vpack.c.b16 %v1508, %v1507
        %v1533 = vpack.c.b16 %v1510, %v1509
        %v1534 = vpack.c.b16 %v1512, %v1511
        %v1535 = vpack.c.b16 %v1514, %v1513
        %v1536 = vpack.c.b16 %v1516, %v1515
        %v1537 = vpack.c.b16 %v1518, %v1517
        %v1538 = vpack.c.b16 %v1520, %v1519
        %v1539 = vpack.c.b16 %v1522, %v1521
        %v1540 = vpack.c.b16 %v1524, %v1523
        %v1573 = vunpack.c.l.b16 %v1365
        %v1574 = vunpack.c.l.b16 %v1366
        %v1575 = vunpack.c.l.b16 %v1367
        %v1576 = vunpack.c.l.b16 %v1368
        %v1577 = vunpack.c.l.b16 %v1369
        %v1578 = vunpack.c.l.b16 %v1370
        %v1579 = vunpack.c.l.b16 %v1371
        %v1580 = vunpack.c.l.b16 %v1372
        %v1581 = vunpack.c.l.b16 %v1373
        %v1582 = vunpack.c.l.b16 %v1374
        %v1583 = vunpack.c.l.b16 %v1375
        %v1584 = vunpack.c.l.b16 %v1376
        %v1585 = vunpack.c.l.b16 %v1377
        %v1586 = vunpack.c.l.b16 %v1378
        %v1587 = vunpack.c.l.b16 %v1379
        %v1588 = vunpack.c.l.b16 %v1380
        %v1589 = vunpack.c.l.b16 %v1381
        %v1590 = vunpack.c.l.b16 %v1382
        %v1591 = vunpack.c.l.b16 %v1383
        %v1592 = vunpack.c.l.b16 %v1384
        %v1593 = vunpack.c.l.b16 %v1385
        %v1594 = vunpack.c.l.b16 %v1386
        %v1595 = vunpack.c.l.b16 %v1387
        %v1596 = vunpack.c.l.b16 %v1388
        %v1597 = vunpack.c.l.b16 %v1389
        %v1598 = vunpack.c.l.b16 %v1390
        %v1599 = vunpack.c.l.b16 %v1391
        %v1600 = vunpack.c.l.b16 %v1392
        %v1601 = vunpack.c.l.b16 %v1393
        %v1602 = vunpack.c.l.b16 %v1394
        %v1603 = vunpack.c.l.b16 %v1395
        %v1604 = vunpack.c.l.b16 %v1396
        %v1605 = vpack.c.b16 %v1574, %v1573
        %v1606 = vpack.c.b16 %v1576, %v1575
        %v1607 = vpack.c.b16 %v1578, %v1577
        %v1608 = vpack.c.b16 %v1580, %v1579
        %v1609 = vpack.c.b16 %v1582, %v1581
        %v1610 = vpack.c.b16 %v1584, %v1583
        %v1611 = vpack.c.b16 %v1586, %v1585
        %v1612 = vpack.c.b16 %v1588, %v1587
        %v1613 = vpack.c.b16 %v1590, %v1589
        %v1614 = vpack.c.b16 %v1592, %v1591
        %v1615 = vpack.c.b16 %v1594, %v1593
        %v1616 = vpack.c.b16 %v1596, %v1595
        %v1617 = vpack.c.b16 %v1598, %v1597
        %v1618 = vpack.c.b16 %v1600, %v1599
        %v1619 = vpack.c.b16 %v1602, %v1601
        %v1620 = vpack.c.b16 %v1604, %v1603
        %1621 = vrot.lane.b32.xlu0 %v1605, 32
        %v1622 = vpop.permute.xlu0 %1621
        %1623 = vrot.lane.b32.xlu0 %v1606, 32
        %v1624 = vpop.permute.xlu0 %1623
        %1625 = vrot.lane.b32.xlu0 %v1607, 32
        %v1626 = vpop.permute.xlu0 %1625
        %1627 = vrot.lane.b32.xlu0 %v1608, 32
        %v1628 = vpop.permute.xlu0 %1627
        %1629 = vrot.lane.b32.xlu0 %v1609, 32
        %v1630 = vpop.permute.xlu0 %1629
        %1631 = vrot.lane.b32.xlu0 %v1610, 32
        %v1632 = vpop.permute.xlu0 %1631
        %1633 = vrot.lane.b32.xlu0 %v1611, 32
        %v1634 = vpop.permute.xlu0 %1633
        %1635 = vrot.lane.b32.xlu0 %v1612, 32
        %v1636 = vpop.permute.xlu0 %1635
        %1637 = vrot.lane.b32.xlu0 %v1613, 32
        %v1638 = vpop.permute.xlu0 %1637
        %1639 = vrot.lane.b32.xlu0 %v1614, 32
        %v1640 = vpop.permute.xlu0 %1639
        %1641 = vrot.lane.b32.xlu0 %v1615, 32
        %v1642 = vpop.permute.xlu0 %1641
        %1643 = vrot.lane.b32.xlu0 %v1616, 32
        %v1644 = vpop.permute.xlu0 %1643
        %1645 = vrot.lane.b32.xlu0 %v1617, 32
        %v1646 = vpop.permute.xlu0 %1645
        %1647 = vrot.lane.b32.xlu0 %v1618, 32
        %v1648 = vpop.permute.xlu0 %1647
        %1649 = vrot.lane.b32.xlu0 %v1619, 32
        %v1650 = vpop.permute.xlu0 %1649
        %1651 = vrot.lane.b32.xlu0 %v1620, 32
        %v1652 = vpop.permute.xlu0 %1651
        %v1655 = vsel %vm1195, %v1525, %v1622
        %v1658 = vsel %vm1195, %v1526, %v1624
        %v1661 = vsel %vm1195, %v1527, %v1626
        %v1664 = vsel %vm1195, %v1528, %v1628
        %v1667 = vsel %vm1195, %v1529, %v1630
        %v1670 = vsel %vm1195, %v1530, %v1632
        %v1673 = vsel %vm1195, %v1531, %v1634
        %v1676 = vsel %vm1195, %v1532, %v1636
        %v1679 = vsel %vm1195, %v1533, %v1638
        %v1682 = vsel %vm1195, %v1534, %v1640
        %v1685 = vsel %vm1195, %v1535, %v1642
        %v1688 = vsel %vm1195, %v1536, %v1644
        %v1691 = vsel %vm1195, %v1537, %v1646
        %v1694 = vsel %vm1195, %v1538, %v1648
        %v1697 = vsel %vm1195, %v1539, %v1650
        %v1700 = vsel %vm1195, %v1540, %v1652
        %v1701 = vld [vmem:[%s6] sm:$0xf]
        %v1702 = vld [vmem:[%s6 + $0x4] sm:$0xf]
        %v1703 = vld [vmem:[%s6 + $0x8] sm:$0xf]
        %v1704 = vld [vmem:[%s6 + $0xc] sm:$0xf]
        %v1705 = vld [vmem:[%s6 + $0x10] sm:$0xf]
        %v1706 = vld [vmem:[%s6 + $0x14] sm:$0xf]
        %v1707 = vld [vmem:[%s6 + $0x18] sm:$0xf]
        %v1708 = vld [vmem:[%s6 + $0x1c] sm:$0xf]
        %v1709 = vld [vmem:[%s7] sm:$0x1]
        %v1711 = vperm.slane %v1709, 0
        %v1721 = vunpack.c.l.b16 %v1701
        %v1722 = vunpack.c.l.b16 %v1702
        %v1723 = vunpack.c.l.b16 %v1703
        %v1724 = vunpack.c.l.b16 %v1704
        %v1725 = vunpack.c.l.b16 %v1705
        %v1726 = vunpack.c.l.b16 %v1706
        %v1727 = vunpack.c.l.b16 %v1707
        %v1728 = vunpack.c.l.b16 %v1708
        %v1729 = vpack.c.b16 %v1722, %v1721
        %v1730 = vpack.c.b16 %v1724, %v1723
        %v1731 = vpack.c.b16 %v1726, %v1725
        %v1732 = vpack.c.b16 %v1728, %v1727
        %vm1737 = vcmask 523264
        %v1738 = vsel %vm1737, %v1655, 0
        %v1740 = vsel %vm1737, %v1658, 0
        %v1742 = vsel %vm1737, %v1661, 0
        %v1744 = vsel %vm1737, %v1664, 0
        %v1746 = vsel %vm1737, %v1667, 0
        %v1748 = vsel %vm1737, %v1670, 0
        %v1750 = vsel %vm1737, %v1673, 0
        %v1752 = vsel %vm1737, %v1676, 0
        %v1754 = vsel %vm1737, %v1679, 0
        %v1756 = vsel %vm1737, %v1682, 0
        %v1758 = vsel %vm1737, %v1685, 0
        %v1760 = vsel %vm1737, %v1688, 0
        %v1762 = vsel %vm1737, %v1691, 0
        %v1764 = vsel %vm1737, %v1694, 0
        %v1766 = vsel %vm1737, %v1697, 0
        %v1768 = vsel %vm1737, %v1700, 0
        %1770 = vmatpush.bf16.msra.mxu0 0
        %1771 = vmatpush.bf16.msra.mxu0 0
        %1772 = vmatpush.bf16.msra.mxu0 0
        %1773 = vmatpush.bf16.msra.mxu0 0
        %1774 = vmatpush.bf16.msra.mxu0 %v1732
        %1775 = vmatpush.bf16.msra.mxu0 %v1731
        %1776 = vmatpush.bf16.msra.mxu0 %v1730
        %1777 = vmatpush.bf16.msra.mxu0 %v1729
        %1778 = vmatmul.bf16.gmra.mxu0 %v1738
        %v1779 = vpop.f32.mrf.mxu0
        %v1780 = vadd.f32 %v1711, %v1779
        %v1781 = vpop.f32.mrf.mxu0
        %v1782 = vadd.f32 %v1711, %v1781
        %1783 = vmatmul.bf16.gmra.mxu0 %v1740
        %v1784 = vpop.f32.mrf.mxu0
        %v1785 = vadd.f32 %v1711, %v1784
        %v1786 = vpop.f32.mrf.mxu0
        %v1787 = vadd.f32 %v1711, %v1786
        %1788 = vmatmul.bf16.gmra.mxu0 %v1742
        %v1789 = vpop.f32.mrf.mxu0
        %v1790 = vadd.f32 %v1711, %v1789
        %v1791 = vpop.f32.mrf.mxu0
        %v1792 = vadd.f32 %v1711, %v1791
        %1793 = vmatmul.bf16.gmra.mxu0 %v1744
        %v1794 = vpop.f32.mrf.mxu0
        %v1795 = vadd.f32 %v1711, %v1794
        %v1796 = vpop.f32.mrf.mxu0
        %v1797 = vadd.f32 %v1711, %v1796
        %1798 = vmatmul.bf16.gmra.mxu0 %v1746
        %v1799 = vpop.f32.mrf.mxu0
        %v1800 = vadd.f32 %v1711, %v1799
        %v1801 = vpop.f32.mrf.mxu0
        %v1802 = vadd.f32 %v1711, %v1801
        %1803 = vmatmul.bf16.gmra.mxu0 %v1748
        %v1804 = vpop.f32.mrf.mxu0
        %v1805 = vadd.f32 %v1711, %v1804
        %v1806 = vpop.f32.mrf.mxu0
        %v1807 = vadd.f32 %v1711, %v1806
        %1808 = vmatmul.bf16.gmra.mxu0 %v1750
        %v1809 = vpop.f32.mrf.mxu0
        %v1810 = vadd.f32 %v1711, %v1809
        %v1811 = vpop.f32.mrf.mxu0
        %v1812 = vadd.f32 %v1711, %v1811
        %1813 = vmatmul.bf16.gmra.mxu0 %v1752
        %v1814 = vpop.f32.mrf.mxu0
        %v1815 = vadd.f32 %v1711, %v1814
        %v1816 = vpop.f32.mrf.mxu0
        %v1817 = vadd.f32 %v1711, %v1816
        %1818 = vmatmul.bf16.gmra.mxu0 %v1754
        %v1819 = vpop.f32.mrf.mxu0
        %v1820 = vadd.f32 %v1711, %v1819
        %v1821 = vpop.f32.mrf.mxu0
        %v1822 = vadd.f32 %v1711, %v1821
        %1823 = vmatmul.bf16.gmra.mxu0 %v1756
        %v1824 = vpop.f32.mrf.mxu0
        %v1825 = vadd.f32 %v1711, %v1824
        %v1826 = vpop.f32.mrf.mxu0
        %v1827 = vadd.f32 %v1711, %v1826
        %1828 = vmatmul.bf16.gmra.mxu0 %v1758
        %v1829 = vpop.f32.mrf.mxu0
        %v1830 = vadd.f32 %v1711, %v1829
        %v1831 = vpop.f32.mrf.mxu0
        %v1832 = vadd.f32 %v1711, %v1831
        %1833 = vmatmul.bf16.gmra.mxu0 %v1760
        %v1834 = vpop.f32.mrf.mxu0
        %v1835 = vadd.f32 %v1711, %v1834
        %v1836 = vpop.f32.mrf.mxu0
        %v1837 = vadd.f32 %v1711, %v1836
        %1838 = vmatmul.bf16.gmra.mxu0 %v1762
        %v1839 = vpop.f32.mrf.mxu0
        %v1840 = vadd.f32 %v1711, %v1839
        %v1841 = vpop.f32.mrf.mxu0
        %v1842 = vadd.f32 %v1711, %v1841
        %1843 = vmatmul.bf16.gmra.mxu0 %v1764
        %v1844 = vpop.f32.mrf.mxu0
        %v1845 = vadd.f32 %v1711, %v1844
        %v1846 = vpop.f32.mrf.mxu0
        %v1847 = vadd.f32 %v1711, %v1846
        %1848 = vmatmul.bf16.gmra.mxu0 %v1766
        %v1849 = vpop.f32.mrf.mxu0
        %v1850 = vadd.f32 %v1711, %v1849
        %v1851 = vpop.f32.mrf.mxu0
        %v1852 = vadd.f32 %v1711, %v1851
        %1853 = vmatmul.bf16.gmra.mxu0 %v1768
        %v1854 = vpop.f32.mrf.mxu0
        %v1855 = vadd.f32 %v1711, %v1854
        %v1856 = vpop.f32.mrf.mxu0
        %v1857 = vadd.f32 %v1711, %v1856
        %1858 = vdwg.mxu0
        %v1859 = vmul.f32 %v1780, 0.5
        %v1860 = vmul.f32 %v1782, 0.5
        %v1861 = vmul.f32 %v1785, 0.5
        %v1862 = vmul.f32 %v1787, 0.5
        %v1863 = vmul.f32 %v1790, 0.5
        %v1864 = vmul.f32 %v1792, 0.5
        %v1865 = vmul.f32 %v1795, 0.5
        %v1866 = vmul.f32 %v1797, 0.5
        %v1867 = vmul.f32 %v1800, 0.5
        %v1868 = vmul.f32 %v1802, 0.5
        %v1869 = vmul.f32 %v1805, 0.5
        %v1870 = vmul.f32 %v1807, 0.5
        %v1871 = vmul.f32 %v1810, 0.5
        %v1872 = vmul.f32 %v1812, 0.5
        %v1873 = vmul.f32 %v1815, 0.5
        %v1874 = vmul.f32 %v1817, 0.5
        %v1875 = vmul.f32 %v1820, 0.5
        %v1876 = vmul.f32 %v1822, 0.5
        %v1877 = vmul.f32 %v1825, 0.5
        %v1878 = vmul.f32 %v1827, 0.5
        %v1879 = vmul.f32 %v1830, 0.5
        %v1880 = vmul.f32 %v1832, 0.5
        %v1881 = vmul.f32 %v1835, 0.5
        %v1882 = vmul.f32 %v1837, 0.5
        %v1883 = vmul.f32 %v1840, 0.5
        %v1884 = vmul.f32 %v1842, 0.5
        %v1885 = vmul.f32 %v1845, 0.5
        %v1886 = vmul.f32 %v1847, 0.5
        %v1887 = vmul.f32 %v1850, 0.5
        %v1888 = vmul.f32 %v1852, 0.5
        %v1889 = vmul.f32 %v1855, 0.5
        %v1890 = vmul.f32 %v1857, 0.5
        %v1891 = vtanh.pop %v1859
        %v1892 = vtanh.pop %v1860
        %v1893 = vtanh.pop %v1861
        %v1894 = vtanh.pop %v1862
        %v1895 = vtanh.pop %v1863
        %v1896 = vtanh.pop %v1864
        %v1897 = vtanh.pop %v1865
        %v1898 = vtanh.pop %v1866
        %v1899 = vtanh.pop %v1867
        %v1900 = vtanh.pop %v1868
        %v1901 = vtanh.pop %v1869
        %v1902 = vtanh.pop %v1870
        %v1903 = vtanh.pop %v1871
        %v1904 = vtanh.pop %v1872
        %v1905 = vtanh.pop %v1873
        %v1906 = vtanh.pop %v1874
        %v1907 = vtanh.pop %v1875
        %v1908 = vtanh.pop %v1876
        %v1909 = vtanh.pop %v1877
        %v1910 = vtanh.pop %v1878
        %v1911 = vtanh.pop %v1879
        %v1912 = vtanh.pop %v1880
        %v1913 = vtanh.pop %v1881
        %v1914 = vtanh.pop %v1882
        %v1915 = vtanh.pop %v1883
        %v1916 = vtanh.pop %v1884
        %v1917 = vtanh.pop %v1885
        %v1918 = vtanh.pop %v1886
        %v1919 = vtanh.pop %v1887
        %v1920 = vtanh.pop %v1888
        %v1921 = vtanh.pop %v1889
        %v1922 = vtanh.pop %v1890
        %v1923 = vadd.f32 %v1891, 1.0
        %v1924 = vadd.f32 %v1892, 1.0
        %v1925 = vadd.f32 %v1893, 1.0
        %v1926 = vadd.f32 %v1894, 1.0
        %v1927 = vadd.f32 %v1895, 1.0
        %v1928 = vadd.f32 %v1896, 1.0
        %v1929 = vadd.f32 %v1897, 1.0
        %v1930 = vadd.f32 %v1898, 1.0
        %v1931 = vadd.f32 %v1899, 1.0
        %v1932 = vadd.f32 %v1900, 1.0
        %v1933 = vadd.f32 %v1901, 1.0
        %v1934 = vadd.f32 %v1902, 1.0
        %v1935 = vadd.f32 %v1903, 1.0
        %v1936 = vadd.f32 %v1904, 1.0
        %v1937 = vadd.f32 %v1905, 1.0
        %v1938 = vadd.f32 %v1906, 1.0
        %v1939 = vadd.f32 %v1907, 1.0
        %v1940 = vadd.f32 %v1908, 1.0
        %v1941 = vadd.f32 %v1909, 1.0
        %v1942 = vadd.f32 %v1910, 1.0
        %v1943 = vadd.f32 %v1911, 1.0
        %v1944 = vadd.f32 %v1912, 1.0
        %v1945 = vadd.f32 %v1913, 1.0
        %v1946 = vadd.f32 %v1914, 1.0
        %v1947 = vadd.f32 %v1915, 1.0
        %v1948 = vadd.f32 %v1916, 1.0
        %v1949 = vadd.f32 %v1917, 1.0
        %v1950 = vadd.f32 %v1918, 1.0
        %v1951 = vadd.f32 %v1919, 1.0
        %v1952 = vadd.f32 %v1920, 1.0
        %v1953 = vadd.f32 %v1921, 1.0
        %v1954 = vadd.f32 %v1922, 1.0
        %v1955 = vmul.f32 %v1923, 0.5
        %v1956 = vmul.f32 %v1924, 0.5
        %v1957 = vmul.f32 %v1925, 0.5
        %v1958 = vmul.f32 %v1926, 0.5
        %v1959 = vmul.f32 %v1927, 0.5
        %v1960 = vmul.f32 %v1928, 0.5
        %v1961 = vmul.f32 %v1929, 0.5
        %v1962 = vmul.f32 %v1930, 0.5
        %v1963 = vmul.f32 %v1931, 0.5
        %v1964 = vmul.f32 %v1932, 0.5
        %v1965 = vmul.f32 %v1933, 0.5
        %v1966 = vmul.f32 %v1934, 0.5
        %v1967 = vmul.f32 %v1935, 0.5
        %v1968 = vmul.f32 %v1936, 0.5
        %v1969 = vmul.f32 %v1937, 0.5
        %v1970 = vmul.f32 %v1938, 0.5
        %v1971 = vmul.f32 %v1939, 0.5
        %v1972 = vmul.f32 %v1940, 0.5
        %v1973 = vmul.f32 %v1941, 0.5
        %v1974 = vmul.f32 %v1942, 0.5
        %v1975 = vmul.f32 %v1943, 0.5
        %v1976 = vmul.f32 %v1944, 0.5
        %v1977 = vmul.f32 %v1945, 0.5
        %v1978 = vmul.f32 %v1946, 0.5
        %v1979 = vmul.f32 %v1947, 0.5
        %v1980 = vmul.f32 %v1948, 0.5
        %v1981 = vmul.f32 %v1949, 0.5
        %v1982 = vmul.f32 %v1950, 0.5
        %v1983 = vmul.f32 %v1951, 0.5
        %v1984 = vmul.f32 %v1952, 0.5
        %v1985 = vmul.f32 %v1953, 0.5
        %v1986 = vmul.f32 %v1954, 0.5
        %v1987 = vmul.f32 %v1955, %v1397
        %v1988 = vmul.f32 %v1956, %v1398
        %v1989 = vmul.f32 %v1957, %v1399
        %v1990 = vmul.f32 %v1958, %v1400
        %v1991 = vmul.f32 %v1959, %v1401
        %v1992 = vmul.f32 %v1960, %v1402
        %v1993 = vmul.f32 %v1961, %v1403
        %v1994 = vmul.f32 %v1962, %v1404
        %v1995 = vmul.f32 %v1963, %v1405
        %v1996 = vmul.f32 %v1964, %v1406
        %v1997 = vmul.f32 %v1965, %v1407
        %v1998 = vmul.f32 %v1966, %v1408
        %v1999 = vmul.f32 %v1967, %v1409
        %v2000 = vmul.f32 %v1968, %v1410
        %v2001 = vmul.f32 %v1969, %v1411
        %v2002 = vmul.f32 %v1970, %v1412
        %v2003 = vmul.f32 %v1971, %v1413
        %v2004 = vmul.f32 %v1972, %v1414
        %v2005 = vmul.f32 %v1973, %v1415
        %v2006 = vmul.f32 %v1974, %v1416
        %v2007 = vmul.f32 %v1975, %v1417
        %v2008 = vmul.f32 %v1976, %v1418
        %v2009 = vmul.f32 %v1977, %v1419
        %v2010 = vmul.f32 %v1978, %v1420
        %v2011 = vmul.f32 %v1979, %v1421
        %v2012 = vmul.f32 %v1980, %v1422
        %v2013 = vmul.f32 %v1981, %v1423
        %v2014 = vmul.f32 %v1982, %v1424
        %v2015 = vmul.f32 %v1983, %v1425
        %v2016 = vmul.f32 %v1984, %v1426
        %v2017 = vmul.f32 %v1985, %v1427
        %v2018 = vmul.f32 %v1986, %v1428
        %v2019 = vpack.c.bf16 %v1987, %v1987
        %v2020 = vpack.c.bf16 %v1988, %v1988
        %v2021 = vpack.c.bf16 %v1989, %v1989
        %v2022 = vpack.c.bf16 %v1990, %v1990
        %v2023 = vpack.c.bf16 %v1991, %v1991
        %v2024 = vpack.c.bf16 %v1992, %v1992
        %v2025 = vpack.c.bf16 %v1993, %v1993
        %v2026 = vpack.c.bf16 %v1994, %v1994
        %v2027 = vpack.c.bf16 %v1995, %v1995
        %v2028 = vpack.c.bf16 %v1996, %v1996
        %v2029 = vpack.c.bf16 %v1997, %v1997
        %v2030 = vpack.c.bf16 %v1998, %v1998
        %v2031 = vpack.c.bf16 %v1999, %v1999
        %v2032 = vpack.c.bf16 %v2000, %v2000
        %v2033 = vpack.c.bf16 %v2001, %v2001
        %v2034 = vpack.c.bf16 %v2002, %v2002
        %v2035 = vpack.c.bf16 %v2003, %v2003
        %v2036 = vpack.c.bf16 %v2004, %v2004
        %v2037 = vpack.c.bf16 %v2005, %v2005
        %v2038 = vpack.c.bf16 %v2006, %v2006
        %v2039 = vpack.c.bf16 %v2007, %v2007
        %v2040 = vpack.c.bf16 %v2008, %v2008
        %v2041 = vpack.c.bf16 %v2009, %v2009
        %v2042 = vpack.c.bf16 %v2010, %v2010
        %v2043 = vpack.c.bf16 %v2011, %v2011
        %v2044 = vpack.c.bf16 %v2012, %v2012
        %v2045 = vpack.c.bf16 %v2013, %v2013
        %v2046 = vpack.c.bf16 %v2014, %v2014
        %v2047 = vpack.c.bf16 %v2015, %v2015
        %v2048 = vpack.c.bf16 %v2016, %v2016
        %v2049 = vpack.c.bf16 %v2017, %v2017
        %v2050 = vpack.c.bf16 %v2018, %v2018
        %v2083 = vunpack.c.l.b16 %v2019
        %v2084 = vunpack.c.l.b16 %v2020
        %v2085 = vunpack.c.l.b16 %v2021
        %v2086 = vunpack.c.l.b16 %v2022
        %v2087 = vunpack.c.l.b16 %v2023
        %v2088 = vunpack.c.l.b16 %v2024
        %v2089 = vunpack.c.l.b16 %v2025
        %v2090 = vunpack.c.l.b16 %v2026
        %v2091 = vunpack.c.l.b16 %v2027
        %v2092 = vunpack.c.l.b16 %v2028
        %v2093 = vunpack.c.l.b16 %v2029
        %v2094 = vunpack.c.l.b16 %v2030
        %v2095 = vunpack.c.l.b16 %v2031
        %v2096 = vunpack.c.l.b16 %v2032
        %v2097 = vunpack.c.l.b16 %v2033
        %v2098 = vunpack.c.l.b16 %v2034
        %v2099 = vunpack.c.l.b16 %v2035
        %v2100 = vunpack.c.l.b16 %v2036
        %v2101 = vunpack.c.l.b16 %v2037
        %v2102 = vunpack.c.l.b16 %v2038
        %v2103 = vunpack.c.l.b16 %v2039
        %v2104 = vunpack.c.l.b16 %v2040
        %v2105 = vunpack.c.l.b16 %v2041
        %v2106 = vunpack.c.l.b16 %v2042
        %v2107 = vunpack.c.l.b16 %v2043
        %v2108 = vunpack.c.l.b16 %v2044
        %v2109 = vunpack.c.l.b16 %v2045
        %v2110 = vunpack.c.l.b16 %v2046
        %v2111 = vunpack.c.l.b16 %v2047
        %v2112 = vunpack.c.l.b16 %v2048
        %v2113 = vunpack.c.l.b16 %v2049
        %v2114 = vunpack.c.l.b16 %v2050
        %v2115 = vpack.c.b16 %v2084, %v2083
        %v2116 = vpack.c.b16 %v2086, %v2085
        %v2117 = vpack.c.b16 %v2088, %v2087
        %v2118 = vpack.c.b16 %v2090, %v2089
        %v2119 = vpack.c.b16 %v2092, %v2091
        %v2120 = vpack.c.b16 %v2094, %v2093
        %v2121 = vpack.c.b16 %v2096, %v2095
        %v2122 = vpack.c.b16 %v2098, %v2097
        %v2123 = vpack.c.b16 %v2100, %v2099
        %v2124 = vpack.c.b16 %v2102, %v2101
        %v2125 = vpack.c.b16 %v2104, %v2103
        %v2126 = vpack.c.b16 %v2106, %v2105
        %v2127 = vpack.c.b16 %v2108, %v2107
        %v2128 = vpack.c.b16 %v2110, %v2109
        %v2129 = vpack.c.b16 %v2112, %v2111
        %v2130 = vpack.c.b16 %v2114, %v2113
        %2131 = vrot.lane.b32.xlu0 %v2115, 32
        %v2132 = vpop.permute.xlu0 %2131
        %2133 = vrot.lane.b32.xlu0 %v2116, 32
        %v2134 = vpop.permute.xlu0 %2133
        %2135 = vrot.lane.b32.xlu0 %v2117, 32
        %v2136 = vpop.permute.xlu0 %2135
        %2137 = vrot.lane.b32.xlu0 %v2118, 32
        %v2138 = vpop.permute.xlu0 %2137
        %2139 = vrot.lane.b32.xlu0 %v2119, 32
        %v2140 = vpop.permute.xlu0 %2139
        %2141 = vrot.lane.b32.xlu0 %v2120, 32
        %v2142 = vpop.permute.xlu0 %2141
        %2143 = vrot.lane.b32.xlu0 %v2121, 32
        %v2144 = vpop.permute.xlu0 %2143
        %2145 = vrot.lane.b32.xlu0 %v2122, 32
        %v2146 = vpop.permute.xlu0 %2145
        %2147 = vrot.lane.b32.xlu0 %v2123, 32
        %v2148 = vpop.permute.xlu0 %2147
        %2149 = vrot.lane.b32.xlu0 %v2124, 32
        %v2150 = vpop.permute.xlu0 %2149
        %2151 = vrot.lane.b32.xlu0 %v2125, 32
        %v2152 = vpop.permute.xlu0 %2151
        %2153 = vrot.lane.b32.xlu0 %v2126, 32
        %v2154 = vpop.permute.xlu0 %2153
        %2155 = vrot.lane.b32.xlu0 %v2127, 32
        %v2156 = vpop.permute.xlu0 %2155
        %2157 = vrot.lane.b32.xlu0 %v2128, 32
        %v2158 = vpop.permute.xlu0 %2157
        %2159 = vrot.lane.b32.xlu0 %v2129, 32
        %v2160 = vpop.permute.xlu0 %2159
        %2161 = vrot.lane.b32.xlu0 %v2130, 32
        %v2162 = vpop.permute.xlu0 %2161
        %v2164 = vsel %vm1195, %v1525, %v2132
        %v2166 = vsel %vm1195, %v1526, %v2134
        %v2168 = vsel %vm1195, %v1527, %v2136
        %v2170 = vsel %vm1195, %v1528, %v2138
        %v2172 = vsel %vm1195, %v1529, %v2140
        %v2174 = vsel %vm1195, %v1530, %v2142
        %v2176 = vsel %vm1195, %v1531, %v2144
        %v2178 = vsel %vm1195, %v1532, %v2146
        %v2180 = vsel %vm1195, %v1533, %v2148
        %v2182 = vsel %vm1195, %v1534, %v2150
        %v2184 = vsel %vm1195, %v1535, %v2152
        %v2186 = vsel %vm1195, %v1536, %v2154
        %v2188 = vsel %vm1195, %v1537, %v2156
        %v2190 = vsel %vm1195, %v1538, %v2158
        %v2192 = vsel %vm1195, %v1539, %v2160
        %v2194 = vsel %vm1195, %v1540, %v2162
        %v2195 = vld [vmem:[%s8] sm:$0xf]
        %v2196 = vld [vmem:[%s8 + $0x4] sm:$0xf]
        %v2197 = vld [vmem:[%s8 + $0x8] sm:$0xf]
        %v2198 = vld [vmem:[%s8 + $0xc] sm:$0xf]
        %v2199 = vld [vmem:[%s8 + $0x10] sm:$0xf]
        %v2200 = vld [vmem:[%s8 + $0x14] sm:$0xf]
        %v2201 = vld [vmem:[%s8 + $0x18] sm:$0xf]
        %v2202 = vld [vmem:[%s8 + $0x1c] sm:$0xf]
        %v2203 = vld [vmem:[%s9] sm:$0x1]
        %v2205 = vperm.slane %v2203, 0
        %v2215 = vunpack.c.l.b16 %v2195
        %v2216 = vunpack.c.l.b16 %v2196
        %v2217 = vunpack.c.l.b16 %v2197
        %v2218 = vunpack.c.l.b16 %v2198
        %v2219 = vunpack.c.l.b16 %v2199
        %v2220 = vunpack.c.l.b16 %v2200
        %v2221 = vunpack.c.l.b16 %v2201
        %v2222 = vunpack.c.l.b16 %v2202
        %v2223 = vpack.c.b16 %v2216, %v2215
        %v2224 = vpack.c.b16 %v2218, %v2217
        %v2225 = vpack.c.b16 %v2220, %v2219
        %v2226 = vpack.c.b16 %v2222, %v2221
        %v2231 = vsel %vm1737, %v2164, 0
        %v2233 = vsel %vm1737, %v2166, 0
        %v2235 = vsel %vm1737, %v2168, 0
        %v2237 = vsel %vm1737, %v2170, 0
        %v2239 = vsel %vm1737, %v2172, 0
        %v2241 = vsel %vm1737, %v2174, 0
        %v2243 = vsel %vm1737, %v2176, 0
        %v2245 = vsel %vm1737, %v2178, 0
        %v2247 = vsel %vm1737, %v2180, 0
        %v2249 = vsel %vm1737, %v2182, 0
        %v2251 = vsel %vm1737, %v2184, 0
        %v2253 = vsel %vm1737, %v2186, 0
        %v2255 = vsel %vm1737, %v2188, 0
        %v2257 = vsel %vm1737, %v2190, 0
        %v2259 = vsel %vm1737, %v2192, 0
        %v2261 = vsel %vm1737, %v2194, 0
        %2263 = vmatpush.bf16.msra.mxu0 0
        %2264 = vmatpush.bf16.msra.mxu0 0
        %2265 = vmatpush.bf16.msra.mxu0 0
        %2266 = vmatpush.bf16.msra.mxu0 0
        %2267 = vmatpush.bf16.msra.mxu0 %v2226
        %2268 = vmatpush.bf16.msra.mxu0 %v2225
        %2269 = vmatpush.bf16.msra.mxu0 %v2224
        %2270 = vmatpush.bf16.msra.mxu0 %v2223
        %2271 = vmatmul.bf16.gmra.mxu0 %v2231
        %v2272 = vpop.f32.mrf.mxu0
        %v2273 = vadd.f32 %v2205, %v2272
        %v2274 = vpop.f32.mrf.mxu0
        %v2275 = vadd.f32 %v2205, %v2274
        %2276 = vmatmul.bf16.gmra.mxu0 %v2233
        %v2277 = vpop.f32.mrf.mxu0
        %v2278 = vadd.f32 %v2205, %v2277
        %v2279 = vpop.f32.mrf.mxu0
        %v2280 = vadd.f32 %v2205, %v2279
        %2281 = vmatmul.bf16.gmra.mxu0 %v2235
        %v2282 = vpop.f32.mrf.mxu0
        %v2283 = vadd.f32 %v2205, %v2282
        %v2284 = vpop.f32.mrf.mxu0
        %v2285 = vadd.f32 %v2205, %v2284
        %2286 = vmatmul.bf16.gmra.mxu0 %v2237
        %v2287 = vpop.f32.mrf.mxu0
        %v2288 = vadd.f32 %v2205, %v2287
        %v2289 = vpop.f32.mrf.mxu0
        %v2290 = vadd.f32 %v2205, %v2289
        %2291 = vmatmul.bf16.gmra.mxu0 %v2239
        %v2292 = vpop.f32.mrf.mxu0
        %v2293 = vadd.f32 %v2205, %v2292
        %v2294 = vpop.f32.mrf.mxu0
        %v2295 = vadd.f32 %v2205, %v2294
        %2296 = vmatmul.bf16.gmra.mxu0 %v2241
        %v2297 = vpop.f32.mrf.mxu0
        %v2298 = vadd.f32 %v2205, %v2297
        %v2299 = vpop.f32.mrf.mxu0
        %v2300 = vadd.f32 %v2205, %v2299
        %2301 = vmatmul.bf16.gmra.mxu0 %v2243
        %v2302 = vpop.f32.mrf.mxu0
        %v2303 = vadd.f32 %v2205, %v2302
        %v2304 = vpop.f32.mrf.mxu0
        %v2305 = vadd.f32 %v2205, %v2304
        %2306 = vmatmul.bf16.gmra.mxu0 %v2245
        %v2307 = vpop.f32.mrf.mxu0
        %v2308 = vadd.f32 %v2205, %v2307
        %v2309 = vpop.f32.mrf.mxu0
        %v2310 = vadd.f32 %v2205, %v2309
        %2311 = vmatmul.bf16.gmra.mxu0 %v2247
        %v2312 = vpop.f32.mrf.mxu0
        %v2313 = vadd.f32 %v2205, %v2312
        %v2314 = vpop.f32.mrf.mxu0
        %v2315 = vadd.f32 %v2205, %v2314
        %2316 = vmatmul.bf16.gmra.mxu0 %v2249
        %v2317 = vpop.f32.mrf.mxu0
        %v2318 = vadd.f32 %v2205, %v2317
        %v2319 = vpop.f32.mrf.mxu0
        %v2320 = vadd.f32 %v2205, %v2319
        %2321 = vmatmul.bf16.gmra.mxu0 %v2251
        %v2322 = vpop.f32.mrf.mxu0
        %v2323 = vadd.f32 %v2205, %v2322
        %v2324 = vpop.f32.mrf.mxu0
        %v2325 = vadd.f32 %v2205, %v2324
        %2326 = vmatmul.bf16.gmra.mxu0 %v2253
        %v2327 = vpop.f32.mrf.mxu0
        %v2328 = vadd.f32 %v2205, %v2327
        %v2329 = vpop.f32.mrf.mxu0
        %v2330 = vadd.f32 %v2205, %v2329
        %2331 = vmatmul.bf16.gmra.mxu0 %v2255
        %v2332 = vpop.f32.mrf.mxu0
        %v2333 = vadd.f32 %v2205, %v2332
        %v2334 = vpop.f32.mrf.mxu0
        %v2335 = vadd.f32 %v2205, %v2334
        %2336 = vmatmul.bf16.gmra.mxu0 %v2257
        %v2337 = vpop.f32.mrf.mxu0
        %v2338 = vadd.f32 %v2205, %v2337
        %v2339 = vpop.f32.mrf.mxu0
        %v2340 = vadd.f32 %v2205, %v2339
        %2341 = vmatmul.bf16.gmra.mxu0 %v2259
        %v2342 = vpop.f32.mrf.mxu0
        %v2343 = vadd.f32 %v2205, %v2342
        %v2344 = vpop.f32.mrf.mxu0
        %v2345 = vadd.f32 %v2205, %v2344
        %2346 = vmatmul.bf16.gmra.mxu0 %v2261
        %v2347 = vpop.f32.mrf.mxu0
        %v2348 = vadd.f32 %v2205, %v2347
        %v2349 = vpop.f32.mrf.mxu0
        %v2350 = vadd.f32 %v2205, %v2349
        %2351 = vdwg.mxu0
        %v2352 = vtanh.pop %v2273
        %v2353 = vtanh.pop %v2275
        %v2354 = vtanh.pop %v2278
        %v2355 = vtanh.pop %v2280
        %v2356 = vtanh.pop %v2283
        %v2357 = vtanh.pop %v2285
        %v2358 = vtanh.pop %v2288
        %v2359 = vtanh.pop %v2290
        %v2360 = vtanh.pop %v2293
        %v2361 = vtanh.pop %v2295
        %v2362 = vtanh.pop %v2298
        %v2363 = vtanh.pop %v2300
        %v2364 = vtanh.pop %v2303
        %v2365 = vtanh.pop %v2305
        %v2366 = vtanh.pop %v2308
        %v2367 = vtanh.pop %v2310
        %v2368 = vtanh.pop %v2313
        %v2369 = vtanh.pop %v2315
        %v2370 = vtanh.pop %v2318
        %v2371 = vtanh.pop %v2320
        %v2372 = vtanh.pop %v2323
        %v2373 = vtanh.pop %v2325
        %v2374 = vtanh.pop %v2328
        %v2375 = vtanh.pop %v2330
        %v2376 = vtanh.pop %v2333
        %v2377 = vtanh.pop %v2335
        %v2378 = vtanh.pop %v2338
        %v2379 = vtanh.pop %v2340
        %v2380 = vtanh.pop %v2343
        %v2381 = vtanh.pop %v2345
        %v2382 = vtanh.pop %v2348
        %v2383 = vtanh.pop %v2350
        %v2384 = vsub.f32 1.0, %v1955
        %v2385 = vsub.f32 1.0, %v1956
        %v2386 = vsub.f32 1.0, %v1957
        %v2387 = vsub.f32 1.0, %v1958
        %v2388 = vsub.f32 1.0, %v1959
        %v2389 = vsub.f32 1.0, %v1960
        %v2390 = vsub.f32 1.0, %v1961
        %v2391 = vsub.f32 1.0, %v1962
        %v2392 = vsub.f32 1.0, %v1963
        %v2393 = vsub.f32 1.0, %v1964
        %v2394 = vsub.f32 1.0, %v1965
        %v2395 = vsub.f32 1.0, %v1966
        %v2396 = vsub.f32 1.0, %v1967
        %v2397 = vsub.f32 1.0, %v1968
        %v2398 = vsub.f32 1.0, %v1969
        %v2399 = vsub.f32 1.0, %v1970
        %v2400 = vsub.f32 1.0, %v1971
        %v2401 = vsub.f32 1.0, %v1972
        %v2402 = vsub.f32 1.0, %v1973
        %v2403 = vsub.f32 1.0, %v1974
        %v2404 = vsub.f32 1.0, %v1975
        %v2405 = vsub.f32 1.0, %v1976
        %v2406 = vsub.f32 1.0, %v1977
        %v2407 = vsub.f32 1.0, %v1978
        %v2408 = vsub.f32 1.0, %v1979
        %v2409 = vsub.f32 1.0, %v1980
        %v2410 = vsub.f32 1.0, %v1981
        %v2411 = vsub.f32 1.0, %v1982
        %v2412 = vsub.f32 1.0, %v1983
        %v2413 = vsub.f32 1.0, %v1984
        %v2414 = vsub.f32 1.0, %v1985
        %v2415 = vsub.f32 1.0, %v1986
        %2448 = vrot.lane.b32.xlu0 %v1397, 32
        %v2449 = vpop.permute.xlu0 %2448
        %2450 = vrot.lane.b32.xlu0 %v1398, 32
        %v2451 = vpop.permute.xlu0 %2450
        %2452 = vrot.lane.b32.xlu0 %v1399, 32
        %v2453 = vpop.permute.xlu0 %2452
        %2454 = vrot.lane.b32.xlu0 %v1400, 32
        %v2455 = vpop.permute.xlu0 %2454
        %2456 = vrot.lane.b32.xlu0 %v1401, 32
        %v2457 = vpop.permute.xlu0 %2456
        %2458 = vrot.lane.b32.xlu0 %v1402, 32
        %v2459 = vpop.permute.xlu0 %2458
        %2460 = vrot.lane.b32.xlu0 %v1403, 32
        %v2461 = vpop.permute.xlu0 %2460
        %2462 = vrot.lane.b32.xlu0 %v1404, 32
        %v2463 = vpop.permute.xlu0 %2462
        %2464 = vrot.lane.b32.xlu0 %v1405, 32
        %v2465 = vpop.permute.xlu0 %2464
        %2466 = vrot.lane.b32.xlu0 %v1406, 32
        %v2467 = vpop.permute.xlu0 %2466
        %2468 = vrot.lane.b32.xlu0 %v1407, 32
        %v2469 = vpop.permute.xlu0 %2468
        %2470 = vrot.lane.b32.xlu0 %v1408, 32
        %v2471 = vpop.permute.xlu0 %2470
        %2472 = vrot.lane.b32.xlu0 %v1409, 32
        %v2473 = vpop.permute.xlu0 %2472
        %2474 = vrot.lane.b32.xlu0 %v1410, 32
        %v2475 = vpop.permute.xlu0 %2474
        %2476 = vrot.lane.b32.xlu0 %v1411, 32
        %v2477 = vpop.permute.xlu0 %2476
        %2478 = vrot.lane.b32.xlu0 %v1412, 32
        %v2479 = vpop.permute.xlu0 %2478
        %2480 = vrot.lane.b32.xlu0 %v1413, 32
        %v2481 = vpop.permute.xlu0 %2480
        %2482 = vrot.lane.b32.xlu0 %v1414, 32
        %v2483 = vpop.permute.xlu0 %2482
        %2484 = vrot.lane.b32.xlu0 %v1415, 32
        %v2485 = vpop.permute.xlu0 %2484
        %2486 = vrot.lane.b32.xlu0 %v1416, 32
        %v2487 = vpop.permute.xlu0 %2486
        %2488 = vrot.lane.b32.xlu0 %v1417, 32
        %v2489 = vpop.permute.xlu0 %2488
        %2490 = vrot.lane.b32.xlu0 %v1418, 32
        %v2491 = vpop.permute.xlu0 %2490
        %2492 = vrot.lane.b32.xlu0 %v1419, 32
        %v2493 = vpop.permute.xlu0 %2492
        %2494 = vrot.lane.b32.xlu0 %v1420, 32
        %v2495 = vpop.permute.xlu0 %2494
        %2496 = vrot.lane.b32.xlu0 %v1421, 32
        %v2497 = vpop.permute.xlu0 %2496
        %2498 = vrot.lane.b32.xlu0 %v1422, 32
        %v2499 = vpop.permute.xlu0 %2498
        %2500 = vrot.lane.b32.xlu0 %v1423, 32
        %v2501 = vpop.permute.xlu0 %2500
        %2502 = vrot.lane.b32.xlu0 %v1424, 32
        %v2503 = vpop.permute.xlu0 %2502
        %2504 = vrot.lane.b32.xlu0 %v1425, 32
        %v2505 = vpop.permute.xlu0 %2504
        %2506 = vrot.lane.b32.xlu0 %v1426, 32
        %v2507 = vpop.permute.xlu0 %2506
        %2508 = vrot.lane.b32.xlu0 %v1427, 32
        %v2509 = vpop.permute.xlu0 %2508
        %2510 = vrot.lane.b32.xlu0 %v1428, 32
        %v2511 = vpop.permute.xlu0 %2510
        %v2544 = vmul.f32 %v2384, %v2449
        %v2545 = vmul.f32 %v2385, %v2451
        %v2546 = vmul.f32 %v2386, %v2453
        %v2547 = vmul.f32 %v2387, %v2455
        %v2548 = vmul.f32 %v2388, %v2457
        %v2549 = vmul.f32 %v2389, %v2459
        %v2550 = vmul.f32 %v2390, %v2461
        %v2551 = vmul.f32 %v2391, %v2463
        %v2552 = vmul.f32 %v2392, %v2465
        %v2553 = vmul.f32 %v2393, %v2467
        %v2554 = vmul.f32 %v2394, %v2469
        %v2555 = vmul.f32 %v2395, %v2471
        %v2556 = vmul.f32 %v2396, %v2473
        %v2557 = vmul.f32 %v2397, %v2475
        %v2558 = vmul.f32 %v2398, %v2477
        %v2559 = vmul.f32 %v2399, %v2479
        %v2560 = vmul.f32 %v2400, %v2481
        %v2561 = vmul.f32 %v2401, %v2483
        %v2562 = vmul.f32 %v2402, %v2485
        %v2563 = vmul.f32 %v2403, %v2487
        %v2564 = vmul.f32 %v2404, %v2489
        %v2565 = vmul.f32 %v2405, %v2491
        %v2566 = vmul.f32 %v2406, %v2493
        %v2567 = vmul.f32 %v2407, %v2495
        %v2568 = vmul.f32 %v2408, %v2497
        %v2569 = vmul.f32 %v2409, %v2499
        %v2570 = vmul.f32 %v2410, %v2501
        %v2571 = vmul.f32 %v2411, %v2503
        %v2572 = vmul.f32 %v2412, %v2505
        %v2573 = vmul.f32 %v2413, %v2507
        %v2574 = vmul.f32 %v2414, %v2509
        %v2575 = vmul.f32 %v2415, %v2511
        %2608 = vrot.lane.b32.xlu0 %v2352, 32
        %v2609 = vpop.permute.xlu0 %2608
        %2610 = vrot.lane.b32.xlu0 %v2353, 32
        %v2611 = vpop.permute.xlu0 %2610
        %2612 = vrot.lane.b32.xlu0 %v2354, 32
        %v2613 = vpop.permute.xlu0 %2612
        %2614 = vrot.lane.b32.xlu0 %v2355, 32
        %v2615 = vpop.permute.xlu0 %2614
        %2616 = vrot.lane.b32.xlu0 %v2356, 32
        %v2617 = vpop.permute.xlu0 %2616
        %2618 = vrot.lane.b32.xlu0 %v2357, 32
        %v2619 = vpop.permute.xlu0 %2618
        %2620 = vrot.lane.b32.xlu0 %v2358, 32
        %v2621 = vpop.permute.xlu0 %2620
        %2622 = vrot.lane.b32.xlu0 %v2359, 32
        %v2623 = vpop.permute.xlu0 %2622
        %2624 = vrot.lane.b32.xlu0 %v2360, 32
        %v2625 = vpop.permute.xlu0 %2624
        %2626 = vrot.lane.b32.xlu0 %v2361, 32
        %v2627 = vpop.permute.xlu0 %2626
        %2628 = vrot.lane.b32.xlu0 %v2362, 32
        %v2629 = vpop.permute.xlu0 %2628
        %2630 = vrot.lane.b32.xlu0 %v2363, 32
        %v2631 = vpop.permute.xlu0 %2630
        %2632 = vrot.lane.b32.xlu0 %v2364, 32
        %v2633 = vpop.permute.xlu0 %2632
        %2634 = vrot.lane.b32.xlu0 %v2365, 32
        %v2635 = vpop.permute.xlu0 %2634
        %2636 = vrot.lane.b32.xlu0 %v2366, 32
        %v2637 = vpop.permute.xlu0 %2636
        %2638 = vrot.lane.b32.xlu0 %v2367, 32
        %v2639 = vpop.permute.xlu0 %2638
        %2640 = vrot.lane.b32.xlu0 %v2368, 32
        %v2641 = vpop.permute.xlu0 %2640
        %2642 = vrot.lane.b32.xlu0 %v2369, 32
        %v2643 = vpop.permute.xlu0 %2642
        %2644 = vrot.lane.b32.xlu0 %v2370, 32
        %v2645 = vpop.permute.xlu0 %2644
        %2646 = vrot.lane.b32.xlu0 %v2371, 32
        %v2647 = vpop.permute.xlu0 %2646
        %2648 = vrot.lane.b32.xlu0 %v2372, 32
        %v2649 = vpop.permute.xlu0 %2648
        %2650 = vrot.lane.b32.xlu0 %v2373, 32
        %v2651 = vpop.permute.xlu0 %2650
        %2652 = vrot.lane.b32.xlu0 %v2374, 32
        %v2653 = vpop.permute.xlu0 %2652
        %2654 = vrot.lane.b32.xlu0 %v2375, 32
        %v2655 = vpop.permute.xlu0 %2654
        %2656 = vrot.lane.b32.xlu0 %v2376, 32
        %v2657 = vpop.permute.xlu0 %2656
        %2658 = vrot.lane.b32.xlu0 %v2377, 32
        %v2659 = vpop.permute.xlu0 %2658
        %2660 = vrot.lane.b32.xlu0 %v2378, 32
        %v2661 = vpop.permute.xlu0 %2660
        %2662 = vrot.lane.b32.xlu0 %v2379, 32
        %v2663 = vpop.permute.xlu0 %2662
        %2664 = vrot.lane.b32.xlu0 %v2380, 32
        %v2665 = vpop.permute.xlu0 %2664
        %2666 = vrot.lane.b32.xlu0 %v2381, 32
        %v2667 = vpop.permute.xlu0 %2666
        %2668 = vrot.lane.b32.xlu0 %v2382, 32
        %v2669 = vpop.permute.xlu0 %2668
        %2670 = vrot.lane.b32.xlu0 %v2383, 32
        %v2671 = vpop.permute.xlu0 %2670
        %v2704 = vmul.f32 %v1955, %v2609
        %v2705 = vmul.f32 %v1956, %v2611
        %v2706 = vmul.f32 %v1957, %v2613
        %v2707 = vmul.f32 %v1958, %v2615
        %v2708 = vmul.f32 %v1959, %v2617
        %v2709 = vmul.f32 %v1960, %v2619
        %v2710 = vmul.f32 %v1961, %v2621
        %v2711 = vmul.f32 %v1962, %v2623
        %v2712 = vmul.f32 %v1963, %v2625
        %v2713 = vmul.f32 %v1964, %v2627
        %v2714 = vmul.f32 %v1965, %v2629
        %v2715 = vmul.f32 %v1966, %v2631
        %v2716 = vmul.f32 %v1967, %v2633
        %v2717 = vmul.f32 %v1968, %v2635
        %v2718 = vmul.f32 %v1969, %v2637
        %v2719 = vmul.f32 %v1970, %v2639
        %v2720 = vmul.f32 %v1971, %v2641
        %v2721 = vmul.f32 %v1972, %v2643
        %v2722 = vmul.f32 %v1973, %v2645
        %v2723 = vmul.f32 %v1974, %v2647
        %v2724 = vmul.f32 %v1975, %v2649
        %v2725 = vmul.f32 %v1976, %v2651
        %v2726 = vmul.f32 %v1977, %v2653
        %v2727 = vmul.f32 %v1978, %v2655
        %v2728 = vmul.f32 %v1979, %v2657
        %v2729 = vmul.f32 %v1980, %v2659
        %v2730 = vmul.f32 %v1981, %v2661
        %v2731 = vmul.f32 %v1982, %v2663
        %v2732 = vmul.f32 %v1983, %v2665
        %v2733 = vmul.f32 %v1984, %v2667
        %v2734 = vmul.f32 %v1985, %v2669
        %v2735 = vmul.f32 %v1986, %v2671
        %v2736 = vadd.f32 %v2544, %v2704
        %v2737 = vadd.f32 %v2545, %v2705
        %v2738 = vadd.f32 %v2546, %v2706
        %v2739 = vadd.f32 %v2547, %v2707
        %v2740 = vadd.f32 %v2548, %v2708
        %v2741 = vadd.f32 %v2549, %v2709
        %v2742 = vadd.f32 %v2550, %v2710
        %v2743 = vadd.f32 %v2551, %v2711
        %v2744 = vadd.f32 %v2552, %v2712
        %v2745 = vadd.f32 %v2553, %v2713
        %v2746 = vadd.f32 %v2554, %v2714
        %v2747 = vadd.f32 %v2555, %v2715
        %v2748 = vadd.f32 %v2556, %v2716
        %v2749 = vadd.f32 %v2557, %v2717
        %v2750 = vadd.f32 %v2558, %v2718
        %v2751 = vadd.f32 %v2559, %v2719
        %v2752 = vadd.f32 %v2560, %v2720
        %v2753 = vadd.f32 %v2561, %v2721
        %v2754 = vadd.f32 %v2562, %v2722
        %v2755 = vadd.f32 %v2563, %v2723
        %v2756 = vadd.f32 %v2564, %v2724
        %v2757 = vadd.f32 %v2565, %v2725
        %v2758 = vadd.f32 %v2566, %v2726
        %v2759 = vadd.f32 %v2567, %v2727
        %v2760 = vadd.f32 %v2568, %v2728
        %v2761 = vadd.f32 %v2569, %v2729
        %v2762 = vadd.f32 %v2570, %v2730
        %v2763 = vadd.f32 %v2571, %v2731
        %v2764 = vadd.f32 %v2572, %v2732
        %v2765 = vadd.f32 %v2573, %v2733
        %v2766 = vadd.f32 %v2574, %v2734
        %v2767 = vadd.f32 %v2575, %v2735
        %v2768 = vpack.c.bf16 %v2736, %v2736
        %v2769 = vpack.c.bf16 %v2737, %v2737
        %v2770 = vpack.c.bf16 %v2738, %v2738
        %v2771 = vpack.c.bf16 %v2739, %v2739
        %v2772 = vpack.c.bf16 %v2740, %v2740
        %v2773 = vpack.c.bf16 %v2741, %v2741
        %v2774 = vpack.c.bf16 %v2742, %v2742
        %v2775 = vpack.c.bf16 %v2743, %v2743
        %v2776 = vpack.c.bf16 %v2744, %v2744
        %v2777 = vpack.c.bf16 %v2745, %v2745
        %v2778 = vpack.c.bf16 %v2746, %v2746
        %v2779 = vpack.c.bf16 %v2747, %v2747
        %v2780 = vpack.c.bf16 %v2748, %v2748
        %v2781 = vpack.c.bf16 %v2749, %v2749
        %v2782 = vpack.c.bf16 %v2750, %v2750
        %v2783 = vpack.c.bf16 %v2751, %v2751
        %v2784 = vpack.c.bf16 %v2752, %v2752
        %v2785 = vpack.c.bf16 %v2753, %v2753
        %v2786 = vpack.c.bf16 %v2754, %v2754
        %v2787 = vpack.c.bf16 %v2755, %v2755
        %v2788 = vpack.c.bf16 %v2756, %v2756
        %v2789 = vpack.c.bf16 %v2757, %v2757
        %v2790 = vpack.c.bf16 %v2758, %v2758
        %v2791 = vpack.c.bf16 %v2759, %v2759
        %v2792 = vpack.c.bf16 %v2760, %v2760
        %v2793 = vpack.c.bf16 %v2761, %v2761
        %v2794 = vpack.c.bf16 %v2762, %v2762
        %v2795 = vpack.c.bf16 %v2763, %v2763
        %v2796 = vpack.c.bf16 %v2764, %v2764
        %v2797 = vpack.c.bf16 %v2765, %v2765
        %v2798 = vpack.c.bf16 %v2766, %v2766
        %v2799 = vpack.c.bf16 %v2767, %v2767
        %2832 = vrot.lane.b32.xlu0 %v2768, 96
        %v2833 = vpop.permute.xlu0 %2832
        %2834 = vrot.lane.b32.xlu0 %v2769, 96
        %v2835 = vpop.permute.xlu0 %2834
        %2836 = vrot.lane.b32.xlu0 %v2770, 96
        %v2837 = vpop.permute.xlu0 %2836
        %2838 = vrot.lane.b32.xlu0 %v2771, 96
        %v2839 = vpop.permute.xlu0 %2838
        %2840 = vrot.lane.b32.xlu0 %v2772, 96
        %v2841 = vpop.permute.xlu0 %2840
        %2842 = vrot.lane.b32.xlu0 %v2773, 96
        %v2843 = vpop.permute.xlu0 %2842
        %2844 = vrot.lane.b32.xlu0 %v2774, 96
        %v2845 = vpop.permute.xlu0 %2844
        %2846 = vrot.lane.b32.xlu0 %v2775, 96
        %v2847 = vpop.permute.xlu0 %2846
        %2848 = vrot.lane.b32.xlu0 %v2776, 96
        %v2849 = vpop.permute.xlu0 %2848
        %2850 = vrot.lane.b32.xlu0 %v2777, 96
        %v2851 = vpop.permute.xlu0 %2850
        %2852 = vrot.lane.b32.xlu0 %v2778, 96
        %v2853 = vpop.permute.xlu0 %2852
        %2854 = vrot.lane.b32.xlu0 %v2779, 96
        %v2855 = vpop.permute.xlu0 %2854
        %2856 = vrot.lane.b32.xlu0 %v2780, 96
        %v2857 = vpop.permute.xlu0 %2856
        %2858 = vrot.lane.b32.xlu0 %v2781, 96
        %v2859 = vpop.permute.xlu0 %2858
        %2860 = vrot.lane.b32.xlu0 %v2782, 96
        %v2861 = vpop.permute.xlu0 %2860
        %2862 = vrot.lane.b32.xlu0 %v2783, 96
        %v2863 = vpop.permute.xlu0 %2862
        %2864 = vrot.lane.b32.xlu0 %v2784, 96
        %v2865 = vpop.permute.xlu0 %2864
        %2866 = vrot.lane.b32.xlu0 %v2785, 96
        %v2867 = vpop.permute.xlu0 %2866
        %2868 = vrot.lane.b32.xlu0 %v2786, 96
        %v2869 = vpop.permute.xlu0 %2868
        %2870 = vrot.lane.b32.xlu0 %v2787, 96
        %v2871 = vpop.permute.xlu0 %2870
        %2872 = vrot.lane.b32.xlu0 %v2788, 96
        %v2873 = vpop.permute.xlu0 %2872
        %2874 = vrot.lane.b32.xlu0 %v2789, 96
        %v2875 = vpop.permute.xlu0 %2874
        %2876 = vrot.lane.b32.xlu0 %v2790, 96
        %v2877 = vpop.permute.xlu0 %2876
        %2878 = vrot.lane.b32.xlu0 %v2791, 96
        %v2879 = vpop.permute.xlu0 %2878
        %2880 = vrot.lane.b32.xlu0 %v2792, 96
        %v2881 = vpop.permute.xlu0 %2880
        %2882 = vrot.lane.b32.xlu0 %v2793, 96
        %v2883 = vpop.permute.xlu0 %2882
        %2884 = vrot.lane.b32.xlu0 %v2794, 96
        %v2885 = vpop.permute.xlu0 %2884
        %2886 = vrot.lane.b32.xlu0 %v2795, 96
        %v2887 = vpop.permute.xlu0 %2886
        %2888 = vrot.lane.b32.xlu0 %v2796, 96
        %v2889 = vpop.permute.xlu0 %2888
        %2890 = vrot.lane.b32.xlu0 %v2797, 96
        %v2891 = vpop.permute.xlu0 %2890
        %2892 = vrot.lane.b32.xlu0 %v2798, 96
        %v2893 = vpop.permute.xlu0 %2892
        %2894 = vrot.lane.b32.xlu0 %v2799, 96
        %v2895 = vpop.permute.xlu0 %2894
        %vm2928 = vcmask 257024
        %2929 = vst.msk [vmem:[%s458] sm:$0xf] %vm2928, %v2833
        %2930 = vst.msk [vmem:[%s458 + $0x4] sm:$0xf] %vm2928, %v2835
        %2931 = vst.msk [vmem:[%s458 + $0x8] sm:$0xf] %vm2928, %v2837
        %2932 = vst.msk [vmem:[%s458 + $0xc] sm:$0xf] %vm2928, %v2839
        %2933 = vst.msk [vmem:[%s458 + $0x10] sm:$0xf] %vm2928, %v2841
        %2934 = vst.msk [vmem:[%s458 + $0x14] sm:$0xf] %vm2928, %v2843
        %2935 = vst.msk [vmem:[%s458 + $0x18] sm:$0xf] %vm2928, %v2845
        %2936 = vst.msk [vmem:[%s458 + $0x1c] sm:$0xf] %vm2928, %v2847
        %2937 = vst.msk [vmem:[%s458 + $0x20] sm:$0xf] %vm2928, %v2849
        %2938 = vst.msk [vmem:[%s458 + $0x24] sm:$0xf] %vm2928, %v2851
        %2939 = vst.msk [vmem:[%s458 + $0x28] sm:$0xf] %vm2928, %v2853
        %2940 = vst.msk [vmem:[%s458 + $0x2c] sm:$0xf] %vm2928, %v2855
        %2941 = vst.msk [vmem:[%s458 + $0x30] sm:$0xf] %vm2928, %v2857
        %2942 = vst.msk [vmem:[%s458 + $0x34] sm:$0xf] %vm2928, %v2859
        %2943 = vst.msk [vmem:[%s458 + $0x38] sm:$0xf] %vm2928, %v2861
        %2944 = vst.msk [vmem:[%s458 + $0x3c] sm:$0xf] %vm2928, %v2863
        %2945 = vst.msk [vmem:[%s458 + $0x40] sm:$0xf] %vm2928, %v2865
        %2946 = vst.msk [vmem:[%s458 + $0x44] sm:$0xf] %vm2928, %v2867
        %2947 = vst.msk [vmem:[%s458 + $0x48] sm:$0xf] %vm2928, %v2869
        %2948 = vst.msk [vmem:[%s458 + $0x4c] sm:$0xf] %vm2928, %v2871
        %2949 = vst.msk [vmem:[%s458 + $0x50] sm:$0xf] %vm2928, %v2873
        %2950 = vst.msk [vmem:[%s458 + $0x54] sm:$0xf] %vm2928, %v2875
        %2951 = vst.msk [vmem:[%s458 + $0x58] sm:$0xf] %vm2928, %v2877
        %2952 = vst.msk [vmem:[%s458 + $0x5c] sm:$0xf] %vm2928, %v2879
        %2953 = vst.msk [vmem:[%s458 + $0x60] sm:$0xf] %vm2928, %v2881
        %2954 = vst.msk [vmem:[%s458 + $0x64] sm:$0xf] %vm2928, %v2883
        %2955 = vst.msk [vmem:[%s458 + $0x68] sm:$0xf] %vm2928, %v2885
        %2956 = vst.msk [vmem:[%s458 + $0x6c] sm:$0xf] %vm2928, %v2887
        %2957 = vst.msk [vmem:[%s458 + $0x70] sm:$0xf] %vm2928, %v2889
        %2958 = vst.msk [vmem:[%s458 + $0x74] sm:$0xf] %vm2928, %v2891
        %2959 = vst.msk [vmem:[%s458 + $0x78] sm:$0xf] %vm2928, %v2893
        %2960 = vst.msk [vmem:[%s458 + $0x7c] sm:$0xf] %vm2928, %v2895
        %v2961 = vunpack.c.l.b16 %v2768
        %v2962 = vunpack.c.l.b16 %v2769
        %v2963 = vunpack.c.l.b16 %v2770
        %v2964 = vunpack.c.l.b16 %v2771
        %v2965 = vunpack.c.l.b16 %v2772
        %v2966 = vunpack.c.l.b16 %v2773
        %v2967 = vunpack.c.l.b16 %v2774
        %v2968 = vunpack.c.l.b16 %v2775
        %v2969 = vunpack.c.l.b16 %v2776
        %v2970 = vunpack.c.l.b16 %v2777
        %v2971 = vunpack.c.l.b16 %v2778
        %v2972 = vunpack.c.l.b16 %v2779
        %v2973 = vunpack.c.l.b16 %v2780
        %v2974 = vunpack.c.l.b16 %v2781
        %v2975 = vunpack.c.l.b16 %v2782
        %v2976 = vunpack.c.l.b16 %v2783
        %v2977 = vunpack.c.l.b16 %v2784
        %v2978 = vunpack.c.l.b16 %v2785
        %v2979 = vunpack.c.l.b16 %v2786
        %v2980 = vunpack.c.l.b16 %v2787
        %v2981 = vunpack.c.l.b16 %v2788
        %v2982 = vunpack.c.l.b16 %v2789
        %v2983 = vunpack.c.l.b16 %v2790
        %v2984 = vunpack.c.l.b16 %v2791
        %v2985 = vunpack.c.l.b16 %v2792
        %v2986 = vunpack.c.l.b16 %v2793
        %v2987 = vunpack.c.l.b16 %v2794
        %v2988 = vunpack.c.l.b16 %v2795
        %v2989 = vunpack.c.l.b16 %v2796
        %v2990 = vunpack.c.l.b16 %v2797
        %v2991 = vunpack.c.l.b16 %v2798
        %v2992 = vunpack.c.l.b16 %v2799
        %v2993 = vpack.c.b16 %v2962, %v2961
        %v2994 = vpack.c.b16 %v2964, %v2963
        %v2995 = vpack.c.b16 %v2966, %v2965
        %v2996 = vpack.c.b16 %v2968, %v2967
        %v2997 = vpack.c.b16 %v2970, %v2969
        %v2998 = vpack.c.b16 %v2972, %v2971
        %v2999 = vpack.c.b16 %v2974, %v2973
        %v3000 = vpack.c.b16 %v2976, %v2975
        %v3001 = vpack.c.b16 %v2978, %v2977
        %v3002 = vpack.c.b16 %v2980, %v2979
        %v3003 = vpack.c.b16 %v2982, %v2981
        %v3004 = vpack.c.b16 %v2984, %v2983
        %v3005 = vpack.c.b16 %v2986, %v2985
        %v3006 = vpack.c.b16 %v2988, %v2987
        %v3007 = vpack.c.b16 %v2990, %v2989
        %v3008 = vpack.c.b16 %v2992, %v2991
        %3009 = vrot.lane.b32.xlu0 %v2993, 96
        %v3010 = vpop.permute.xlu0 %3009
        %3011 = vrot.lane.b32.xlu0 %v2994, 96
        %v3012 = vpop.permute.xlu0 %3011
        %3013 = vrot.lane.b32.xlu0 %v2995, 96
        %v3014 = vpop.permute.xlu0 %3013
        %3015 = vrot.lane.b32.xlu0 %v2996, 96
        %v3016 = vpop.permute.xlu0 %3015
        %3017 = vrot.lane.b32.xlu0 %v2997, 96
        %v3018 = vpop.permute.xlu0 %3017
        %3019 = vrot.lane.b32.xlu0 %v2998, 96
        %v3020 = vpop.permute.xlu0 %3019
        %3021 = vrot.lane.b32.xlu0 %v2999, 96
        %v3022 = vpop.permute.xlu0 %3021
        %3023 = vrot.lane.b32.xlu0 %v3000, 96
        %v3024 = vpop.permute.xlu0 %3023
        %3025 = vrot.lane.b32.xlu0 %v3001, 96
        %v3026 = vpop.permute.xlu0 %3025
        %3027 = vrot.lane.b32.xlu0 %v3002, 96
        %v3028 = vpop.permute.xlu0 %3027
        %3029 = vrot.lane.b32.xlu0 %v3003, 96
        %v3030 = vpop.permute.xlu0 %3029
        %3031 = vrot.lane.b32.xlu0 %v3004, 96
        %v3032 = vpop.permute.xlu0 %3031
        %3033 = vrot.lane.b32.xlu0 %v3005, 96
        %v3034 = vpop.permute.xlu0 %3033
        %3035 = vrot.lane.b32.xlu0 %v3006, 96
        %v3036 = vpop.permute.xlu0 %3035
        %3037 = vrot.lane.b32.xlu0 %v3007, 96
        %v3038 = vpop.permute.xlu0 %3037
        %3039 = vrot.lane.b32.xlu0 %v3008, 96
        %v3040 = vpop.permute.xlu0 %3039
        %v3043 = vsel %vm1195, %v3010, %v1605
        %v3046 = vsel %vm1195, %v3012, %v1606
        %v3049 = vsel %vm1195, %v3014, %v1607
        %v3052 = vsel %vm1195, %v3016, %v1608
        %v3055 = vsel %vm1195, %v3018, %v1609
        %v3058 = vsel %vm1195, %v3020, %v1610
        %v3061 = vsel %vm1195, %v3022, %v1611
        %v3064 = vsel %vm1195, %v3024, %v1612
        %v3067 = vsel %vm1195, %v3026, %v1613
        %v3070 = vsel %vm1195, %v3028, %v1614
        %v3073 = vsel %vm1195, %v3030, %v1615
        %v3076 = vsel %vm1195, %v3032, %v1616
        %v3079 = vsel %vm1195, %v3034, %v1617
        %v3082 = vsel %vm1195, %v3036, %v1618
        %v3085 = vsel %vm1195, %v3038, %v1619
        %v3088 = vsel %vm1195, %v3040, %v1620
        %s3089 = scalar_lea.vmem %s6, 32
        %v3090 = vld [vmem:[%s3089] sm:$0xf]
        %v3091 = vld [vmem:[%s3089 + $0x4] sm:$0xf]
        %v3092 = vld [vmem:[%s3089 + $0x8] sm:$0xf]
        %v3093 = vld [vmem:[%s3089 + $0xc] sm:$0xf]
        %v3094 = vld [vmem:[%s3089 + $0x10] sm:$0xf]
        %v3095 = vld [vmem:[%s3089 + $0x14] sm:$0xf]
        %v3096 = vld [vmem:[%s3089 + $0x18] sm:$0xf]
        %v3097 = vld [vmem:[%s3089 + $0x1c] sm:$0xf]
        %s3098 = scalar_lea.vmem %s7, 1
        %v3099 = vld [vmem:[%s3098] sm:$0x1]
        %v3101 = vperm.slane %v3099, 0
        %v3111 = vunpack.c.l.b16 %v3090
        %v3112 = vunpack.c.l.b16 %v3091
        %v3113 = vunpack.c.l.b16 %v3092
        %v3114 = vunpack.c.l.b16 %v3093
        %v3115 = vunpack.c.l.b16 %v3094
        %v3116 = vunpack.c.l.b16 %v3095
        %v3117 = vunpack.c.l.b16 %v3096
        %v3118 = vunpack.c.l.b16 %v3097
        %v3119 = vpack.c.b16 %v3112, %v3111
        %v3120 = vpack.c.b16 %v3114, %v3113
        %v3121 = vpack.c.b16 %v3116, %v3115
        %v3122 = vpack.c.b16 %v3118, %v3117
        %v3127 = vsel %vm1737, %v3043, 0
        %v3129 = vsel %vm1737, %v3046, 0
        %v3131 = vsel %vm1737, %v3049, 0
        %v3133 = vsel %vm1737, %v3052, 0
        %v3135 = vsel %vm1737, %v3055, 0
        %v3137 = vsel %vm1737, %v3058, 0
        %v3139 = vsel %vm1737, %v3061, 0
        %v3141 = vsel %vm1737, %v3064, 0
        %v3143 = vsel %vm1737, %v3067, 0
        %v3145 = vsel %vm1737, %v3070, 0
        %v3147 = vsel %vm1737, %v3073, 0
        %v3149 = vsel %vm1737, %v3076, 0
        %v3151 = vsel %vm1737, %v3079, 0
        %v3153 = vsel %vm1737, %v3082, 0
        %v3155 = vsel %vm1737, %v3085, 0
        %v3157 = vsel %vm1737, %v3088, 0
        %3159 = vmatpush.bf16.msra.mxu0 0
        %3160 = vmatpush.bf16.msra.mxu0 0
        %3161 = vmatpush.bf16.msra.mxu0 0
        %3162 = vmatpush.bf16.msra.mxu0 0
        %3163 = vmatpush.bf16.msra.mxu0 %v3122
        %3164 = vmatpush.bf16.msra.mxu0 %v3121
        %3165 = vmatpush.bf16.msra.mxu0 %v3120
        %3166 = vmatpush.bf16.msra.mxu0 %v3119
        %3167 = vmatmul.bf16.gmra.mxu0 %v3127
        %v3168 = vpop.f32.mrf.mxu0
        %v3169 = vadd.f32 %v3101, %v3168
        %v3170 = vpop.f32.mrf.mxu0
        %v3171 = vadd.f32 %v3101, %v3170
        %3172 = vmatmul.bf16.gmra.mxu0 %v3129
        %v3173 = vpop.f32.mrf.mxu0
        %v3174 = vadd.f32 %v3101, %v3173
        %v3175 = vpop.f32.mrf.mxu0
        %v3176 = vadd.f32 %v3101, %v3175
        %3177 = vmatmul.bf16.gmra.mxu0 %v3131
        %v3178 = vpop.f32.mrf.mxu0
        %v3179 = vadd.f32 %v3101, %v3178
        %v3180 = vpop.f32.mrf.mxu0
        %v3181 = vadd.f32 %v3101, %v3180
        %3182 = vmatmul.bf16.gmra.mxu0 %v3133
        %v3183 = vpop.f32.mrf.mxu0
        %v3184 = vadd.f32 %v3101, %v3183
        %v3185 = vpop.f32.mrf.mxu0
        %v3186 = vadd.f32 %v3101, %v3185
        %3187 = vmatmul.bf16.gmra.mxu0 %v3135
        %v3188 = vpop.f32.mrf.mxu0
        %v3189 = vadd.f32 %v3101, %v3188
        %v3190 = vpop.f32.mrf.mxu0
        %v3191 = vadd.f32 %v3101, %v3190
        %3192 = vmatmul.bf16.gmra.mxu0 %v3137
        %v3193 = vpop.f32.mrf.mxu0
        %v3194 = vadd.f32 %v3101, %v3193
        %v3195 = vpop.f32.mrf.mxu0
        %v3196 = vadd.f32 %v3101, %v3195
        %3197 = vmatmul.bf16.gmra.mxu0 %v3139
        %v3198 = vpop.f32.mrf.mxu0
        %v3199 = vadd.f32 %v3101, %v3198
        %v3200 = vpop.f32.mrf.mxu0
        %v3201 = vadd.f32 %v3101, %v3200
        %3202 = vmatmul.bf16.gmra.mxu0 %v3141
        %v3203 = vpop.f32.mrf.mxu0
        %v3204 = vadd.f32 %v3101, %v3203
        %v3205 = vpop.f32.mrf.mxu0
        %v3206 = vadd.f32 %v3101, %v3205
        %3207 = vmatmul.bf16.gmra.mxu0 %v3143
        %v3208 = vpop.f32.mrf.mxu0
        %v3209 = vadd.f32 %v3101, %v3208
        %v3210 = vpop.f32.mrf.mxu0
        %v3211 = vadd.f32 %v3101, %v3210
        %3212 = vmatmul.bf16.gmra.mxu0 %v3145
        %v3213 = vpop.f32.mrf.mxu0
        %v3214 = vadd.f32 %v3101, %v3213
        %v3215 = vpop.f32.mrf.mxu0
        %v3216 = vadd.f32 %v3101, %v3215
        %3217 = vmatmul.bf16.gmra.mxu0 %v3147
        %v3218 = vpop.f32.mrf.mxu0
        %v3219 = vadd.f32 %v3101, %v3218
        %v3220 = vpop.f32.mrf.mxu0
        %v3221 = vadd.f32 %v3101, %v3220
        %3222 = vmatmul.bf16.gmra.mxu0 %v3149
        %v3223 = vpop.f32.mrf.mxu0
        %v3224 = vadd.f32 %v3101, %v3223
        %v3225 = vpop.f32.mrf.mxu0
        %v3226 = vadd.f32 %v3101, %v3225
        %3227 = vmatmul.bf16.gmra.mxu0 %v3151
        %v3228 = vpop.f32.mrf.mxu0
        %v3229 = vadd.f32 %v3101, %v3228
        %v3230 = vpop.f32.mrf.mxu0
        %v3231 = vadd.f32 %v3101, %v3230
        %3232 = vmatmul.bf16.gmra.mxu0 %v3153
        %v3233 = vpop.f32.mrf.mxu0
        %v3234 = vadd.f32 %v3101, %v3233
        %v3235 = vpop.f32.mrf.mxu0
        %v3236 = vadd.f32 %v3101, %v3235
        %3237 = vmatmul.bf16.gmra.mxu0 %v3155
        %v3238 = vpop.f32.mrf.mxu0
        %v3239 = vadd.f32 %v3101, %v3238
        %v3240 = vpop.f32.mrf.mxu0
        %v3241 = vadd.f32 %v3101, %v3240
        %3242 = vmatmul.bf16.gmra.mxu0 %v3157
        %v3243 = vpop.f32.mrf.mxu0
        %v3244 = vadd.f32 %v3101, %v3243
        %v3245 = vpop.f32.mrf.mxu0
        %v3246 = vadd.f32 %v3101, %v3245
        %3247 = vdwg.mxu0
        %v3248 = vmul.f32 %v3169, 0.5
        %v3249 = vmul.f32 %v3171, 0.5
        %v3250 = vmul.f32 %v3174, 0.5
        %v3251 = vmul.f32 %v3176, 0.5
        %v3252 = vmul.f32 %v3179, 0.5
        %v3253 = vmul.f32 %v3181, 0.5
        %v3254 = vmul.f32 %v3184, 0.5
        %v3255 = vmul.f32 %v3186, 0.5
        %v3256 = vmul.f32 %v3189, 0.5
        %v3257 = vmul.f32 %v3191, 0.5
        %v3258 = vmul.f32 %v3194, 0.5
        %v3259 = vmul.f32 %v3196, 0.5
        %v3260 = vmul.f32 %v3199, 0.5
        %v3261 = vmul.f32 %v3201, 0.5
        %v3262 = vmul.f32 %v3204, 0.5
        %v3263 = vmul.f32 %v3206, 0.5
        %v3264 = vmul.f32 %v3209, 0.5
        %v3265 = vmul.f32 %v3211, 0.5
        %v3266 = vmul.f32 %v3214, 0.5
        %v3267 = vmul.f32 %v3216, 0.5
        %v3268 = vmul.f32 %v3219, 0.5
        %v3269 = vmul.f32 %v3221, 0.5
        %v3270 = vmul.f32 %v3224, 0.5
        %v3271 = vmul.f32 %v3226, 0.5
        %v3272 = vmul.f32 %v3229, 0.5
        %v3273 = vmul.f32 %v3231, 0.5
        %v3274 = vmul.f32 %v3234, 0.5
        %v3275 = vmul.f32 %v3236, 0.5
        %v3276 = vmul.f32 %v3239, 0.5
        %v3277 = vmul.f32 %v3241, 0.5
        %v3278 = vmul.f32 %v3244, 0.5
        %v3279 = vmul.f32 %v3246, 0.5
        %v3280 = vtanh.pop %v3248
        %v3281 = vtanh.pop %v3249
        %v3282 = vtanh.pop %v3250
        %v3283 = vtanh.pop %v3251
        %v3284 = vtanh.pop %v3252
        %v3285 = vtanh.pop %v3253
        %v3286 = vtanh.pop %v3254
        %v3287 = vtanh.pop %v3255
        %v3288 = vtanh.pop %v3256
        %v3289 = vtanh.pop %v3257
        %v3290 = vtanh.pop %v3258
        %v3291 = vtanh.pop %v3259
        %v3292 = vtanh.pop %v3260
        %v3293 = vtanh.pop %v3261
        %v3294 = vtanh.pop %v3262
        %v3295 = vtanh.pop %v3263
        %v3296 = vtanh.pop %v3264
        %v3297 = vtanh.pop %v3265
        %v3298 = vtanh.pop %v3266
        %v3299 = vtanh.pop %v3267
        %v3300 = vtanh.pop %v3268
        %v3301 = vtanh.pop %v3269
        %v3302 = vtanh.pop %v3270
        %v3303 = vtanh.pop %v3271
        %v3304 = vtanh.pop %v3272
        %v3305 = vtanh.pop %v3273
        %v3306 = vtanh.pop %v3274
        %v3307 = vtanh.pop %v3275
        %v3308 = vtanh.pop %v3276
        %v3309 = vtanh.pop %v3277
        %v3310 = vtanh.pop %v3278
        %v3311 = vtanh.pop %v3279
        %v3312 = vadd.f32 %v3280, 1.0
        %v3313 = vadd.f32 %v3281, 1.0
        %v3314 = vadd.f32 %v3282, 1.0
        %v3315 = vadd.f32 %v3283, 1.0
        %v3316 = vadd.f32 %v3284, 1.0
        %v3317 = vadd.f32 %v3285, 1.0
        %v3318 = vadd.f32 %v3286, 1.0
        %v3319 = vadd.f32 %v3287, 1.0
        %v3320 = vadd.f32 %v3288, 1.0
        %v3321 = vadd.f32 %v3289, 1.0
        %v3322 = vadd.f32 %v3290, 1.0
        %v3323 = vadd.f32 %v3291, 1.0
        %v3324 = vadd.f32 %v3292, 1.0
        %v3325 = vadd.f32 %v3293, 1.0
        %v3326 = vadd.f32 %v3294, 1.0
        %v3327 = vadd.f32 %v3295, 1.0
        %v3328 = vadd.f32 %v3296, 1.0
        %v3329 = vadd.f32 %v3297, 1.0
        %v3330 = vadd.f32 %v3298, 1.0
        %v3331 = vadd.f32 %v3299, 1.0
        %v3332 = vadd.f32 %v3300, 1.0
        %v3333 = vadd.f32 %v3301, 1.0
        %v3334 = vadd.f32 %v3302, 1.0
        %v3335 = vadd.f32 %v3303, 1.0
        %v3336 = vadd.f32 %v3304, 1.0
        %v3337 = vadd.f32 %v3305, 1.0
        %v3338 = vadd.f32 %v3306, 1.0
        %v3339 = vadd.f32 %v3307, 1.0
        %v3340 = vadd.f32 %v3308, 1.0
        %v3341 = vadd.f32 %v3309, 1.0
        %v3342 = vadd.f32 %v3310, 1.0
        %v3343 = vadd.f32 %v3311, 1.0
        %v3344 = vmul.f32 %v3312, 0.5
        %v3345 = vmul.f32 %v3313, 0.5
        %v3346 = vmul.f32 %v3314, 0.5
        %v3347 = vmul.f32 %v3315, 0.5
        %v3348 = vmul.f32 %v3316, 0.5
        %v3349 = vmul.f32 %v3317, 0.5
        %v3350 = vmul.f32 %v3318, 0.5
        %v3351 = vmul.f32 %v3319, 0.5
        %v3352 = vmul.f32 %v3320, 0.5
        %v3353 = vmul.f32 %v3321, 0.5
        %v3354 = vmul.f32 %v3322, 0.5
        %v3355 = vmul.f32 %v3323, 0.5
        %v3356 = vmul.f32 %v3324, 0.5
        %v3357 = vmul.f32 %v3325, 0.5
        %v3358 = vmul.f32 %v3326, 0.5
        %v3359 = vmul.f32 %v3327, 0.5
        %v3360 = vmul.f32 %v3328, 0.5
        %v3361 = vmul.f32 %v3329, 0.5
        %v3362 = vmul.f32 %v3330, 0.5
        %v3363 = vmul.f32 %v3331, 0.5
        %v3364 = vmul.f32 %v3332, 0.5
        %v3365 = vmul.f32 %v3333, 0.5
        %v3366 = vmul.f32 %v3334, 0.5
        %v3367 = vmul.f32 %v3335, 0.5
        %v3368 = vmul.f32 %v3336, 0.5
        %v3369 = vmul.f32 %v3337, 0.5
        %v3370 = vmul.f32 %v3338, 0.5
        %v3371 = vmul.f32 %v3339, 0.5
        %v3372 = vmul.f32 %v3340, 0.5
        %v3373 = vmul.f32 %v3341, 0.5
        %v3374 = vmul.f32 %v3342, 0.5
        %v3375 = vmul.f32 %v3343, 0.5
        %3376 = vrot.lane.b32.xlu0 %v1397, 96
        %v3377 = vpop.permute.xlu0 %3376
        %3378 = vrot.lane.b32.xlu0 %v1398, 96
        %v3379 = vpop.permute.xlu0 %3378
        %3380 = vrot.lane.b32.xlu0 %v1399, 96
        %v3381 = vpop.permute.xlu0 %3380
        %3382 = vrot.lane.b32.xlu0 %v1400, 96
        %v3383 = vpop.permute.xlu0 %3382
        %3384 = vrot.lane.b32.xlu0 %v1401, 96
        %v3385 = vpop.permute.xlu0 %3384
        %3386 = vrot.lane.b32.xlu0 %v1402, 96
        %v3387 = vpop.permute.xlu0 %3386
        %3388 = vrot.lane.b32.xlu0 %v1403, 96
        %v3389 = vpop.permute.xlu0 %3388
        %3390 = vrot.lane.b32.xlu0 %v1404, 96
        %v3391 = vpop.permute.xlu0 %3390
        %3392 = vrot.lane.b32.xlu0 %v1405, 96
        %v3393 = vpop.permute.xlu0 %3392
        %3394 = vrot.lane.b32.xlu0 %v1406, 96
        %v3395 = vpop.permute.xlu0 %3394
        %3396 = vrot.lane.b32.xlu0 %v1407, 96
        %v3397 = vpop.permute.xlu0 %3396
        %3398 = vrot.lane.b32.xlu0 %v1408, 96
        %v3399 = vpop.permute.xlu0 %3398
        %3400 = vrot.lane.b32.xlu0 %v1409, 96
        %v3401 = vpop.permute.xlu0 %3400
        %3402 = vrot.lane.b32.xlu0 %v1410, 96
        %v3403 = vpop.permute.xlu0 %3402
        %3404 = vrot.lane.b32.xlu0 %v1411, 96
        %v3405 = vpop.permute.xlu0 %3404
        %3406 = vrot.lane.b32.xlu0 %v1412, 96
        %v3407 = vpop.permute.xlu0 %3406
        %3408 = vrot.lane.b32.xlu0 %v1413, 96
        %v3409 = vpop.permute.xlu0 %3408
        %3410 = vrot.lane.b32.xlu0 %v1414, 96
        %v3411 = vpop.permute.xlu0 %3410
        %3412 = vrot.lane.b32.xlu0 %v1415, 96
        %v3413 = vpop.permute.xlu0 %3412
        %3414 = vrot.lane.b32.xlu0 %v1416, 96
        %v3415 = vpop.permute.xlu0 %3414
        %3416 = vrot.lane.b32.xlu0 %v1417, 96
        %v3417 = vpop.permute.xlu0 %3416
        %3418 = vrot.lane.b32.xlu0 %v1418, 96
        %v3419 = vpop.permute.xlu0 %3418
        %3420 = vrot.lane.b32.xlu0 %v1419, 96
        %v3421 = vpop.permute.xlu0 %3420
        %3422 = vrot.lane.b32.xlu0 %v1420, 96
        %v3423 = vpop.permute.xlu0 %3422
        %3424 = vrot.lane.b32.xlu0 %v1421, 96
        %v3425 = vpop.permute.xlu0 %3424
        %3426 = vrot.lane.b32.xlu0 %v1422, 96
        %v3427 = vpop.permute.xlu0 %3426
        %3428 = vrot.lane.b32.xlu0 %v1423, 96
        %v3429 = vpop.permute.xlu0 %3428
        %3430 = vrot.lane.b32.xlu0 %v1424, 96
        %v3431 = vpop.permute.xlu0 %3430
        %3432 = vrot.lane.b32.xlu0 %v1425, 96
        %v3433 = vpop.permute.xlu0 %3432
        %3434 = vrot.lane.b32.xlu0 %v1426, 96
        %v3435 = vpop.permute.xlu0 %3434
        %3436 = vrot.lane.b32.xlu0 %v1427, 96
        %v3437 = vpop.permute.xlu0 %3436
        %3438 = vrot.lane.b32.xlu0 %v1428, 96
        %v3439 = vpop.permute.xlu0 %3438
        %v3472 = vmul.f32 %v3344, %v3377
        %v3473 = vmul.f32 %v3345, %v3379
        %v3474 = vmul.f32 %v3346, %v3381
        %v3475 = vmul.f32 %v3347, %v3383
        %v3476 = vmul.f32 %v3348, %v3385
        %v3477 = vmul.f32 %v3349, %v3387
        %v3478 = vmul.f32 %v3350, %v3389
        %v3479 = vmul.f32 %v3351, %v3391
        %v3480 = vmul.f32 %v3352, %v3393
        %v3481 = vmul.f32 %v3353, %v3395
        %v3482 = vmul.f32 %v3354, %v3397
        %v3483 = vmul.f32 %v3355, %v3399
        %v3484 = vmul.f32 %v3356, %v3401
        %v3485 = vmul.f32 %v3357, %v3403
        %v3486 = vmul.f32 %v3358, %v3405
        %v3487 = vmul.f32 %v3359, %v3407
        %v3488 = vmul.f32 %v3360, %v3409
        %v3489 = vmul.f32 %v3361, %v3411
        %v3490 = vmul.f32 %v3362, %v3413
        %v3491 = vmul.f32 %v3363, %v3415
        %v3492 = vmul.f32 %v3364, %v3417
        %v3493 = vmul.f32 %v3365, %v3419
        %v3494 = vmul.f32 %v3366, %v3421
        %v3495 = vmul.f32 %v3367, %v3423
        %v3496 = vmul.f32 %v3368, %v3425
        %v3497 = vmul.f32 %v3369, %v3427
        %v3498 = vmul.f32 %v3370, %v3429
        %v3499 = vmul.f32 %v3371, %v3431
        %v3500 = vmul.f32 %v3372, %v3433
        %v3501 = vmul.f32 %v3373, %v3435
        %v3502 = vmul.f32 %v3374, %v3437
        %v3503 = vmul.f32 %v3375, %v3439
        %v3504 = vpack.c.bf16 %v3472, %v3472
        %v3505 = vpack.c.bf16 %v3473, %v3473
        %v3506 = vpack.c.bf16 %v3474, %v3474
        %v3507 = vpack.c.bf16 %v3475, %v3475
        %v3508 = vpack.c.bf16 %v3476, %v3476
        %v3509 = vpack.c.bf16 %v3477, %v3477
        %v3510 = vpack.c.bf16 %v3478, %v3478
        %v3511 = vpack.c.bf16 %v3479, %v3479
        %v3512 = vpack.c.bf16 %v3480, %v3480
        %v3513 = vpack.c.bf16 %v3481, %v3481
        %v3514 = vpack.c.bf16 %v3482, %v3482
        %v3515 = vpack.c.bf16 %v3483, %v3483
        %v3516 = vpack.c.bf16 %v3484, %v3484
        %v3517 = vpack.c.bf16 %v3485, %v3485
        %v3518 = vpack.c.bf16 %v3486, %v3486
        %v3519 = vpack.c.bf16 %v3487, %v3487
        %v3520 = vpack.c.bf16 %v3488, %v3488
        %v3521 = vpack.c.bf16 %v3489, %v3489
        %v3522 = vpack.c.bf16 %v3490, %v3490
        %v3523 = vpack.c.bf16 %v3491, %v3491
        %v3524 = vpack.c.bf16 %v3492, %v3492
        %v3525 = vpack.c.bf16 %v3493, %v3493
        %v3526 = vpack.c.bf16 %v3494, %v3494
        %v3527 = vpack.c.bf16 %v3495, %v3495
        %v3528 = vpack.c.bf16 %v3496, %v3496
        %v3529 = vpack.c.bf16 %v3497, %v3497
        %v3530 = vpack.c.bf16 %v3498, %v3498
        %v3531 = vpack.c.bf16 %v3499, %v3499
        %v3532 = vpack.c.bf16 %v3500, %v3500
        %v3533 = vpack.c.bf16 %v3501, %v3501
        %v3534 = vpack.c.bf16 %v3502, %v3502
        %v3535 = vpack.c.bf16 %v3503, %v3503
        %v3568 = vunpack.c.l.b16 %v3504
        %v3569 = vunpack.c.l.b16 %v3505
        %v3570 = vunpack.c.l.b16 %v3506
        %v3571 = vunpack.c.l.b16 %v3507
        %v3572 = vunpack.c.l.b16 %v3508
        %v3573 = vunpack.c.l.b16 %v3509
        %v3574 = vunpack.c.l.b16 %v3510
        %v3575 = vunpack.c.l.b16 %v3511
        %v3576 = vunpack.c.l.b16 %v3512
        %v3577 = vunpack.c.l.b16 %v3513
        %v3578 = vunpack.c.l.b16 %v3514
        %v3579 = vunpack.c.l.b16 %v3515
        %v3580 = vunpack.c.l.b16 %v3516
        %v3581 = vunpack.c.l.b16 %v3517
        %v3582 = vunpack.c.l.b16 %v3518
        %v3583 = vunpack.c.l.b16 %v3519
        %v3584 = vunpack.c.l.b16 %v3520
        %v3585 = vunpack.c.l.b16 %v3521
        %v3586 = vunpack.c.l.b16 %v3522
        %v3587 = vunpack.c.l.b16 %v3523
        %v3588 = vunpack.c.l.b16 %v3524
        %v3589 = vunpack.c.l.b16 %v3525
        %v3590 = vunpack.c.l.b16 %v3526
        %v3591 = vunpack.c.l.b16 %v3527
        %v3592 = vunpack.c.l.b16 %v3528
        %v3593 = vunpack.c.l.b16 %v3529
        %v3594 = vunpack.c.l.b16 %v3530
        %v3595 = vunpack.c.l.b16 %v3531
        %v3596 = vunpack.c.l.b16 %v3532
        %v3597 = vunpack.c.l.b16 %v3533
        %v3598 = vunpack.c.l.b16 %v3534
        %v3599 = vunpack.c.l.b16 %v3535
        %v3600 = vpack.c.b16 %v3569, %v3568
        %v3601 = vpack.c.b16 %v3571, %v3570
        %v3602 = vpack.c.b16 %v3573, %v3572
        %v3603 = vpack.c.b16 %v3575, %v3574
        %v3604 = vpack.c.b16 %v3577, %v3576
        %v3605 = vpack.c.b16 %v3579, %v3578
        %v3606 = vpack.c.b16 %v3581, %v3580
        %v3607 = vpack.c.b16 %v3583, %v3582
        %v3608 = vpack.c.b16 %v3585, %v3584
        %v3609 = vpack.c.b16 %v3587, %v3586
        %v3610 = vpack.c.b16 %v3589, %v3588
        %v3611 = vpack.c.b16 %v3591, %v3590
        %v3612 = vpack.c.b16 %v3593, %v3592
        %v3613 = vpack.c.b16 %v3595, %v3594
        %v3614 = vpack.c.b16 %v3597, %v3596
        %v3615 = vpack.c.b16 %v3599, %v3598
        %3616 = vrot.lane.b32.xlu0 %v3600, 32
        %v3617 = vpop.permute.xlu0 %3616
        %3618 = vrot.lane.b32.xlu0 %v3601, 32
        %v3619 = vpop.permute.xlu0 %3618
        %3620 = vrot.lane.b32.xlu0 %v3602, 32
        %v3621 = vpop.permute.xlu0 %3620
        %3622 = vrot.lane.b32.xlu0 %v3603, 32
        %v3623 = vpop.permute.xlu0 %3622
        %3624 = vrot.lane.b32.xlu0 %v3604, 32
        %v3625 = vpop.permute.xlu0 %3624
        %3626 = vrot.lane.b32.xlu0 %v3605, 32
        %v3627 = vpop.permute.xlu0 %3626
        %3628 = vrot.lane.b32.xlu0 %v3606, 32
        %v3629 = vpop.permute.xlu0 %3628
        %3630 = vrot.lane.b32.xlu0 %v3607, 32
        %v3631 = vpop.permute.xlu0 %3630
        %3632 = vrot.lane.b32.xlu0 %v3608, 32
        %v3633 = vpop.permute.xlu0 %3632
        %3634 = vrot.lane.b32.xlu0 %v3609, 32
        %v3635 = vpop.permute.xlu0 %3634
        %3636 = vrot.lane.b32.xlu0 %v3610, 32
        %v3637 = vpop.permute.xlu0 %3636
        %3638 = vrot.lane.b32.xlu0 %v3611, 32
        %v3639 = vpop.permute.xlu0 %3638
        %3640 = vrot.lane.b32.xlu0 %v3612, 32
        %v3641 = vpop.permute.xlu0 %3640
        %3642 = vrot.lane.b32.xlu0 %v3613, 32
        %v3643 = vpop.permute.xlu0 %3642
        %3644 = vrot.lane.b32.xlu0 %v3614, 32
        %v3645 = vpop.permute.xlu0 %3644
        %3646 = vrot.lane.b32.xlu0 %v3615, 32
        %v3647 = vpop.permute.xlu0 %3646
        %v3649 = vsel %vm1195, %v3010, %v3617
        %v3651 = vsel %vm1195, %v3012, %v3619
        %v3653 = vsel %vm1195, %v3014, %v3621
        %v3655 = vsel %vm1195, %v3016, %v3623
        %v3657 = vsel %vm1195, %v3018, %v3625
        %v3659 = vsel %vm1195, %v3020, %v3627
        %v3661 = vsel %vm1195, %v3022, %v3629
        %v3663 = vsel %vm1195, %v3024, %v3631
        %v3665 = vsel %vm1195, %v3026, %v3633
        %v3667 = vsel %vm1195, %v3028, %v3635
        %v3669 = vsel %vm1195, %v3030, %v3637
        %v3671 = vsel %vm1195, %v3032, %v3639
        %v3673 = vsel %vm1195, %v3034, %v3641
        %v3675 = vsel %vm1195, %v3036, %v3643
        %v3677 = vsel %vm1195, %v3038, %v3645
        %v3679 = vsel %vm1195, %v3040, %v3647
        %s3680 = scalar_lea.vmem %s8, 32
        %v3681 = vld [vmem:[%s3680] sm:$0xf]
        %v3682 = vld [vmem:[%s3680 + $0x4] sm:$0xf]
        %v3683 = vld [vmem:[%s3680 + $0x8] sm:$0xf]
        %v3684 = vld [vmem:[%s3680 + $0xc] sm:$0xf]
        %v3685 = vld [vmem:[%s3680 + $0x10] sm:$0xf]
        %v3686 = vld [vmem:[%s3680 + $0x14] sm:$0xf]
        %v3687 = vld [vmem:[%s3680 + $0x18] sm:$0xf]
        %v3688 = vld [vmem:[%s3680 + $0x1c] sm:$0xf]
        %s3689 = scalar_lea.vmem %s9, 1
        %v3690 = vld [vmem:[%s3689] sm:$0x1]
        %v3692 = vperm.slane %v3690, 0
        %v3702 = vunpack.c.l.b16 %v3681
        %v3703 = vunpack.c.l.b16 %v3682
        %v3704 = vunpack.c.l.b16 %v3683
        %v3705 = vunpack.c.l.b16 %v3684
        %v3706 = vunpack.c.l.b16 %v3685
        %v3707 = vunpack.c.l.b16 %v3686
        %v3708 = vunpack.c.l.b16 %v3687
        %v3709 = vunpack.c.l.b16 %v3688
        %v3710 = vpack.c.b16 %v3703, %v3702
        %v3711 = vpack.c.b16 %v3705, %v3704
        %v3712 = vpack.c.b16 %v3707, %v3706
        %v3713 = vpack.c.b16 %v3709, %v3708
        %v3718 = vsel %vm1737, %v3649, 0
        %v3720 = vsel %vm1737, %v3651, 0
        %v3722 = vsel %vm1737, %v3653, 0
        %v3724 = vsel %vm1737, %v3655, 0
        %v3726 = vsel %vm1737, %v3657, 0
        %v3728 = vsel %vm1737, %v3659, 0
        %v3730 = vsel %vm1737, %v3661, 0
        %v3732 = vsel %vm1737, %v3663, 0
        %v3734 = vsel %vm1737, %v3665, 0
        %v3736 = vsel %vm1737, %v3667, 0
        %v3738 = vsel %vm1737, %v3669, 0
        %v3740 = vsel %vm1737, %v3671, 0
        %v3742 = vsel %vm1737, %v3673, 0
        %v3744 = vsel %vm1737, %v3675, 0
        %v3746 = vsel %vm1737, %v3677, 0
        %v3748 = vsel %vm1737, %v3679, 0
        %3750 = vmatpush.bf16.msra.mxu0 0
        %3751 = vmatpush.bf16.msra.mxu0 0
        %3752 = vmatpush.bf16.msra.mxu0 0
        %3753 = vmatpush.bf16.msra.mxu0 0
        %3754 = vmatpush.bf16.msra.mxu0 %v3713
        %3755 = vmatpush.bf16.msra.mxu0 %v3712
        %3756 = vmatpush.bf16.msra.mxu0 %v3711
        %3757 = vmatpush.bf16.msra.mxu0 %v3710
        %3758 = vmatmul.bf16.gmra.mxu0 %v3718
        %v3759 = vpop.f32.mrf.mxu0
        %v3760 = vadd.f32 %v3692, %v3759
        %v3761 = vpop.f32.mrf.mxu0
        %v3762 = vadd.f32 %v3692, %v3761
        %3763 = vmatmul.bf16.gmra.mxu0 %v3720
        %v3764 = vpop.f32.mrf.mxu0
        %v3765 = vadd.f32 %v3692, %v3764
        %v3766 = vpop.f32.mrf.mxu0
        %v3767 = vadd.f32 %v3692, %v3766
        %3768 = vmatmul.bf16.gmra.mxu0 %v3722
        %v3769 = vpop.f32.mrf.mxu0
        %v3770 = vadd.f32 %v3692, %v3769
        %v3771 = vpop.f32.mrf.mxu0
        %v3772 = vadd.f32 %v3692, %v3771
        %3773 = vmatmul.bf16.gmra.mxu0 %v3724
        %v3774 = vpop.f32.mrf.mxu0
        %v3775 = vadd.f32 %v3692, %v3774
        %v3776 = vpop.f32.mrf.mxu0
        %v3777 = vadd.f32 %v3692, %v3776
        %3778 = vmatmul.bf16.gmra.mxu0 %v3726
        %v3779 = vpop.f32.mrf.mxu0
        %v3780 = vadd.f32 %v3692, %v3779
        %v3781 = vpop.f32.mrf.mxu0
        %v3782 = vadd.f32 %v3692, %v3781
        %3783 = vmatmul.bf16.gmra.mxu0 %v3728
        %v3784 = vpop.f32.mrf.mxu0
        %v3785 = vadd.f32 %v3692, %v3784
        %v3786 = vpop.f32.mrf.mxu0
        %v3787 = vadd.f32 %v3692, %v3786
        %3788 = vmatmul.bf16.gmra.mxu0 %v3730
        %v3789 = vpop.f32.mrf.mxu0
        %v3790 = vadd.f32 %v3692, %v3789
        %v3791 = vpop.f32.mrf.mxu0
        %v3792 = vadd.f32 %v3692, %v3791
        %3793 = vmatmul.bf16.gmra.mxu0 %v3732
        %v3794 = vpop.f32.mrf.mxu0
        %v3795 = vadd.f32 %v3692, %v3794
        %v3796 = vpop.f32.mrf.mxu0
        %v3797 = vadd.f32 %v3692, %v3796
        %3798 = vmatmul.bf16.gmra.mxu0 %v3734
        %v3799 = vpop.f32.mrf.mxu0
        %v3800 = vadd.f32 %v3692, %v3799
        %v3801 = vpop.f32.mrf.mxu0
        %v3802 = vadd.f32 %v3692, %v3801
        %3803 = vmatmul.bf16.gmra.mxu0 %v3736
        %v3804 = vpop.f32.mrf.mxu0
        %v3805 = vadd.f32 %v3692, %v3804
        %v3806 = vpop.f32.mrf.mxu0
        %v3807 = vadd.f32 %v3692, %v3806
        %3808 = vmatmul.bf16.gmra.mxu0 %v3738
        %v3809 = vpop.f32.mrf.mxu0
        %v3810 = vadd.f32 %v3692, %v3809
        %v3811 = vpop.f32.mrf.mxu0
        %v3812 = vadd.f32 %v3692, %v3811
        %3813 = vmatmul.bf16.gmra.mxu0 %v3740
        %v3814 = vpop.f32.mrf.mxu0
        %v3815 = vadd.f32 %v3692, %v3814
        %v3816 = vpop.f32.mrf.mxu0
        %v3817 = vadd.f32 %v3692, %v3816
        %3818 = vmatmul.bf16.gmra.mxu0 %v3742
        %v3819 = vpop.f32.mrf.mxu0
        %v3820 = vadd.f32 %v3692, %v3819
        %v3821 = vpop.f32.mrf.mxu0
        %v3822 = vadd.f32 %v3692, %v3821
        %3823 = vmatmul.bf16.gmra.mxu0 %v3744
        %v3824 = vpop.f32.mrf.mxu0
        %v3825 = vadd.f32 %v3692, %v3824
        %v3826 = vpop.f32.mrf.mxu0
        %v3827 = vadd.f32 %v3692, %v3826
        %3828 = vmatmul.bf16.gmra.mxu0 %v3746
        %v3829 = vpop.f32.mrf.mxu0
        %v3830 = vadd.f32 %v3692, %v3829
        %v3831 = vpop.f32.mrf.mxu0
        %v3832 = vadd.f32 %v3692, %v3831
        %3833 = vmatmul.bf16.gmra.mxu0 %v3748
        %v3834 = vpop.f32.mrf.mxu0
        %v3835 = vadd.f32 %v3692, %v3834
        %v3836 = vpop.f32.mrf.mxu0
        %v3837 = vadd.f32 %v3692, %v3836
        %3838 = vdwg.mxu0
        %v3839 = vtanh.pop %v3760
        %v3840 = vtanh.pop %v3762
        %v3841 = vtanh.pop %v3765
        %v3842 = vtanh.pop %v3767
        %v3843 = vtanh.pop %v3770
        %v3844 = vtanh.pop %v3772
        %v3845 = vtanh.pop %v3775
        %v3846 = vtanh.pop %v3777
        %v3847 = vtanh.pop %v3780
        %v3848 = vtanh.pop %v3782
        %v3849 = vtanh.pop %v3785
        %v3850 = vtanh.pop %v3787
        %v3851 = vtanh.pop %v3790
        %v3852 = vtanh.pop %v3792
        %v3853 = vtanh.pop %v3795
        %v3854 = vtanh.pop %v3797
        %v3855 = vtanh.pop %v3800
        %v3856 = vtanh.pop %v3802
        %v3857 = vtanh.pop %v3805
        %v3858 = vtanh.pop %v3807
        %v3859 = vtanh.pop %v3810
        %v3860 = vtanh.pop %v3812
        %v3861 = vtanh.pop %v3815
        %v3862 = vtanh.pop %v3817
        %v3863 = vtanh.pop %v3820
        %v3864 = vtanh.pop %v3822
        %v3865 = vtanh.pop %v3825
        %v3866 = vtanh.pop %v3827
        %v3867 = vtanh.pop %v3830
        %v3868 = vtanh.pop %v3832
        %v3869 = vtanh.pop %v3835
        %v3870 = vtanh.pop %v3837
        %v3871 = vsub.f32 1.0, %v3344
        %v3872 = vsub.f32 1.0, %v3345
        %v3873 = vsub.f32 1.0, %v3346
        %v3874 = vsub.f32 1.0, %v3347
        %v3875 = vsub.f32 1.0, %v3348
        %v3876 = vsub.f32 1.0, %v3349
        %v3877 = vsub.f32 1.0, %v3350
        %v3878 = vsub.f32 1.0, %v3351
        %v3879 = vsub.f32 1.0, %v3352
        %v3880 = vsub.f32 1.0, %v3353
        %v3881 = vsub.f32 1.0, %v3354
        %v3882 = vsub.f32 1.0, %v3355
        %v3883 = vsub.f32 1.0, %v3356
        %v3884 = vsub.f32 1.0, %v3357
        %v3885 = vsub.f32 1.0, %v3358
        %v3886 = vsub.f32 1.0, %v3359
        %v3887 = vsub.f32 1.0, %v3360
        %v3888 = vsub.f32 1.0, %v3361
        %v3889 = vsub.f32 1.0, %v3362
        %v3890 = vsub.f32 1.0, %v3363
        %v3891 = vsub.f32 1.0, %v3364
        %v3892 = vsub.f32 1.0, %v3365
        %v3893 = vsub.f32 1.0, %v3366
        %v3894 = vsub.f32 1.0, %v3367
        %v3895 = vsub.f32 1.0, %v3368
        %v3896 = vsub.f32 1.0, %v3369
        %v3897 = vsub.f32 1.0, %v3370
        %v3898 = vsub.f32 1.0, %v3371
        %v3899 = vsub.f32 1.0, %v3372
        %v3900 = vsub.f32 1.0, %v3373
        %v3901 = vsub.f32 1.0, %v3374
        %v3902 = vsub.f32 1.0, %v3375
        %v3903 = vmul.f32 %v3871, %v1397
        %v3904 = vmul.f32 %v3872, %v1398
        %v3905 = vmul.f32 %v3873, %v1399
        %v3906 = vmul.f32 %v3874, %v1400
        %v3907 = vmul.f32 %v3875, %v1401
        %v3908 = vmul.f32 %v3876, %v1402
        %v3909 = vmul.f32 %v3877, %v1403
        %v3910 = vmul.f32 %v3878, %v1404
        %v3911 = vmul.f32 %v3879, %v1405
        %v3912 = vmul.f32 %v3880, %v1406
        %v3913 = vmul.f32 %v3881, %v1407
        %v3914 = vmul.f32 %v3882, %v1408
        %v3915 = vmul.f32 %v3883, %v1409
        %v3916 = vmul.f32 %v3884, %v1410
        %v3917 = vmul.f32 %v3885, %v1411
        %v3918 = vmul.f32 %v3886, %v1412
        %v3919 = vmul.f32 %v3887, %v1413
        %v3920 = vmul.f32 %v3888, %v1414
        %v3921 = vmul.f32 %v3889, %v1415
        %v3922 = vmul.f32 %v3890, %v1416
        %v3923 = vmul.f32 %v3891, %v1417
        %v3924 = vmul.f32 %v3892, %v1418
        %v3925 = vmul.f32 %v3893, %v1419
        %v3926 = vmul.f32 %v3894, %v1420
        %v3927 = vmul.f32 %v3895, %v1421
        %v3928 = vmul.f32 %v3896, %v1422
        %v3929 = vmul.f32 %v3897, %v1423
        %v3930 = vmul.f32 %v3898, %v1424
        %v3931 = vmul.f32 %v3899, %v1425
        %v3932 = vmul.f32 %v3900, %v1426
        %v3933 = vmul.f32 %v3901, %v1427
        %v3934 = vmul.f32 %v3902, %v1428
        %3967 = vrot.lane.b32.xlu0 %v3839, 32
        %v3968 = vpop.permute.xlu0 %3967
        %3969 = vrot.lane.b32.xlu0 %v3840, 32
        %v3970 = vpop.permute.xlu0 %3969
        %3971 = vrot.lane.b32.xlu0 %v3841, 32
        %v3972 = vpop.permute.xlu0 %3971
        %3973 = vrot.lane.b32.xlu0 %v3842, 32
        %v3974 = vpop.permute.xlu0 %3973
        %3975 = vrot.lane.b32.xlu0 %v3843, 32
        %v3976 = vpop.permute.xlu0 %3975
        %3977 = vrot.lane.b32.xlu0 %v3844, 32
        %v3978 = vpop.permute.xlu0 %3977
        %3979 = vrot.lane.b32.xlu0 %v3845, 32
        %v3980 = vpop.permute.xlu0 %3979
        %3981 = vrot.lane.b32.xlu0 %v3846, 32
        %v3982 = vpop.permute.xlu0 %3981
        %3983 = vrot.lane.b32.xlu0 %v3847, 32
        %v3984 = vpop.permute.xlu0 %3983
        %3985 = vrot.lane.b32.xlu0 %v3848, 32
        %v3986 = vpop.permute.xlu0 %3985
        %3987 = vrot.lane.b32.xlu0 %v3849, 32
        %v3988 = vpop.permute.xlu0 %3987
        %3989 = vrot.lane.b32.xlu0 %v3850, 32
        %v3990 = vpop.permute.xlu0 %3989
        %3991 = vrot.lane.b32.xlu0 %v3851, 32
        %v3992 = vpop.permute.xlu0 %3991
        %3993 = vrot.lane.b32.xlu0 %v3852, 32
        %v3994 = vpop.permute.xlu0 %3993
        %3995 = vrot.lane.b32.xlu0 %v3853, 32
        %v3996 = vpop.permute.xlu0 %3995
        %3997 = vrot.lane.b32.xlu0 %v3854, 32
        %v3998 = vpop.permute.xlu0 %3997
        %3999 = vrot.lane.b32.xlu0 %v3855, 32
        %v4000 = vpop.permute.xlu0 %3999
        %4001 = vrot.lane.b32.xlu0 %v3856, 32
        %v4002 = vpop.permute.xlu0 %4001
        %4003 = vrot.lane.b32.xlu0 %v3857, 32
        %v4004 = vpop.permute.xlu0 %4003
        %4005 = vrot.lane.b32.xlu0 %v3858, 32
        %v4006 = vpop.permute.xlu0 %4005
        %4007 = vrot.lane.b32.xlu0 %v3859, 32
        %v4008 = vpop.permute.xlu0 %4007
        %4009 = vrot.lane.b32.xlu0 %v3860, 32
        %v4010 = vpop.permute.xlu0 %4009
        %4011 = vrot.lane.b32.xlu0 %v3861, 32
        %v4012 = vpop.permute.xlu0 %4011
        %4013 = vrot.lane.b32.xlu0 %v3862, 32
        %v4014 = vpop.permute.xlu0 %4013
        %4015 = vrot.lane.b32.xlu0 %v3863, 32
        %v4016 = vpop.permute.xlu0 %4015
        %4017 = vrot.lane.b32.xlu0 %v3864, 32
        %v4018 = vpop.permute.xlu0 %4017
        %4019 = vrot.lane.b32.xlu0 %v3865, 32
        %v4020 = vpop.permute.xlu0 %4019
        %4021 = vrot.lane.b32.xlu0 %v3866, 32
        %v4022 = vpop.permute.xlu0 %4021
        %4023 = vrot.lane.b32.xlu0 %v3867, 32
        %v4024 = vpop.permute.xlu0 %4023
        %4025 = vrot.lane.b32.xlu0 %v3868, 32
        %v4026 = vpop.permute.xlu0 %4025
        %4027 = vrot.lane.b32.xlu0 %v3869, 32
        %v4028 = vpop.permute.xlu0 %4027
        %4029 = vrot.lane.b32.xlu0 %v3870, 32
        %v4030 = vpop.permute.xlu0 %4029
        %v4063 = vmul.f32 %v3344, %v3968
        %v4064 = vmul.f32 %v3345, %v3970
        %v4065 = vmul.f32 %v3346, %v3972
        %v4066 = vmul.f32 %v3347, %v3974
        %v4067 = vmul.f32 %v3348, %v3976
        %v4068 = vmul.f32 %v3349, %v3978
        %v4069 = vmul.f32 %v3350, %v3980
        %v4070 = vmul.f32 %v3351, %v3982
        %v4071 = vmul.f32 %v3352, %v3984
        %v4072 = vmul.f32 %v3353, %v3986
        %v4073 = vmul.f32 %v3354, %v3988
        %v4074 = vmul.f32 %v3355, %v3990
        %v4075 = vmul.f32 %v3356, %v3992
        %v4076 = vmul.f32 %v3357, %v3994
        %v4077 = vmul.f32 %v3358, %v3996
        %v4078 = vmul.f32 %v3359, %v3998
        %v4079 = vmul.f32 %v3360, %v4000
        %v4080 = vmul.f32 %v3361, %v4002
        %v4081 = vmul.f32 %v3362, %v4004
        %v4082 = vmul.f32 %v3363, %v4006
        %v4083 = vmul.f32 %v3364, %v4008
        %v4084 = vmul.f32 %v3365, %v4010
        %v4085 = vmul.f32 %v3366, %v4012
        %v4086 = vmul.f32 %v3367, %v4014
        %v4087 = vmul.f32 %v3368, %v4016
        %v4088 = vmul.f32 %v3369, %v4018
        %v4089 = vmul.f32 %v3370, %v4020
        %v4090 = vmul.f32 %v3371, %v4022
        %v4091 = vmul.f32 %v3372, %v4024
        %v4092 = vmul.f32 %v3373, %v4026
        %v4093 = vmul.f32 %v3374, %v4028
        %v4094 = vmul.f32 %v3375, %v4030
        %v4095 = vadd.f32 %v3903, %v4063
        %v4096 = vadd.f32 %v3904, %v4064
        %v4097 = vadd.f32 %v3905, %v4065
        %v4098 = vadd.f32 %v3906, %v4066
        %v4099 = vadd.f32 %v3907, %v4067
        %v4100 = vadd.f32 %v3908, %v4068
        %v4101 = vadd.f32 %v3909, %v4069
        %v4102 = vadd.f32 %v3910, %v4070
        %v4103 = vadd.f32 %v3911, %v4071
        %v4104 = vadd.f32 %v3912, %v4072
        %v4105 = vadd.f32 %v3913, %v4073
        %v4106 = vadd.f32 %v3914, %v4074
        %v4107 = vadd.f32 %v3915, %v4075
        %v4108 = vadd.f32 %v3916, %v4076
        %v4109 = vadd.f32 %v3917, %v4077
        %v4110 = vadd.f32 %v3918, %v4078
        %v4111 = vadd.f32 %v3919, %v4079
        %v4112 = vadd.f32 %v3920, %v4080
        %v4113 = vadd.f32 %v3921, %v4081
        %v4114 = vadd.f32 %v3922, %v4082
        %v4115 = vadd.f32 %v3923, %v4083
        %v4116 = vadd.f32 %v3924, %v4084
        %v4117 = vadd.f32 %v3925, %v4085
        %v4118 = vadd.f32 %v3926, %v4086
        %v4119 = vadd.f32 %v3927, %v4087
        %v4120 = vadd.f32 %v3928, %v4088
        %v4121 = vadd.f32 %v3929, %v4089
        %v4122 = vadd.f32 %v3930, %v4090
        %v4123 = vadd.f32 %v3931, %v4091
        %v4124 = vadd.f32 %v3932, %v4092
        %v4125 = vadd.f32 %v3933, %v4093
        %v4126 = vadd.f32 %v3934, %v4094
        %v4127 = vpack.c.bf16 %v4095, %v4095
        %v4128 = vpack.c.bf16 %v4096, %v4096
        %v4129 = vpack.c.bf16 %v4097, %v4097
        %v4130 = vpack.c.bf16 %v4098, %v4098
        %v4131 = vpack.c.bf16 %v4099, %v4099
        %v4132 = vpack.c.bf16 %v4100, %v4100
        %v4133 = vpack.c.bf16 %v4101, %v4101
        %v4134 = vpack.c.bf16 %v4102, %v4102
        %v4135 = vpack.c.bf16 %v4103, %v4103
        %v4136 = vpack.c.bf16 %v4104, %v4104
        %v4137 = vpack.c.bf16 %v4105, %v4105
        %v4138 = vpack.c.bf16 %v4106, %v4106
        %v4139 = vpack.c.bf16 %v4107, %v4107
        %v4140 = vpack.c.bf16 %v4108, %v4108
        %v4141 = vpack.c.bf16 %v4109, %v4109
        %v4142 = vpack.c.bf16 %v4110, %v4110
        %v4143 = vpack.c.bf16 %v4111, %v4111
        %v4144 = vpack.c.bf16 %v4112, %v4112
        %v4145 = vpack.c.bf16 %v4113, %v4113
        %v4146 = vpack.c.bf16 %v4114, %v4114
        %v4147 = vpack.c.bf16 %v4115, %v4115
        %v4148 = vpack.c.bf16 %v4116, %v4116
        %v4149 = vpack.c.bf16 %v4117, %v4117
        %v4150 = vpack.c.bf16 %v4118, %v4118
        %v4151 = vpack.c.bf16 %v4119, %v4119
        %v4152 = vpack.c.bf16 %v4120, %v4120
        %v4153 = vpack.c.bf16 %v4121, %v4121
        %v4154 = vpack.c.bf16 %v4122, %v4122
        %v4155 = vpack.c.bf16 %v4123, %v4123
        %v4156 = vpack.c.bf16 %v4124, %v4124
        %v4157 = vpack.c.bf16 %v4125, %v4125
        %v4158 = vpack.c.bf16 %v4126, %v4126
        %vm4159 = vcmask 519424
        %4160 = vst.msk [vmem:[%s458] sm:$0xf] %vm4159, %v4127
        %4161 = vst.msk [vmem:[%s458 + $0x4] sm:$0xf] %vm4159, %v4128
        %4162 = vst.msk [vmem:[%s458 + $0x8] sm:$0xf] %vm4159, %v4129
        %4163 = vst.msk [vmem:[%s458 + $0xc] sm:$0xf] %vm4159, %v4130
        %4164 = vst.msk [vmem:[%s458 + $0x10] sm:$0xf] %vm4159, %v4131
        %4165 = vst.msk [vmem:[%s458 + $0x14] sm:$0xf] %vm4159, %v4132
        %4166 = vst.msk [vmem:[%s458 + $0x18] sm:$0xf] %vm4159, %v4133
        %4167 = vst.msk [vmem:[%s458 + $0x1c] sm:$0xf] %vm4159, %v4134
        %4168 = vst.msk [vmem:[%s458 + $0x20] sm:$0xf] %vm4159, %v4135
        %4169 = vst.msk [vmem:[%s458 + $0x24] sm:$0xf] %vm4159, %v4136
        %4170 = vst.msk [vmem:[%s458 + $0x28] sm:$0xf] %vm4159, %v4137
        %4171 = vst.msk [vmem:[%s458 + $0x2c] sm:$0xf] %vm4159, %v4138
        %4172 = vst.msk [vmem:[%s458 + $0x30] sm:$0xf] %vm4159, %v4139
        %4173 = vst.msk [vmem:[%s458 + $0x34] sm:$0xf] %vm4159, %v4140
        %4174 = vst.msk [vmem:[%s458 + $0x38] sm:$0xf] %vm4159, %v4141
        %4175 = vst.msk [vmem:[%s458 + $0x3c] sm:$0xf] %vm4159, %v4142
        %4176 = vst.msk [vmem:[%s458 + $0x40] sm:$0xf] %vm4159, %v4143
        %4177 = vst.msk [vmem:[%s458 + $0x44] sm:$0xf] %vm4159, %v4144
        %4178 = vst.msk [vmem:[%s458 + $0x48] sm:$0xf] %vm4159, %v4145
        %4179 = vst.msk [vmem:[%s458 + $0x4c] sm:$0xf] %vm4159, %v4146
        %4180 = vst.msk [vmem:[%s458 + $0x50] sm:$0xf] %vm4159, %v4147
        %4181 = vst.msk [vmem:[%s458 + $0x54] sm:$0xf] %vm4159, %v4148
        %4182 = vst.msk [vmem:[%s458 + $0x58] sm:$0xf] %vm4159, %v4149
        %4183 = vst.msk [vmem:[%s458 + $0x5c] sm:$0xf] %vm4159, %v4150
        %4184 = vst.msk [vmem:[%s458 + $0x60] sm:$0xf] %vm4159, %v4151
        %4185 = vst.msk [vmem:[%s458 + $0x64] sm:$0xf] %vm4159, %v4152
        %4186 = vst.msk [vmem:[%s458 + $0x68] sm:$0xf] %vm4159, %v4153
        %4187 = vst.msk [vmem:[%s458 + $0x6c] sm:$0xf] %vm4159, %v4154
        %4188 = vst.msk [vmem:[%s458 + $0x70] sm:$0xf] %vm4159, %v4155
        %4189 = vst.msk [vmem:[%s458 + $0x74] sm:$0xf] %vm4159, %v4156
        %4190 = vst.msk [vmem:[%s458 + $0x78] sm:$0xf] %vm4159, %v4157
        %4191 = vst.msk [vmem:[%s458 + $0x7c] sm:$0xf] %vm4159, %v4158
        %v4224 = vunpack.c.l.b16 %v4127
        %v4225 = vunpack.c.l.b16 %v4128
        %v4226 = vunpack.c.l.b16 %v4129
        %v4227 = vunpack.c.l.b16 %v4130
        %v4228 = vunpack.c.l.b16 %v4131
        %v4229 = vunpack.c.l.b16 %v4132
        %v4230 = vunpack.c.l.b16 %v4133
        %v4231 = vunpack.c.l.b16 %v4134
        %v4232 = vunpack.c.l.b16 %v4135
        %v4233 = vunpack.c.l.b16 %v4136
        %v4234 = vunpack.c.l.b16 %v4137
        %v4235 = vunpack.c.l.b16 %v4138
        %v4236 = vunpack.c.l.b16 %v4139
        %v4237 = vunpack.c.l.b16 %v4140
        %v4238 = vunpack.c.l.b16 %v4141
        %v4239 = vunpack.c.l.b16 %v4142
        %v4240 = vunpack.c.l.b16 %v4143
        %v4241 = vunpack.c.l.b16 %v4144
        %v4242 = vunpack.c.l.b16 %v4145
        %v4243 = vunpack.c.l.b16 %v4146
        %v4244 = vunpack.c.l.b16 %v4147
        %v4245 = vunpack.c.l.b16 %v4148
        %v4246 = vunpack.c.l.b16 %v4149
        %v4247 = vunpack.c.l.b16 %v4150
        %v4248 = vunpack.c.l.b16 %v4151
        %v4249 = vunpack.c.l.b16 %v4152
        %v4250 = vunpack.c.l.b16 %v4153
        %v4251 = vunpack.c.l.b16 %v4154
        %v4252 = vunpack.c.l.b16 %v4155
        %v4253 = vunpack.c.l.b16 %v4156
        %v4254 = vunpack.c.l.b16 %v4157
        %v4255 = vunpack.c.l.b16 %v4158
        %v4256 = vpack.c.b16 %v4225, %v4224
        %v4257 = vpack.c.b16 %v4227, %v4226
        %v4258 = vpack.c.b16 %v4229, %v4228
        %v4259 = vpack.c.b16 %v4231, %v4230
        %v4260 = vpack.c.b16 %v4233, %v4232
        %v4261 = vpack.c.b16 %v4235, %v4234
        %v4262 = vpack.c.b16 %v4237, %v4236
        %v4263 = vpack.c.b16 %v4239, %v4238
        %v4264 = vpack.c.b16 %v4241, %v4240
        %v4265 = vpack.c.b16 %v4243, %v4242
        %v4266 = vpack.c.b16 %v4245, %v4244
        %v4267 = vpack.c.b16 %v4247, %v4246
        %v4268 = vpack.c.b16 %v4249, %v4248
        %v4269 = vpack.c.b16 %v4251, %v4250
        %v4270 = vpack.c.b16 %v4253, %v4252
        %v4271 = vpack.c.b16 %v4255, %v4254
        %4272 = vrot.lane.b32.xlu0 %v4256, 96
        %v4273 = vpop.permute.xlu0 %4272
        %4274 = vrot.lane.b32.xlu0 %v4257, 96
        %v4275 = vpop.permute.xlu0 %4274
        %4276 = vrot.lane.b32.xlu0 %v4258, 96
        %v4277 = vpop.permute.xlu0 %4276
        %4278 = vrot.lane.b32.xlu0 %v4259, 96
        %v4279 = vpop.permute.xlu0 %4278
        %4280 = vrot.lane.b32.xlu0 %v4260, 96
        %v4281 = vpop.permute.xlu0 %4280
        %4282 = vrot.lane.b32.xlu0 %v4261, 96
        %v4283 = vpop.permute.xlu0 %4282
        %4284 = vrot.lane.b32.xlu0 %v4262, 96
        %v4285 = vpop.permute.xlu0 %4284
        %4286 = vrot.lane.b32.xlu0 %v4263, 96
        %v4287 = vpop.permute.xlu0 %4286
        %4288 = vrot.lane.b32.xlu0 %v4264, 96
        %v4289 = vpop.permute.xlu0 %4288
        %4290 = vrot.lane.b32.xlu0 %v4265, 96
        %v4291 = vpop.permute.xlu0 %4290
        %4292 = vrot.lane.b32.xlu0 %v4266, 96
        %v4293 = vpop.permute.xlu0 %4292
        %4294 = vrot.lane.b32.xlu0 %v4267, 96
        %v4295 = vpop.permute.xlu0 %4294
        %4296 = vrot.lane.b32.xlu0 %v4268, 96
        %v4297 = vpop.permute.xlu0 %4296
        %4298 = vrot.lane.b32.xlu0 %v4269, 96
        %v4299 = vpop.permute.xlu0 %4298
        %4300 = vrot.lane.b32.xlu0 %v4270, 96
        %v4301 = vpop.permute.xlu0 %4300
        %4302 = vrot.lane.b32.xlu0 %v4271, 96
        %v4303 = vpop.permute.xlu0 %4302
        %4304 = vrot.lane.b32.xlu0 %v1605, 96
        %v4305 = vpop.permute.xlu0 %4304
        %4306 = vrot.lane.b32.xlu0 %v1606, 96
        %v4307 = vpop.permute.xlu0 %4306
        %4308 = vrot.lane.b32.xlu0 %v1607, 96
        %v4309 = vpop.permute.xlu0 %4308
        %4310 = vrot.lane.b32.xlu0 %v1608, 96
        %v4311 = vpop.permute.xlu0 %4310
        %4312 = vrot.lane.b32.xlu0 %v1609, 96
        %v4313 = vpop.permute.xlu0 %4312
        %4314 = vrot.lane.b32.xlu0 %v1610, 96
        %v4315 = vpop.permute.xlu0 %4314
        %4316 = vrot.lane.b32.xlu0 %v1611, 96
        %v4317 = vpop.permute.xlu0 %4316
        %4318 = vrot.lane.b32.xlu0 %v1612, 96
        %v4319 = vpop.permute.xlu0 %4318
        %4320 = vrot.lane.b32.xlu0 %v1613, 96
        %v4321 = vpop.permute.xlu0 %4320
        %4322 = vrot.lane.b32.xlu0 %v1614, 96
        %v4323 = vpop.permute.xlu0 %4322
        %4324 = vrot.lane.b32.xlu0 %v1615, 96
        %v4325 = vpop.permute.xlu0 %4324
        %4326 = vrot.lane.b32.xlu0 %v1616, 96
        %v4327 = vpop.permute.xlu0 %4326
        %4328 = vrot.lane.b32.xlu0 %v1617, 96
        %v4329 = vpop.permute.xlu0 %4328
        %4330 = vrot.lane.b32.xlu0 %v1618, 96
        %v4331 = vpop.permute.xlu0 %4330
        %4332 = vrot.lane.b32.xlu0 %v1619, 96
        %v4333 = vpop.permute.xlu0 %4332
        %4334 = vrot.lane.b32.xlu0 %v1620, 96
        %v4335 = vpop.permute.xlu0 %4334
        %v4338 = vsel %vm1195, %v4273, %v4305
        %v4341 = vsel %vm1195, %v4275, %v4307
        %v4344 = vsel %vm1195, %v4277, %v4309
        %v4347 = vsel %vm1195, %v4279, %v4311
        %v4350 = vsel %vm1195, %v4281, %v4313
        %v4353 = vsel %vm1195, %v4283, %v4315
        %v4356 = vsel %vm1195, %v4285, %v4317
        %v4359 = vsel %vm1195, %v4287, %v4319
        %v4362 = vsel %vm1195, %v4289, %v4321
        %v4365 = vsel %vm1195, %v4291, %v4323
        %v4368 = vsel %vm1195, %v4293, %v4325
        %v4371 = vsel %vm1195, %v4295, %v4327
        %v4374 = vsel %vm1195, %v4297, %v4329
        %v4377 = vsel %vm1195, %v4299, %v4331
        %v4380 = vsel %vm1195, %v4301, %v4333
        %v4383 = vsel %vm1195, %v4303, %v4335
        %s4384 = scalar_lea.vmem %s6, 64
        %v4385 = vld [vmem:[%s4384] sm:$0xf]
        %v4386 = vld [vmem:[%s4384 + $0x4] sm:$0xf]
        %v4387 = vld [vmem:[%s4384 + $0x8] sm:$0xf]
        %v4388 = vld [vmem:[%s4384 + $0xc] sm:$0xf]
        %v4389 = vld [vmem:[%s4384 + $0x10] sm:$0xf]
        %v4390 = vld [vmem:[%s4384 + $0x14] sm:$0xf]
        %v4391 = vld [vmem:[%s4384 + $0x18] sm:$0xf]
        %v4392 = vld [vmem:[%s4384 + $0x1c] sm:$0xf]
        %s4393 = scalar_lea.vmem %s7, 2
        %v4394 = vld [vmem:[%s4393] sm:$0x1]
        %v4396 = vperm.slane %v4394, 0
        %v4406 = vunpack.c.l.b16 %v4385
        %v4407 = vunpack.c.l.b16 %v4386
        %v4408 = vunpack.c.l.b16 %v4387
        %v4409 = vunpack.c.l.b16 %v4388
        %v4410 = vunpack.c.l.b16 %v4389
        %v4411 = vunpack.c.l.b16 %v4390
        %v4412 = vunpack.c.l.b16 %v4391
        %v4413 = vunpack.c.l.b16 %v4392
        %v4414 = vpack.c.b16 %v4407, %v4406
        %v4415 = vpack.c.b16 %v4409, %v4408
        %v4416 = vpack.c.b16 %v4411, %v4410
        %v4417 = vpack.c.b16 %v4413, %v4412
        %v4422 = vsel %vm1737, %v4338, 0
        %v4424 = vsel %vm1737, %v4341, 0
        %v4426 = vsel %vm1737, %v4344, 0
        %v4428 = vsel %vm1737, %v4347, 0
        %v4430 = vsel %vm1737, %v4350, 0
        %v4432 = vsel %vm1737, %v4353, 0
        %v4434 = vsel %vm1737, %v4356, 0
        %v4436 = vsel %vm1737, %v4359, 0
        %v4438 = vsel %vm1737, %v4362, 0
        %v4440 = vsel %vm1737, %v4365, 0
        %v4442 = vsel %vm1737, %v4368, 0
        %v4444 = vsel %vm1737, %v4371, 0
        %v4446 = vsel %vm1737, %v4374, 0
        %v4448 = vsel %vm1737, %v4377, 0
        %v4450 = vsel %vm1737, %v4380, 0
        %v4452 = vsel %vm1737, %v4383, 0
        %4454 = vmatpush.bf16.msra.mxu0 0
        %4455 = vmatpush.bf16.msra.mxu0 0
        %4456 = vmatpush.bf16.msra.mxu0 0
        %4457 = vmatpush.bf16.msra.mxu0 0
        %4458 = vmatpush.bf16.msra.mxu0 %v4417
        %4459 = vmatpush.bf16.msra.mxu0 %v4416
        %4460 = vmatpush.bf16.msra.mxu0 %v4415
        %4461 = vmatpush.bf16.msra.mxu0 %v4414
        %4462 = vmatmul.bf16.gmra.mxu0 %v4422
        %v4463 = vpop.f32.mrf.mxu0
        %v4464 = vadd.f32 %v4396, %v4463
        %v4465 = vpop.f32.mrf.mxu0
        %v4466 = vadd.f32 %v4396, %v4465
        %4467 = vmatmul.bf16.gmra.mxu0 %v4424
        %v4468 = vpop.f32.mrf.mxu0
        %v4469 = vadd.f32 %v4396, %v4468
        %v4470 = vpop.f32.mrf.mxu0
        %v4471 = vadd.f32 %v4396, %v4470
        %4472 = vmatmul.bf16.gmra.mxu0 %v4426
        %v4473 = vpop.f32.mrf.mxu0
        %v4474 = vadd.f32 %v4396, %v4473
        %v4475 = vpop.f32.mrf.mxu0
        %v4476 = vadd.f32 %v4396, %v4475
        %4477 = vmatmul.bf16.gmra.mxu0 %v4428
        %v4478 = vpop.f32.mrf.mxu0
        %v4479 = vadd.f32 %v4396, %v4478
        %v4480 = vpop.f32.mrf.mxu0
        %v4481 = vadd.f32 %v4396, %v4480
        %4482 = vmatmul.bf16.gmra.mxu0 %v4430
        %v4483 = vpop.f32.mrf.mxu0
        %v4484 = vadd.f32 %v4396, %v4483
        %v4485 = vpop.f32.mrf.mxu0
        %v4486 = vadd.f32 %v4396, %v4485
        %4487 = vmatmul.bf16.gmra.mxu0 %v4432
        %v4488 = vpop.f32.mrf.mxu0
        %v4489 = vadd.f32 %v4396, %v4488
        %v4490 = vpop.f32.mrf.mxu0
        %v4491 = vadd.f32 %v4396, %v4490
        %4492 = vmatmul.bf16.gmra.mxu0 %v4434
        %v4493 = vpop.f32.mrf.mxu0
        %v4494 = vadd.f32 %v4396, %v4493
        %v4495 = vpop.f32.mrf.mxu0
        %v4496 = vadd.f32 %v4396, %v4495
        %4497 = vmatmul.bf16.gmra.mxu0 %v4436
        %v4498 = vpop.f32.mrf.mxu0
        %v4499 = vadd.f32 %v4396, %v4498
        %v4500 = vpop.f32.mrf.mxu0
        %v4501 = vadd.f32 %v4396, %v4500
        %4502 = vmatmul.bf16.gmra.mxu0 %v4438
        %v4503 = vpop.f32.mrf.mxu0
        %v4504 = vadd.f32 %v4396, %v4503
        %v4505 = vpop.f32.mrf.mxu0
        %v4506 = vadd.f32 %v4396, %v4505
        %4507 = vmatmul.bf16.gmra.mxu0 %v4440
        %v4508 = vpop.f32.mrf.mxu0
        %v4509 = vadd.f32 %v4396, %v4508
        %v4510 = vpop.f32.mrf.mxu0
        %v4511 = vadd.f32 %v4396, %v4510
        %4512 = vmatmul.bf16.gmra.mxu0 %v4442
        %v4513 = vpop.f32.mrf.mxu0
        %v4514 = vadd.f32 %v4396, %v4513
        %v4515 = vpop.f32.mrf.mxu0
        %v4516 = vadd.f32 %v4396, %v4515
        %4517 = vmatmul.bf16.gmra.mxu0 %v4444
        %v4518 = vpop.f32.mrf.mxu0
        %v4519 = vadd.f32 %v4396, %v4518
        %v4520 = vpop.f32.mrf.mxu0
        %v4521 = vadd.f32 %v4396, %v4520
        %4522 = vmatmul.bf16.gmra.mxu0 %v4446
        %v4523 = vpop.f32.mrf.mxu0
        %v4524 = vadd.f32 %v4396, %v4523
        %v4525 = vpop.f32.mrf.mxu0
        %v4526 = vadd.f32 %v4396, %v4525
        %4527 = vmatmul.bf16.gmra.mxu0 %v4448
        %v4528 = vpop.f32.mrf.mxu0
        %v4529 = vadd.f32 %v4396, %v4528
        %v4530 = vpop.f32.mrf.mxu0
        %v4531 = vadd.f32 %v4396, %v4530
        %4532 = vmatmul.bf16.gmra.mxu0 %v4450
        %v4533 = vpop.f32.mrf.mxu0
        %v4534 = vadd.f32 %v4396, %v4533
        %v4535 = vpop.f32.mrf.mxu0
        %v4536 = vadd.f32 %v4396, %v4535
        %4537 = vmatmul.bf16.gmra.mxu0 %v4452
        %v4538 = vpop.f32.mrf.mxu0
        %v4539 = vadd.f32 %v4396, %v4538
        %v4540 = vpop.f32.mrf.mxu0
        %v4541 = vadd.f32 %v4396, %v4540
        %4542 = vdwg.mxu0
        %v4543 = vmul.f32 %v4464, 0.5
        %v4544 = vmul.f32 %v4466, 0.5
        %v4545 = vmul.f32 %v4469, 0.5
        %v4546 = vmul.f32 %v4471, 0.5
        %v4547 = vmul.f32 %v4474, 0.5
        %v4548 = vmul.f32 %v4476, 0.5
        %v4549 = vmul.f32 %v4479, 0.5
        %v4550 = vmul.f32 %v4481, 0.5
        %v4551 = vmul.f32 %v4484, 0.5
        %v4552 = vmul.f32 %v4486, 0.5
        %v4553 = vmul.f32 %v4489, 0.5
        %v4554 = vmul.f32 %v4491, 0.5
        %v4555 = vmul.f32 %v4494, 0.5
        %v4556 = vmul.f32 %v4496, 0.5
        %v4557 = vmul.f32 %v4499, 0.5
        %v4558 = vmul.f32 %v4501, 0.5
        %v4559 = vmul.f32 %v4504, 0.5
        %v4560 = vmul.f32 %v4506, 0.5
        %v4561 = vmul.f32 %v4509, 0.5
        %v4562 = vmul.f32 %v4511, 0.5
        %v4563 = vmul.f32 %v4514, 0.5
        %v4564 = vmul.f32 %v4516, 0.5
        %v4565 = vmul.f32 %v4519, 0.5
        %v4566 = vmul.f32 %v4521, 0.5
        %v4567 = vmul.f32 %v4524, 0.5
        %v4568 = vmul.f32 %v4526, 0.5
        %v4569 = vmul.f32 %v4529, 0.5
        %v4570 = vmul.f32 %v4531, 0.5
        %v4571 = vmul.f32 %v4534, 0.5
        %v4572 = vmul.f32 %v4536, 0.5
        %v4573 = vmul.f32 %v4539, 0.5
        %v4574 = vmul.f32 %v4541, 0.5
        %v4575 = vtanh.pop %v4543
        %v4576 = vtanh.pop %v4544
        %v4577 = vtanh.pop %v4545
        %v4578 = vtanh.pop %v4546
        %v4579 = vtanh.pop %v4547
        %v4580 = vtanh.pop %v4548
        %v4581 = vtanh.pop %v4549
        %v4582 = vtanh.pop %v4550
        %v4583 = vtanh.pop %v4551
        %v4584 = vtanh.pop %v4552
        %v4585 = vtanh.pop %v4553
        %v4586 = vtanh.pop %v4554
        %v4587 = vtanh.pop %v4555
        %v4588 = vtanh.pop %v4556
        %v4589 = vtanh.pop %v4557
        %v4590 = vtanh.pop %v4558
        %v4591 = vtanh.pop %v4559
        %v4592 = vtanh.pop %v4560
        %v4593 = vtanh.pop %v4561
        %v4594 = vtanh.pop %v4562
        %v4595 = vtanh.pop %v4563
        %v4596 = vtanh.pop %v4564
        %v4597 = vtanh.pop %v4565
        %v4598 = vtanh.pop %v4566
        %v4599 = vtanh.pop %v4567
        %v4600 = vtanh.pop %v4568
        %v4601 = vtanh.pop %v4569
        %v4602 = vtanh.pop %v4570
        %v4603 = vtanh.pop %v4571
        %v4604 = vtanh.pop %v4572
        %v4605 = vtanh.pop %v4573
        %v4606 = vtanh.pop %v4574
        %v4607 = vadd.f32 %v4575, 1.0
        %v4608 = vadd.f32 %v4576, 1.0
        %v4609 = vadd.f32 %v4577, 1.0
        %v4610 = vadd.f32 %v4578, 1.0
        %v4611 = vadd.f32 %v4579, 1.0
        %v4612 = vadd.f32 %v4580, 1.0
        %v4613 = vadd.f32 %v4581, 1.0
        %v4614 = vadd.f32 %v4582, 1.0
        %v4615 = vadd.f32 %v4583, 1.0
        %v4616 = vadd.f32 %v4584, 1.0
        %v4617 = vadd.f32 %v4585, 1.0
        %v4618 = vadd.f32 %v4586, 1.0
        %v4619 = vadd.f32 %v4587, 1.0
        %v4620 = vadd.f32 %v4588, 1.0
        %v4621 = vadd.f32 %v4589, 1.0
        %v4622 = vadd.f32 %v4590, 1.0
        %v4623 = vadd.f32 %v4591, 1.0
        %v4624 = vadd.f32 %v4592, 1.0
        %v4625 = vadd.f32 %v4593, 1.0
        %v4626 = vadd.f32 %v4594, 1.0
        %v4627 = vadd.f32 %v4595, 1.0
        %v4628 = vadd.f32 %v4596, 1.0
        %v4629 = vadd.f32 %v4597, 1.0
        %v4630 = vadd.f32 %v4598, 1.0
        %v4631 = vadd.f32 %v4599, 1.0
        %v4632 = vadd.f32 %v4600, 1.0
        %v4633 = vadd.f32 %v4601, 1.0
        %v4634 = vadd.f32 %v4602, 1.0
        %v4635 = vadd.f32 %v4603, 1.0
        %v4636 = vadd.f32 %v4604, 1.0
        %v4637 = vadd.f32 %v4605, 1.0
        %v4638 = vadd.f32 %v4606, 1.0
        %v4639 = vmul.f32 %v4607, 0.5
        %v4640 = vmul.f32 %v4608, 0.5
        %v4641 = vmul.f32 %v4609, 0.5
        %v4642 = vmul.f32 %v4610, 0.5
        %v4643 = vmul.f32 %v4611, 0.5
        %v4644 = vmul.f32 %v4612, 0.5
        %v4645 = vmul.f32 %v4613, 0.5
        %v4646 = vmul.f32 %v4614, 0.5
        %v4647 = vmul.f32 %v4615, 0.5
        %v4648 = vmul.f32 %v4616, 0.5
        %v4649 = vmul.f32 %v4617, 0.5
        %v4650 = vmul.f32 %v4618, 0.5
        %v4651 = vmul.f32 %v4619, 0.5
        %v4652 = vmul.f32 %v4620, 0.5
        %v4653 = vmul.f32 %v4621, 0.5
        %v4654 = vmul.f32 %v4622, 0.5
        %v4655 = vmul.f32 %v4623, 0.5
        %v4656 = vmul.f32 %v4624, 0.5
        %v4657 = vmul.f32 %v4625, 0.5
        %v4658 = vmul.f32 %v4626, 0.5
        %v4659 = vmul.f32 %v4627, 0.5
        %v4660 = vmul.f32 %v4628, 0.5
        %v4661 = vmul.f32 %v4629, 0.5
        %v4662 = vmul.f32 %v4630, 0.5
        %v4663 = vmul.f32 %v4631, 0.5
        %v4664 = vmul.f32 %v4632, 0.5
        %v4665 = vmul.f32 %v4633, 0.5
        %v4666 = vmul.f32 %v4634, 0.5
        %v4667 = vmul.f32 %v4635, 0.5
        %v4668 = vmul.f32 %v4636, 0.5
        %v4669 = vmul.f32 %v4637, 0.5
        %v4670 = vmul.f32 %v4638, 0.5
        %4671 = vrot.lane.b32.xlu0 %v1397, 64
        %v4672 = vpop.permute.xlu0 %4671
        %4673 = vrot.lane.b32.xlu0 %v1398, 64
        %v4674 = vpop.permute.xlu0 %4673
        %4675 = vrot.lane.b32.xlu0 %v1399, 64
        %v4676 = vpop.permute.xlu0 %4675
        %4677 = vrot.lane.b32.xlu0 %v1400, 64
        %v4678 = vpop.permute.xlu0 %4677
        %4679 = vrot.lane.b32.xlu0 %v1401, 64
        %v4680 = vpop.permute.xlu0 %4679
        %4681 = vrot.lane.b32.xlu0 %v1402, 64
        %v4682 = vpop.permute.xlu0 %4681
        %4683 = vrot.lane.b32.xlu0 %v1403, 64
        %v4684 = vpop.permute.xlu0 %4683
        %4685 = vrot.lane.b32.xlu0 %v1404, 64
        %v4686 = vpop.permute.xlu0 %4685
        %4687 = vrot.lane.b32.xlu0 %v1405, 64
        %v4688 = vpop.permute.xlu0 %4687
        %4689 = vrot.lane.b32.xlu0 %v1406, 64
        %v4690 = vpop.permute.xlu0 %4689
        %4691 = vrot.lane.b32.xlu0 %v1407, 64
        %v4692 = vpop.permute.xlu0 %4691
        %4693 = vrot.lane.b32.xlu0 %v1408, 64
        %v4694 = vpop.permute.xlu0 %4693
        %4695 = vrot.lane.b32.xlu0 %v1409, 64
        %v4696 = vpop.permute.xlu0 %4695
        %4697 = vrot.lane.b32.xlu0 %v1410, 64
        %v4698 = vpop.permute.xlu0 %4697
        %4699 = vrot.lane.b32.xlu0 %v1411, 64
        %v4700 = vpop.permute.xlu0 %4699
        %4701 = vrot.lane.b32.xlu0 %v1412, 64
        %v4702 = vpop.permute.xlu0 %4701
        %4703 = vrot.lane.b32.xlu0 %v1413, 64
        %v4704 = vpop.permute.xlu0 %4703
        %4705 = vrot.lane.b32.xlu0 %v1414, 64
        %v4706 = vpop.permute.xlu0 %4705
        %4707 = vrot.lane.b32.xlu0 %v1415, 64
        %v4708 = vpop.permute.xlu0 %4707
        %4709 = vrot.lane.b32.xlu0 %v1416, 64
        %v4710 = vpop.permute.xlu0 %4709
        %4711 = vrot.lane.b32.xlu0 %v1417, 64
        %v4712 = vpop.permute.xlu0 %4711
        %4713 = vrot.lane.b32.xlu0 %v1418, 64
        %v4714 = vpop.permute.xlu0 %4713
        %4715 = vrot.lane.b32.xlu0 %v1419, 64
        %v4716 = vpop.permute.xlu0 %4715
        %4717 = vrot.lane.b32.xlu0 %v1420, 64
        %v4718 = vpop.permute.xlu0 %4717
        %4719 = vrot.lane.b32.xlu0 %v1421, 64
        %v4720 = vpop.permute.xlu0 %4719
        %4721 = vrot.lane.b32.xlu0 %v1422, 64
        %v4722 = vpop.permute.xlu0 %4721
        %4723 = vrot.lane.b32.xlu0 %v1423, 64
        %v4724 = vpop.permute.xlu0 %4723
        %4725 = vrot.lane.b32.xlu0 %v1424, 64
        %v4726 = vpop.permute.xlu0 %4725
        %4727 = vrot.lane.b32.xlu0 %v1425, 64
        %v4728 = vpop.permute.xlu0 %4727
        %4729 = vrot.lane.b32.xlu0 %v1426, 64
        %v4730 = vpop.permute.xlu0 %4729
        %4731 = vrot.lane.b32.xlu0 %v1427, 64
        %v4732 = vpop.permute.xlu0 %4731
        %4733 = vrot.lane.b32.xlu0 %v1428, 64
        %v4734 = vpop.permute.xlu0 %4733
        %v4767 = vmul.f32 %v4639, %v4672
        %v4768 = vmul.f32 %v4640, %v4674
        %v4769 = vmul.f32 %v4641, %v4676
        %v4770 = vmul.f32 %v4642, %v4678
        %v4771 = vmul.f32 %v4643, %v4680
        %v4772 = vmul.f32 %v4644, %v4682
        %v4773 = vmul.f32 %v4645, %v4684
        %v4774 = vmul.f32 %v4646, %v4686
        %v4775 = vmul.f32 %v4647, %v4688
        %v4776 = vmul.f32 %v4648, %v4690
        %v4777 = vmul.f32 %v4649, %v4692
        %v4778 = vmul.f32 %v4650, %v4694
        %v4779 = vmul.f32 %v4651, %v4696
        %v4780 = vmul.f32 %v4652, %v4698
        %v4781 = vmul.f32 %v4653, %v4700
        %v4782 = vmul.f32 %v4654, %v4702
        %v4783 = vmul.f32 %v4655, %v4704
        %v4784 = vmul.f32 %v4656, %v4706
        %v4785 = vmul.f32 %v4657, %v4708
        %v4786 = vmul.f32 %v4658, %v4710
        %v4787 = vmul.f32 %v4659, %v4712
        %v4788 = vmul.f32 %v4660, %v4714
        %v4789 = vmul.f32 %v4661, %v4716
        %v4790 = vmul.f32 %v4662, %v4718
        %v4791 = vmul.f32 %v4663, %v4720
        %v4792 = vmul.f32 %v4664, %v4722
        %v4793 = vmul.f32 %v4665, %v4724
        %v4794 = vmul.f32 %v4666, %v4726
        %v4795 = vmul.f32 %v4667, %v4728
        %v4796 = vmul.f32 %v4668, %v4730
        %v4797 = vmul.f32 %v4669, %v4732
        %v4798 = vmul.f32 %v4670, %v4734
        %v4799 = vpack.c.bf16 %v4767, %v4767
        %v4800 = vpack.c.bf16 %v4768, %v4768
        %v4801 = vpack.c.bf16 %v4769, %v4769
        %v4802 = vpack.c.bf16 %v4770, %v4770
        %v4803 = vpack.c.bf16 %v4771, %v4771
        %v4804 = vpack.c.bf16 %v4772, %v4772
        %v4805 = vpack.c.bf16 %v4773, %v4773
        %v4806 = vpack.c.bf16 %v4774, %v4774
        %v4807 = vpack.c.bf16 %v4775, %v4775
        %v4808 = vpack.c.bf16 %v4776, %v4776
        %v4809 = vpack.c.bf16 %v4777, %v4777
        %v4810 = vpack.c.bf16 %v4778, %v4778
        %v4811 = vpack.c.bf16 %v4779, %v4779
        %v4812 = vpack.c.bf16 %v4780, %v4780
        %v4813 = vpack.c.bf16 %v4781, %v4781
        %v4814 = vpack.c.bf16 %v4782, %v4782
        %v4815 = vpack.c.bf16 %v4783, %v4783
        %v4816 = vpack.c.bf16 %v4784, %v4784
        %v4817 = vpack.c.bf16 %v4785, %v4785
        %v4818 = vpack.c.bf16 %v4786, %v4786
        %v4819 = vpack.c.bf16 %v4787, %v4787
        %v4820 = vpack.c.bf16 %v4788, %v4788
        %v4821 = vpack.c.bf16 %v4789, %v4789
        %v4822 = vpack.c.bf16 %v4790, %v4790
        %v4823 = vpack.c.bf16 %v4791, %v4791
        %v4824 = vpack.c.bf16 %v4792, %v4792
        %v4825 = vpack.c.bf16 %v4793, %v4793
        %v4826 = vpack.c.bf16 %v4794, %v4794
        %v4827 = vpack.c.bf16 %v4795, %v4795
        %v4828 = vpack.c.bf16 %v4796, %v4796
        %v4829 = vpack.c.bf16 %v4797, %v4797
        %v4830 = vpack.c.bf16 %v4798, %v4798
        %v4863 = vunpack.c.l.b16 %v4799
        %v4864 = vunpack.c.l.b16 %v4800
        %v4865 = vunpack.c.l.b16 %v4801
        %v4866 = vunpack.c.l.b16 %v4802
        %v4867 = vunpack.c.l.b16 %v4803
        %v4868 = vunpack.c.l.b16 %v4804
        %v4869 = vunpack.c.l.b16 %v4805
        %v4870 = vunpack.c.l.b16 %v4806
        %v4871 = vunpack.c.l.b16 %v4807
        %v4872 = vunpack.c.l.b16 %v4808
        %v4873 = vunpack.c.l.b16 %v4809
        %v4874 = vunpack.c.l.b16 %v4810
        %v4875 = vunpack.c.l.b16 %v4811
        %v4876 = vunpack.c.l.b16 %v4812
        %v4877 = vunpack.c.l.b16 %v4813
        %v4878 = vunpack.c.l.b16 %v4814
        %v4879 = vunpack.c.l.b16 %v4815
        %v4880 = vunpack.c.l.b16 %v4816
        %v4881 = vunpack.c.l.b16 %v4817
        %v4882 = vunpack.c.l.b16 %v4818
        %v4883 = vunpack.c.l.b16 %v4819
        %v4884 = vunpack.c.l.b16 %v4820
        %v4885 = vunpack.c.l.b16 %v4821
        %v4886 = vunpack.c.l.b16 %v4822
        %v4887 = vunpack.c.l.b16 %v4823
        %v4888 = vunpack.c.l.b16 %v4824
        %v4889 = vunpack.c.l.b16 %v4825
        %v4890 = vunpack.c.l.b16 %v4826
        %v4891 = vunpack.c.l.b16 %v4827
        %v4892 = vunpack.c.l.b16 %v4828
        %v4893 = vunpack.c.l.b16 %v4829
        %v4894 = vunpack.c.l.b16 %v4830
        %v4895 = vpack.c.b16 %v4864, %v4863
        %v4896 = vpack.c.b16 %v4866, %v4865
        %v4897 = vpack.c.b16 %v4868, %v4867
        %v4898 = vpack.c.b16 %v4870, %v4869
        %v4899 = vpack.c.b16 %v4872, %v4871
        %v4900 = vpack.c.b16 %v4874, %v4873
        %v4901 = vpack.c.b16 %v4876, %v4875
        %v4902 = vpack.c.b16 %v4878, %v4877
        %v4903 = vpack.c.b16 %v4880, %v4879
        %v4904 = vpack.c.b16 %v4882, %v4881
        %v4905 = vpack.c.b16 %v4884, %v4883
        %v4906 = vpack.c.b16 %v4886, %v4885
        %v4907 = vpack.c.b16 %v4888, %v4887
        %v4908 = vpack.c.b16 %v4890, %v4889
        %v4909 = vpack.c.b16 %v4892, %v4891
        %v4910 = vpack.c.b16 %v4894, %v4893
        %4911 = vrot.lane.b32.xlu0 %v4895, 32
        %v4912 = vpop.permute.xlu0 %4911
        %4913 = vrot.lane.b32.xlu0 %v4896, 32
        %v4914 = vpop.permute.xlu0 %4913
        %4915 = vrot.lane.b32.xlu0 %v4897, 32
        %v4916 = vpop.permute.xlu0 %4915
        %4917 = vrot.lane.b32.xlu0 %v4898, 32
        %v4918 = vpop.permute.xlu0 %4917
        %4919 = vrot.lane.b32.xlu0 %v4899, 32
        %v4920 = vpop.permute.xlu0 %4919
        %4921 = vrot.lane.b32.xlu0 %v4900, 32
        %v4922 = vpop.permute.xlu0 %4921
        %4923 = vrot.lane.b32.xlu0 %v4901, 32
        %v4924 = vpop.permute.xlu0 %4923
        %4925 = vrot.lane.b32.xlu0 %v4902, 32
        %v4926 = vpop.permute.xlu0 %4925
        %4927 = vrot.lane.b32.xlu0 %v4903, 32
        %v4928 = vpop.permute.xlu0 %4927
        %4929 = vrot.lane.b32.xlu0 %v4904, 32
        %v4930 = vpop.permute.xlu0 %4929
        %4931 = vrot.lane.b32.xlu0 %v4905, 32
        %v4932 = vpop.permute.xlu0 %4931
        %4933 = vrot.lane.b32.xlu0 %v4906, 32
        %v4934 = vpop.permute.xlu0 %4933
        %4935 = vrot.lane.b32.xlu0 %v4907, 32
        %v4936 = vpop.permute.xlu0 %4935
        %4937 = vrot.lane.b32.xlu0 %v4908, 32
        %v4938 = vpop.permute.xlu0 %4937
        %4939 = vrot.lane.b32.xlu0 %v4909, 32
        %v4940 = vpop.permute.xlu0 %4939
        %4941 = vrot.lane.b32.xlu0 %v4910, 32
        %v4942 = vpop.permute.xlu0 %4941
        %v4944 = vsel %vm1195, %v4273, %v4912
        %v4946 = vsel %vm1195, %v4275, %v4914
        %v4948 = vsel %vm1195, %v4277, %v4916
        %v4950 = vsel %vm1195, %v4279, %v4918
        %v4952 = vsel %vm1195, %v4281, %v4920
        %v4954 = vsel %vm1195, %v4283, %v4922
        %v4956 = vsel %vm1195, %v4285, %v4924
        %v4958 = vsel %vm1195, %v4287, %v4926
        %v4960 = vsel %vm1195, %v4289, %v4928
        %v4962 = vsel %vm1195, %v4291, %v4930
        %v4964 = vsel %vm1195, %v4293, %v4932
        %v4966 = vsel %vm1195, %v4295, %v4934
        %v4968 = vsel %vm1195, %v4297, %v4936
        %v4970 = vsel %vm1195, %v4299, %v4938
        %v4972 = vsel %vm1195, %v4301, %v4940
        %v4974 = vsel %vm1195, %v4303, %v4942
        %s4975 = scalar_lea.vmem %s8, 64
        %v4976 = vld [vmem:[%s4975] sm:$0xf]
        %v4977 = vld [vmem:[%s4975 + $0x4] sm:$0xf]
        %v4978 = vld [vmem:[%s4975 + $0x8] sm:$0xf]
        %v4979 = vld [vmem:[%s4975 + $0xc] sm:$0xf]
        %v4980 = vld [vmem:[%s4975 + $0x10] sm:$0xf]
        %v4981 = vld [vmem:[%s4975 + $0x14] sm:$0xf]
        %v4982 = vld [vmem:[%s4975 + $0x18] sm:$0xf]
        %v4983 = vld [vmem:[%s4975 + $0x1c] sm:$0xf]
        %s4984 = scalar_lea.vmem %s9, 2
        %v4985 = vld [vmem:[%s4984] sm:$0x1]
        %v4987 = vperm.slane %v4985, 0
        %v4997 = vunpack.c.l.b16 %v4976
        %v4998 = vunpack.c.l.b16 %v4977
        %v4999 = vunpack.c.l.b16 %v4978
        %v5000 = vunpack.c.l.b16 %v4979
        %v5001 = vunpack.c.l.b16 %v4980
        %v5002 = vunpack.c.l.b16 %v4981
        %v5003 = vunpack.c.l.b16 %v4982
        %v5004 = vunpack.c.l.b16 %v4983
        %v5005 = vpack.c.b16 %v4998, %v4997
        %v5006 = vpack.c.b16 %v5000, %v4999
        %v5007 = vpack.c.b16 %v5002, %v5001
        %v5008 = vpack.c.b16 %v5004, %v5003
        %v5013 = vsel %vm1737, %v4944, 0
        %v5015 = vsel %vm1737, %v4946, 0
        %v5017 = vsel %vm1737, %v4948, 0
        %v5019 = vsel %vm1737, %v4950, 0
        %v5021 = vsel %vm1737, %v4952, 0
        %v5023 = vsel %vm1737, %v4954, 0
        %v5025 = vsel %vm1737, %v4956, 0
        %v5027 = vsel %vm1737, %v4958, 0
        %v5029 = vsel %vm1737, %v4960, 0
        %v5031 = vsel %vm1737, %v4962, 0
        %v5033 = vsel %vm1737, %v4964, 0
        %v5035 = vsel %vm1737, %v4966, 0
        %v5037 = vsel %vm1737, %v4968, 0
        %v5039 = vsel %vm1737, %v4970, 0
        %v5041 = vsel %vm1737, %v4972, 0
        %v5043 = vsel %vm1737, %v4974, 0
        %5045 = vmatpush.bf16.msra.mxu0 0
        %5046 = vmatpush.bf16.msra.mxu0 0
        %5047 = vmatpush.bf16.msra.mxu0 0
        %5048 = vmatpush.bf16.msra.mxu0 0
        %5049 = vmatpush.bf16.msra.mxu0 %v5008
        %5050 = vmatpush.bf16.msra.mxu0 %v5007
        %5051 = vmatpush.bf16.msra.mxu0 %v5006
        %5052 = vmatpush.bf16.msra.mxu0 %v5005
        %5053 = vmatmul.bf16.gmra.mxu0 %v5013
        %v5054 = vpop.f32.mrf.mxu0
        %v5055 = vadd.f32 %v4987, %v5054
        %v5056 = vpop.f32.mrf.mxu0
        %v5057 = vadd.f32 %v4987, %v5056
        %5058 = vmatmul.bf16.gmra.mxu0 %v5015
        %v5059 = vpop.f32.mrf.mxu0
        %v5060 = vadd.f32 %v4987, %v5059
        %v5061 = vpop.f32.mrf.mxu0
        %v5062 = vadd.f32 %v4987, %v5061
        %5063 = vmatmul.bf16.gmra.mxu0 %v5017
        %v5064 = vpop.f32.mrf.mxu0
        %v5065 = vadd.f32 %v4987, %v5064
        %v5066 = vpop.f32.mrf.mxu0
        %v5067 = vadd.f32 %v4987, %v5066
        %5068 = vmatmul.bf16.gmra.mxu0 %v5019
        %v5069 = vpop.f32.mrf.mxu0
        %v5070 = vadd.f32 %v4987, %v5069
        %v5071 = vpop.f32.mrf.mxu0
        %v5072 = vadd.f32 %v4987, %v5071
        %5073 = vmatmul.bf16.gmra.mxu0 %v5021
        %v5074 = vpop.f32.mrf.mxu0
        %v5075 = vadd.f32 %v4987, %v5074
        %v5076 = vpop.f32.mrf.mxu0
        %v5077 = vadd.f32 %v4987, %v5076
        %5078 = vmatmul.bf16.gmra.mxu0 %v5023
        %v5079 = vpop.f32.mrf.mxu0
        %v5080 = vadd.f32 %v4987, %v5079
        %v5081 = vpop.f32.mrf.mxu0
        %v5082 = vadd.f32 %v4987, %v5081
        %5083 = vmatmul.bf16.gmra.mxu0 %v5025
        %v5084 = vpop.f32.mrf.mxu0
        %v5085 = vadd.f32 %v4987, %v5084
        %v5086 = vpop.f32.mrf.mxu0
        %v5087 = vadd.f32 %v4987, %v5086
        %5088 = vmatmul.bf16.gmra.mxu0 %v5027
        %v5089 = vpop.f32.mrf.mxu0
        %v5090 = vadd.f32 %v4987, %v5089
        %v5091 = vpop.f32.mrf.mxu0
        %v5092 = vadd.f32 %v4987, %v5091
        %5093 = vmatmul.bf16.gmra.mxu0 %v5029
        %v5094 = vpop.f32.mrf.mxu0
        %v5095 = vadd.f32 %v4987, %v5094
        %v5096 = vpop.f32.mrf.mxu0
        %v5097 = vadd.f32 %v4987, %v5096
        %5098 = vmatmul.bf16.gmra.mxu0 %v5031
        %v5099 = vpop.f32.mrf.mxu0
        %v5100 = vadd.f32 %v4987, %v5099
        %v5101 = vpop.f32.mrf.mxu0
        %v5102 = vadd.f32 %v4987, %v5101
        %5103 = vmatmul.bf16.gmra.mxu0 %v5033
        %v5104 = vpop.f32.mrf.mxu0
        %v5105 = vadd.f32 %v4987, %v5104
        %v5106 = vpop.f32.mrf.mxu0
        %v5107 = vadd.f32 %v4987, %v5106
        %5108 = vmatmul.bf16.gmra.mxu0 %v5035
        %v5109 = vpop.f32.mrf.mxu0
        %v5110 = vadd.f32 %v4987, %v5109
        %v5111 = vpop.f32.mrf.mxu0
        %v5112 = vadd.f32 %v4987, %v5111
        %5113 = vmatmul.bf16.gmra.mxu0 %v5037
        %v5114 = vpop.f32.mrf.mxu0
        %v5115 = vadd.f32 %v4987, %v5114
        %v5116 = vpop.f32.mrf.mxu0
        %v5117 = vadd.f32 %v4987, %v5116
        %5118 = vmatmul.bf16.gmra.mxu0 %v5039
        %v5119 = vpop.f32.mrf.mxu0
        %v5120 = vadd.f32 %v4987, %v5119
        %v5121 = vpop.f32.mrf.mxu0
        %v5122 = vadd.f32 %v4987, %v5121
        %5123 = vmatmul.bf16.gmra.mxu0 %v5041
        %v5124 = vpop.f32.mrf.mxu0
        %v5125 = vadd.f32 %v4987, %v5124
        %v5126 = vpop.f32.mrf.mxu0
        %v5127 = vadd.f32 %v4987, %v5126
        %5128 = vmatmul.bf16.gmra.mxu0 %v5043
        %v5129 = vpop.f32.mrf.mxu0
        %v5130 = vadd.f32 %v4987, %v5129
        %v5131 = vpop.f32.mrf.mxu0
        %v5132 = vadd.f32 %v4987, %v5131
        %5133 = vdwg.mxu0
        %v5134 = vtanh.pop %v5055
        %v5135 = vtanh.pop %v5057
        %v5136 = vtanh.pop %v5060
        %v5137 = vtanh.pop %v5062
        %v5138 = vtanh.pop %v5065
        %v5139 = vtanh.pop %v5067
        %v5140 = vtanh.pop %v5070
        %v5141 = vtanh.pop %v5072
        %v5142 = vtanh.pop %v5075
        %v5143 = vtanh.pop %v5077
        %v5144 = vtanh.pop %v5080
        %v5145 = vtanh.pop %v5082
        %v5146 = vtanh.pop %v5085
        %v5147 = vtanh.pop %v5087
        %v5148 = vtanh.pop %v5090
        %v5149 = vtanh.pop %v5092
        %v5150 = vtanh.pop %v5095
        %v5151 = vtanh.pop %v5097
        %v5152 = vtanh.pop %v5100
        %v5153 = vtanh.pop %v5102
        %v5154 = vtanh.pop %v5105
        %v5155 = vtanh.pop %v5107
        %v5156 = vtanh.pop %v5110
        %v5157 = vtanh.pop %v5112
        %v5158 = vtanh.pop %v5115
        %v5159 = vtanh.pop %v5117
        %v5160 = vtanh.pop %v5120
        %v5161 = vtanh.pop %v5122
        %v5162 = vtanh.pop %v5125
        %v5163 = vtanh.pop %v5127
        %v5164 = vtanh.pop %v5130
        %v5165 = vtanh.pop %v5132
        %v5166 = vsub.f32 1.0, %v4639
        %v5167 = vsub.f32 1.0, %v4640
        %v5168 = vsub.f32 1.0, %v4641
        %v5169 = vsub.f32 1.0, %v4642
        %v5170 = vsub.f32 1.0, %v4643
        %v5171 = vsub.f32 1.0, %v4644
        %v5172 = vsub.f32 1.0, %v4645
        %v5173 = vsub.f32 1.0, %v4646
        %v5174 = vsub.f32 1.0, %v4647
        %v5175 = vsub.f32 1.0, %v4648
        %v5176 = vsub.f32 1.0, %v4649
        %v5177 = vsub.f32 1.0, %v4650
        %v5178 = vsub.f32 1.0, %v4651
        %v5179 = vsub.f32 1.0, %v4652
        %v5180 = vsub.f32 1.0, %v4653
        %v5181 = vsub.f32 1.0, %v4654
        %v5182 = vsub.f32 1.0, %v4655
        %v5183 = vsub.f32 1.0, %v4656
        %v5184 = vsub.f32 1.0, %v4657
        %v5185 = vsub.f32 1.0, %v4658
        %v5186 = vsub.f32 1.0, %v4659
        %v5187 = vsub.f32 1.0, %v4660
        %v5188 = vsub.f32 1.0, %v4661
        %v5189 = vsub.f32 1.0, %v4662
        %v5190 = vsub.f32 1.0, %v4663
        %v5191 = vsub.f32 1.0, %v4664
        %v5192 = vsub.f32 1.0, %v4665
        %v5193 = vsub.f32 1.0, %v4666
        %v5194 = vsub.f32 1.0, %v4667
        %v5195 = vsub.f32 1.0, %v4668
        %v5196 = vsub.f32 1.0, %v4669
        %v5197 = vsub.f32 1.0, %v4670
        %v5198 = vmul.f32 %v5166, %v3377
        %v5199 = vmul.f32 %v5167, %v3379
        %v5200 = vmul.f32 %v5168, %v3381
        %v5201 = vmul.f32 %v5169, %v3383
        %v5202 = vmul.f32 %v5170, %v3385
        %v5203 = vmul.f32 %v5171, %v3387
        %v5204 = vmul.f32 %v5172, %v3389
        %v5205 = vmul.f32 %v5173, %v3391
        %v5206 = vmul.f32 %v5174, %v3393
        %v5207 = vmul.f32 %v5175, %v3395
        %v5208 = vmul.f32 %v5176, %v3397
        %v5209 = vmul.f32 %v5177, %v3399
        %v5210 = vmul.f32 %v5178, %v3401
        %v5211 = vmul.f32 %v5179, %v3403
        %v5212 = vmul.f32 %v5180, %v3405
        %v5213 = vmul.f32 %v5181, %v3407
        %v5214 = vmul.f32 %v5182, %v3409
        %v5215 = vmul.f32 %v5183, %v3411
        %v5216 = vmul.f32 %v5184, %v3413
        %v5217 = vmul.f32 %v5185, %v3415
        %v5218 = vmul.f32 %v5186, %v3417
        %v5219 = vmul.f32 %v5187, %v3419
        %v5220 = vmul.f32 %v5188, %v3421
        %v5221 = vmul.f32 %v5189, %v3423
        %v5222 = vmul.f32 %v5190, %v3425
        %v5223 = vmul.f32 %v5191, %v3427
        %v5224 = vmul.f32 %v5192, %v3429
        %v5225 = vmul.f32 %v5193, %v3431
        %v5226 = vmul.f32 %v5194, %v3433
        %v5227 = vmul.f32 %v5195, %v3435
        %v5228 = vmul.f32 %v5196, %v3437
        %v5229 = vmul.f32 %v5197, %v3439
        %5262 = vrot.lane.b32.xlu0 %v5134, 32
        %v5263 = vpop.permute.xlu0 %5262
        %5264 = vrot.lane.b32.xlu0 %v5135, 32
        %v5265 = vpop.permute.xlu0 %5264
        %5266 = vrot.lane.b32.xlu0 %v5136, 32
        %v5267 = vpop.permute.xlu0 %5266
        %5268 = vrot.lane.b32.xlu0 %v5137, 32
        %v5269 = vpop.permute.xlu0 %5268
        %5270 = vrot.lane.b32.xlu0 %v5138, 32
        %v5271 = vpop.permute.xlu0 %5270
        %5272 = vrot.lane.b32.xlu0 %v5139, 32
        %v5273 = vpop.permute.xlu0 %5272
        %5274 = vrot.lane.b32.xlu0 %v5140, 32
        %v5275 = vpop.permute.xlu0 %5274
        %5276 = vrot.lane.b32.xlu0 %v5141, 32
        %v5277 = vpop.permute.xlu0 %5276
        %5278 = vrot.lane.b32.xlu0 %v5142, 32
        %v5279 = vpop.permute.xlu0 %5278
        %5280 = vrot.lane.b32.xlu0 %v5143, 32
        %v5281 = vpop.permute.xlu0 %5280
        %5282 = vrot.lane.b32.xlu0 %v5144, 32
        %v5283 = vpop.permute.xlu0 %5282
        %5284 = vrot.lane.b32.xlu0 %v5145, 32
        %v5285 = vpop.permute.xlu0 %5284
        %5286 = vrot.lane.b32.xlu0 %v5146, 32
        %v5287 = vpop.permute.xlu0 %5286
        %5288 = vrot.lane.b32.xlu0 %v5147, 32
        %v5289 = vpop.permute.xlu0 %5288
        %5290 = vrot.lane.b32.xlu0 %v5148, 32
        %v5291 = vpop.permute.xlu0 %5290
        %5292 = vrot.lane.b32.xlu0 %v5149, 32
        %v5293 = vpop.permute.xlu0 %5292
        %5294 = vrot.lane.b32.xlu0 %v5150, 32
        %v5295 = vpop.permute.xlu0 %5294
        %5296 = vrot.lane.b32.xlu0 %v5151, 32
        %v5297 = vpop.permute.xlu0 %5296
        %5298 = vrot.lane.b32.xlu0 %v5152, 32
        %v5299 = vpop.permute.xlu0 %5298
        %5300 = vrot.lane.b32.xlu0 %v5153, 32
        %v5301 = vpop.permute.xlu0 %5300
        %5302 = vrot.lane.b32.xlu0 %v5154, 32
        %v5303 = vpop.permute.xlu0 %5302
        %5304 = vrot.lane.b32.xlu0 %v5155, 32
        %v5305 = vpop.permute.xlu0 %5304
        %5306 = vrot.lane.b32.xlu0 %v5156, 32
        %v5307 = vpop.permute.xlu0 %5306
        %5308 = vrot.lane.b32.xlu0 %v5157, 32
        %v5309 = vpop.permute.xlu0 %5308
        %5310 = vrot.lane.b32.xlu0 %v5158, 32
        %v5311 = vpop.permute.xlu0 %5310
        %5312 = vrot.lane.b32.xlu0 %v5159, 32
        %v5313 = vpop.permute.xlu0 %5312
        %5314 = vrot.lane.b32.xlu0 %v5160, 32
        %v5315 = vpop.permute.xlu0 %5314
        %5316 = vrot.lane.b32.xlu0 %v5161, 32
        %v5317 = vpop.permute.xlu0 %5316
        %5318 = vrot.lane.b32.xlu0 %v5162, 32
        %v5319 = vpop.permute.xlu0 %5318
        %5320 = vrot.lane.b32.xlu0 %v5163, 32
        %v5321 = vpop.permute.xlu0 %5320
        %5322 = vrot.lane.b32.xlu0 %v5164, 32
        %v5323 = vpop.permute.xlu0 %5322
        %5324 = vrot.lane.b32.xlu0 %v5165, 32
        %v5325 = vpop.permute.xlu0 %5324
        %v5358 = vmul.f32 %v4639, %v5263
        %v5359 = vmul.f32 %v4640, %v5265
        %v5360 = vmul.f32 %v4641, %v5267
        %v5361 = vmul.f32 %v4642, %v5269
        %v5362 = vmul.f32 %v4643, %v5271
        %v5363 = vmul.f32 %v4644, %v5273
        %v5364 = vmul.f32 %v4645, %v5275
        %v5365 = vmul.f32 %v4646, %v5277
        %v5366 = vmul.f32 %v4647, %v5279
        %v5367 = vmul.f32 %v4648, %v5281
        %v5368 = vmul.f32 %v4649, %v5283
        %v5369 = vmul.f32 %v4650, %v5285
        %v5370 = vmul.f32 %v4651, %v5287
        %v5371 = vmul.f32 %v4652, %v5289
        %v5372 = vmul.f32 %v4653, %v5291
        %v5373 = vmul.f32 %v4654, %v5293
        %v5374 = vmul.f32 %v4655, %v5295
        %v5375 = vmul.f32 %v4656, %v5297
        %v5376 = vmul.f32 %v4657, %v5299
        %v5377 = vmul.f32 %v4658, %v5301
        %v5378 = vmul.f32 %v4659, %v5303
        %v5379 = vmul.f32 %v4660, %v5305
        %v5380 = vmul.f32 %v4661, %v5307
        %v5381 = vmul.f32 %v4662, %v5309
        %v5382 = vmul.f32 %v4663, %v5311
        %v5383 = vmul.f32 %v4664, %v5313
        %v5384 = vmul.f32 %v4665, %v5315
        %v5385 = vmul.f32 %v4666, %v5317
        %v5386 = vmul.f32 %v4667, %v5319
        %v5387 = vmul.f32 %v4668, %v5321
        %v5388 = vmul.f32 %v4669, %v5323
        %v5389 = vmul.f32 %v4670, %v5325
        %v5390 = vadd.f32 %v5198, %v5358
        %v5391 = vadd.f32 %v5199, %v5359
        %v5392 = vadd.f32 %v5200, %v5360
        %v5393 = vadd.f32 %v5201, %v5361
        %v5394 = vadd.f32 %v5202, %v5362
        %v5395 = vadd.f32 %v5203, %v5363
        %v5396 = vadd.f32 %v5204, %v5364
        %v5397 = vadd.f32 %v5205, %v5365
        %v5398 = vadd.f32 %v5206, %v5366
        %v5399 = vadd.f32 %v5207, %v5367
        %v5400 = vadd.f32 %v5208, %v5368
        %v5401 = vadd.f32 %v5209, %v5369
        %v5402 = vadd.f32 %v5210, %v5370
        %v5403 = vadd.f32 %v5211, %v5371
        %v5404 = vadd.f32 %v5212, %v5372
        %v5405 = vadd.f32 %v5213, %v5373
        %v5406 = vadd.f32 %v5214, %v5374
        %v5407 = vadd.f32 %v5215, %v5375
        %v5408 = vadd.f32 %v5216, %v5376
        %v5409 = vadd.f32 %v5217, %v5377
        %v5410 = vadd.f32 %v5218, %v5378
        %v5411 = vadd.f32 %v5219, %v5379
        %v5412 = vadd.f32 %v5220, %v5380
        %v5413 = vadd.f32 %v5221, %v5381
        %v5414 = vadd.f32 %v5222, %v5382
        %v5415 = vadd.f32 %v5223, %v5383
        %v5416 = vadd.f32 %v5224, %v5384
        %v5417 = vadd.f32 %v5225, %v5385
        %v5418 = vadd.f32 %v5226, %v5386
        %v5419 = vadd.f32 %v5227, %v5387
        %v5420 = vadd.f32 %v5228, %v5388
        %v5421 = vadd.f32 %v5229, %v5389
        %v5422 = vpack.c.bf16 %v5390, %v5390
        %v5423 = vpack.c.bf16 %v5391, %v5391
        %v5424 = vpack.c.bf16 %v5392, %v5392
        %v5425 = vpack.c.bf16 %v5393, %v5393
        %v5426 = vpack.c.bf16 %v5394, %v5394
        %v5427 = vpack.c.bf16 %v5395, %v5395
        %v5428 = vpack.c.bf16 %v5396, %v5396
        %v5429 = vpack.c.bf16 %v5397, %v5397
        %v5430 = vpack.c.bf16 %v5398, %v5398
        %v5431 = vpack.c.bf16 %v5399, %v5399
        %v5432 = vpack.c.bf16 %v5400, %v5400
        %v5433 = vpack.c.bf16 %v5401, %v5401
        %v5434 = vpack.c.bf16 %v5402, %v5402
        %v5435 = vpack.c.bf16 %v5403, %v5403
        %v5436 = vpack.c.bf16 %v5404, %v5404
        %v5437 = vpack.c.bf16 %v5405, %v5405
        %v5438 = vpack.c.bf16 %v5406, %v5406
        %v5439 = vpack.c.bf16 %v5407, %v5407
        %v5440 = vpack.c.bf16 %v5408, %v5408
        %v5441 = vpack.c.bf16 %v5409, %v5409
        %v5442 = vpack.c.bf16 %v5410, %v5410
        %v5443 = vpack.c.bf16 %v5411, %v5411
        %v5444 = vpack.c.bf16 %v5412, %v5412
        %v5445 = vpack.c.bf16 %v5413, %v5413
        %v5446 = vpack.c.bf16 %v5414, %v5414
        %v5447 = vpack.c.bf16 %v5415, %v5415
        %v5448 = vpack.c.bf16 %v5416, %v5416
        %v5449 = vpack.c.bf16 %v5417, %v5417
        %v5450 = vpack.c.bf16 %v5418, %v5418
        %v5451 = vpack.c.bf16 %v5419, %v5419
        %v5452 = vpack.c.bf16 %v5420, %v5420
        %v5453 = vpack.c.bf16 %v5421, %v5421
        %5486 = vrot.lane.b32.xlu0 %v5422, 32
        %v5487 = vpop.permute.xlu0 %5486
        %5488 = vrot.lane.b32.xlu0 %v5423, 32
        %v5489 = vpop.permute.xlu0 %5488
        %5490 = vrot.lane.b32.xlu0 %v5424, 32
        %v5491 = vpop.permute.xlu0 %5490
        %5492 = vrot.lane.b32.xlu0 %v5425, 32
        %v5493 = vpop.permute.xlu0 %5492
        %5494 = vrot.lane.b32.xlu0 %v5426, 32
        %v5495 = vpop.permute.xlu0 %5494
        %5496 = vrot.lane.b32.xlu0 %v5427, 32
        %v5497 = vpop.permute.xlu0 %5496
        %5498 = vrot.lane.b32.xlu0 %v5428, 32
        %v5499 = vpop.permute.xlu0 %5498
        %5500 = vrot.lane.b32.xlu0 %v5429, 32
        %v5501 = vpop.permute.xlu0 %5500
        %5502 = vrot.lane.b32.xlu0 %v5430, 32
        %v5503 = vpop.permute.xlu0 %5502
        %5504 = vrot.lane.b32.xlu0 %v5431, 32
        %v5505 = vpop.permute.xlu0 %5504
        %5506 = vrot.lane.b32.xlu0 %v5432, 32
        %v5507 = vpop.permute.xlu0 %5506
        %5508 = vrot.lane.b32.xlu0 %v5433, 32
        %v5509 = vpop.permute.xlu0 %5508
        %5510 = vrot.lane.b32.xlu0 %v5434, 32
        %v5511 = vpop.permute.xlu0 %5510
        %5512 = vrot.lane.b32.xlu0 %v5435, 32
        %v5513 = vpop.permute.xlu0 %5512
        %5514 = vrot.lane.b32.xlu0 %v5436, 32
        %v5515 = vpop.permute.xlu0 %5514
        %5516 = vrot.lane.b32.xlu0 %v5437, 32
        %v5517 = vpop.permute.xlu0 %5516
        %5518 = vrot.lane.b32.xlu0 %v5438, 32
        %v5519 = vpop.permute.xlu0 %5518
        %5520 = vrot.lane.b32.xlu0 %v5439, 32
        %v5521 = vpop.permute.xlu0 %5520
        %5522 = vrot.lane.b32.xlu0 %v5440, 32
        %v5523 = vpop.permute.xlu0 %5522
        %5524 = vrot.lane.b32.xlu0 %v5441, 32
        %v5525 = vpop.permute.xlu0 %5524
        %5526 = vrot.lane.b32.xlu0 %v5442, 32
        %v5527 = vpop.permute.xlu0 %5526
        %5528 = vrot.lane.b32.xlu0 %v5443, 32
        %v5529 = vpop.permute.xlu0 %5528
        %5530 = vrot.lane.b32.xlu0 %v5444, 32
        %v5531 = vpop.permute.xlu0 %5530
        %5532 = vrot.lane.b32.xlu0 %v5445, 32
        %v5533 = vpop.permute.xlu0 %5532
        %5534 = vrot.lane.b32.xlu0 %v5446, 32
        %v5535 = vpop.permute.xlu0 %5534
        %5536 = vrot.lane.b32.xlu0 %v5447, 32
        %v5537 = vpop.permute.xlu0 %5536
        %5538 = vrot.lane.b32.xlu0 %v5448, 32
        %v5539 = vpop.permute.xlu0 %5538
        %5540 = vrot.lane.b32.xlu0 %v5449, 32
        %v5541 = vpop.permute.xlu0 %5540
        %5542 = vrot.lane.b32.xlu0 %v5450, 32
        %v5543 = vpop.permute.xlu0 %5542
        %5544 = vrot.lane.b32.xlu0 %v5451, 32
        %v5545 = vpop.permute.xlu0 %5544
        %5546 = vrot.lane.b32.xlu0 %v5452, 32
        %v5547 = vpop.permute.xlu0 %5546
        %5548 = vrot.lane.b32.xlu0 %v5453, 32
        %v5549 = vpop.permute.xlu0 %5548
        %vm5582 = vcmask 781824
        %5583 = vst.msk [vmem:[%s458] sm:$0xf] %vm5582, %v5487
        %5584 = vst.msk [vmem:[%s458 + $0x4] sm:$0xf] %vm5582, %v5489
        %5585 = vst.msk [vmem:[%s458 + $0x8] sm:$0xf] %vm5582, %v5491
        %5586 = vst.msk [vmem:[%s458 + $0xc] sm:$0xf] %vm5582, %v5493
        %5587 = vst.msk [vmem:[%s458 + $0x10] sm:$0xf] %vm5582, %v5495
        %5588 = vst.msk [vmem:[%s458 + $0x14] sm:$0xf] %vm5582, %v5497
        %5589 = vst.msk [vmem:[%s458 + $0x18] sm:$0xf] %vm5582, %v5499
        %5590 = vst.msk [vmem:[%s458 + $0x1c] sm:$0xf] %vm5582, %v5501
        %5591 = vst.msk [vmem:[%s458 + $0x20] sm:$0xf] %vm5582, %v5503
        %5592 = vst.msk [vmem:[%s458 + $0x24] sm:$0xf] %vm5582, %v5505
        %5593 = vst.msk [vmem:[%s458 + $0x28] sm:$0xf] %vm5582, %v5507
        %5594 = vst.msk [vmem:[%s458 + $0x2c] sm:$0xf] %vm5582, %v5509
        %5595 = vst.msk [vmem:[%s458 + $0x30] sm:$0xf] %vm5582, %v5511
        %5596 = vst.msk [vmem:[%s458 + $0x34] sm:$0xf] %vm5582, %v5513
        %5597 = vst.msk [vmem:[%s458 + $0x38] sm:$0xf] %vm5582, %v5515
        %5598 = vst.msk [vmem:[%s458 + $0x3c] sm:$0xf] %vm5582, %v5517
        %5599 = vst.msk [vmem:[%s458 + $0x40] sm:$0xf] %vm5582, %v5519
        %5600 = vst.msk [vmem:[%s458 + $0x44] sm:$0xf] %vm5582, %v5521
        %5601 = vst.msk [vmem:[%s458 + $0x48] sm:$0xf] %vm5582, %v5523
        %5602 = vst.msk [vmem:[%s458 + $0x4c] sm:$0xf] %vm5582, %v5525
        %5603 = vst.msk [vmem:[%s458 + $0x50] sm:$0xf] %vm5582, %v5527
        %5604 = vst.msk [vmem:[%s458 + $0x54] sm:$0xf] %vm5582, %v5529
        %5605 = vst.msk [vmem:[%s458 + $0x58] sm:$0xf] %vm5582, %v5531
        %5606 = vst.msk [vmem:[%s458 + $0x5c] sm:$0xf] %vm5582, %v5533
        %5607 = vst.msk [vmem:[%s458 + $0x60] sm:$0xf] %vm5582, %v5535
        %5608 = vst.msk [vmem:[%s458 + $0x64] sm:$0xf] %vm5582, %v5537
        %5609 = vst.msk [vmem:[%s458 + $0x68] sm:$0xf] %vm5582, %v5539
        %5610 = vst.msk [vmem:[%s458 + $0x6c] sm:$0xf] %vm5582, %v5541
        %5611 = vst.msk [vmem:[%s458 + $0x70] sm:$0xf] %vm5582, %v5543
        %5612 = vst.msk [vmem:[%s458 + $0x74] sm:$0xf] %vm5582, %v5545
        %5613 = vst.msk [vmem:[%s458 + $0x78] sm:$0xf] %vm5582, %v5547
        %5614 = vst.msk [vmem:[%s458 + $0x7c] sm:$0xf] %vm5582, %v5549
        %v5615 = vunpack.c.l.b16 %v5422
        %v5616 = vunpack.c.l.b16 %v5423
        %v5617 = vunpack.c.l.b16 %v5424
        %v5618 = vunpack.c.l.b16 %v5425
        %v5619 = vunpack.c.l.b16 %v5426
        %v5620 = vunpack.c.l.b16 %v5427
        %v5621 = vunpack.c.l.b16 %v5428
        %v5622 = vunpack.c.l.b16 %v5429
        %v5623 = vunpack.c.l.b16 %v5430
        %v5624 = vunpack.c.l.b16 %v5431
        %v5625 = vunpack.c.l.b16 %v5432
        %v5626 = vunpack.c.l.b16 %v5433
        %v5627 = vunpack.c.l.b16 %v5434
        %v5628 = vunpack.c.l.b16 %v5435
        %v5629 = vunpack.c.l.b16 %v5436
        %v5630 = vunpack.c.l.b16 %v5437
        %v5631 = vunpack.c.l.b16 %v5438
        %v5632 = vunpack.c.l.b16 %v5439
        %v5633 = vunpack.c.l.b16 %v5440
        %v5634 = vunpack.c.l.b16 %v5441
        %v5635 = vunpack.c.l.b16 %v5442
        %v5636 = vunpack.c.l.b16 %v5443
        %v5637 = vunpack.c.l.b16 %v5444
        %v5638 = vunpack.c.l.b16 %v5445
        %v5639 = vunpack.c.l.b16 %v5446
        %v5640 = vunpack.c.l.b16 %v5447
        %v5641 = vunpack.c.l.b16 %v5448
        %v5642 = vunpack.c.l.b16 %v5449
        %v5643 = vunpack.c.l.b16 %v5450
        %v5644 = vunpack.c.l.b16 %v5451
        %v5645 = vunpack.c.l.b16 %v5452
        %v5646 = vunpack.c.l.b16 %v5453
        %v5647 = vpack.c.b16 %v5616, %v5615
        %v5648 = vpack.c.b16 %v5618, %v5617
        %v5649 = vpack.c.b16 %v5620, %v5619
        %v5650 = vpack.c.b16 %v5622, %v5621
        %v5651 = vpack.c.b16 %v5624, %v5623
        %v5652 = vpack.c.b16 %v5626, %v5625
        %v5653 = vpack.c.b16 %v5628, %v5627
        %v5654 = vpack.c.b16 %v5630, %v5629
        %v5655 = vpack.c.b16 %v5632, %v5631
        %v5656 = vpack.c.b16 %v5634, %v5633
        %v5657 = vpack.c.b16 %v5636, %v5635
        %v5658 = vpack.c.b16 %v5638, %v5637
        %v5659 = vpack.c.b16 %v5640, %v5639
        %v5660 = vpack.c.b16 %v5642, %v5641
        %v5661 = vpack.c.b16 %v5644, %v5643
        %v5662 = vpack.c.b16 %v5646, %v5645
        %5663 = vrot.lane.b32.xlu0 %v5647, 96
        %v5664 = vpop.permute.xlu0 %5663
        %5665 = vrot.lane.b32.xlu0 %v5648, 96
        %v5666 = vpop.permute.xlu0 %5665
        %5667 = vrot.lane.b32.xlu0 %v5649, 96
        %v5668 = vpop.permute.xlu0 %5667
        %5669 = vrot.lane.b32.xlu0 %v5650, 96
        %v5670 = vpop.permute.xlu0 %5669
        %5671 = vrot.lane.b32.xlu0 %v5651, 96
        %v5672 = vpop.permute.xlu0 %5671
        %5673 = vrot.lane.b32.xlu0 %v5652, 96
        %v5674 = vpop.permute.xlu0 %5673
        %5675 = vrot.lane.b32.xlu0 %v5653, 96
        %v5676 = vpop.permute.xlu0 %5675
        %5677 = vrot.lane.b32.xlu0 %v5654, 96
        %v5678 = vpop.permute.xlu0 %5677
        %5679 = vrot.lane.b32.xlu0 %v5655, 96
        %v5680 = vpop.permute.xlu0 %5679
        %5681 = vrot.lane.b32.xlu0 %v5656, 96
        %v5682 = vpop.permute.xlu0 %5681
        %5683 = vrot.lane.b32.xlu0 %v5657, 96
        %v5684 = vpop.permute.xlu0 %5683
        %5685 = vrot.lane.b32.xlu0 %v5658, 96
        %v5686 = vpop.permute.xlu0 %5685
        %5687 = vrot.lane.b32.xlu0 %v5659, 96
        %v5688 = vpop.permute.xlu0 %5687
        %5689 = vrot.lane.b32.xlu0 %v5660, 96
        %v5690 = vpop.permute.xlu0 %5689
        %5691 = vrot.lane.b32.xlu0 %v5661, 96
        %v5692 = vpop.permute.xlu0 %5691
        %5693 = vrot.lane.b32.xlu0 %v5662, 96
        %v5694 = vpop.permute.xlu0 %5693
        %5695 = vrot.lane.b32.xlu0 %v1605, 64
        %v5696 = vpop.permute.xlu0 %5695
        %5697 = vrot.lane.b32.xlu0 %v1606, 64
        %v5698 = vpop.permute.xlu0 %5697
        %5699 = vrot.lane.b32.xlu0 %v1607, 64
        %v5700 = vpop.permute.xlu0 %5699
        %5701 = vrot.lane.b32.xlu0 %v1608, 64
        %v5702 = vpop.permute.xlu0 %5701
        %5703 = vrot.lane.b32.xlu0 %v1609, 64
        %v5704 = vpop.permute.xlu0 %5703
        %5705 = vrot.lane.b32.xlu0 %v1610, 64
        %v5706 = vpop.permute.xlu0 %5705
        %5707 = vrot.lane.b32.xlu0 %v1611, 64
        %v5708 = vpop.permute.xlu0 %5707
        %5709 = vrot.lane.b32.xlu0 %v1612, 64
        %v5710 = vpop.permute.xlu0 %5709
        %5711 = vrot.lane.b32.xlu0 %v1613, 64
        %v5712 = vpop.permute.xlu0 %5711
        %5713 = vrot.lane.b32.xlu0 %v1614, 64
        %v5714 = vpop.permute.xlu0 %5713
        %5715 = vrot.lane.b32.xlu0 %v1615, 64
        %v5716 = vpop.permute.xlu0 %5715
        %5717 = vrot.lane.b32.xlu0 %v1616, 64
        %v5718 = vpop.permute.xlu0 %5717
        %5719 = vrot.lane.b32.xlu0 %v1617, 64
        %v5720 = vpop.permute.xlu0 %5719
        %5721 = vrot.lane.b32.xlu0 %v1618, 64
        %v5722 = vpop.permute.xlu0 %5721
        %5723 = vrot.lane.b32.xlu0 %v1619, 64
        %v5724 = vpop.permute.xlu0 %5723
        %5725 = vrot.lane.b32.xlu0 %v1620, 64
        %v5726 = vpop.permute.xlu0 %5725
        %v5729 = vsel %vm1195, %v5664, %v5696
        %v5732 = vsel %vm1195, %v5666, %v5698
        %v5735 = vsel %vm1195, %v5668, %v5700
        %v5738 = vsel %vm1195, %v5670, %v5702
        %v5741 = vsel %vm1195, %v5672, %v5704
        %v5744 = vsel %vm1195, %v5674, %v5706
        %v5747 = vsel %vm1195, %v5676, %v5708
        %v5750 = vsel %vm1195, %v5678, %v5710
        %v5753 = vsel %vm1195, %v5680, %v5712
        %v5756 = vsel %vm1195, %v5682, %v5714
        %v5759 = vsel %vm1195, %v5684, %v5716
        %v5762 = vsel %vm1195, %v5686, %v5718
        %v5765 = vsel %vm1195, %v5688, %v5720
        %v5768 = vsel %vm1195, %v5690, %v5722
        %v5771 = vsel %vm1195, %v5692, %v5724
        %v5774 = vsel %vm1195, %v5694, %v5726
        %s5775 = scalar_lea.vmem %s6, 96
        %v5776 = vld [vmem:[%s5775] sm:$0xf]
        %v5777 = vld [vmem:[%s5775 + $0x4] sm:$0xf]
        %v5778 = vld [vmem:[%s5775 + $0x8] sm:$0xf]
        %v5779 = vld [vmem:[%s5775 + $0xc] sm:$0xf]
        %v5780 = vld [vmem:[%s5775 + $0x10] sm:$0xf]
        %v5781 = vld [vmem:[%s5775 + $0x14] sm:$0xf]
        %v5782 = vld [vmem:[%s5775 + $0x18] sm:$0xf]
        %v5783 = vld [vmem:[%s5775 + $0x1c] sm:$0xf]
        %s5784 = scalar_lea.vmem %s7, 3
        %v5785 = vld [vmem:[%s5784] sm:$0x1]
        %v5787 = vperm.slane %v5785, 0
        %v5797 = vunpack.c.l.b16 %v5776
        %v5798 = vunpack.c.l.b16 %v5777
        %v5799 = vunpack.c.l.b16 %v5778
        %v5800 = vunpack.c.l.b16 %v5779
        %v5801 = vunpack.c.l.b16 %v5780
        %v5802 = vunpack.c.l.b16 %v5781
        %v5803 = vunpack.c.l.b16 %v5782
        %v5804 = vunpack.c.l.b16 %v5783
        %v5805 = vpack.c.b16 %v5798, %v5797
        %v5806 = vpack.c.b16 %v5800, %v5799
        %v5807 = vpack.c.b16 %v5802, %v5801
        %v5808 = vpack.c.b16 %v5804, %v5803
        %v5813 = vsel %vm1737, %v5729, 0
        %v5815 = vsel %vm1737, %v5732, 0
        %v5817 = vsel %vm1737, %v5735, 0
        %v5819 = vsel %vm1737, %v5738, 0
        %v5821 = vsel %vm1737, %v5741, 0
        %v5823 = vsel %vm1737, %v5744, 0
        %v5825 = vsel %vm1737, %v5747, 0
        %v5827 = vsel %vm1737, %v5750, 0
        %v5829 = vsel %vm1737, %v5753, 0
        %v5831 = vsel %vm1737, %v5756, 0
        %v5833 = vsel %vm1737, %v5759, 0
        %v5835 = vsel %vm1737, %v5762, 0
        %v5837 = vsel %vm1737, %v5765, 0
        %v5839 = vsel %vm1737, %v5768, 0
        %v5841 = vsel %vm1737, %v5771, 0
        %v5843 = vsel %vm1737, %v5774, 0
        %5845 = vmatpush.bf16.msra.mxu0 0
        %5846 = vmatpush.bf16.msra.mxu0 0
        %5847 = vmatpush.bf16.msra.mxu0 0
        %5848 = vmatpush.bf16.msra.mxu0 0
        %5849 = vmatpush.bf16.msra.mxu0 %v5808
        %5850 = vmatpush.bf16.msra.mxu0 %v5807
        %5851 = vmatpush.bf16.msra.mxu0 %v5806
        %5852 = vmatpush.bf16.msra.mxu0 %v5805
        %5853 = vmatmul.bf16.gmra.mxu0 %v5813
        %v5854 = vpop.f32.mrf.mxu0
        %v5855 = vadd.f32 %v5787, %v5854
        %v5856 = vpop.f32.mrf.mxu0
        %v5857 = vadd.f32 %v5787, %v5856
        %5858 = vmatmul.bf16.gmra.mxu0 %v5815
        %v5859 = vpop.f32.mrf.mxu0
        %v5860 = vadd.f32 %v5787, %v5859
        %v5861 = vpop.f32.mrf.mxu0
        %v5862 = vadd.f32 %v5787, %v5861
        %5863 = vmatmul.bf16.gmra.mxu0 %v5817
        %v5864 = vpop.f32.mrf.mxu0
        %v5865 = vadd.f32 %v5787, %v5864
        %v5866 = vpop.f32.mrf.mxu0
        %v5867 = vadd.f32 %v5787, %v5866
        %5868 = vmatmul.bf16.gmra.mxu0 %v5819
        %v5869 = vpop.f32.mrf.mxu0
        %v5870 = vadd.f32 %v5787, %v5869
        %v5871 = vpop.f32.mrf.mxu0
        %v5872 = vadd.f32 %v5787, %v5871
        %5873 = vmatmul.bf16.gmra.mxu0 %v5821
        %v5874 = vpop.f32.mrf.mxu0
        %v5875 = vadd.f32 %v5787, %v5874
        %v5876 = vpop.f32.mrf.mxu0
        %v5877 = vadd.f32 %v5787, %v5876
        %5878 = vmatmul.bf16.gmra.mxu0 %v5823
        %v5879 = vpop.f32.mrf.mxu0
        %v5880 = vadd.f32 %v5787, %v5879
        %v5881 = vpop.f32.mrf.mxu0
        %v5882 = vadd.f32 %v5787, %v5881
        %5883 = vmatmul.bf16.gmra.mxu0 %v5825
        %v5884 = vpop.f32.mrf.mxu0
        %v5885 = vadd.f32 %v5787, %v5884
        %v5886 = vpop.f32.mrf.mxu0
        %v5887 = vadd.f32 %v5787, %v5886
        %5888 = vmatmul.bf16.gmra.mxu0 %v5827
        %v5889 = vpop.f32.mrf.mxu0
        %v5890 = vadd.f32 %v5787, %v5889
        %v5891 = vpop.f32.mrf.mxu0
        %v5892 = vadd.f32 %v5787, %v5891
        %5893 = vmatmul.bf16.gmra.mxu0 %v5829
        %v5894 = vpop.f32.mrf.mxu0
        %v5895 = vadd.f32 %v5787, %v5894
        %v5896 = vpop.f32.mrf.mxu0
        %v5897 = vadd.f32 %v5787, %v5896
        %5898 = vmatmul.bf16.gmra.mxu0 %v5831
        %v5899 = vpop.f32.mrf.mxu0
        %v5900 = vadd.f32 %v5787, %v5899
        %v5901 = vpop.f32.mrf.mxu0
        %v5902 = vadd.f32 %v5787, %v5901
        %5903 = vmatmul.bf16.gmra.mxu0 %v5833
        %v5904 = vpop.f32.mrf.mxu0
        %v5905 = vadd.f32 %v5787, %v5904
        %v5906 = vpop.f32.mrf.mxu0
        %v5907 = vadd.f32 %v5787, %v5906
        %5908 = vmatmul.bf16.gmra.mxu0 %v5835
        %v5909 = vpop.f32.mrf.mxu0
        %v5910 = vadd.f32 %v5787, %v5909
        %v5911 = vpop.f32.mrf.mxu0
        %v5912 = vadd.f32 %v5787, %v5911
        %5913 = vmatmul.bf16.gmra.mxu0 %v5837
        %v5914 = vpop.f32.mrf.mxu0
        %v5915 = vadd.f32 %v5787, %v5914
        %v5916 = vpop.f32.mrf.mxu0
        %v5917 = vadd.f32 %v5787, %v5916
        %5918 = vmatmul.bf16.gmra.mxu0 %v5839
        %v5919 = vpop.f32.mrf.mxu0
        %v5920 = vadd.f32 %v5787, %v5919
        %v5921 = vpop.f32.mrf.mxu0
        %v5922 = vadd.f32 %v5787, %v5921
        %5923 = vmatmul.bf16.gmra.mxu0 %v5841
        %v5924 = vpop.f32.mrf.mxu0
        %v5925 = vadd.f32 %v5787, %v5924
        %v5926 = vpop.f32.mrf.mxu0
        %v5927 = vadd.f32 %v5787, %v5926
        %5928 = vmatmul.bf16.gmra.mxu0 %v5843
        %v5929 = vpop.f32.mrf.mxu0
        %v5930 = vadd.f32 %v5787, %v5929
        %v5931 = vpop.f32.mrf.mxu0
        %v5932 = vadd.f32 %v5787, %v5931
        %5933 = vdwg.mxu0
        %v5934 = vmul.f32 %v5855, 0.5
        %v5935 = vmul.f32 %v5857, 0.5
        %v5936 = vmul.f32 %v5860, 0.5
        %v5937 = vmul.f32 %v5862, 0.5
        %v5938 = vmul.f32 %v5865, 0.5
        %v5939 = vmul.f32 %v5867, 0.5
        %v5940 = vmul.f32 %v5870, 0.5
        %v5941 = vmul.f32 %v5872, 0.5
        %v5942 = vmul.f32 %v5875, 0.5
        %v5943 = vmul.f32 %v5877, 0.5
        %v5944 = vmul.f32 %v5880, 0.5
        %v5945 = vmul.f32 %v5882, 0.5
        %v5946 = vmul.f32 %v5885, 0.5
        %v5947 = vmul.f32 %v5887, 0.5
        %v5948 = vmul.f32 %v5890, 0.5
        %v5949 = vmul.f32 %v5892, 0.5
        %v5950 = vmul.f32 %v5895, 0.5
        %v5951 = vmul.f32 %v5897, 0.5
        %v5952 = vmul.f32 %v5900, 0.5
        %v5953 = vmul.f32 %v5902, 0.5
        %v5954 = vmul.f32 %v5905, 0.5
        %v5955 = vmul.f32 %v5907, 0.5
        %v5956 = vmul.f32 %v5910, 0.5
        %v5957 = vmul.f32 %v5912, 0.5
        %v5958 = vmul.f32 %v5915, 0.5
        %v5959 = vmul.f32 %v5917, 0.5
        %v5960 = vmul.f32 %v5920, 0.5
        %v5961 = vmul.f32 %v5922, 0.5
        %v5962 = vmul.f32 %v5925, 0.5
        %v5963 = vmul.f32 %v5927, 0.5
        %v5964 = vmul.f32 %v5930, 0.5
        %v5965 = vmul.f32 %v5932, 0.5
        %v5966 = vtanh.pop %v5934
        %v5967 = vtanh.pop %v5935
        %v5968 = vtanh.pop %v5936
        %v5969 = vtanh.pop %v5937
        %v5970 = vtanh.pop %v5938
        %v5971 = vtanh.pop %v5939
        %v5972 = vtanh.pop %v5940
        %v5973 = vtanh.pop %v5941
        %v5974 = vtanh.pop %v5942
        %v5975 = vtanh.pop %v5943
        %v5976 = vtanh.pop %v5944
        %v5977 = vtanh.pop %v5945
        %v5978 = vtanh.pop %v5946
        %v5979 = vtanh.pop %v5947
        %v5980 = vtanh.pop %v5948
        %v5981 = vtanh.pop %v5949
        %v5982 = vtanh.pop %v5950
        %v5983 = vtanh.pop %v5951
        %v5984 = vtanh.pop %v5952
        %v5985 = vtanh.pop %v5953
        %v5986 = vtanh.pop %v5954
        %v5987 = vtanh.pop %v5955
        %v5988 = vtanh.pop %v5956
        %v5989 = vtanh.pop %v5957
        %v5990 = vtanh.pop %v5958
        %v5991 = vtanh.pop %v5959
        %v5992 = vtanh.pop %v5960
        %v5993 = vtanh.pop %v5961
        %v5994 = vtanh.pop %v5962
        %v5995 = vtanh.pop %v5963
        %v5996 = vtanh.pop %v5964
        %v5997 = vtanh.pop %v5965
        %v5998 = vadd.f32 %v5966, 1.0
        %v5999 = vadd.f32 %v5967, 1.0
        %v6000 = vadd.f32 %v5968, 1.0
        %v6001 = vadd.f32 %v5969, 1.0
        %v6002 = vadd.f32 %v5970, 1.0
        %v6003 = vadd.f32 %v5971, 1.0
        %v6004 = vadd.f32 %v5972, 1.0
        %v6005 = vadd.f32 %v5973, 1.0
        %v6006 = vadd.f32 %v5974, 1.0
        %v6007 = vadd.f32 %v5975, 1.0
        %v6008 = vadd.f32 %v5976, 1.0
        %v6009 = vadd.f32 %v5977, 1.0
        %v6010 = vadd.f32 %v5978, 1.0
        %v6011 = vadd.f32 %v5979, 1.0
        %v6012 = vadd.f32 %v5980, 1.0
        %v6013 = vadd.f32 %v5981, 1.0
        %v6014 = vadd.f32 %v5982, 1.0
        %v6015 = vadd.f32 %v5983, 1.0
        %v6016 = vadd.f32 %v5984, 1.0
        %v6017 = vadd.f32 %v5985, 1.0
        %v6018 = vadd.f32 %v5986, 1.0
        %v6019 = vadd.f32 %v5987, 1.0
        %v6020 = vadd.f32 %v5988, 1.0
        %v6021 = vadd.f32 %v5989, 1.0
        %v6022 = vadd.f32 %v5990, 1.0
        %v6023 = vadd.f32 %v5991, 1.0
        %v6024 = vadd.f32 %v5992, 1.0
        %v6025 = vadd.f32 %v5993, 1.0
        %v6026 = vadd.f32 %v5994, 1.0
        %v6027 = vadd.f32 %v5995, 1.0
        %v6028 = vadd.f32 %v5996, 1.0
        %v6029 = vadd.f32 %v5997, 1.0
        %v6030 = vmul.f32 %v5998, 0.5
        %v6031 = vmul.f32 %v5999, 0.5
        %v6032 = vmul.f32 %v6000, 0.5
        %v6033 = vmul.f32 %v6001, 0.5
        %v6034 = vmul.f32 %v6002, 0.5
        %v6035 = vmul.f32 %v6003, 0.5
        %v6036 = vmul.f32 %v6004, 0.5
        %v6037 = vmul.f32 %v6005, 0.5
        %v6038 = vmul.f32 %v6006, 0.5
        %v6039 = vmul.f32 %v6007, 0.5
        %v6040 = vmul.f32 %v6008, 0.5
        %v6041 = vmul.f32 %v6009, 0.5
        %v6042 = vmul.f32 %v6010, 0.5
        %v6043 = vmul.f32 %v6011, 0.5
        %v6044 = vmul.f32 %v6012, 0.5
        %v6045 = vmul.f32 %v6013, 0.5
        %v6046 = vmul.f32 %v6014, 0.5
        %v6047 = vmul.f32 %v6015, 0.5
        %v6048 = vmul.f32 %v6016, 0.5
        %v6049 = vmul.f32 %v6017, 0.5
        %v6050 = vmul.f32 %v6018, 0.5
        %v6051 = vmul.f32 %v6019, 0.5
        %v6052 = vmul.f32 %v6020, 0.5
        %v6053 = vmul.f32 %v6021, 0.5
        %v6054 = vmul.f32 %v6022, 0.5
        %v6055 = vmul.f32 %v6023, 0.5
        %v6056 = vmul.f32 %v6024, 0.5
        %v6057 = vmul.f32 %v6025, 0.5
        %v6058 = vmul.f32 %v6026, 0.5
        %v6059 = vmul.f32 %v6027, 0.5
        %v6060 = vmul.f32 %v6028, 0.5
        %v6061 = vmul.f32 %v6029, 0.5
        %v6062 = vmul.f32 %v6030, %v2449
        %v6063 = vmul.f32 %v6031, %v2451
        %v6064 = vmul.f32 %v6032, %v2453
        %v6065 = vmul.f32 %v6033, %v2455
        %v6066 = vmul.f32 %v6034, %v2457
        %v6067 = vmul.f32 %v6035, %v2459
        %v6068 = vmul.f32 %v6036, %v2461
        %v6069 = vmul.f32 %v6037, %v2463
        %v6070 = vmul.f32 %v6038, %v2465
        %v6071 = vmul.f32 %v6039, %v2467
        %v6072 = vmul.f32 %v6040, %v2469
        %v6073 = vmul.f32 %v6041, %v2471
        %v6074 = vmul.f32 %v6042, %v2473
        %v6075 = vmul.f32 %v6043, %v2475
        %v6076 = vmul.f32 %v6044, %v2477
        %v6077 = vmul.f32 %v6045, %v2479
        %v6078 = vmul.f32 %v6046, %v2481
        %v6079 = vmul.f32 %v6047, %v2483
        %v6080 = vmul.f32 %v6048, %v2485
        %v6081 = vmul.f32 %v6049, %v2487
        %v6082 = vmul.f32 %v6050, %v2489
        %v6083 = vmul.f32 %v6051, %v2491
        %v6084 = vmul.f32 %v6052, %v2493
        %v6085 = vmul.f32 %v6053, %v2495
        %v6086 = vmul.f32 %v6054, %v2497
        %v6087 = vmul.f32 %v6055, %v2499
        %v6088 = vmul.f32 %v6056, %v2501
        %v6089 = vmul.f32 %v6057, %v2503
        %v6090 = vmul.f32 %v6058, %v2505
        %v6091 = vmul.f32 %v6059, %v2507
        %v6092 = vmul.f32 %v6060, %v2509
        %v6093 = vmul.f32 %v6061, %v2511
        %v6094 = vpack.c.bf16 %v6062, %v6062
        %v6095 = vpack.c.bf16 %v6063, %v6063
        %v6096 = vpack.c.bf16 %v6064, %v6064
        %v6097 = vpack.c.bf16 %v6065, %v6065
        %v6098 = vpack.c.bf16 %v6066, %v6066
        %v6099 = vpack.c.bf16 %v6067, %v6067
        %v6100 = vpack.c.bf16 %v6068, %v6068
        %v6101 = vpack.c.bf16 %v6069, %v6069
        %v6102 = vpack.c.bf16 %v6070, %v6070
        %v6103 = vpack.c.bf16 %v6071, %v6071
        %v6104 = vpack.c.bf16 %v6072, %v6072
        %v6105 = vpack.c.bf16 %v6073, %v6073
        %v6106 = vpack.c.bf16 %v6074, %v6074
        %v6107 = vpack.c.bf16 %v6075, %v6075
        %v6108 = vpack.c.bf16 %v6076, %v6076
        %v6109 = vpack.c.bf16 %v6077, %v6077
        %v6110 = vpack.c.bf16 %v6078, %v6078
        %v6111 = vpack.c.bf16 %v6079, %v6079
        %v6112 = vpack.c.bf16 %v6080, %v6080
        %v6113 = vpack.c.bf16 %v6081, %v6081
        %v6114 = vpack.c.bf16 %v6082, %v6082
        %v6115 = vpack.c.bf16 %v6083, %v6083
        %v6116 = vpack.c.bf16 %v6084, %v6084
        %v6117 = vpack.c.bf16 %v6085, %v6085
        %v6118 = vpack.c.bf16 %v6086, %v6086
        %v6119 = vpack.c.bf16 %v6087, %v6087
        %v6120 = vpack.c.bf16 %v6088, %v6088
        %v6121 = vpack.c.bf16 %v6089, %v6089
        %v6122 = vpack.c.bf16 %v6090, %v6090
        %v6123 = vpack.c.bf16 %v6091, %v6091
        %v6124 = vpack.c.bf16 %v6092, %v6092
        %v6125 = vpack.c.bf16 %v6093, %v6093
        %v6158 = vunpack.c.l.b16 %v6094
        %v6159 = vunpack.c.l.b16 %v6095
        %v6160 = vunpack.c.l.b16 %v6096
        %v6161 = vunpack.c.l.b16 %v6097
        %v6162 = vunpack.c.l.b16 %v6098
        %v6163 = vunpack.c.l.b16 %v6099
        %v6164 = vunpack.c.l.b16 %v6100
        %v6165 = vunpack.c.l.b16 %v6101
        %v6166 = vunpack.c.l.b16 %v6102
        %v6167 = vunpack.c.l.b16 %v6103
        %v6168 = vunpack.c.l.b16 %v6104
        %v6169 = vunpack.c.l.b16 %v6105
        %v6170 = vunpack.c.l.b16 %v6106
        %v6171 = vunpack.c.l.b16 %v6107
        %v6172 = vunpack.c.l.b16 %v6108
        %v6173 = vunpack.c.l.b16 %v6109
        %v6174 = vunpack.c.l.b16 %v6110
        %v6175 = vunpack.c.l.b16 %v6111
        %v6176 = vunpack.c.l.b16 %v6112
        %v6177 = vunpack.c.l.b16 %v6113
        %v6178 = vunpack.c.l.b16 %v6114
        %v6179 = vunpack.c.l.b16 %v6115
        %v6180 = vunpack.c.l.b16 %v6116
        %v6181 = vunpack.c.l.b16 %v6117
        %v6182 = vunpack.c.l.b16 %v6118
        %v6183 = vunpack.c.l.b16 %v6119
        %v6184 = vunpack.c.l.b16 %v6120
        %v6185 = vunpack.c.l.b16 %v6121
        %v6186 = vunpack.c.l.b16 %v6122
        %v6187 = vunpack.c.l.b16 %v6123
        %v6188 = vunpack.c.l.b16 %v6124
        %v6189 = vunpack.c.l.b16 %v6125
        %v6190 = vpack.c.b16 %v6159, %v6158
        %v6191 = vpack.c.b16 %v6161, %v6160
        %v6192 = vpack.c.b16 %v6163, %v6162
        %v6193 = vpack.c.b16 %v6165, %v6164
        %v6194 = vpack.c.b16 %v6167, %v6166
        %v6195 = vpack.c.b16 %v6169, %v6168
        %v6196 = vpack.c.b16 %v6171, %v6170
        %v6197 = vpack.c.b16 %v6173, %v6172
        %v6198 = vpack.c.b16 %v6175, %v6174
        %v6199 = vpack.c.b16 %v6177, %v6176
        %v6200 = vpack.c.b16 %v6179, %v6178
        %v6201 = vpack.c.b16 %v6181, %v6180
        %v6202 = vpack.c.b16 %v6183, %v6182
        %v6203 = vpack.c.b16 %v6185, %v6184
        %v6204 = vpack.c.b16 %v6187, %v6186
        %v6205 = vpack.c.b16 %v6189, %v6188
        %6206 = vrot.lane.b32.xlu0 %v6190, 32
        %v6207 = vpop.permute.xlu0 %6206
        %6208 = vrot.lane.b32.xlu0 %v6191, 32
        %v6209 = vpop.permute.xlu0 %6208
        %6210 = vrot.lane.b32.xlu0 %v6192, 32
        %v6211 = vpop.permute.xlu0 %6210
        %6212 = vrot.lane.b32.xlu0 %v6193, 32
        %v6213 = vpop.permute.xlu0 %6212
        %6214 = vrot.lane.b32.xlu0 %v6194, 32
        %v6215 = vpop.permute.xlu0 %6214
        %6216 = vrot.lane.b32.xlu0 %v6195, 32
        %v6217 = vpop.permute.xlu0 %6216
        %6218 = vrot.lane.b32.xlu0 %v6196, 32
        %v6219 = vpop.permute.xlu0 %6218
        %6220 = vrot.lane.b32.xlu0 %v6197, 32
        %v6221 = vpop.permute.xlu0 %6220
        %6222 = vrot.lane.b32.xlu0 %v6198, 32
        %v6223 = vpop.permute.xlu0 %6222
        %6224 = vrot.lane.b32.xlu0 %v6199, 32
        %v6225 = vpop.permute.xlu0 %6224
        %6226 = vrot.lane.b32.xlu0 %v6200, 32
        %v6227 = vpop.permute.xlu0 %6226
        %6228 = vrot.lane.b32.xlu0 %v6201, 32
        %v6229 = vpop.permute.xlu0 %6228
        %6230 = vrot.lane.b32.xlu0 %v6202, 32
        %v6231 = vpop.permute.xlu0 %6230
        %6232 = vrot.lane.b32.xlu0 %v6203, 32
        %v6233 = vpop.permute.xlu0 %6232
        %6234 = vrot.lane.b32.xlu0 %v6204, 32
        %v6235 = vpop.permute.xlu0 %6234
        %6236 = vrot.lane.b32.xlu0 %v6205, 32
        %v6237 = vpop.permute.xlu0 %6236
        %v6239 = vsel %vm1195, %v5664, %v6207
        %v6241 = vsel %vm1195, %v5666, %v6209
        %v6243 = vsel %vm1195, %v5668, %v6211
        %v6245 = vsel %vm1195, %v5670, %v6213
        %v6247 = vsel %vm1195, %v5672, %v6215
        %v6249 = vsel %vm1195, %v5674, %v6217
        %v6251 = vsel %vm1195, %v5676, %v6219
        %v6253 = vsel %vm1195, %v5678, %v6221
        %v6255 = vsel %vm1195, %v5680, %v6223
        %v6257 = vsel %vm1195, %v5682, %v6225
        %v6259 = vsel %vm1195, %v5684, %v6227
        %v6261 = vsel %vm1195, %v5686, %v6229
        %v6263 = vsel %vm1195, %v5688, %v6231
        %v6265 = vsel %vm1195, %v5690, %v6233
        %v6267 = vsel %vm1195, %v5692, %v6235
        %v6269 = vsel %vm1195, %v5694, %v6237
        %s6270 = scalar_lea.vmem %s8, 96
        %v6271 = vld [vmem:[%s6270] sm:$0xf]
        %v6272 = vld [vmem:[%s6270 + $0x4] sm:$0xf]
        %v6273 = vld [vmem:[%s6270 + $0x8] sm:$0xf]
        %v6274 = vld [vmem:[%s6270 + $0xc] sm:$0xf]
        %v6275 = vld [vmem:[%s6270 + $0x10] sm:$0xf]
        %v6276 = vld [vmem:[%s6270 + $0x14] sm:$0xf]
        %v6277 = vld [vmem:[%s6270 + $0x18] sm:$0xf]
        %v6278 = vld [vmem:[%s6270 + $0x1c] sm:$0xf]
        %s6279 = scalar_lea.vmem %s9, 3
        %v6280 = vld [vmem:[%s6279] sm:$0x1]
        %v6282 = vperm.slane %v6280, 0
        %v6292 = vunpack.c.l.b16 %v6271
        %v6293 = vunpack.c.l.b16 %v6272
        %v6294 = vunpack.c.l.b16 %v6273
        %v6295 = vunpack.c.l.b16 %v6274
        %v6296 = vunpack.c.l.b16 %v6275
        %v6297 = vunpack.c.l.b16 %v6276
        %v6298 = vunpack.c.l.b16 %v6277
        %v6299 = vunpack.c.l.b16 %v6278
        %v6300 = vpack.c.b16 %v6293, %v6292
        %v6301 = vpack.c.b16 %v6295, %v6294
        %v6302 = vpack.c.b16 %v6297, %v6296
        %v6303 = vpack.c.b16 %v6299, %v6298
        %v6308 = vsel %vm1737, %v6239, 0
        %v6310 = vsel %vm1737, %v6241, 0
        %v6312 = vsel %vm1737, %v6243, 0
        %v6314 = vsel %vm1737, %v6245, 0
        %v6316 = vsel %vm1737, %v6247, 0
        %v6318 = vsel %vm1737, %v6249, 0
        %v6320 = vsel %vm1737, %v6251, 0
        %v6322 = vsel %vm1737, %v6253, 0
        %v6324 = vsel %vm1737, %v6255, 0
        %v6326 = vsel %vm1737, %v6257, 0
        %v6328 = vsel %vm1737, %v6259, 0
        %v6330 = vsel %vm1737, %v6261, 0
        %v6332 = vsel %vm1737, %v6263, 0
        %v6334 = vsel %vm1737, %v6265, 0
        %v6336 = vsel %vm1737, %v6267, 0
        %v6338 = vsel %vm1737, %v6269, 0
        %6340 = vmatpush.bf16.msra.mxu0 0
        %6341 = vmatpush.bf16.msra.mxu0 0
        %6342 = vmatpush.bf16.msra.mxu0 0
        %6343 = vmatpush.bf16.msra.mxu0 0
        %6344 = vmatpush.bf16.msra.mxu0 %v6303
        %6345 = vmatpush.bf16.msra.mxu0 %v6302
        %6346 = vmatpush.bf16.msra.mxu0 %v6301
        %6347 = vmatpush.bf16.msra.mxu0 %v6300
        %6348 = vmatmul.bf16.gmra.mxu0 %v6308
        %v6349 = vpop.f32.mrf.mxu0
        %v6350 = vadd.f32 %v6282, %v6349
        %v6351 = vpop.f32.mrf.mxu0
        %v6352 = vadd.f32 %v6282, %v6351
        %6353 = vmatmul.bf16.gmra.mxu0 %v6310
        %v6354 = vpop.f32.mrf.mxu0
        %v6355 = vadd.f32 %v6282, %v6354
        %v6356 = vpop.f32.mrf.mxu0
        %v6357 = vadd.f32 %v6282, %v6356
        %6358 = vmatmul.bf16.gmra.mxu0 %v6312
        %v6359 = vpop.f32.mrf.mxu0
        %v6360 = vadd.f32 %v6282, %v6359
        %v6361 = vpop.f32.mrf.mxu0
        %v6362 = vadd.f32 %v6282, %v6361
        %6363 = vmatmul.bf16.gmra.mxu0 %v6314
        %v6364 = vpop.f32.mrf.mxu0
        %v6365 = vadd.f32 %v6282, %v6364
        %v6366 = vpop.f32.mrf.mxu0
        %v6367 = vadd.f32 %v6282, %v6366
        %6368 = vmatmul.bf16.gmra.mxu0 %v6316
        %v6369 = vpop.f32.mrf.mxu0
        %v6370 = vadd.f32 %v6282, %v6369
        %v6371 = vpop.f32.mrf.mxu0
        %v6372 = vadd.f32 %v6282, %v6371
        %6373 = vmatmul.bf16.gmra.mxu0 %v6318
        %v6374 = vpop.f32.mrf.mxu0
        %v6375 = vadd.f32 %v6282, %v6374
        %v6376 = vpop.f32.mrf.mxu0
        %v6377 = vadd.f32 %v6282, %v6376
        %6378 = vmatmul.bf16.gmra.mxu0 %v6320
        %v6379 = vpop.f32.mrf.mxu0
        %v6380 = vadd.f32 %v6282, %v6379
        %v6381 = vpop.f32.mrf.mxu0
        %v6382 = vadd.f32 %v6282, %v6381
        %6383 = vmatmul.bf16.gmra.mxu0 %v6322
        %v6384 = vpop.f32.mrf.mxu0
        %v6385 = vadd.f32 %v6282, %v6384
        %v6386 = vpop.f32.mrf.mxu0
        %v6387 = vadd.f32 %v6282, %v6386
        %6388 = vmatmul.bf16.gmra.mxu0 %v6324
        %v6389 = vpop.f32.mrf.mxu0
        %v6390 = vadd.f32 %v6282, %v6389
        %v6391 = vpop.f32.mrf.mxu0
        %v6392 = vadd.f32 %v6282, %v6391
        %6393 = vmatmul.bf16.gmra.mxu0 %v6326
        %v6394 = vpop.f32.mrf.mxu0
        %v6395 = vadd.f32 %v6282, %v6394
        %v6396 = vpop.f32.mrf.mxu0
        %v6397 = vadd.f32 %v6282, %v6396
        %6398 = vmatmul.bf16.gmra.mxu0 %v6328
        %v6399 = vpop.f32.mrf.mxu0
        %v6400 = vadd.f32 %v6282, %v6399
        %v6401 = vpop.f32.mrf.mxu0
        %v6402 = vadd.f32 %v6282, %v6401
        %6403 = vmatmul.bf16.gmra.mxu0 %v6330
        %v6404 = vpop.f32.mrf.mxu0
        %v6405 = vadd.f32 %v6282, %v6404
        %v6406 = vpop.f32.mrf.mxu0
        %v6407 = vadd.f32 %v6282, %v6406
        %6408 = vmatmul.bf16.gmra.mxu0 %v6332
        %v6409 = vpop.f32.mrf.mxu0
        %v6410 = vadd.f32 %v6282, %v6409
        %v6411 = vpop.f32.mrf.mxu0
        %v6412 = vadd.f32 %v6282, %v6411
        %6413 = vmatmul.bf16.gmra.mxu0 %v6334
        %v6414 = vpop.f32.mrf.mxu0
        %v6415 = vadd.f32 %v6282, %v6414
        %v6416 = vpop.f32.mrf.mxu0
        %v6417 = vadd.f32 %v6282, %v6416
        %6418 = vmatmul.bf16.gmra.mxu0 %v6336
        %v6419 = vpop.f32.mrf.mxu0
        %v6420 = vadd.f32 %v6282, %v6419
        %v6421 = vpop.f32.mrf.mxu0
        %v6422 = vadd.f32 %v6282, %v6421
        %6423 = vmatmul.bf16.gmra.mxu0 %v6338
        %v6424 = vpop.f32.mrf.mxu0
        %v6425 = vadd.f32 %v6282, %v6424
        %v6426 = vpop.f32.mrf.mxu0
        %v6427 = vadd.f32 %v6282, %v6426
        %6428 = vdwg.mxu0
        %v6429 = vtanh.pop %v6350
        %v6430 = vtanh.pop %v6352
        %v6431 = vtanh.pop %v6355
        %v6432 = vtanh.pop %v6357
        %v6433 = vtanh.pop %v6360
        %v6434 = vtanh.pop %v6362
        %v6435 = vtanh.pop %v6365
        %v6436 = vtanh.pop %v6367
        %v6437 = vtanh.pop %v6370
        %v6438 = vtanh.pop %v6372
        %v6439 = vtanh.pop %v6375
        %v6440 = vtanh.pop %v6377
        %v6441 = vtanh.pop %v6380
        %v6442 = vtanh.pop %v6382
        %v6443 = vtanh.pop %v6385
        %v6444 = vtanh.pop %v6387
        %v6445 = vtanh.pop %v6390
        %v6446 = vtanh.pop %v6392
        %v6447 = vtanh.pop %v6395
        %v6448 = vtanh.pop %v6397
        %v6449 = vtanh.pop %v6400
        %v6450 = vtanh.pop %v6402
        %v6451 = vtanh.pop %v6405
        %v6452 = vtanh.pop %v6407
        %v6453 = vtanh.pop %v6410
        %v6454 = vtanh.pop %v6412
        %v6455 = vtanh.pop %v6415
        %v6456 = vtanh.pop %v6417
        %v6457 = vtanh.pop %v6420
        %v6458 = vtanh.pop %v6422
        %v6459 = vtanh.pop %v6425
        %v6460 = vtanh.pop %v6427
        %v6461 = vsub.f32 1.0, %v6030
        %v6462 = vsub.f32 1.0, %v6031
        %v6463 = vsub.f32 1.0, %v6032
        %v6464 = vsub.f32 1.0, %v6033
        %v6465 = vsub.f32 1.0, %v6034
        %v6466 = vsub.f32 1.0, %v6035
        %v6467 = vsub.f32 1.0, %v6036
        %v6468 = vsub.f32 1.0, %v6037
        %v6469 = vsub.f32 1.0, %v6038
        %v6470 = vsub.f32 1.0, %v6039
        %v6471 = vsub.f32 1.0, %v6040
        %v6472 = vsub.f32 1.0, %v6041
        %v6473 = vsub.f32 1.0, %v6042
        %v6474 = vsub.f32 1.0, %v6043
        %v6475 = vsub.f32 1.0, %v6044
        %v6476 = vsub.f32 1.0, %v6045
        %v6477 = vsub.f32 1.0, %v6046
        %v6478 = vsub.f32 1.0, %v6047
        %v6479 = vsub.f32 1.0, %v6048
        %v6480 = vsub.f32 1.0, %v6049
        %v6481 = vsub.f32 1.0, %v6050
        %v6482 = vsub.f32 1.0, %v6051
        %v6483 = vsub.f32 1.0, %v6052
        %v6484 = vsub.f32 1.0, %v6053
        %v6485 = vsub.f32 1.0, %v6054
        %v6486 = vsub.f32 1.0, %v6055
        %v6487 = vsub.f32 1.0, %v6056
        %v6488 = vsub.f32 1.0, %v6057
        %v6489 = vsub.f32 1.0, %v6058
        %v6490 = vsub.f32 1.0, %v6059
        %v6491 = vsub.f32 1.0, %v6060
        %v6492 = vsub.f32 1.0, %v6061
        %v6493 = vmul.f32 %v6461, %v4672
        %v6494 = vmul.f32 %v6462, %v4674
        %v6495 = vmul.f32 %v6463, %v4676
        %v6496 = vmul.f32 %v6464, %v4678
        %v6497 = vmul.f32 %v6465, %v4680
        %v6498 = vmul.f32 %v6466, %v4682
        %v6499 = vmul.f32 %v6467, %v4684
        %v6500 = vmul.f32 %v6468, %v4686
        %v6501 = vmul.f32 %v6469, %v4688
        %v6502 = vmul.f32 %v6470, %v4690
        %v6503 = vmul.f32 %v6471, %v4692
        %v6504 = vmul.f32 %v6472, %v4694
        %v6505 = vmul.f32 %v6473, %v4696
        %v6506 = vmul.f32 %v6474, %v4698
        %v6507 = vmul.f32 %v6475, %v4700
        %v6508 = vmul.f32 %v6476, %v4702
        %v6509 = vmul.f32 %v6477, %v4704
        %v6510 = vmul.f32 %v6478, %v4706
        %v6511 = vmul.f32 %v6479, %v4708
        %v6512 = vmul.f32 %v6480, %v4710
        %v6513 = vmul.f32 %v6481, %v4712
        %v6514 = vmul.f32 %v6482, %v4714
        %v6515 = vmul.f32 %v6483, %v4716
        %v6516 = vmul.f32 %v6484, %v4718
        %v6517 = vmul.f32 %v6485, %v4720
        %v6518 = vmul.f32 %v6486, %v4722
        %v6519 = vmul.f32 %v6487, %v4724
        %v6520 = vmul.f32 %v6488, %v4726
        %v6521 = vmul.f32 %v6489, %v4728
        %v6522 = vmul.f32 %v6490, %v4730
        %v6523 = vmul.f32 %v6491, %v4732
        %v6524 = vmul.f32 %v6492, %v4734
        %6557 = vrot.lane.b32.xlu0 %v6429, 32
        %v6558 = vpop.permute.xlu0 %6557
        %6559 = vrot.lane.b32.xlu0 %v6430, 32
        %v6560 = vpop.permute.xlu0 %6559
        %6561 = vrot.lane.b32.xlu0 %v6431, 32
        %v6562 = vpop.permute.xlu0 %6561
        %6563 = vrot.lane.b32.xlu0 %v6432, 32
        %v6564 = vpop.permute.xlu0 %6563
        %6565 = vrot.lane.b32.xlu0 %v6433, 32
        %v6566 = vpop.permute.xlu0 %6565
        %6567 = vrot.lane.b32.xlu0 %v6434, 32
        %v6568 = vpop.permute.xlu0 %6567
        %6569 = vrot.lane.b32.xlu0 %v6435, 32
        %v6570 = vpop.permute.xlu0 %6569
        %6571 = vrot.lane.b32.xlu0 %v6436, 32
        %v6572 = vpop.permute.xlu0 %6571
        %6573 = vrot.lane.b32.xlu0 %v6437, 32
        %v6574 = vpop.permute.xlu0 %6573
        %6575 = vrot.lane.b32.xlu0 %v6438, 32
        %v6576 = vpop.permute.xlu0 %6575
        %6577 = vrot.lane.b32.xlu0 %v6439, 32
        %v6578 = vpop.permute.xlu0 %6577
        %6579 = vrot.lane.b32.xlu0 %v6440, 32
        %v6580 = vpop.permute.xlu0 %6579
        %6581 = vrot.lane.b32.xlu0 %v6441, 32
        %v6582 = vpop.permute.xlu0 %6581
        %6583 = vrot.lane.b32.xlu0 %v6442, 32
        %v6584 = vpop.permute.xlu0 %6583
        %6585 = vrot.lane.b32.xlu0 %v6443, 32
        %v6586 = vpop.permute.xlu0 %6585
        %6587 = vrot.lane.b32.xlu0 %v6444, 32
        %v6588 = vpop.permute.xlu0 %6587
        %6589 = vrot.lane.b32.xlu0 %v6445, 32
        %v6590 = vpop.permute.xlu0 %6589
        %6591 = vrot.lane.b32.xlu0 %v6446, 32
        %v6592 = vpop.permute.xlu0 %6591
        %6593 = vrot.lane.b32.xlu0 %v6447, 32
        %v6594 = vpop.permute.xlu0 %6593
        %6595 = vrot.lane.b32.xlu0 %v6448, 32
        %v6596 = vpop.permute.xlu0 %6595
        %6597 = vrot.lane.b32.xlu0 %v6449, 32
        %v6598 = vpop.permute.xlu0 %6597
        %6599 = vrot.lane.b32.xlu0 %v6450, 32
        %v6600 = vpop.permute.xlu0 %6599
        %6601 = vrot.lane.b32.xlu0 %v6451, 32
        %v6602 = vpop.permute.xlu0 %6601
        %6603 = vrot.lane.b32.xlu0 %v6452, 32
        %v6604 = vpop.permute.xlu0 %6603
        %6605 = vrot.lane.b32.xlu0 %v6453, 32
        %v6606 = vpop.permute.xlu0 %6605
        %6607 = vrot.lane.b32.xlu0 %v6454, 32
        %v6608 = vpop.permute.xlu0 %6607
        %6609 = vrot.lane.b32.xlu0 %v6455, 32
        %v6610 = vpop.permute.xlu0 %6609
        %6611 = vrot.lane.b32.xlu0 %v6456, 32
        %v6612 = vpop.permute.xlu0 %6611
        %6613 = vrot.lane.b32.xlu0 %v6457, 32
        %v6614 = vpop.permute.xlu0 %6613
        %6615 = vrot.lane.b32.xlu0 %v6458, 32
        %v6616 = vpop.permute.xlu0 %6615
        %6617 = vrot.lane.b32.xlu0 %v6459, 32
        %v6618 = vpop.permute.xlu0 %6617
        %6619 = vrot.lane.b32.xlu0 %v6460, 32
        %v6620 = vpop.permute.xlu0 %6619
        %v6653 = vmul.f32 %v6030, %v6558
        %v6654 = vmul.f32 %v6031, %v6560
        %v6655 = vmul.f32 %v6032, %v6562
        %v6656 = vmul.f32 %v6033, %v6564
        %v6657 = vmul.f32 %v6034, %v6566
        %v6658 = vmul.f32 %v6035, %v6568
        %v6659 = vmul.f32 %v6036, %v6570
        %v6660 = vmul.f32 %v6037, %v6572
        %v6661 = vmul.f32 %v6038, %v6574
        %v6662 = vmul.f32 %v6039, %v6576
        %v6663 = vmul.f32 %v6040, %v6578
        %v6664 = vmul.f32 %v6041, %v6580
        %v6665 = vmul.f32 %v6042, %v6582
        %v6666 = vmul.f32 %v6043, %v6584
        %v6667 = vmul.f32 %v6044, %v6586
        %v6668 = vmul.f32 %v6045, %v6588
        %v6669 = vmul.f32 %v6046, %v6590
        %v6670 = vmul.f32 %v6047, %v6592
        %v6671 = vmul.f32 %v6048, %v6594
        %v6672 = vmul.f32 %v6049, %v6596
        %v6673 = vmul.f32 %v6050, %v6598
        %v6674 = vmul.f32 %v6051, %v6600
        %v6675 = vmul.f32 %v6052, %v6602
        %v6676 = vmul.f32 %v6053, %v6604
        %v6677 = vmul.f32 %v6054, %v6606
        %v6678 = vmul.f32 %v6055, %v6608
        %v6679 = vmul.f32 %v6056, %v6610
        %v6680 = vmul.f32 %v6057, %v6612
        %v6681 = vmul.f32 %v6058, %v6614
        %v6682 = vmul.f32 %v6059, %v6616
        %v6683 = vmul.f32 %v6060, %v6618
        %v6684 = vmul.f32 %v6061, %v6620
        %v6685 = vadd.f32 %v6493, %v6653
        %v6686 = vadd.f32 %v6494, %v6654
        %v6687 = vadd.f32 %v6495, %v6655
        %v6688 = vadd.f32 %v6496, %v6656
        %v6689 = vadd.f32 %v6497, %v6657
        %v6690 = vadd.f32 %v6498, %v6658
        %v6691 = vadd.f32 %v6499, %v6659
        %v6692 = vadd.f32 %v6500, %v6660
        %v6693 = vadd.f32 %v6501, %v6661
        %v6694 = vadd.f32 %v6502, %v6662
        %v6695 = vadd.f32 %v6503, %v6663
        %v6696 = vadd.f32 %v6504, %v6664
        %v6697 = vadd.f32 %v6505, %v6665
        %v6698 = vadd.f32 %v6506, %v6666
        %v6699 = vadd.f32 %v6507, %v6667
        %v6700 = vadd.f32 %v6508, %v6668
        %v6701 = vadd.f32 %v6509, %v6669
        %v6702 = vadd.f32 %v6510, %v6670
        %v6703 = vadd.f32 %v6511, %v6671
        %v6704 = vadd.f32 %v6512, %v6672
        %v6705 = vadd.f32 %v6513, %v6673
        %v6706 = vadd.f32 %v6514, %v6674
        %v6707 = vadd.f32 %v6515, %v6675
        %v6708 = vadd.f32 %v6516, %v6676
        %v6709 = vadd.f32 %v6517, %v6677
        %v6710 = vadd.f32 %v6518, %v6678
        %v6711 = vadd.f32 %v6519, %v6679
        %v6712 = vadd.f32 %v6520, %v6680
        %v6713 = vadd.f32 %v6521, %v6681
        %v6714 = vadd.f32 %v6522, %v6682
        %v6715 = vadd.f32 %v6523, %v6683
        %v6716 = vadd.f32 %v6524, %v6684
        %v6717 = vpack.c.bf16 %v6685, %v6685
        %v6718 = vpack.c.bf16 %v6686, %v6686
        %v6719 = vpack.c.bf16 %v6687, %v6687
        %v6720 = vpack.c.bf16 %v6688, %v6688
        %v6721 = vpack.c.bf16 %v6689, %v6689
        %v6722 = vpack.c.bf16 %v6690, %v6690
        %v6723 = vpack.c.bf16 %v6691, %v6691
        %v6724 = vpack.c.bf16 %v6692, %v6692
        %v6725 = vpack.c.bf16 %v6693, %v6693
        %v6726 = vpack.c.bf16 %v6694, %v6694
        %v6727 = vpack.c.bf16 %v6695, %v6695
        %v6728 = vpack.c.bf16 %v6696, %v6696
        %v6729 = vpack.c.bf16 %v6697, %v6697
        %v6730 = vpack.c.bf16 %v6698, %v6698
        %v6731 = vpack.c.bf16 %v6699, %v6699
        %v6732 = vpack.c.bf16 %v6700, %v6700
        %v6733 = vpack.c.bf16 %v6701, %v6701
        %v6734 = vpack.c.bf16 %v6702, %v6702
        %v6735 = vpack.c.bf16 %v6703, %v6703
        %v6736 = vpack.c.bf16 %v6704, %v6704
        %v6737 = vpack.c.bf16 %v6705, %v6705
        %v6738 = vpack.c.bf16 %v6706, %v6706
        %v6739 = vpack.c.bf16 %v6707, %v6707
        %v6740 = vpack.c.bf16 %v6708, %v6708
        %v6741 = vpack.c.bf16 %v6709, %v6709
        %v6742 = vpack.c.bf16 %v6710, %v6710
        %v6743 = vpack.c.bf16 %v6711, %v6711
        %v6744 = vpack.c.bf16 %v6712, %v6712
        %v6745 = vpack.c.bf16 %v6713, %v6713
        %v6746 = vpack.c.bf16 %v6714, %v6714
        %v6747 = vpack.c.bf16 %v6715, %v6715
        %v6748 = vpack.c.bf16 %v6716, %v6716
        %6781 = vrot.lane.b32.xlu0 %v6717, 64
        %v6782 = vpop.permute.xlu0 %6781
        %6783 = vrot.lane.b32.xlu0 %v6718, 64
        %v6784 = vpop.permute.xlu0 %6783
        %6785 = vrot.lane.b32.xlu0 %v6719, 64
        %v6786 = vpop.permute.xlu0 %6785
        %6787 = vrot.lane.b32.xlu0 %v6720, 64
        %v6788 = vpop.permute.xlu0 %6787
        %6789 = vrot.lane.b32.xlu0 %v6721, 64
        %v6790 = vpop.permute.xlu0 %6789
        %6791 = vrot.lane.b32.xlu0 %v6722, 64
        %v6792 = vpop.permute.xlu0 %6791
        %6793 = vrot.lane.b32.xlu0 %v6723, 64
        %v6794 = vpop.permute.xlu0 %6793
        %6795 = vrot.lane.b32.xlu0 %v6724, 64
        %v6796 = vpop.permute.xlu0 %6795
        %6797 = vrot.lane.b32.xlu0 %v6725, 64
        %v6798 = vpop.permute.xlu0 %6797
        %6799 = vrot.lane.b32.xlu0 %v6726, 64
        %v6800 = vpop.permute.xlu0 %6799
        %6801 = vrot.lane.b32.xlu0 %v6727, 64
        %v6802 = vpop.permute.xlu0 %6801
        %6803 = vrot.lane.b32.xlu0 %v6728, 64
        %v6804 = vpop.permute.xlu0 %6803
        %6805 = vrot.lane.b32.xlu0 %v6729, 64
        %v6806 = vpop.permute.xlu0 %6805
        %6807 = vrot.lane.b32.xlu0 %v6730, 64
        %v6808 = vpop.permute.xlu0 %6807
        %6809 = vrot.lane.b32.xlu0 %v6731, 64
        %v6810 = vpop.permute.xlu0 %6809
        %6811 = vrot.lane.b32.xlu0 %v6732, 64
        %v6812 = vpop.permute.xlu0 %6811
        %6813 = vrot.lane.b32.xlu0 %v6733, 64
        %v6814 = vpop.permute.xlu0 %6813
        %6815 = vrot.lane.b32.xlu0 %v6734, 64
        %v6816 = vpop.permute.xlu0 %6815
        %6817 = vrot.lane.b32.xlu0 %v6735, 64
        %v6818 = vpop.permute.xlu0 %6817
        %6819 = vrot.lane.b32.xlu0 %v6736, 64
        %v6820 = vpop.permute.xlu0 %6819
        %6821 = vrot.lane.b32.xlu0 %v6737, 64
        %v6822 = vpop.permute.xlu0 %6821
        %6823 = vrot.lane.b32.xlu0 %v6738, 64
        %v6824 = vpop.permute.xlu0 %6823
        %6825 = vrot.lane.b32.xlu0 %v6739, 64
        %v6826 = vpop.permute.xlu0 %6825
        %6827 = vrot.lane.b32.xlu0 %v6740, 64
        %v6828 = vpop.permute.xlu0 %6827
        %6829 = vrot.lane.b32.xlu0 %v6741, 64
        %v6830 = vpop.permute.xlu0 %6829
        %6831 = vrot.lane.b32.xlu0 %v6742, 64
        %v6832 = vpop.permute.xlu0 %6831
        %6833 = vrot.lane.b32.xlu0 %v6743, 64
        %v6834 = vpop.permute.xlu0 %6833
        %6835 = vrot.lane.b32.xlu0 %v6744, 64
        %v6836 = vpop.permute.xlu0 %6835
        %6837 = vrot.lane.b32.xlu0 %v6745, 64
        %v6838 = vpop.permute.xlu0 %6837
        %6839 = vrot.lane.b32.xlu0 %v6746, 64
        %v6840 = vpop.permute.xlu0 %6839
        %6841 = vrot.lane.b32.xlu0 %v6747, 64
        %v6842 = vpop.permute.xlu0 %6841
        %6843 = vrot.lane.b32.xlu0 %v6748, 64
        %v6844 = vpop.permute.xlu0 %6843
        %vm6877 = vcmask 1044224
        %6878 = vst.msk [vmem:[%s458] sm:$0xf] %vm6877, %v6782
        %6879 = vst.msk [vmem:[%s458 + $0x4] sm:$0xf] %vm6877, %v6784
        %6880 = vst.msk [vmem:[%s458 + $0x8] sm:$0xf] %vm6877, %v6786
        %6881 = vst.msk [vmem:[%s458 + $0xc] sm:$0xf] %vm6877, %v6788
        %6882 = vst.msk [vmem:[%s458 + $0x10] sm:$0xf] %vm6877, %v6790
        %6883 = vst.msk [vmem:[%s458 + $0x14] sm:$0xf] %vm6877, %v6792
        %6884 = vst.msk [vmem:[%s458 + $0x18] sm:$0xf] %vm6877, %v6794
        %6885 = vst.msk [vmem:[%s458 + $0x1c] sm:$0xf] %vm6877, %v6796
        %6886 = vst.msk [vmem:[%s458 + $0x20] sm:$0xf] %vm6877, %v6798
        %6887 = vst.msk [vmem:[%s458 + $0x24] sm:$0xf] %vm6877, %v6800
        %6888 = vst.msk [vmem:[%s458 + $0x28] sm:$0xf] %vm6877, %v6802
        %6889 = vst.msk [vmem:[%s458 + $0x2c] sm:$0xf] %vm6877, %v6804
        %6890 = vst.msk [vmem:[%s458 + $0x30] sm:$0xf] %vm6877, %v6806
        %6891 = vst.msk [vmem:[%s458 + $0x34] sm:$0xf] %vm6877, %v6808
        %6892 = vst.msk [vmem:[%s458 + $0x38] sm:$0xf] %vm6877, %v6810
        %6893 = vst.msk [vmem:[%s458 + $0x3c] sm:$0xf] %vm6877, %v6812
        %6894 = vst.msk [vmem:[%s458 + $0x40] sm:$0xf] %vm6877, %v6814
        %6895 = vst.msk [vmem:[%s458 + $0x44] sm:$0xf] %vm6877, %v6816
        %6896 = vst.msk [vmem:[%s458 + $0x48] sm:$0xf] %vm6877, %v6818
        %6897 = vst.msk [vmem:[%s458 + $0x4c] sm:$0xf] %vm6877, %v6820
        %6898 = vst.msk [vmem:[%s458 + $0x50] sm:$0xf] %vm6877, %v6822
        %6899 = vst.msk [vmem:[%s458 + $0x54] sm:$0xf] %vm6877, %v6824
        %6900 = vst.msk [vmem:[%s458 + $0x58] sm:$0xf] %vm6877, %v6826
        %6901 = vst.msk [vmem:[%s458 + $0x5c] sm:$0xf] %vm6877, %v6828
        %6902 = vst.msk [vmem:[%s458 + $0x60] sm:$0xf] %vm6877, %v6830
        %6903 = vst.msk [vmem:[%s458 + $0x64] sm:$0xf] %vm6877, %v6832
        %6904 = vst.msk [vmem:[%s458 + $0x68] sm:$0xf] %vm6877, %v6834
        %6905 = vst.msk [vmem:[%s458 + $0x6c] sm:$0xf] %vm6877, %v6836
        %6906 = vst.msk [vmem:[%s458 + $0x70] sm:$0xf] %vm6877, %v6838
        %6907 = vst.msk [vmem:[%s458 + $0x74] sm:$0xf] %vm6877, %v6840
        %6908 = vst.msk [vmem:[%s458 + $0x78] sm:$0xf] %vm6877, %v6842
        %6909 = vst.msk [vmem:[%s458 + $0x7c] sm:$0xf] %vm6877, %v6844
        %v6910 = vld [vmem:[%s10] sm:$0xf]
        %v6911 = vld [vmem:[%s10 + $0x4] sm:$0xf]
        %v6912 = vld [vmem:[%s10 + $0x8] sm:$0xf]
        %v6913 = vld [vmem:[%s10 + $0xc] sm:$0xf]
        %v6914 = vld [vmem:[%s11] sm:$0x1]
        %v6916 = vperm.slane %v6914, 0
        %v6918 = vunpack.c.l.b16 %v6717
        %v6919 = vunpack.c.l.b16 %v6718
        %v6920 = vunpack.c.l.b16 %v6719
        %v6921 = vunpack.c.l.b16 %v6720
        %v6922 = vunpack.c.l.b16 %v6721
        %v6923 = vunpack.c.l.b16 %v6722
        %v6924 = vunpack.c.l.b16 %v6723
        %v6925 = vunpack.c.l.b16 %v6724
        %v6926 = vunpack.c.l.b16 %v6725
        %v6927 = vunpack.c.l.b16 %v6726
        %v6928 = vunpack.c.l.b16 %v6727
        %v6929 = vunpack.c.l.b16 %v6728
        %v6930 = vunpack.c.l.b16 %v6729
        %v6931 = vunpack.c.l.b16 %v6730
        %v6932 = vunpack.c.l.b16 %v6731
        %v6933 = vunpack.c.l.b16 %v6732
        %v6934 = vunpack.c.l.b16 %v6733
        %v6935 = vunpack.c.l.b16 %v6734
        %v6936 = vunpack.c.l.b16 %v6735
        %v6937 = vunpack.c.l.b16 %v6736
        %v6938 = vunpack.c.l.b16 %v6737
        %v6939 = vunpack.c.l.b16 %v6738
        %v6940 = vunpack.c.l.b16 %v6739
        %v6941 = vunpack.c.l.b16 %v6740
        %v6942 = vunpack.c.l.b16 %v6741
        %v6943 = vunpack.c.l.b16 %v6742
        %v6944 = vunpack.c.l.b16 %v6743
        %v6945 = vunpack.c.l.b16 %v6744
        %v6946 = vunpack.c.l.b16 %v6745
        %v6947 = vunpack.c.l.b16 %v6746
        %v6948 = vunpack.c.l.b16 %v6747
        %v6949 = vunpack.c.l.b16 %v6748
        %v6950 = vpack.c.b16 %v6919, %v6918
        %v6951 = vpack.c.b16 %v6921, %v6920
        %v6952 = vpack.c.b16 %v6923, %v6922
        %v6953 = vpack.c.b16 %v6925, %v6924
        %v6954 = vpack.c.b16 %v6927, %v6926
        %v6955 = vpack.c.b16 %v6929, %v6928
        %v6956 = vpack.c.b16 %v6931, %v6930
        %v6957 = vpack.c.b16 %v6933, %v6932
        %v6958 = vpack.c.b16 %v6935, %v6934
        %v6959 = vpack.c.b16 %v6937, %v6936
        %v6960 = vpack.c.b16 %v6939, %v6938
        %v6961 = vpack.c.b16 %v6941, %v6940
        %v6962 = vpack.c.b16 %v6943, %v6942
        %v6963 = vpack.c.b16 %v6945, %v6944
        %v6964 = vpack.c.b16 %v6947, %v6946
        %v6965 = vpack.c.b16 %v6949, %v6948
        %6966 = vrot.lane.b32.xlu0 %v6950, 96
        %v6967 = vpop.permute.xlu0 %6966
        %6968 = vrot.lane.b32.xlu0 %v6951, 96
        %v6969 = vpop.permute.xlu0 %6968
        %6970 = vrot.lane.b32.xlu0 %v6952, 96
        %v6971 = vpop.permute.xlu0 %6970
        %6972 = vrot.lane.b32.xlu0 %v6953, 96
        %v6973 = vpop.permute.xlu0 %6972
        %6974 = vrot.lane.b32.xlu0 %v6954, 96
        %v6975 = vpop.permute.xlu0 %6974
        %6976 = vrot.lane.b32.xlu0 %v6955, 96
        %v6977 = vpop.permute.xlu0 %6976
        %6978 = vrot.lane.b32.xlu0 %v6956, 96
        %v6979 = vpop.permute.xlu0 %6978
        %6980 = vrot.lane.b32.xlu0 %v6957, 96
        %v6981 = vpop.permute.xlu0 %6980
        %6982 = vrot.lane.b32.xlu0 %v6958, 96
        %v6983 = vpop.permute.xlu0 %6982
        %6984 = vrot.lane.b32.xlu0 %v6959, 96
        %v6985 = vpop.permute.xlu0 %6984
        %6986 = vrot.lane.b32.xlu0 %v6960, 96
        %v6987 = vpop.permute.xlu0 %6986
        %6988 = vrot.lane.b32.xlu0 %v6961, 96
        %v6989 = vpop.permute.xlu0 %6988
        %6990 = vrot.lane.b32.xlu0 %v6962, 96
        %v6991 = vpop.permute.xlu0 %6990
        %6992 = vrot.lane.b32.xlu0 %v6963, 96
        %v6993 = vpop.permute.xlu0 %6992
        %6994 = vrot.lane.b32.xlu0 %v6964, 96
        %v6995 = vpop.permute.xlu0 %6994
        %6996 = vrot.lane.b32.xlu0 %v6965, 96
        %v6997 = vpop.permute.xlu0 %6996
        %v7002 = vunpack.c.l.b16 %v6910
        %v7003 = vunpack.c.l.b16 %v6911
        %v7004 = vunpack.c.l.b16 %v6912
        %v7005 = vunpack.c.l.b16 %v6913
        %v7006 = vpack.c.b16 %v7003, %v7002
        %v7007 = vpack.c.b16 %v7005, %v7004
        %v7011 = vsel %vm1195, %v6967, 0
        %v7014 = vsel %vm1195, %v6969, 0
        %v7017 = vsel %vm1195, %v6971, 0
        %v7020 = vsel %vm1195, %v6973, 0
        %v7023 = vsel %vm1195, %v6975, 0
        %v7026 = vsel %vm1195, %v6977, 0
        %v7029 = vsel %vm1195, %v6979, 0
        %v7032 = vsel %vm1195, %v6981, 0
        %v7035 = vsel %vm1195, %v6983, 0
        %v7038 = vsel %vm1195, %v6985, 0
        %v7041 = vsel %vm1195, %v6987, 0
        %v7044 = vsel %vm1195, %v6989, 0
        %v7047 = vsel %vm1195, %v6991, 0
        %v7050 = vsel %vm1195, %v6993, 0
        %v7053 = vsel %vm1195, %v6995, 0
        %v7056 = vsel %vm1195, %v6997, 0
        %7058 = vmatpush.bf16.msra.mxu0 0
        %7059 = vmatpush.bf16.msra.mxu0 0
        %7060 = vmatpush.bf16.msra.mxu0 0
        %7061 = vmatpush.bf16.msra.mxu0 0
        %7062 = vmatpush.bf16.msra.mxu0 0
        %7063 = vmatpush.bf16.msra.mxu0 0
        %7064 = vmatpush.bf16.msra.mxu0 %v7007
        %7065 = vmatpush.bf16.msra.mxu0 %v7006
        %7066 = vmatmul.bf16.gmra.mxu0 %v7011
        %v7067 = vpop.f32.mrf.mxu0
        %v7068 = vadd.f32 %v6916, %v7067
        %v7069 = vpop.f32.mrf.mxu0
        %v7070 = vadd.f32 %v6916, %v7069
        %7071 = vmatmul.bf16.gmra.mxu0 %v7014
        %v7072 = vpop.f32.mrf.mxu0
        %v7073 = vadd.f32 %v6916, %v7072
        %v7074 = vpop.f32.mrf.mxu0
        %v7075 = vadd.f32 %v6916, %v7074
        %7076 = vmatmul.bf16.gmra.mxu0 %v7017
        %v7077 = vpop.f32.mrf.mxu0
        %v7078 = vadd.f32 %v6916, %v7077
        %v7079 = vpop.f32.mrf.mxu0
        %v7080 = vadd.f32 %v6916, %v7079
        %7081 = vmatmul.bf16.gmra.mxu0 %v7020
        %v7082 = vpop.f32.mrf.mxu0
        %v7083 = vadd.f32 %v6916, %v7082
        %v7084 = vpop.f32.mrf.mxu0
        %v7085 = vadd.f32 %v6916, %v7084
        %7086 = vmatmul.bf16.gmra.mxu0 %v7023
        %v7087 = vpop.f32.mrf.mxu0
        %v7088 = vadd.f32 %v6916, %v7087
        %v7089 = vpop.f32.mrf.mxu0
        %v7090 = vadd.f32 %v6916, %v7089
        %7091 = vmatmul.bf16.gmra.mxu0 %v7026
        %v7092 = vpop.f32.mrf.mxu0
        %v7093 = vadd.f32 %v6916, %v7092
        %v7094 = vpop.f32.mrf.mxu0
        %v7095 = vadd.f32 %v6916, %v7094
        %7096 = vmatmul.bf16.gmra.mxu0 %v7029
        %v7097 = vpop.f32.mrf.mxu0
        %v7098 = vadd.f32 %v6916, %v7097
        %v7099 = vpop.f32.mrf.mxu0
        %v7100 = vadd.f32 %v6916, %v7099
        %7101 = vmatmul.bf16.gmra.mxu0 %v7032
        %v7102 = vpop.f32.mrf.mxu0
        %v7103 = vadd.f32 %v6916, %v7102
        %v7104 = vpop.f32.mrf.mxu0
        %v7105 = vadd.f32 %v6916, %v7104
        %7106 = vmatmul.bf16.gmra.mxu0 %v7035
        %v7107 = vpop.f32.mrf.mxu0
        %v7108 = vadd.f32 %v6916, %v7107
        %v7109 = vpop.f32.mrf.mxu0
        %v7110 = vadd.f32 %v6916, %v7109
        %7111 = vmatmul.bf16.gmra.mxu0 %v7038
        %v7112 = vpop.f32.mrf.mxu0
        %v7113 = vadd.f32 %v6916, %v7112
        %v7114 = vpop.f32.mrf.mxu0
        %v7115 = vadd.f32 %v6916, %v7114
        %7116 = vmatmul.bf16.gmra.mxu0 %v7041
        %v7117 = vpop.f32.mrf.mxu0
        %v7118 = vadd.f32 %v6916, %v7117
        %v7119 = vpop.f32.mrf.mxu0
        %v7120 = vadd.f32 %v6916, %v7119
        %7121 = vmatmul.bf16.gmra.mxu0 %v7044
        %v7122 = vpop.f32.mrf.mxu0
        %v7123 = vadd.f32 %v6916, %v7122
        %v7124 = vpop.f32.mrf.mxu0
        %v7125 = vadd.f32 %v6916, %v7124
        %7126 = vmatmul.bf16.gmra.mxu0 %v7047
        %v7127 = vpop.f32.mrf.mxu0
        %v7128 = vadd.f32 %v6916, %v7127
        %v7129 = vpop.f32.mrf.mxu0
        %v7130 = vadd.f32 %v6916, %v7129
        %7131 = vmatmul.bf16.gmra.mxu0 %v7050
        %v7132 = vpop.f32.mrf.mxu0
        %v7133 = vadd.f32 %v6916, %v7132
        %v7134 = vpop.f32.mrf.mxu0
        %v7135 = vadd.f32 %v6916, %v7134
        %7136 = vmatmul.bf16.gmra.mxu0 %v7053
        %v7137 = vpop.f32.mrf.mxu0
        %v7138 = vadd.f32 %v6916, %v7137
        %v7139 = vpop.f32.mrf.mxu0
        %v7140 = vadd.f32 %v6916, %v7139
        %7141 = vmatmul.bf16.gmra.mxu0 %v7056
        %v7142 = vpop.f32.mrf.mxu0
        %v7143 = vadd.f32 %v6916, %v7142
        %v7144 = vpop.f32.mrf.mxu0
        %v7145 = vadd.f32 %v6916, %v7144
        %7146 = vdwg.mxu0
        %v7147 = vadd.f32 %v479, %v7068
        %v7148 = vadd.f32 %v480, %v7070
        %v7149 = vadd.f32 %v481, %v7073
        %v7150 = vadd.f32 %v482, %v7075
        %v7151 = vadd.f32 %v483, %v7078
        %v7152 = vadd.f32 %v484, %v7080
        %v7153 = vadd.f32 %v485, %v7083
        %v7154 = vadd.f32 %v486, %v7085
        %v7155 = vadd.f32 %v487, %v7088
        %v7156 = vadd.f32 %v488, %v7090
        %v7157 = vadd.f32 %v489, %v7093
        %v7158 = vadd.f32 %v490, %v7095
        %v7159 = vadd.f32 %v491, %v7098
        %v7160 = vadd.f32 %v492, %v7100
        %v7161 = vadd.f32 %v493, %v7103
        %v7162 = vadd.f32 %v494, %v7105
        %v7163 = vadd.f32 %v495, %v7108
        %v7164 = vadd.f32 %v496, %v7110
        %v7165 = vadd.f32 %v497, %v7113
        %v7166 = vadd.f32 %v498, %v7115
        %v7167 = vadd.f32 %v499, %v7118
        %v7168 = vadd.f32 %v500, %v7120
        %v7169 = vadd.f32 %v501, %v7123
        %v7170 = vadd.f32 %v502, %v7125
        %v7171 = vadd.f32 %v503, %v7128
        %v7172 = vadd.f32 %v504, %v7130
        %v7173 = vadd.f32 %v505, %v7133
        %v7174 = vadd.f32 %v506, %v7135
        %v7175 = vadd.f32 %v507, %v7138
        %v7176 = vadd.f32 %v508, %v7140
        %v7177 = vadd.f32 %v509, %v7143
        %v7178 = vadd.f32 %v510, %v7145
        %v7179 = vmax.f32 %v7147, 0.0
        %v7180 = vmax.f32 %v7148, 0.0
        %v7181 = vmax.f32 %v7149, 0.0
        %v7182 = vmax.f32 %v7150, 0.0
        %v7183 = vmax.f32 %v7151, 0.0
        %v7184 = vmax.f32 %v7152, 0.0
        %v7185 = vmax.f32 %v7153, 0.0
        %v7186 = vmax.f32 %v7154, 0.0
        %v7187 = vmax.f32 %v7155, 0.0
        %v7188 = vmax.f32 %v7156, 0.0
        %v7189 = vmax.f32 %v7157, 0.0
        %v7190 = vmax.f32 %v7158, 0.0
        %v7191 = vmax.f32 %v7159, 0.0
        %v7192 = vmax.f32 %v7160, 0.0
        %v7193 = vmax.f32 %v7161, 0.0
        %v7194 = vmax.f32 %v7162, 0.0
        %v7195 = vmax.f32 %v7163, 0.0
        %v7196 = vmax.f32 %v7164, 0.0
        %v7197 = vmax.f32 %v7165, 0.0
        %v7198 = vmax.f32 %v7166, 0.0
        %v7199 = vmax.f32 %v7167, 0.0
        %v7200 = vmax.f32 %v7168, 0.0
        %v7201 = vmax.f32 %v7169, 0.0
        %v7202 = vmax.f32 %v7170, 0.0
        %v7203 = vmax.f32 %v7171, 0.0
        %v7204 = vmax.f32 %v7172, 0.0
        %v7205 = vmax.f32 %v7173, 0.0
        %v7206 = vmax.f32 %v7174, 0.0
        %v7207 = vmax.f32 %v7175, 0.0
        %v7208 = vmax.f32 %v7176, 0.0
        %v7209 = vmax.f32 %v7177, 0.0
        %v7210 = vmax.f32 %v7178, 0.0
        %v7211 = vmin.f32 %v7179, 1.0
        %v7212 = vmin.f32 %v7180, 1.0
        %v7213 = vmin.f32 %v7181, 1.0
        %v7214 = vmin.f32 %v7182, 1.0
        %v7215 = vmin.f32 %v7183, 1.0
        %v7216 = vmin.f32 %v7184, 1.0
        %v7217 = vmin.f32 %v7185, 1.0
        %v7218 = vmin.f32 %v7186, 1.0
        %v7219 = vmin.f32 %v7187, 1.0
        %v7220 = vmin.f32 %v7188, 1.0
        %v7221 = vmin.f32 %v7189, 1.0
        %v7222 = vmin.f32 %v7190, 1.0
        %v7223 = vmin.f32 %v7191, 1.0
        %v7224 = vmin.f32 %v7192, 1.0
        %v7225 = vmin.f32 %v7193, 1.0
        %v7226 = vmin.f32 %v7194, 1.0
        %v7227 = vmin.f32 %v7195, 1.0
        %v7228 = vmin.f32 %v7196, 1.0
        %v7229 = vmin.f32 %v7197, 1.0
        %v7230 = vmin.f32 %v7198, 1.0
        %v7231 = vmin.f32 %v7199, 1.0
        %v7232 = vmin.f32 %v7200, 1.0
        %v7233 = vmin.f32 %v7201, 1.0
        %v7234 = vmin.f32 %v7202, 1.0
        %v7235 = vmin.f32 %v7203, 1.0
        %v7236 = vmin.f32 %v7204, 1.0
        %v7237 = vmin.f32 %v7205, 1.0
        %v7238 = vmin.f32 %v7206, 1.0
        %v7239 = vmin.f32 %v7207, 1.0
        %v7240 = vmin.f32 %v7208, 1.0
        %v7241 = vmin.f32 %v7209, 1.0
        %v7242 = vmin.f32 %v7210, 1.0
        %v7243 = vmax.f32 %v7068, 0.0
        %v7244 = vmax.f32 %v7070, 0.0
        %v7245 = vmax.f32 %v7073, 0.0
        %v7246 = vmax.f32 %v7075, 0.0
        %v7247 = vmax.f32 %v7078, 0.0
        %v7248 = vmax.f32 %v7080, 0.0
        %v7249 = vmax.f32 %v7083, 0.0
        %v7250 = vmax.f32 %v7085, 0.0
        %v7251 = vmax.f32 %v7088, 0.0
        %v7252 = vmax.f32 %v7090, 0.0
        %v7253 = vmax.f32 %v7093, 0.0
        %v7254 = vmax.f32 %v7095, 0.0
        %v7255 = vmax.f32 %v7098, 0.0
        %v7256 = vmax.f32 %v7100, 0.0
        %v7257 = vmax.f32 %v7103, 0.0
        %v7258 = vmax.f32 %v7105, 0.0
        %v7259 = vmax.f32 %v7108, 0.0
        %v7260 = vmax.f32 %v7110, 0.0
        %v7261 = vmax.f32 %v7113, 0.0
        %v7262 = vmax.f32 %v7115, 0.0
        %v7263 = vmax.f32 %v7118, 0.0
        %v7264 = vmax.f32 %v7120, 0.0
        %v7265 = vmax.f32 %v7123, 0.0
        %v7266 = vmax.f32 %v7125, 0.0
        %v7267 = vmax.f32 %v7128, 0.0
        %v7268 = vmax.f32 %v7130, 0.0
        %v7269 = vmax.f32 %v7133, 0.0
        %v7270 = vmax.f32 %v7135, 0.0
        %v7271 = vmax.f32 %v7138, 0.0
        %v7272 = vmax.f32 %v7140, 0.0
        %v7273 = vmax.f32 %v7143, 0.0
        %v7274 = vmax.f32 %v7145, 0.0
        %v7275 = vmin.f32 %v7243, 1.0
        %v7276 = vmin.f32 %v7244, 1.0
        %v7277 = vmin.f32 %v7245, 1.0
        %v7278 = vmin.f32 %v7246, 1.0
        %v7279 = vmin.f32 %v7247, 1.0
        %v7280 = vmin.f32 %v7248, 1.0
        %v7281 = vmin.f32 %v7249, 1.0
        %v7282 = vmin.f32 %v7250, 1.0
        %v7283 = vmin.f32 %v7251, 1.0
        %v7284 = vmin.f32 %v7252, 1.0
        %v7285 = vmin.f32 %v7253, 1.0
        %v7286 = vmin.f32 %v7254, 1.0
        %v7287 = vmin.f32 %v7255, 1.0
        %v7288 = vmin.f32 %v7256, 1.0
        %v7289 = vmin.f32 %v7257, 1.0
        %v7290 = vmin.f32 %v7258, 1.0
        %v7291 = vmin.f32 %v7259, 1.0
        %v7292 = vmin.f32 %v7260, 1.0
        %v7293 = vmin.f32 %v7261, 1.0
        %v7294 = vmin.f32 %v7262, 1.0
        %v7295 = vmin.f32 %v7263, 1.0
        %v7296 = vmin.f32 %v7264, 1.0
        %v7297 = vmin.f32 %v7265, 1.0
        %v7298 = vmin.f32 %v7266, 1.0
        %v7299 = vmin.f32 %v7267, 1.0
        %v7300 = vmin.f32 %v7268, 1.0
        %v7301 = vmin.f32 %v7269, 1.0
        %v7302 = vmin.f32 %v7270, 1.0
        %v7303 = vmin.f32 %v7271, 1.0
        %v7304 = vmin.f32 %v7272, 1.0
        %v7305 = vmin.f32 %v7273, 1.0
        %v7306 = vmin.f32 %v7274, 1.0
        %vm7307 = vcmask 23552
        %v7308 = vsel %vm7307, %v7211, %v7275
        %v7309 = vsel %vm7307, %v7212, %v7276
        %v7310 = vsel %vm7307, %v7213, %v7277
        %v7311 = vsel %vm7307, %v7214, %v7278
        %v7312 = vsel %vm7307, %v7215, %v7279
        %v7313 = vsel %vm7307, %v7216, %v7280
        %v7314 = vsel %vm7307, %v7217, %v7281
        %v7315 = vsel %vm7307, %v7218, %v7282
        %v7316 = vsel %vm7307, %v7219, %v7283
        %v7317 = vsel %vm7307, %v7220, %v7284
        %v7318 = vsel %vm7307, %v7221, %v7285
        %v7319 = vsel %vm7307, %v7222, %v7286
        %v7320 = vsel %vm7307, %v7223, %v7287
        %v7321 = vsel %vm7307, %v7224, %v7288
        %v7322 = vsel %vm7307, %v7225, %v7289
        %v7323 = vsel %vm7307, %v7226, %v7290
        %v7324 = vsel %vm7307, %v7227, %v7291
        %v7325 = vsel %vm7307, %v7228, %v7292
        %v7326 = vsel %vm7307, %v7229, %v7293
        %v7327 = vsel %vm7307, %v7230, %v7294
        %v7328 = vsel %vm7307, %v7231, %v7295
        %v7329 = vsel %vm7307, %v7232, %v7296
        %v7330 = vsel %vm7307, %v7233, %v7297
        %v7331 = vsel %vm7307, %v7234, %v7298
        %v7332 = vsel %vm7307, %v7235, %v7299
        %v7333 = vsel %vm7307, %v7236, %v7300
        %v7334 = vsel %vm7307, %v7237, %v7301
        %v7335 = vsel %vm7307, %v7238, %v7302
        %v7336 = vsel %vm7307, %v7239, %v7303
        %v7337 = vsel %vm7307, %v7240, %v7304
        %v7338 = vsel %vm7307, %v7241, %v7305
        %v7339 = vsel %vm7307, %v7242, %v7306
        %vm7340 = vcmask 31744
        %7341 = vst.msk [vmem:[%s475] sm:$0xff] %vm7340, %v7308
        %7342 = vst.msk [vmem:[%s475 + $0x8] sm:$0xff] %vm7340, %v7309
        %7343 = vst.msk [vmem:[%s475 + $0x10] sm:$0xff] %vm7340, %v7310
        %7344 = vst.msk [vmem:[%s475 + $0x18] sm:$0xff] %vm7340, %v7311
        %7345 = vst.msk [vmem:[%s475 + $0x20] sm:$0xff] %vm7340, %v7312
        %7346 = vst.msk [vmem:[%s475 + $0x28] sm:$0xff] %vm7340, %v7313
        %7347 = vst.msk [vmem:[%s475 + $0x30] sm:$0xff] %vm7340, %v7314
        %7348 = vst.msk [vmem:[%s475 + $0x38] sm:$0xff] %vm7340, %v7315
        %7349 = vst.msk [vmem:[%s475 + $0x40] sm:$0xff] %vm7340, %v7316
        %7350 = vst.msk [vmem:[%s475 + $0x48] sm:$0xff] %vm7340, %v7317
        %7351 = vst.msk [vmem:[%s475 + $0x50] sm:$0xff] %vm7340, %v7318
        %7352 = vst.msk [vmem:[%s475 + $0x58] sm:$0xff] %vm7340, %v7319
        %7353 = vst.msk [vmem:[%s475 + $0x60] sm:$0xff] %vm7340, %v7320
        %7354 = vst.msk [vmem:[%s475 + $0x68] sm:$0xff] %vm7340, %v7321
        %7355 = vst.msk [vmem:[%s475 + $0x70] sm:$0xff] %vm7340, %v7322
        %7356 = vst.msk [vmem:[%s475 + $0x78] sm:$0xff] %vm7340, %v7323
        %7357 = vst.msk [vmem:[%s475 + $0x80] sm:$0xff] %vm7340, %v7324
        %7358 = vst.msk [vmem:[%s475 + $0x88] sm:$0xff] %vm7340, %v7325
        %7359 = vst.msk [vmem:[%s475 + $0x90] sm:$0xff] %vm7340, %v7326
        %7360 = vst.msk [vmem:[%s475 + $0x98] sm:$0xff] %vm7340, %v7327
        %7361 = vst.msk [vmem:[%s475 + $0xa0] sm:$0xff] %vm7340, %v7328
        %7362 = vst.msk [vmem:[%s475 + $0xa8] sm:$0xff] %vm7340, %v7329
        %7363 = vst.msk [vmem:[%s475 + $0xb0] sm:$0xff] %vm7340, %v7330
        %7364 = vst.msk [vmem:[%s475 + $0xb8] sm:$0xff] %vm7340, %v7331
        %7365 = vst.msk [vmem:[%s475 + $0xc0] sm:$0xff] %vm7340, %v7332
        %7366 = vst.msk [vmem:[%s475 + $0xc8] sm:$0xff] %vm7340, %v7333
        %7367 = vst.msk [vmem:[%s475 + $0xd0] sm:$0xff] %vm7340, %v7334
        %7368 = vst.msk [vmem:[%s475 + $0xd8] sm:$0xff] %vm7340, %v7335
        %7369 = vst.msk [vmem:[%s475 + $0xe0] sm:$0xff] %vm7340, %v7336
        %7370 = vst.msk [vmem:[%s475 + $0xe8] sm:$0xff] %vm7340, %v7337
        %7371 = vst.msk [vmem:[%s475 + $0xf0] sm:$0xff] %vm7340, %v7338
        %7372 = vst.msk [vmem:[%s475 + $0xf8] sm:$0xff] %vm7340, %v7339
        %s7373 = smul.u32 32, %s28
        %p7374 = scmp.lt.s32.totalorder %s7373, 63
        %s7375 = scalar_select %p7374, %s7373, 63
        %s7376 = smul.addr %s7375, 8
        %s7377 = scalar_lea.vmem %s12, %s7376
        %s7378 = sand.u32 %s324, 1
        %s7379 = scalar_lea.sflag [#allocation3], %s7378
        %s7380 = sand.u32 %s324, 1
        %s7381 = smul.addr %s7380, 128
        %s7382 = scalar_lea.vmem [#allocation2], %s7381
        // Predicated region
        $region69: #{tpu_custom_call.1} parent=67 // pred_check
          %p7383 = pneg %p308
        $region70: #{tpu_custom_call.1} parent=67 // pred_check_branch
          %7385 = sbr.rel (%p7383) target = $region72
        $region71: #{tpu_custom_call.1} parent=67 // pred_region
          %s7386 = smul.u32 32, %s28
        $region72: #{tpu_custom_call.1} parent=67 // pred_fallthru
          _
        // Predicated region
        $region73: #{tpu_custom_call.1} parent=67 // pred_check
          %p7387 = pneg %p334
        $region74: #{tpu_custom_call.1} parent=67 // pred_check_branch
          %7389 = sbr.rel (%p7387) target = $region76
        $region75: #{tpu_custom_call.1} parent=67 // pred_region
          %s7390 = smul.u32 32, %s28
          %7392 = vsyncadd %s7379, 0
          %s7393 = smul.addr %s7390, 4
          %s7394 = scalar_lea.hbm %s13, %s7393
          %s7395 = sshll.u32 %s7382, 4
          %s7396 = int_to_ptr.vmem [resolvable:$true] %s7395
          %s7397 = sshll.u32 %s7394, 4
          %s7398 = int_to_ptr.hbm [resolvable:$true] %s7397
          %7403 = dma.vmem_to_hbm [thread:$0]  %s7396, 2048, %s7398, %s7379, 64, 64, 4
        $region76: #{tpu_custom_call.1} parent=67 // pred_fallthru
          _
      $region68: #{tpu_custom_call.1} parent=5 // pred_fallthru
        _
      %p7404 = scmp.le.s32.totalorder 2, %s23
      // Predicated region
      $region77: #{tpu_custom_call.1} parent=5 // pred_check
        %p7405 = pneg %p7404
      $region78: #{tpu_custom_call.1} parent=5 // pred_check_branch
        %7407 = sbr.rel (%p7405) target = $region80
      $region79: #{tpu_custom_call.1} parent=5 // pred_region
        %s7408 = ssub.s32 %s23, 2
        // Predicated region
        $region81: #{tpu_custom_call.1} parent=79 // pred_check
          %p7409 = pneg %p314
        $region82: #{tpu_custom_call.1} parent=79 // pred_check_branch
          %7411 = sbr.rel (%p7409) target = $region84
        $region83: #{tpu_custom_call.1} parent=79 // pred_region
          %s7412 = smul.u32 32, %s29
          %p7413 = scmp.lt.s32.totalorder %s7412, 63
          %s7414 = scalar_select %p7413, %s7412, 63
          %s7415 = smul.addr %s7414, 8
          %s7416 = scalar_lea.vmem %s12, %s7415
        $region84: #{tpu_custom_call.1} parent=79 // pred_fallthru
          _
        // Predicated region
        $region85: #{tpu_custom_call.1} parent=79 // pred_check
          %p7417 = pneg %p340
        $region86: #{tpu_custom_call.1} parent=79 // pred_check_branch
          %7419 = sbr.rel (%p7417) target = $region88
        $region87: #{tpu_custom_call.1} parent=79 // pred_region
          %s7420 = sand.u32 %s325, 1
          %s7421 = scalar_lea.sflag [#allocation3], %s7420
          %s7422 = sand.u32 %s325, 1
          %s7423 = smul.addr %s7422, 128
          %s7424 = scalar_lea.vmem [#allocation2], %s7423
          %7426 = dma.done %s7421, 2048
        $region88: #{tpu_custom_call.1} parent=79 // pred_fallthru
          _
      $region80: #{tpu_custom_call.1} parent=5 // pred_fallthru
        _
    $region6: #{tpu_custom_call.1} parent=1 // loop_footer
      %s27 = sadd.s32 1, %s23
    $region7: #{tpu_custom_call.1} parent=1 // loop_footer_branch
      %22 = sbr.rel target = $region3
    $region8: #{tpu_custom_call.1} parent=1 // loop_exit
      _
    %7427 = vsyncpa [#allocation3], 1
    %s7428 = scalar_lea.sflag [#allocation3], 1
    %7429 = vsyncpa %s7428, 1

</llo_original>
